<compile_context>
chip_gen: v6e
topology: v6e:2x2x1
jax: 0.10.0
libtpu: 0.0.40
codegen_flags: <defaults>
</compile_context>

<pallas_src>
import jax
import jax.numpy as jnp
from jax.experimental import pallas as pl
from jax.experimental.pallas import tpu as pltpu


# ---------------------------------------------------------------------------
# Pallas kernels
# ---------------------------------------------------------------------------
def _conv_kernel(x_ref, w_ref, b_ref, o_ref, acc_ref):
    """out[m] = (bias + sum_k x[m, k] @ w[k]).astype(bf16)

    grid = (M_tiles, K_tiles); K is the innermost reduction axis.  The f32
    accumulator lives in VMEM scratch; the bf16 output block is written once,
    at the last K step.
    """
    k = pl.program_id(1)

    @pl.when(k == 0)
    def _():
        acc_ref[...] = jnp.broadcast_to(b_ref[...], acc_ref.shape)

    acc_ref[...] += jnp.dot(x_ref[...], w_ref[...],
                            preferred_element_type=jnp.float32)

    @pl.when(k == pl.num_programs(1) - 1)
    def _():
        o_ref[...] = acc_ref[...].astype(o_ref.dtype)


def _conv_stats_kernel(x_ref, w_ref, b_ref, o_ref, st_ref, acc_ref):
    """Same as _conv_kernel plus per-(M-tile, channel) partial BatchNorm
    statistics (sum, sum-of-squares) written at the last K step.  Stats are
    per-tile outputs, so the "parallel" M axis stays correct on megacore."""
    k = pl.program_id(1)

    @pl.when(k == 0)
    def _():
        acc_ref[...] = jnp.broadcast_to(b_ref[...], acc_ref.shape)

    acc_ref[...] += jnp.dot(x_ref[...], w_ref[...],
                            preferred_element_type=jnp.float32)

    @pl.when(k == pl.num_programs(1) - 1)
    def _():
        y = acc_ref[...]                                   # [tm, Ct] f32
        o_ref[...] = y.astype(o_ref.dtype)
        st_ref[0:1, :] = jnp.sum(y, axis=0, keepdims=True)
        st_ref[1:2, :] = jnp.sum(y * y, axis=0, keepdims=True)


# ---------------------------------------------------------------------------
# pallas_call wrapper
# ---------------------------------------------------------------------------
def _pick_tile(dim, target, quantum):
    """Largest divisor of `dim` that is <= target and a multiple of `quantum`
    (TPU (8,128) block alignment); falls back to the full dim (always legal)."""
    if dim <= target:
        return dim
    t = (target // quantum) * quantum
    while t >= quantum:
        if dim % t == 0:
            return t
        t -= quantum
    return dim


def _conv_mm(patches, w_mat, bias, gamma=None, beta=None, phases=1, eps=1e-5):
    """patches [M, K] bf16  @  w_mat [K, Ct] bf16  + bias [Ct] f32 -> bf16 [M, Ct].

    If gamma/beta are given, also returns the BatchNorm (scale, shift) vectors
    computed from training-mode batch statistics of the conv output; the
    affine itself is applied lazily by the consumer (fused into its glue).
    `phases` > 1 means Ct = phases * C and statistics are pooled over the
    phase column groups (used by the packed transpose-conv output slab)."""
    M, K = patches.shape
    Ct = w_mat.shape[-1]
    tm = _pick_tile(M, 512, 8)
    tk = _pick_tile(K, 512, 128)
    mt, kt = M // tm, K // tk
    bias2 = bias.reshape(1, Ct).astype(jnp.float32)

    # VMEM budget from the actual block sizes (double-buffered ins/outs, f32
    # accumulator + epilogue temps); capped so it also fits v7x (64 MiB phys).
    est = (2 * tm * tk * 2 + 2 * tk * Ct * 2 + 2 * tm * Ct * 2
           + 4 * tm * Ct * 4 + 4 * 2 * Ct * 4)
    vmem_limit = int(min(56 * 2 ** 20, max(2 * est, 32 * 2 ** 20)))
    cparams = pltpu.CompilerParams(
        dimension_semantics=("parallel", "arbitrary"),
        vmem_limit_bytes=vmem_limit)

    in_specs = [
        pl.BlockSpec((tm, tk), lambda m, k: (m, k)),
        pl.BlockSpec((tk, Ct), lambda m, k: (k, 0)),
        pl.BlockSpec((1, Ct), lambda m, k: (0, 0)),
    ]
    out_spec = pl.BlockSpec((tm, Ct), lambda m, k: (m, 0))
    scratch = [pltpu.VMEM((tm, Ct), jnp.float32)]

    if gamma is None:
        out = pl.pallas_call(
            _conv_kernel,
            out_shape=jax.ShapeDtypeStruct((M, Ct), jnp.bfloat16),
            grid=(mt, kt),
            in_specs=in_specs,
            out_specs=out_spec,
            scratch_shapes=scratch,
            compiler_params=cparams,
        )(patches, w_mat, bias2)
        return out, None

    out, stats = pl.pallas_call(
        _conv_stats_kernel,
        out_shape=(jax.ShapeDtypeStruct((M, Ct), jnp.bfloat16),
                   jax.ShapeDtypeStruct((mt, 2, Ct), jnp.float32)),
        grid=(mt, kt),
        in_specs=in_specs,
        out_specs=(out_spec,
                   pl.BlockSpec((None, 2, Ct), lambda m, k: (m, 0, 0))),
        scratch_shapes=scratch,
        compiler_params=cparams,
    )(patches, w_mat, bias2)

    # Tiny reduction over M-tiles (and phases) in JAX glue -> (scale, shift).
    s = jnp.sum(stats[:, 0, :], axis=0)
    sq = jnp.sum(stats[:, 1, :], axis=0)
    if phases > 1:
        s = s.reshape(phases, -1).sum(axis=0)
        sq = sq.reshape(phases, -1).sum(axis=0)
    count = float(M * phases)
    mean = s / count
    var = sq / count - mean * mean            # biased variance (training mode)
    inv = jax.lax.rsqrt(jnp.maximum(var, 0.0) + eps)
    scale = gamma.astype(jnp.float32) * inv
    shift = beta.astype(jnp.float32) - mean * scale
    return out, (scale, shift)


# ---------------------------------------------------------------------------
# Conv layers (patch construction in JAX glue, matmul/stats in Pallas)
# ---------------------------------------------------------------------------
def _prep(x, pre, act):
    """Apply a deferred per-channel BatchNorm affine (if any) and the
    activation of the consuming layer, in f32.  XLA fuses this into the
    im2col gather that follows, so the affine costs no extra HBM pass."""
    y = x.astype(jnp.float32)
    if pre is not None:
        scale, shift = pre
        y = y * scale + shift
    if act == "leaky":
        y = jnp.where(y >= 0.0, y, 0.2 * y)    # nn.LeakyReLU(0.2)
    elif act == "relu":
        y = jnp.maximum(y, 0.0)                # nn.ReLU
    return y


def conv2d_down(x, pre, w, b, gamma=None, beta=None, act=None):
    """PyTorch Conv2d(k=4, s=2, p=1) on NHWC input.  `pre` is the producer's
    deferred BN affine; this layer's optional BN is returned as a deferred
    (scale, shift).  w: [C_out, C_in, 4, 4] (PyTorch layout)."""
    N, H, W, C = x.shape
    y = _prep(x, pre, act)
    OH, OW = H // 2, W // 2
    xp = jnp.pad(y, ((0, 0), (1, 1), (1, 1), (0, 0)))
    # TODO(synk): generate taps inside the kernel from a raw NHWC row block
    # instead of materializing the 16x-duplicated patch tensor in HBM.
    taps = [xp[:, kh:kh + 2 * OH:2, kw:kw + 2 * OW:2, :]
            for kh in range(4) for kw in range(4)]
    patches = jnp.concatenate(taps, axis=-1)                   # [N,OH,OW,16C]
    patches = patches.reshape(N * OH * OW, 16 * C).astype(jnp.bfloat16)
    C_out = w.shape[0]
    # [C_out, C_in, kh, kw] -> [(kh, kw, C_in), C_out] to match tap order.
    w_mat = jnp.transpose(w, (2, 3, 1, 0)).reshape(16 * C, C_out)
    out, out_pre = _conv_mm(patches, w_mat.astype(jnp.bfloat16), b,
                            gamma, beta, phases=1)
    return out.reshape(N, OH, OW, C_out), out_pre


def conv_transpose2d_up(x, pre, w, b, gamma=None, beta=None, act=None):
    """PyTorch ConvTranspose2d(k=4, s=2, p=1) via sub-pixel decomposition with
    a *shared* 3x3 tap neighborhood: all 4 output phases come out of one
    matmul per row block with a phase-packed weight [9*C_in, 4*C_out], giving
    a lane-dense [tm, 4*C_out] output slab and 9*C (not 16*C) patch columns.
    w: [C_in, C_out, 4, 4] (PyTorch layout)."""
    N, H, W, C = x.shape
    y = _prep(x, pre, act)
    C_out = w.shape[1]
    xp = jnp.pad(y, ((0, 0), (1, 1), (1, 1), (0, 0)))
    taps = [xp[:, a:a + H, bb:bb + W, :] for a in range(3) for bb in range(3)]
    patches = jnp.concatenate(taps, axis=-1)                   # [N,H,W,9C]
    patches = patches.reshape(N * H * W, 9 * C).astype(jnp.bfloat16)

    # out[2q+r, 2p+c] = sum_{dh,dw in {0,1}} xp[q+r+dh, p+c+dw] *
    #                   w[:, :, 3-r-2dh, 3-c-2dw].
    # With shared tap index (a, b) = (r+dh, c+dw), phase (r, c) uses kernel
    # element w[:, :, 3+r-2a, 3+c-2b] iff a-r in {0,1} and b-c in {0,1};
    # all other (tap, phase) pairs are zero.
    zeros = jnp.zeros((C, C_out), w.dtype)
    rows = []
    for a in range(3):
        for bb in range(3):
            cols = []
            for r in range(2):
                for c in range(2):
                    if 0 <= a - r <= 1 and 0 <= bb - c <= 1:
                        cols.append(w[:, :, 3 + r - 2 * a, 3 + c - 2 * bb])
                    else:
                        cols.append(zeros)
            rows.append(jnp.concatenate(cols, axis=1))          # [C, 4*C_out]
    w_pack = jnp.concatenate(rows, axis=0).astype(jnp.bfloat16)  # [9C, 4*C_out]
    b_pack = jnp.tile(b, 4)                                      # [4*C_out]

    out, out_pre = _conv_mm(patches, w_pack, b_pack, gamma, beta, phases=4)
    out = out.reshape(N, H, W, 2, 2, C_out)
    out = jnp.transpose(out, (0, 1, 3, 2, 4, 5)).reshape(N, 2 * H, 2 * W, C_out)
    return out, out_pre


# ---------------------------------------------------------------------------
# UnetSkipConnectionBlock / UnetGenerator forward
# ---------------------------------------------------------------------------
def _concat_skip(x, xpre, h, hpre):
    """torch.cat([x, h], dim=channel) with the deferred BN affines carried
    along (identity for halves with no pending normalization).
    TODO(synk): feed the two halves to the consumer conv as separate Pallas
    inputs (split K) instead of materializing the concatenation."""
    cat = jnp.concatenate([x.astype(jnp.bfloat16), h.astype(jnp.bfloat16)],
                          axis=-1)
    if xpre is None and hpre is None:
        return cat, None
    cx, ch = x.shape[-1], h.shape[-1]
    sx, tx = xpre if xpre is not None else (jnp.ones((cx,), jnp.float32),
                                            jnp.zeros((cx,), jnp.float32))
    sh, th = hpre if hpre is not None else (jnp.ones((ch,), jnp.float32),
                                            jnp.zeros((ch,), jnp.float32))
    return cat, (jnp.concatenate([sx, sh]), jnp.concatenate([tx, th]))


def unet_block_forward(x, xpre, p):
    # Block kind is inferred from the (static) dict keys so params stay a
    # pure array pytree and jax.jit works.
    if "sub" not in p:
        # innermost: [downrelu, downconv, uprelu, upconv, upnorm]; cat skip
        h, hpre = conv2d_down(x, xpre, p["dw"], p["db"], act="leaky")
        u, upre = conv_transpose2d_up(h, hpre, p["uw"], p["ub"],
                                      gamma=p["ug"], beta=p["ubeta"],
                                      act="relu")
        return _concat_skip(x, xpre, u, upre)
    if "ug" not in p:
        # outermost: [downconv, submodule, uprelu, upconv]; no skip, no norms
        h, hpre = conv2d_down(x, xpre, p["dw"], p["db"])
        f, fpre = unet_block_forward(h, hpre, p["sub"])
        return conv_transpose2d_up(f, fpre, p["uw"], p["ub"], act="relu")
    # middle: [downrelu, downconv, downnorm, submodule, uprelu, upconv, upnorm]
    h, hpre = conv2d_down(x, xpre, p["dw"], p["db"],
                          gamma=p["dg"], beta=p["dbeta"], act="leaky")
    f, fpre = unet_block_forward(h, hpre, p["sub"])
    u, upre = conv_transpose2d_up(f, fpre, p["uw"], p["ub"],
                                  gamma=p["ug"], beta=p["ubeta"], act="relu")
    return _concat_skip(x, xpre, u, upre)


@jax.jit
def unet_generator(x_nchw, params):
    x = jnp.transpose(x_nchw, (0, 2, 3, 1))            # NCHW -> NHWC
    y, ypre = unet_block_forward(x, None, params)
    y = y.astype(jnp.float32)
    if ypre is not None:                                # outermost has no BN
        y = y * ypre[0] + ypre[1]
    return jnp.transpose(y, (0, 3, 1, 2))               # NHWC -> NCHW


# ---------------------------------------------------------------------------
# Deterministic parameter construction (mirrors UnetGenerator.__init__,
# use_bias=True as forced in the spec; arrays only -> jit-compatible pytree)
# ---------------------------------------------------------------------------
def build_unet_params(key, input_nc, output_nc, num_downs, ngf):
    keys = iter(jax.random.split(key, 512))

    def conv_p(cout, cin):
        w = 0.05 * jax.random.normal(next(keys), (cout, cin, 4, 4), jnp.float32)
        b = 0.05 * jax.random.normal(next(keys), (cout,), jnp.float32)
        return w, b

    def convT_p(cin, cout):
        w = 0.05 * jax.random.normal(next(keys), (cin, cout, 4, 4), jnp.float32)
        b = 0.05 * jax.random.normal(next(keys), (cout,), jnp.float32)
        return w, b

    def norm_p(c):
        g = 1.0 + 0.05 * jax.random.normal(next(keys), (c,), jnp.float32)
        bt = 0.05 * jax.random.normal(next(keys), (c,), jnp.float32)
        return g, bt

    def middle_block(outer_nc, inner_nc, sub):
        dw, db = conv_p(inner_nc, outer_nc)           # Conv2d(outer->inner)
        dg, dbeta = norm_p(inner_nc)
        uw, ub = convT_p(inner_nc * 2, outer_nc)      # ConvT(inner*2->outer)
        ug, ubeta = norm_p(outer_nc)
        return dict(dw=dw, db=db, dg=dg, dbeta=dbeta,
                    uw=uw, ub=ub, ug=ug, ubeta=ubeta, sub=sub)

    # innermost: (ngf*8, ngf*8)
    dw, db = conv_p(ngf * 8, ngf * 8)
    uw, ub = convT_p(ngf * 8, ngf * 8)
    ug, ubeta = norm_p(ngf * 8)
    block = dict(dw=dw, db=db, uw=uw, ub=ub, ug=ug, ubeta=ubeta)

    for _ in range(num_downs - 5):                    # extra ngf*8 blocks
        block = middle_block(ngf * 8, ngf * 8, block)
    for outer, inner in [(ngf * 4, ngf * 8), (ngf * 2, ngf * 4), (ngf, ngf * 2)]:
        block = middle_block(outer, inner, block)

    # outermost: downconv Conv2d(input_nc -> ngf), upconv ConvT(ngf*2 -> output_nc)
    dw, db = conv_p(ngf, input_nc)
    uw, ub = convT_p(ngf * 2, output_nc)
    return dict(dw=dw, db=db, uw=uw, ub=ub, sub=block)


# ---------------------------------------------------------------------------
if __name__ == "__main__":
    key = jax.random.PRNGKey(0)
    kp, kx = jax.random.split(key)

    # num_downs=5 -> the U-Net always has 5 downsamplings, so spatial >= 32.
    N, input_nc, output_nc, num_downs, ngf, S = 2, 4, 3, 5, 8, 32

    params = build_unet_params(kp, input_nc, output_nc, num_downs, ngf)
    x = jax.random.normal(kx, (N, input_nc, S, S), jnp.float32)

    out = unet_generator(x, params)
    out = jax.block_until_ready(out)

    assert out.shape == (N, output_nc, S, S), out.shape
    assert bool(jnp.all(jnp.isfinite(out)))
    print("KERNEL_OK")
</pallas_src>

<mosaic_0001>
module attributes {stable_mosaic.version = 11 : i64} {
  func.func @_conv_kernel(%arg0: i32, %arg1: i32, %arg2: memref<512x64xbf16, #tpu.memory_space<vmem>>, %arg3: memref<64x8xbf16, #tpu.memory_space<vmem>>, %arg4: memref<1x8xf32, #tpu.memory_space<vmem>>, %arg5: memref<512x8xbf16, #tpu.memory_space<vmem>>, %arg6: memref<512x8xf32, #tpu.memory_space<vmem>>) attributes {dimension_semantics = [#tpu.dimension_semantics<parallel>, #tpu.dimension_semantics<arbitrary>], iteration_bounds = array<i64: 1, 1>, scalar_prefetch = 0 : i64, scratch_operands = 1 : i64, tpu.core_type = #tpu.core_type<tc>, window_params = [{transform_indices = @transform_0, window_bounds = array<i64: 512, 64>}, {transform_indices = @transform_1, window_bounds = array<i64: 64, 8>}, {pipeline_mode = #tpu.pipeline_mode<synchronous>, transform_indices = @transform_2, window_bounds = array<i64: 1, 8>}, {transform_indices = @transform_3, window_bounds = array<i64: 512, 8>}]} {
    %c0_i32 = arith.constant 0 : i32
    %0 = arith.cmpi eq, %arg1, %c0_i32 : i32
    %1 = arith.extui %0 : i1 to i32
    %c0_i32_0 = arith.constant 0 : i32
    %2 = arith.cmpi ne, %1, %c0_i32_0 : i32
    scf.if %2 {
      %c0_10 = arith.constant 0 : index
      %c0_11 = arith.constant 0 : index
      %12 = vector.load %arg4[%c0_10, %c0_11] : memref<1x8xf32, #tpu.memory_space<vmem>>, vector<1x8xf32>
      %13 = vector.shape_cast %12 : vector<1x8xf32> to vector<1x8xf32>
      %14 = vector.broadcast %13 : vector<1x8xf32> to vector<512x8xf32>
      %c0_12 = arith.constant 0 : index
      %c0_13 = arith.constant 0 : index
      %15 = vector.load %arg6[%c0_12, %c0_13] : memref<512x8xf32, #tpu.memory_space<vmem>>, vector<512x8xf32>
      tpu.vector_store %arg6[%c0_12, %c0_13], %14 {strides = array<i32>} : memref<512x8xf32, #tpu.memory_space<vmem>>, vector<512x8xf32>,
    } else {
    }
    %c0 = arith.constant 0 : index
    %c0_1 = arith.constant 0 : index
    %3 = vector.load %arg6[%c0, %c0_1] : memref<512x8xf32, #tpu.memory_space<vmem>>, vector<512x8xf32>
    %c0_2 = arith.constant 0 : index
    %c0_3 = arith.constant 0 : index
    %4 = vector.load %arg2[%c0_2, %c0_3] : memref<512x64xbf16, #tpu.memory_space<vmem>>, vector<512x64xbf16>
    %c0_4 = arith.constant 0 : index
    %c0_5 = arith.constant 0 : index
    %5 = vector.load %arg3[%c0_4, %c0_5] : memref<64x8xbf16, #tpu.memory_space<vmem>>, vector<64x8xbf16>
    %cst = arith.constant dense<0.000000e+00> : vector<512x8xf32>
    %6 = tpu.matmul %4, %5, %cst {dimension_numbers = #tpu.dot_dimension_numbers<[1], [0], [0], [1], [0, 0, 1, 1], [], []>} : vector<512x64xbf16>, vector<64x8xbf16>, vector<512x8xf32> -> vector<512x8xf32>
    %7 = arith.addf %3, %6 : vector<512x8xf32>
    %c0_6 = arith.constant 0 : index
    %c0_7 = arith.constant 0 : index
    %8 = vector.load %arg6[%c0_6, %c0_7] : memref<512x8xf32, #tpu.memory_space<vmem>>, vector<512x8xf32>
    tpu.vector_store %arg6[%c0_6, %c0_7], %7 {strides = array<i32>} : memref<512x8xf32, #tpu.memory_space<vmem>>, vector<512x8xf32>,
    %c0_i32_8 = arith.constant 0 : i32
    %9 = arith.cmpi eq, %arg1, %c0_i32_8 : i32
    %10 = arith.extui %9 : i1 to i32
    %c0_i32_9 = arith.constant 0 : i32
    %11 = arith.cmpi ne, %10, %c0_i32_9 : i32
    scf.if %11 {
      %c0_10 = arith.constant 0 : index
      %c0_11 = arith.constant 0 : index
      %12 = vector.load %arg6[%c0_10, %c0_11] : memref<512x8xf32, #tpu.memory_space<vmem>>, vector<512x8xf32>
      %13 = arith.truncf %12 : vector<512x8xf32> to vector<512x8xbf16>
      %c0_12 = arith.constant 0 : index
      %c0_13 = arith.constant 0 : index
      %14 = vector.load %arg5[%c0_12, %c0_13] : memref<512x8xbf16, #tpu.memory_space<vmem>>, vector<512x8xbf16>
      tpu.vector_store %arg5[%c0_12, %c0_13], %13 {strides = array<i32>} : memref<512x8xbf16, #tpu.memory_space<vmem>>, vector<512x8xbf16>,
    } else {
    }
    return
  }
  func.func @transform_0(%arg0: i32, %arg1: i32) -> (i32, i32) {
    %c0_i32 = arith.constant 0 : i32
    return %arg0, %arg1 : i32, i32
  }
  func.func @transform_1(%arg0: i32, %arg1: i32) -> (i32, i32) {
    %c0_i32 = arith.constant 0 : i32
    %c0_i32_0 = arith.constant 0 : i32
    return %arg1, %c0_i32 : i32, i32
  }
  func.func @transform_2(%arg0: i32, %arg1: i32) -> (i32, i32) {
    %c0_i32 = arith.constant 0 : i32
    %c0_i32_0 = arith.constant 0 : i32
    %c0_i32_1 = arith.constant 0 : i32
    return %c0_i32, %c0_i32_0 : i32, i32
  }
  func.func @transform_3(%arg0: i32, %arg1: i32) -> (i32, i32) {
    %c0_i32 = arith.constant 0 : i32
    %c0_i32_0 = arith.constant 0 : i32
    return %arg0, %c0_i32 : i32, i32
  }
}

module attributes {stable_mosaic.version = 11 : i64} {
  func.func @_conv_stats_kernel(%arg0: i32, %arg1: i32, %arg2: memref<128x128xbf16, #tpu.memory_space<vmem>>, %arg3: memref<128x16xbf16, #tpu.memory_space<vmem>>, %arg4: memref<1x16xf32, #tpu.memory_space<vmem>>, %arg5: memref<128x16xbf16, #tpu.memory_space<vmem>>, %arg6: memref<1x2x16xf32, #tpu.memory_space<vmem>>, %arg7: memref<128x16xf32, #tpu.memory_space<vmem>>) attributes {dimension_semantics = [#tpu.dimension_semantics<parallel>, #tpu.dimension_semantics<arbitrary>], iteration_bounds = array<i64: 1, 1>, scalar_prefetch = 0 : i64, scratch_operands = 1 : i64, tpu.core_type = #tpu.core_type<tc>, window_params = [{transform_indices = @transform_0, window_bounds = array<i64: 128, 128>}, {transform_indices = @transform_1, window_bounds = array<i64: 128, 16>}, {pipeline_mode = #tpu.pipeline_mode<synchronous>, transform_indices = @transform_2, window_bounds = array<i64: 1, 16>}, {transform_indices = @transform_3, window_bounds = array<i64: 128, 16>}, {transform_indices = @transform_4, window_bounds = array<i64: 1, 2, 16>}]} {
    %c0_i32 = arith.constant 0 : i32
    %0 = arith.cmpi eq, %arg1, %c0_i32 : i32
    %1 = arith.extui %0 : i1 to i32
    %c0_i32_0 = arith.constant 0 : i32
    %2 = arith.cmpi ne, %1, %c0_i32_0 : i32
    scf.if %2 {
      %c0_10 = arith.constant 0 : index
      %c0_11 = arith.constant 0 : index
      %12 = vector.load %arg4[%c0_10, %c0_11] : memref<1x16xf32, #tpu.memory_space<vmem>>, vector<1x16xf32>
      %13 = vector.shape_cast %12 : vector<1x16xf32> to vector<1x16xf32>
      %14 = vector.broadcast %13 : vector<1x16xf32> to vector<128x16xf32>
      %c0_12 = arith.constant 0 : index
      %c0_13 = arith.constant 0 : index
      %15 = vector.load %arg7[%c0_12, %c0_13] : memref<128x16xf32, #tpu.memory_space<vmem>>, vector<128x16xf32>
      tpu.vector_store %arg7[%c0_12, %c0_13], %14 {strides = array<i32>} : memref<128x16xf32, #tpu.memory_space<vmem>>, vector<128x16xf32>,
    } else {
    }
    %c0 = arith.constant 0 : index
    %c0_1 = arith.constant 0 : index
    %3 = vector.load %arg7[%c0, %c0_1] : memref<128x16xf32, #tpu.memory_space<vmem>>, vector<128x16xf32>
    %c0_2 = arith.constant 0 : index
    %c0_3 = arith.constant 0 : index
    %4 = vector.load %arg2[%c0_2, %c0_3] : memref<128x128xbf16, #tpu.memory_space<vmem>>, vector<128x128xbf16>
    %c0_4 = arith.constant 0 : index
    %c0_5 = arith.constant 0 : index
    %5 = vector.load %arg3[%c0_4, %c0_5] : memref<128x16xbf16, #tpu.memory_space<vmem>>, vector<128x16xbf16>
    %cst = arith.constant dense<0.000000e+00> : vector<128x16xf32>
    %6 = tpu.matmul %4, %5, %cst {dimension_numbers = #tpu.dot_dimension_numbers<[1], [0], [0], [1], [0, 0, 1, 1], [], []>} : vector<128x128xbf16>, vector<128x16xbf16>, vector<128x16xf32> -> vector<128x16xf32>
    %7 = arith.addf %3, %6 : vector<128x16xf32>
    %c0_6 = arith.constant 0 : index
    %c0_7 = arith.constant 0 : index
    %8 = vector.load %arg7[%c0_6, %c0_7] : memref<128x16xf32, #tpu.memory_space<vmem>>, vector<128x16xf32>
    tpu.vector_store %arg7[%c0_6, %c0_7], %7 {strides = array<i32>} : memref<128x16xf32, #tpu.memory_space<vmem>>, vector<128x16xf32>,
    %c0_i32_8 = arith.constant 0 : i32
    %9 = arith.cmpi eq, %arg1, %c0_i32_8 : i32
    %10 = arith.extui %9 : i1 to i32
    %c0_i32_9 = arith.constant 0 : i32
    %11 = arith.cmpi ne, %10, %c0_i32_9 : i32
    scf.if %11 {
      %c0_10 = arith.constant 0 : index
      %c0_11 = arith.constant 0 : index
      %12 = vector.load %arg7[%c0_10, %c0_11] : memref<128x16xf32, #tpu.memory_space<vmem>>, vector<128x16xf32>
      %13 = arith.truncf %12 : vector<128x16xf32> to vector<128x16xbf16>
      %c0_12 = arith.constant 0 : index
      %c0_13 = arith.constant 0 : index
      %14 = vector.load %arg5[%c0_12, %c0_13] : memref<128x16xbf16, #tpu.memory_space<vmem>>, vector<128x16xbf16>
      tpu.vector_store %arg5[%c0_12, %c0_13], %13 {strides = array<i32>} : memref<128x16xbf16, #tpu.memory_space<vmem>>, vector<128x16xbf16>,
      %cst_14 = arith.constant dense<0.000000e+00> : vector<16xf32>
      %15 = vector.multi_reduction <add>, %12, %cst_14 [0] : vector<128x16xf32> to vector<16xf32>
      %16 = vector.shape_cast %15 : vector<16xf32> to vector<1x16xf32>
      %c0_15 = arith.constant 0 : index
      %c0_16 = arith.constant 0 : index
      %c0_17 = arith.constant 0 : index
      %17 = vector.load %arg6[%c0_15, %c0_16, %c0_17] : memref<1x2x16xf32, #tpu.memory_space<vmem>>, vector<1x1x16xf32>
      %18 = vector.shape_cast %17 : vector<1x1x16xf32> to vector<1x16xf32>
      %19 = vector.shape_cast %16 : vector<1x16xf32> to vector<1x1x16xf32>
      tpu.vector_store %arg6[%c0_15, %c0_16, %c0_17], %19 {strides = array<i32>} : memref<1x2x16xf32, #tpu.memory_space<vmem>>, vector<1x1x16xf32>,
      %20 = arith.mulf %12, %12 : vector<128x16xf32>
      %cst_18 = arith.constant dense<0.000000e+00> : vector<16xf32>
      %21 = vector.multi_reduction <add>, %20, %cst_18 [0] : vector<128x16xf32> to vector<16xf32>
      %22 = vector.shape_cast %21 : vector<16xf32> to vector<1x16xf32>
      %c0_19 = arith.constant 0 : index
      %c1 = arith.constant 1 : index
      %c0_20 = arith.constant 0 : index
      %23 = vector.load %arg6[%c0_19, %c1, %c0_20] : memref<1x2x16xf32, #tpu.memory_space<vmem>>, vector<1x1x16xf32>
      %24 = vector.shape_cast %23 : vector<1x1x16xf32> to vector<1x16xf32>
      %25 = vector.shape_cast %22 : vector<1x16xf32> to vector<1x1x16xf32>
      tpu.vector_store %arg6[%c0_19, %c1, %c0_20], %25 {strides = array<i32>} : memref<1x2x16xf32, #tpu.memory_space<vmem>>, vector<1x1x16xf32>,
    } else {
    }
    return
  }
  func.func @transform_0(%arg0: i32, %arg1: i32) -> (i32, i32) {
    %c0_i32 = arith.constant 0 : i32
    return %arg0, %arg1 : i32, i32
  }
  func.func @transform_1(%arg0: i32, %arg1: i32) -> (i32, i32) {
    %c0_i32 = arith.constant 0 : i32
    %c0_i32_0 = arith.constant 0 : i32
    return %arg1, %c0_i32 : i32, i32
  }
  func.func @transform_2(%arg0: i32, %arg1: i32) -> (i32, i32) {
    %c0_i32 = arith.constant 0 : i32
    %c0_i32_0 = arith.constant 0 : i32
    %c0_i32_1 = arith.constant 0 : i32
    return %c0_i32, %c0_i32_0 : i32, i32
  }
  func.func @transform_3(%arg0: i32, %arg1: i32) -> (i32, i32) {
    %c0_i32 = arith.constant 0 : i32
    %c0_i32_0 = arith.constant 0 : i32
    return %arg0, %c0_i32 : i32, i32
  }
  func.func @transform_4(%arg0: i32, %arg1: i32) -> (i32, i32, i32) {
    %c0_i32 = arith.constant 0 : i32
    %c0_i32_0 = arith.constant 0 : i32
    %c0_i32_1 = arith.constant 0 : i32
    return %arg0, %c0_i32, %c0_i32_0 : i32, i32, i32
  }
}

module attributes {stable_mosaic.version = 11 : i64} {
  func.func @_conv_stats_kernel(%arg0: i32, %arg1: i32, %arg2: memref<32x256xbf16, #tpu.memory_space<vmem>>, %arg3: memref<256x32xbf16, #tpu.memory_space<vmem>>, %arg4: memref<1x32xf32, #tpu.memory_space<vmem>>, %arg5: memref<32x32xbf16, #tpu.memory_space<vmem>>, %arg6: memref<1x2x32xf32, #tpu.memory_space<vmem>>, %arg7: memref<32x32xf32, #tpu.memory_space<vmem>>) attributes {dimension_semantics = [#tpu.dimension_semantics<parallel>, #tpu.dimension_semantics<arbitrary>], iteration_bounds = array<i64: 1, 1>, scalar_prefetch = 0 : i64, scratch_operands = 1 : i64, tpu.core_type = #tpu.core_type<tc>, window_params = [{transform_indices = @transform_0, window_bounds = array<i64: 32, 256>}, {transform_indices = @transform_1, window_bounds = array<i64: 256, 32>}, {pipeline_mode = #tpu.pipeline_mode<synchronous>, transform_indices = @transform_2, window_bounds = array<i64: 1, 32>}, {transform_indices = @transform_3, window_bounds = array<i64: 32, 32>}, {transform_indices = @transform_4, window_bounds = array<i64: 1, 2, 32>}]} {
    %c0_i32 = arith.constant 0 : i32
    %0 = arith.cmpi eq, %arg1, %c0_i32 : i32
    %1 = arith.extui %0 : i1 to i32
    %c0_i32_0 = arith.constant 0 : i32
    %2 = arith.cmpi ne, %1, %c0_i32_0 : i32
    scf.if %2 {
      %c0_10 = arith.constant 0 : index
      %c0_11 = arith.constant 0 : index
      %12 = vector.load %arg4[%c0_10, %c0_11] : memref<1x32xf32, #tpu.memory_space<vmem>>, vector<1x32xf32>
      %13 = vector.shape_cast %12 : vector<1x32xf32> to vector<1x32xf32>
      %14 = vector.broadcast %13 : vector<1x32xf32> to vector<32x32xf32>
      %c0_12 = arith.constant 0 : index
      %c0_13 = arith.constant 0 : index
      %15 = vector.load %arg7[%c0_12, %c0_13] : memref<32x32xf32, #tpu.memory_space<vmem>>, vector<32x32xf32>
      tpu.vector_store %arg7[%c0_12, %c0_13], %14 {strides = array<i32>} : memref<32x32xf32, #tpu.memory_space<vmem>>, vector<32x32xf32>,
    } else {
    }
    %c0 = arith.constant 0 : index
    %c0_1 = arith.constant 0 : index
    %3 = vector.load %arg7[%c0, %c0_1] : memref<32x32xf32, #tpu.memory_space<vmem>>, vector<32x32xf32>
    %c0_2 = arith.constant 0 : index
    %c0_3 = arith.constant 0 : index
    %4 = vector.load %arg2[%c0_2, %c0_3] : memref<32x256xbf16, #tpu.memory_space<vmem>>, vector<32x256xbf16>
    %c0_4 = arith.constant 0 : index
    %c0_5 = arith.constant 0 : index
    %5 = vector.load %arg3[%c0_4, %c0_5] : memref<256x32xbf16, #tpu.memory_space<vmem>>, vector<256x32xbf16>
    %cst = arith.constant dense<0.000000e+00> : vector<32x32xf32>
    %6 = tpu.matmul %4, %5, %cst {dimension_numbers = #tpu.dot_dimension_numbers<[1], [0], [0], [1], [0, 0, 1, 1], [], []>} : vector<32x256xbf16>, vector<256x32xbf16>, vector<32x32xf32> -> vector<32x32xf32>
    %7 = arith.addf %3, %6 : vector<32x32xf32>
    %c0_6 = arith.constant 0 : index
    %c0_7 = arith.constant 0 : index
    %8 = vector.load %arg7[%c0_6, %c0_7] : memref<32x32xf32, #tpu.memory_space<vmem>>, vector<32x32xf32>
    tpu.vector_store %arg7[%c0_6, %c0_7], %7 {strides = array<i32>} : memref<32x32xf32, #tpu.memory_space<vmem>>, vector<32x32xf32>,
    %c0_i32_8 = arith.constant 0 : i32
    %9 = arith.cmpi eq, %arg1, %c0_i32_8 : i32
    %10 = arith.extui %9 : i1 to i32
    %c0_i32_9 = arith.constant 0 : i32
    %11 = arith.cmpi ne, %10, %c0_i32_9 : i32
    scf.if %11 {
      %c0_10 = arith.constant 0 : index
      %c0_11 = arith.constant 0 : index
      %12 = vector.load %arg7[%c0_10, %c0_11] : memref<32x32xf32, #tpu.memory_space<vmem>>, vector<32x32xf32>
      %13 = arith.truncf %12 : vector<32x32xf32> to vector<32x32xbf16>
      %c0_12 = arith.constant 0 : index
      %c0_13 = arith.constant 0 : index
      %14 = vector.load %arg5[%c0_12, %c0_13] : memref<32x32xbf16, #tpu.memory_space<vmem>>, vector<32x32xbf16>
      tpu.vector_store %arg5[%c0_12, %c0_13], %13 {strides = array<i32>} : memref<32x32xbf16, #tpu.memory_space<vmem>>, vector<32x32xbf16>,
      %cst_14 = arith.constant dense<0.000000e+00> : vector<32xf32>
      %15 = vector.multi_reduction <add>, %12, %cst_14 [0] : vector<32x32xf32> to vector<32xf32>
      %16 = vector.shape_cast %15 : vector<32xf32> to vector<1x32xf32>
      %c0_15 = arith.constant 0 : index
      %c0_16 = arith.constant 0 : index
      %c0_17 = arith.constant 0 : index
      %17 = vector.load %arg6[%c0_15, %c0_16, %c0_17] : memref<1x2x32xf32, #tpu.memory_space<vmem>>, vector<1x1x32xf32>
      %18 = vector.shape_cast %17 : vector<1x1x32xf32> to vector<1x32xf32>
      %19 = vector.shape_cast %16 : vector<1x32xf32> to vector<1x1x32xf32>
      tpu.vector_store %arg6[%c0_15, %c0_16, %c0_17], %19 {strides = array<i32>} : memref<1x2x32xf32, #tpu.memory_space<vmem>>, vector<1x1x32xf32>,
      %20 = arith.mulf %12, %12 : vector<32x32xf32>
      %cst_18 = arith.constant dense<0.000000e+00> : vector<32xf32>
      %21 = vector.multi_reduction <add>, %20, %cst_18 [0] : vector<32x32xf32> to vector<32xf32>
      %22 = vector.shape_cast %21 : vector<32xf32> to vector<1x32xf32>
      %c0_19 = arith.constant 0 : index
      %c1 = arith.constant 1 : index
      %c0_20 = arith.constant 0 : index
      %23 = vector.load %arg6[%c0_19, %c1, %c0_20] : memref<1x2x32xf32, #tpu.memory_space<vmem>>, vector<1x1x32xf32>
      %24 = vector.shape_cast %23 : vector<1x1x32xf32> to vector<1x32xf32>
      %25 = vector.shape_cast %22 : vector<1x32xf32> to vector<1x1x32xf32>
      tpu.vector_store %arg6[%c0_19, %c1, %c0_20], %25 {strides = array<i32>} : memref<1x2x32xf32, #tpu.memory_space<vmem>>, vector<1x1x32xf32>,
    } else {
    }
    return
  }
  func.func @transform_0(%arg0: i32, %arg1: i32) -> (i32, i32) {
    %c0_i32 = arith.constant 0 : i32
    return %arg0, %arg1 : i32, i32
  }
  func.func @transform_1(%arg0: i32, %arg1: i32) -> (i32, i32) {
    %c0_i32 = arith.constant 0 : i32
    %c0_i32_0 = arith.constant 0 : i32
    return %arg1, %c0_i32 : i32, i32
  }
  func.func @transform_2(%arg0: i32, %arg1: i32) -> (i32, i32) {
    %c0_i32 = arith.constant 0 : i32
    %c0_i32_0 = arith.constant 0 : i32
    %c0_i32_1 = arith.constant 0 : i32
    return %c0_i32, %c0_i32_0 : i32, i32
  }
  func.func @transform_3(%arg0: i32, %arg1: i32) -> (i32, i32) {
    %c0_i32 = arith.constant 0 : i32
    %c0_i32_0 = arith.constant 0 : i32
    return %arg0, %c0_i32 : i32, i32
  }
  func.func @transform_4(%arg0: i32, %arg1: i32) -> (i32, i32, i32) {
    %c0_i32 = arith.constant 0 : i32
    %c0_i32_0 = arith.constant 0 : i32
    %c0_i32_1 = arith.constant 0 : i32
    return %arg0, %c0_i32, %c0_i32_0 : i32, i32, i32
  }
}

module attributes {stable_mosaic.version = 11 : i64} {
  func.func @_conv_stats_kernel(%arg0: i32, %arg1: i32, %arg2: memref<8x512xbf16, #tpu.memory_space<vmem>>, %arg3: memref<512x64xbf16, #tpu.memory_space<vmem>>, %arg4: memref<1x64xf32, #tpu.memory_space<vmem>>, %arg5: memref<8x64xbf16, #tpu.memory_space<vmem>>, %arg6: memref<1x2x64xf32, #tpu.memory_space<vmem>>, %arg7: memref<8x64xf32, #tpu.memory_space<vmem>>) attributes {dimension_semantics = [#tpu.dimension_semantics<parallel>, #tpu.dimension_semantics<arbitrary>], iteration_bounds = array<i64: 1, 1>, scalar_prefetch = 0 : i64, scratch_operands = 1 : i64, tpu.core_type = #tpu.core_type<tc>, window_params = [{transform_indices = @transform_0, window_bounds = array<i64: 8, 512>}, {transform_indices = @transform_1, window_bounds = array<i64: 512, 64>}, {pipeline_mode = #tpu.pipeline_mode<synchronous>, transform_indices = @transform_2, window_bounds = array<i64: 1, 64>}, {transform_indices = @transform_3, window_bounds = array<i64: 8, 64>}, {transform_indices = @transform_4, window_bounds = array<i64: 1, 2, 64>}]} {
    %c0_i32 = arith.constant 0 : i32
    %0 = arith.cmpi eq, %arg1, %c0_i32 : i32
    %1 = arith.extui %0 : i1 to i32
    %c0_i32_0 = arith.constant 0 : i32
    %2 = arith.cmpi ne, %1, %c0_i32_0 : i32
    scf.if %2 {
      %c0_10 = arith.constant 0 : index
      %c0_11 = arith.constant 0 : index
      %12 = vector.load %arg4[%c0_10, %c0_11] : memref<1x64xf32, #tpu.memory_space<vmem>>, vector<1x64xf32>
      %13 = vector.shape_cast %12 : vector<1x64xf32> to vector<1x64xf32>
      %14 = vector.broadcast %13 : vector<1x64xf32> to vector<8x64xf32>
      %c0_12 = arith.constant 0 : index
      %c0_13 = arith.constant 0 : index
      %15 = vector.load %arg7[%c0_12, %c0_13] : memref<8x64xf32, #tpu.memory_space<vmem>>, vector<8x64xf32>
      tpu.vector_store %arg7[%c0_12, %c0_13], %14 {strides = array<i32>} : memref<8x64xf32, #tpu.memory_space<vmem>>, vector<8x64xf32>,
    } else {
    }
    %c0 = arith.constant 0 : index
    %c0_1 = arith.constant 0 : index
    %3 = vector.load %arg7[%c0, %c0_1] : memref<8x64xf32, #tpu.memory_space<vmem>>, vector<8x64xf32>
    %c0_2 = arith.constant 0 : index
    %c0_3 = arith.constant 0 : index
    %4 = vector.load %arg2[%c0_2, %c0_3] : memref<8x512xbf16, #tpu.memory_space<vmem>>, vector<8x512xbf16>
    %c0_4 = arith.constant 0 : index
    %c0_5 = arith.constant 0 : index
    %5 = vector.load %arg3[%c0_4, %c0_5] : memref<512x64xbf16, #tpu.memory_space<vmem>>, vector<512x64xbf16>
    %cst = arith.constant dense<0.000000e+00> : vector<8x64xf32>
    %6 = tpu.matmul %4, %5, %cst {dimension_numbers = #tpu.dot_dimension_numbers<[1], [0], [0], [1], [0, 0, 1, 1], [], []>} : vector<8x512xbf16>, vector<512x64xbf16>, vector<8x64xf32> -> vector<8x64xf32>
    %7 = arith.addf %3, %6 : vector<8x64xf32>
    %c0_6 = arith.constant 0 : index
    %c0_7 = arith.constant 0 : index
    %8 = vector.load %arg7[%c0_6, %c0_7] : memref<8x64xf32, #tpu.memory_space<vmem>>, vector<8x64xf32>
    tpu.vector_store %arg7[%c0_6, %c0_7], %7 {strides = array<i32>} : memref<8x64xf32, #tpu.memory_space<vmem>>, vector<8x64xf32>,
    %c0_i32_8 = arith.constant 0 : i32
    %9 = arith.cmpi eq, %arg1, %c0_i32_8 : i32
    %10 = arith.extui %9 : i1 to i32
    %c0_i32_9 = arith.constant 0 : i32
    %11 = arith.cmpi ne, %10, %c0_i32_9 : i32
    scf.if %11 {
      %c0_10 = arith.constant 0 : index
      %c0_11 = arith.constant 0 : index
      %12 = vector.load %arg7[%c0_10, %c0_11] : memref<8x64xf32, #tpu.memory_space<vmem>>, vector<8x64xf32>
      %13 = arith.truncf %12 : vector<8x64xf32> to vector<8x64xbf16>
      %c0_12 = arith.constant 0 : index
      %c0_13 = arith.constant 0 : index
      %14 = vector.load %arg5[%c0_12, %c0_13] : memref<8x64xbf16, #tpu.memory_space<vmem>>, vector<8x64xbf16>
      tpu.vector_store %arg5[%c0_12, %c0_13], %13 {strides = array<i32>} : memref<8x64xbf16, #tpu.memory_space<vmem>>, vector<8x64xbf16>,
      %cst_14 = arith.constant dense<0.000000e+00> : vector<64xf32>
      %15 = vector.multi_reduction <add>, %12, %cst_14 [0] : vector<8x64xf32> to vector<64xf32>
      %16 = vector.shape_cast %15 : vector<64xf32> to vector<1x64xf32>
      %c0_15 = arith.constant 0 : index
      %c0_16 = arith.constant 0 : index
      %c0_17 = arith.constant 0 : index
      %17 = vector.load %arg6[%c0_15, %c0_16, %c0_17] : memref<1x2x64xf32, #tpu.memory_space<vmem>>, vector<1x1x64xf32>
      %18 = vector.shape_cast %17 : vector<1x1x64xf32> to vector<1x64xf32>
      %19 = vector.shape_cast %16 : vector<1x64xf32> to vector<1x1x64xf32>
      tpu.vector_store %arg6[%c0_15, %c0_16, %c0_17], %19 {strides = array<i32>} : memref<1x2x64xf32, #tpu.memory_space<vmem>>, vector<1x1x64xf32>,
      %20 = arith.mulf %12, %12 : vector<8x64xf32>
      %cst_18 = arith.constant dense<0.000000e+00> : vector<64xf32>
      %21 = vector.multi_reduction <add>, %20, %cst_18 [0] : vector<8x64xf32> to vector<64xf32>
      %22 = vector.shape_cast %21 : vector<64xf32> to vector<1x64xf32>
      %c0_19 = arith.constant 0 : index
      %c1 = arith.constant 1 : index
      %c0_20 = arith.constant 0 : index
      %23 = vector.load %arg6[%c0_19, %c1, %c0_20] : memref<1x2x64xf32, #tpu.memory_space<vmem>>, vector<1x1x64xf32>
      %24 = vector.shape_cast %23 : vector<1x1x64xf32> to vector<1x64xf32>
      %25 = vector.shape_cast %22 : vector<1x64xf32> to vector<1x1x64xf32>
      tpu.vector_store %arg6[%c0_19, %c1, %c0_20], %25 {strides = array<i32>} : memref<1x2x64xf32, #tpu.memory_space<vmem>>, vector<1x1x64xf32>,
    } else {
    }
    return
  }
  func.func @transform_0(%arg0: i32, %arg1: i32) -> (i32, i32) {
    %c0_i32 = arith.constant 0 : i32
    return %arg0, %arg1 : i32, i32
  }
  func.func @transform_1(%arg0: i32, %arg1: i32) -> (i32, i32) {
    %c0_i32 = arith.constant 0 : i32
    %c0_i32_0 = arith.constant 0 : i32
    return %arg1, %c0_i32 : i32, i32
  }
  func.func @transform_2(%arg0: i32, %arg1: i32) -> (i32, i32) {
    %c0_i32 = arith.constant 0 : i32
    %c0_i32_0 = arith.constant 0 : i32
    %c0_i32_1 = arith.constant 0 : i32
    return %c0_i32, %c0_i32_0 : i32, i32
  }
  func.func @transform_3(%arg0: i32, %arg1: i32) -> (i32, i32) {
    %c0_i32 = arith.constant 0 : i32
    %c0_i32_0 = arith.constant 0 : i32
    return %arg0, %c0_i32 : i32, i32
  }
  func.func @transform_4(%arg0: i32, %arg1: i32) -> (i32, i32, i32) {
    %c0_i32 = arith.constant 0 : i32
    %c0_i32_0 = arith.constant 0 : i32
    %c0_i32_1 = arith.constant 0 : i32
    return %arg0, %c0_i32, %c0_i32_0 : i32, i32, i32
  }
}

module attributes {stable_mosaic.version = 11 : i64} {
  func.func @_conv_kernel(%arg0: i32, %arg1: i32, %arg2: memref<2x512xbf16, #tpu.memory_space<vmem>>, %arg3: memref<512x64xbf16, #tpu.memory_space<vmem>>, %arg4: memref<1x64xf32, #tpu.memory_space<vmem>>, %arg5: memref<2x64xbf16, #tpu.memory_space<vmem>>, %arg6: memref<2x64xf32, #tpu.memory_space<vmem>>) attributes {dimension_semantics = [#tpu.dimension_semantics<parallel>, #tpu.dimension_semantics<arbitrary>], iteration_bounds = array<i64: 1, 2>, scalar_prefetch = 0 : i64, scratch_operands = 1 : i64, tpu.core_type = #tpu.core_type<tc>, window_params = [{transform_indices = @transform_0, window_bounds = array<i64: 2, 512>}, {transform_indices = @transform_1, window_bounds = array<i64: 512, 64>}, {pipeline_mode = #tpu.pipeline_mode<synchronous>, transform_indices = @transform_2, window_bounds = array<i64: 1, 64>}, {transform_indices = @transform_3, window_bounds = array<i64: 2, 64>}]} {
    %c0_i32 = arith.constant 0 : i32
    %0 = arith.cmpi eq, %arg1, %c0_i32 : i32
    %1 = arith.extui %0 : i1 to i32
    %c0_i32_0 = arith.constant 0 : i32
    %2 = arith.cmpi ne, %1, %c0_i32_0 : i32
    scf.if %2 {
      %c0_9 = arith.constant 0 : index
      %c0_10 = arith.constant 0 : index
      %12 = vector.load %arg4[%c0_9, %c0_10] : memref<1x64xf32, #tpu.memory_space<vmem>>, vector<1x64xf32>
      %13 = vector.shape_cast %12 : vector<1x64xf32> to vector<1x64xf32>
      %14 = vector.broadcast %13 : vector<1x64xf32> to vector<2x64xf32>
      %c0_11 = arith.constant 0 : index
      %c0_12 = arith.constant 0 : index
      %15 = vector.load %arg6[%c0_11, %c0_12] : memref<2x64xf32, #tpu.memory_space<vmem>>, vector<2x64xf32>
      tpu.vector_store %arg6[%c0_11, %c0_12], %14 {strides = array<i32>} : memref<2x64xf32, #tpu.memory_space<vmem>>, vector<2x64xf32>,
    } else {
    }
    %c0 = arith.constant 0 : index
    %c0_1 = arith.constant 0 : index
    %3 = vector.load %arg6[%c0, %c0_1] : memref<2x64xf32, #tpu.memory_space<vmem>>, vector<2x64xf32>
    %c0_2 = arith.constant 0 : index
    %c0_3 = arith.constant 0 : index
    %4 = vector.load %arg2[%c0_2, %c0_3] : memref<2x512xbf16, #tpu.memory_space<vmem>>, vector<2x512xbf16>
    %c0_4 = arith.constant 0 : index
    %c0_5 = arith.constant 0 : index
    %5 = vector.load %arg3[%c0_4, %c0_5] : memref<512x64xbf16, #tpu.memory_space<vmem>>, vector<512x64xbf16>
    %cst = arith.constant dense<0.000000e+00> : vector<2x64xf32>
    %6 = tpu.matmul %4, %5, %cst {dimension_numbers = #tpu.dot_dimension_numbers<[1], [0], [0], [1], [0, 0, 1, 1], [], []>} : vector<2x512xbf16>, vector<512x64xbf16>, vector<2x64xf32> -> vector<2x64xf32>
    %7 = arith.addf %3, %6 : vector<2x64xf32>
    %c0_6 = arith.constant 0 : index
    %c0_7 = arith.constant 0 : index
    %8 = vector.load %arg6[%c0_6, %c0_7] : memref<2x64xf32, #tpu.memory_space<vmem>>, vector<2x64xf32>
    tpu.vector_store %arg6[%c0_6, %c0_7], %7 {strides = array<i32>} : memref<2x64xf32, #tpu.memory_space<vmem>>, vector<2x64xf32>,
    %c1_i32 = arith.constant 1 : i32
    %9 = arith.cmpi eq, %arg1, %c1_i32 : i32
    %10 = arith.extui %9 : i1 to i32
    %c0_i32_8 = arith.constant 0 : i32
    %11 = arith.cmpi ne, %10, %c0_i32_8 : i32
    scf.if %11 {
      %c0_9 = arith.constant 0 : index
      %c0_10 = arith.constant 0 : index
      %12 = vector.load %arg6[%c0_9, %c0_10] : memref<2x64xf32, #tpu.memory_space<vmem>>, vector<2x64xf32>
      %13 = arith.truncf %12 : vector<2x64xf32> to vector<2x64xbf16>
      %c0_11 = arith.constant 0 : index
      %c0_12 = arith.constant 0 : index
      %14 = vector.load %arg5[%c0_11, %c0_12] : memref<2x64xbf16, #tpu.memory_space<vmem>>, vector<2x64xbf16>
      tpu.vector_store %arg5[%c0_11, %c0_12], %13 {strides = array<i32>} : memref<2x64xbf16, #tpu.memory_space<vmem>>, vector<2x64xbf16>,
    } else {
    }
    return
  }
  func.func @transform_0(%arg0: i32, %arg1: i32) -> (i32, i32) {
    %c0_i32 = arith.constant 0 : i32
    return %arg0, %arg1 : i32, i32
  }
  func.func @transform_1(%arg0: i32, %arg1: i32) -> (i32, i32) {
    %c0_i32 = arith.constant 0 : i32
    %c0_i32_0 = arith.constant 0 : i32
    return %arg1, %c0_i32 : i32, i32
  }
  func.func @transform_2(%arg0: i32, %arg1: i32) -> (i32, i32) {
    %c0_i32 = arith.constant 0 : i32
    %c0_i32_0 = arith.constant 0 : i32
    %c0_i32_1 = arith.constant 0 : i32
    return %c0_i32, %c0_i32_0 : i32, i32
  }
  func.func @transform_3(%arg0: i32, %arg1: i32) -> (i32, i32) {
    %c0_i32 = arith.constant 0 : i32
    %c0_i32_0 = arith.constant 0 : i32
    return %arg0, %c0_i32 : i32, i32
  }
}

module attributes {stable_mosaic.version = 11 : i64} {
  func.func @_conv_stats_kernel(%arg0: i32, %arg1: i32, %arg2: memref<2x576xbf16, #tpu.memory_space<vmem>>, %arg3: memref<576x256xbf16, #tpu.memory_space<vmem>>, %arg4: memref<1x256xf32, #tpu.memory_space<vmem>>, %arg5: memref<2x256xbf16, #tpu.memory_space<vmem>>, %arg6: memref<1x2x256xf32, #tpu.memory_space<vmem>>, %arg7: memref<2x256xf32, #tpu.memory_space<vmem>>) attributes {dimension_semantics = [#tpu.dimension_semantics<parallel>, #tpu.dimension_semantics<arbitrary>], iteration_bounds = array<i64: 1, 1>, scalar_prefetch = 0 : i64, scratch_operands = 1 : i64, tpu.core_type = #tpu.core_type<tc>, window_params = [{transform_indices = @transform_0, window_bounds = array<i64: 2, 576>}, {transform_indices = @transform_1, window_bounds = array<i64: 576, 256>}, {pipeline_mode = #tpu.pipeline_mode<synchronous>, transform_indices = @transform_2, window_bounds = array<i64: 1, 256>}, {transform_indices = @transform_3, window_bounds = array<i64: 2, 256>}, {transform_indices = @transform_4, window_bounds = array<i64: 1, 2, 256>}]} {
    %c0_i32 = arith.constant 0 : i32
    %0 = arith.cmpi eq, %arg1, %c0_i32 : i32
    %1 = arith.extui %0 : i1 to i32
    %c0_i32_0 = arith.constant 0 : i32
    %2 = arith.cmpi ne, %1, %c0_i32_0 : i32
    scf.if %2 {
      %c0_10 = arith.constant 0 : index
      %c0_11 = arith.constant 0 : index
      %12 = vector.load %arg4[%c0_10, %c0_11] : memref<1x256xf32, #tpu.memory_space<vmem>>, vector<1x256xf32>
      %13 = vector.shape_cast %12 : vector<1x256xf32> to vector<1x256xf32>
      %14 = vector.broadcast %13 : vector<1x256xf32> to vector<2x256xf32>
      %c0_12 = arith.constant 0 : index
      %c0_13 = arith.constant 0 : index
      %15 = vector.load %arg7[%c0_12, %c0_13] : memref<2x256xf32, #tpu.memory_space<vmem>>, vector<2x256xf32>
      tpu.vector_store %arg7[%c0_12, %c0_13], %14 {strides = array<i32>} : memref<2x256xf32, #tpu.memory_space<vmem>>, vector<2x256xf32>,
    } else {
    }
    %c0 = arith.constant 0 : index
    %c0_1 = arith.constant 0 : index
    %3 = vector.load %arg7[%c0, %c0_1] : memref<2x256xf32, #tpu.memory_space<vmem>>, vector<2x256xf32>
    %c0_2 = arith.constant 0 : index
    %c0_3 = arith.constant 0 : index
    %4 = vector.load %arg2[%c0_2, %c0_3] : memref<2x576xbf16, #tpu.memory_space<vmem>>, vector<2x576xbf16>
    %c0_4 = arith.constant 0 : index
    %c0_5 = arith.constant 0 : index
    %5 = vector.load %arg3[%c0_4, %c0_5] : memref<576x256xbf16, #tpu.memory_space<vmem>>, vector<576x256xbf16>
    %cst = arith.constant dense<0.000000e+00> : vector<2x256xf32>
    %6 = tpu.matmul %4, %5, %cst {dimension_numbers = #tpu.dot_dimension_numbers<[1], [0], [0], [1], [0, 0, 1, 1], [], []>} : vector<2x576xbf16>, vector<576x256xbf16>, vector<2x256xf32> -> vector<2x256xf32>
    %7 = arith.addf %3, %6 : vector<2x256xf32>
    %c0_6 = arith.constant 0 : index
    %c0_7 = arith.constant 0 : index
    %8 = vector.load %arg7[%c0_6, %c0_7] : memref<2x256xf32, #tpu.memory_space<vmem>>, vector<2x256xf32>
    tpu.vector_store %arg7[%c0_6, %c0_7], %7 {strides = array<i32>} : memref<2x256xf32, #tpu.memory_space<vmem>>, vector<2x256xf32>,
    %c0_i32_8 = arith.constant 0 : i32
    %9 = arith.cmpi eq, %arg1, %c0_i32_8 : i32
    %10 = arith.extui %9 : i1 to i32
    %c0_i32_9 = arith.constant 0 : i32
    %11 = arith.cmpi ne, %10, %c0_i32_9 : i32
    scf.if %11 {
      %c0_10 = arith.constant 0 : index
      %c0_11 = arith.constant 0 : index
      %12 = vector.load %arg7[%c0_10, %c0_11] : memref<2x256xf32, #tpu.memory_space<vmem>>, vector<2x256xf32>
      %13 = arith.truncf %12 : vector<2x256xf32> to vector<2x256xbf16>
      %c0_12 = arith.constant 0 : index
      %c0_13 = arith.constant 0 : index
      %14 = vector.load %arg5[%c0_12, %c0_13] : memref<2x256xbf16, #tpu.memory_space<vmem>>, vector<2x256xbf16>
      tpu.vector_store %arg5[%c0_12, %c0_13], %13 {strides = array<i32>} : memref<2x256xbf16, #tpu.memory_space<vmem>>, vector<2x256xbf16>,
      %cst_14 = arith.constant dense<0.000000e+00> : vector<256xf32>
      %15 = vector.multi_reduction <add>, %12, %cst_14 [0] : vector<2x256xf32> to vector<256xf32>
      %16 = vector.shape_cast %15 : vector<256xf32> to vector<1x256xf32>
      %c0_15 = arith.constant 0 : index
      %c0_16 = arith.constant 0 : index
      %c0_17 = arith.constant 0 : index
      %17 = vector.load %arg6[%c0_15, %c0_16, %c0_17] : memref<1x2x256xf32, #tpu.memory_space<vmem>>, vector<1x1x256xf32>
      %18 = vector.shape_cast %17 : vector<1x1x256xf32> to vector<1x256xf32>
      %19 = vector.shape_cast %16 : vector<1x256xf32> to vector<1x1x256xf32>
      tpu.vector_store %arg6[%c0_15, %c0_16, %c0_17], %19 {strides = array<i32>} : memref<1x2x256xf32, #tpu.memory_space<vmem>>, vector<1x1x256xf32>,
      %20 = arith.mulf %12, %12 : vector<2x256xf32>
      %cst_18 = arith.constant dense<0.000000e+00> : vector<256xf32>
      %21 = vector.multi_reduction <add>, %20, %cst_18 [0] : vector<2x256xf32> to vector<256xf32>
      %22 = vector.shape_cast %21 : vector<256xf32> to vector<1x256xf32>
      %c0_19 = arith.constant 0 : index
      %c1 = arith.constant 1 : index
      %c0_20 = arith.constant 0 : index
      %23 = vector.load %arg6[%c0_19, %c1, %c0_20] : memref<1x2x256xf32, #tpu.memory_space<vmem>>, vector<1x1x256xf32>
      %24 = vector.shape_cast %23 : vector<1x1x256xf32> to vector<1x256xf32>
      %25 = vector.shape_cast %22 : vector<1x256xf32> to vector<1x1x256xf32>
      tpu.vector_store %arg6[%c0_19, %c1, %c0_20], %25 {strides = array<i32>} : memref<1x2x256xf32, #tpu.memory_space<vmem>>, vector<1x1x256xf32>,
    } else {
    }
    return
  }
  func.func @transform_0(%arg0: i32, %arg1: i32) -> (i32, i32) {
    %c0_i32 = arith.constant 0 : i32
    return %arg0, %arg1 : i32, i32
  }
  func.func @transform_1(%arg0: i32, %arg1: i32) -> (i32, i32) {
    %c0_i32 = arith.constant 0 : i32
    %c0_i32_0 = arith.constant 0 : i32
    return %arg1, %c0_i32 : i32, i32
  }
  func.func @transform_2(%arg0: i32, %arg1: i32) -> (i32, i32) {
    %c0_i32 = arith.constant 0 : i32
    %c0_i32_0 = arith.constant 0 : i32
    %c0_i32_1 = arith.constant 0 : i32
    return %c0_i32, %c0_i32_0 : i32, i32
  }
  func.func @transform_3(%arg0: i32, %arg1: i32) -> (i32, i32) {
    %c0_i32 = arith.constant 0 : i32
    %c0_i32_0 = arith.constant 0 : i32
    return %arg0, %c0_i32 : i32, i32
  }
  func.func @transform_4(%arg0: i32, %arg1: i32) -> (i32, i32, i32) {
    %c0_i32 = arith.constant 0 : i32
    %c0_i32_0 = arith.constant 0 : i32
    %c0_i32_1 = arith.constant 0 : i32
    return %arg0, %c0_i32, %c0_i32_0 : i32, i32, i32
  }
}

module attributes {stable_mosaic.version = 11 : i64} {
  func.func @_conv_stats_kernel(%arg0: i32, %arg1: i32, %arg2: memref<8x384xbf16, #tpu.memory_space<vmem>>, %arg3: memref<384x128xbf16, #tpu.memory_space<vmem>>, %arg4: memref<1x128xf32, #tpu.memory_space<vmem>>, %arg5: memref<8x128xbf16, #tpu.memory_space<vmem>>, %arg6: memref<1x2x128xf32, #tpu.memory_space<vmem>>, %arg7: memref<8x128xf32, #tpu.memory_space<vmem>>) attributes {dimension_semantics = [#tpu.dimension_semantics<parallel>, #tpu.dimension_semantics<arbitrary>], iteration_bounds = array<i64: 1, 3>, scalar_prefetch = 0 : i64, scratch_operands = 1 : i64, tpu.core_type = #tpu.core_type<tc>, window_params = [{transform_indices = @transform_0, window_bounds = array<i64: 8, 384>}, {transform_indices = @transform_1, window_bounds = array<i64: 384, 128>}, {pipeline_mode = #tpu.pipeline_mode<synchronous>, transform_indices = @transform_2, window_bounds = array<i64: 1, 128>}, {transform_indices = @transform_3, window_bounds = array<i64: 8, 128>}, {transform_indices = @transform_4, window_bounds = array<i64: 1, 2, 128>}]} {
    %c0_i32 = arith.constant 0 : i32
    %0 = arith.cmpi eq, %arg1, %c0_i32 : i32
    %1 = arith.extui %0 : i1 to i32
    %c0_i32_0 = arith.constant 0 : i32
    %2 = arith.cmpi ne, %1, %c0_i32_0 : i32
    scf.if %2 {
      %c0_9 = arith.constant 0 : index
      %c0_10 = arith.constant 0 : index
      %12 = vector.load %arg4[%c0_9, %c0_10] : memref<1x128xf32, #tpu.memory_space<vmem>>, vector<1x128xf32>
      %13 = vector.shape_cast %12 : vector<1x128xf32> to vector<1x128xf32>
      %14 = vector.broadcast %13 : vector<1x128xf32> to vector<8x128xf32>
      %c0_11 = arith.constant 0 : index
      %c0_12 = arith.constant 0 : index
      %15 = vector.load %arg7[%c0_11, %c0_12] : memref<8x128xf32, #tpu.memory_space<vmem>>, vector<8x128xf32>
      tpu.vector_store %arg7[%c0_11, %c0_12], %14 {strides = array<i32>} : memref<8x128xf32, #tpu.memory_space<vmem>>, vector<8x128xf32>,
    } else {
    }
    %c0 = arith.constant 0 : index
    %c0_1 = arith.constant 0 : index
    %3 = vector.load %arg7[%c0, %c0_1] : memref<8x128xf32, #tpu.memory_space<vmem>>, vector<8x128xf32>
    %c0_2 = arith.constant 0 : index
    %c0_3 = arith.constant 0 : index
    %4 = vector.load %arg2[%c0_2, %c0_3] : memref<8x384xbf16, #tpu.memory_space<vmem>>, vector<8x384xbf16>
    %c0_4 = arith.constant 0 : index
    %c0_5 = arith.constant 0 : index
    %5 = vector.load %arg3[%c0_4, %c0_5] : memref<384x128xbf16, #tpu.memory_space<vmem>>, vector<384x128xbf16>
    %cst = arith.constant dense<0.000000e+00> : vector<8x128xf32>
    %6 = tpu.matmul %4, %5, %cst {dimension_numbers = #tpu.dot_dimension_numbers<[1], [0], [0], [1], [0, 0, 1, 1], [], []>} : vector<8x384xbf16>, vector<384x128xbf16>, vector<8x128xf32> -> vector<8x128xf32>
    %7 = arith.addf %3, %6 : vector<8x128xf32>
    %c0_6 = arith.constant 0 : index
    %c0_7 = arith.constant 0 : index
    %8 = vector.load %arg7[%c0_6, %c0_7] : memref<8x128xf32, #tpu.memory_space<vmem>>, vector<8x128xf32>
    tpu.vector_store %arg7[%c0_6, %c0_7], %7 {strides = array<i32>} : memref<8x128xf32, #tpu.memory_space<vmem>>, vector<8x128xf32>,
    %c2_i32 = arith.constant 2 : i32
    %9 = arith.cmpi eq, %arg1, %c2_i32 : i32
    %10 = arith.extui %9 : i1 to i32
    %c0_i32_8 = arith.constant 0 : i32
    %11 = arith.cmpi ne, %10, %c0_i32_8 : i32
    scf.if %11 {
      %c0_9 = arith.constant 0 : index
      %c0_10 = arith.constant 0 : index
      %12 = vector.load %arg7[%c0_9, %c0_10] : memref<8x128xf32, #tpu.memory_space<vmem>>, vector<8x128xf32>
      %13 = arith.truncf %12 : vector<8x128xf32> to vector<8x128xbf16>
      %c0_11 = arith.constant 0 : index
      %c0_12 = arith.constant 0 : index
      %14 = vector.load %arg5[%c0_11, %c0_12] : memref<8x128xbf16, #tpu.memory_space<vmem>>, vector<8x128xbf16>
      tpu.vector_store %arg5[%c0_11, %c0_12], %13 {strides = array<i32>} : memref<8x128xbf16, #tpu.memory_space<vmem>>, vector<8x128xbf16>,
      %cst_13 = arith.constant dense<0.000000e+00> : vector<128xf32>
      %15 = vector.multi_reduction <add>, %12, %cst_13 [0] : vector<8x128xf32> to vector<128xf32>
      %16 = vector.shape_cast %15 : vector<128xf32> to vector<1x128xf32>
      %c0_14 = arith.constant 0 : index
      %c0_15 = arith.constant 0 : index
      %c0_16 = arith.constant 0 : index
      %17 = vector.load %arg6[%c0_14, %c0_15, %c0_16] : memref<1x2x128xf32, #tpu.memory_space<vmem>>, vector<1x1x128xf32>
      %18 = vector.shape_cast %17 : vector<1x1x128xf32> to vector<1x128xf32>
      %19 = vector.shape_cast %16 : vector<1x128xf32> to vector<1x1x128xf32>
      tpu.vector_store %arg6[%c0_14, %c0_15, %c0_16], %19 {strides = array<i32>} : memref<1x2x128xf32, #tpu.memory_space<vmem>>, vector<1x1x128xf32>,
      %20 = arith.mulf %12, %12 : vector<8x128xf32>
      %cst_17 = arith.constant dense<0.000000e+00> : vector<128xf32>
      %21 = vector.multi_reduction <add>, %20, %cst_17 [0] : vector<8x128xf32> to vector<128xf32>
      %22 = vector.shape_cast %21 : vector<128xf32> to vector<1x128xf32>
      %c0_18 = arith.constant 0 : index
      %c1 = arith.constant 1 : index
      %c0_19 = arith.constant 0 : index
      %23 = vector.load %arg6[%c0_18, %c1, %c0_19] : memref<1x2x128xf32, #tpu.memory_space<vmem>>, vector<1x1x128xf32>
      %24 = vector.shape_cast %23 : vector<1x1x128xf32> to vector<1x128xf32>
      %25 = vector.shape_cast %22 : vector<1x128xf32> to vector<1x1x128xf32>
      tpu.vector_store %arg6[%c0_18, %c1, %c0_19], %25 {strides = array<i32>} : memref<1x2x128xf32, #tpu.memory_space<vmem>>, vector<1x1x128xf32>,
    } else {
    }
    return
  }
  func.func @transform_0(%arg0: i32, %arg1: i32) -> (i32, i32) {
    %c0_i32 = arith.constant 0 : i32
    return %arg0, %arg1 : i32, i32
  }
  func.func @transform_1(%arg0: i32, %arg1: i32) -> (i32, i32) {
    %c0_i32 = arith.constant 0 : i32
    %c0_i32_0 = arith.constant 0 : i32
    return %arg1, %c0_i32 : i32, i32
  }
  func.func @transform_2(%arg0: i32, %arg1: i32) -> (i32, i32) {
    %c0_i32 = arith.constant 0 : i32
    %c0_i32_0 = arith.constant 0 : i32
    %c0_i32_1 = arith.constant 0 : i32
    return %c0_i32, %c0_i32_0 : i32, i32
  }
  func.func @transform_3(%arg0: i32, %arg1: i32) -> (i32, i32) {
    %c0_i32 = arith.constant 0 : i32
    %c0_i32_0 = arith.constant 0 : i32
    return %arg0, %c0_i32 : i32, i32
  }
  func.func @transform_4(%arg0: i32, %arg1: i32) -> (i32, i32, i32) {
    %c0_i32 = arith.constant 0 : i32
    %c0_i32_0 = arith.constant 0 : i32
    %c0_i32_1 = arith.constant 0 : i32
    return %arg0, %c0_i32, %c0_i32_0 : i32, i32, i32
  }
}

module attributes {stable_mosaic.version = 11 : i64} {
  func.func @_conv_stats_kernel(%arg0: i32, %arg1: i32, %arg2: memref<32x576xbf16, #tpu.memory_space<vmem>>, %arg3: memref<576x64xbf16, #tpu.memory_space<vmem>>, %arg4: memref<1x64xf32, #tpu.memory_space<vmem>>, %arg5: memref<32x64xbf16, #tpu.memory_space<vmem>>, %arg6: memref<1x2x64xf32, #tpu.memory_space<vmem>>, %arg7: memref<32x64xf32, #tpu.memory_space<vmem>>) attributes {dimension_semantics = [#tpu.dimension_semantics<parallel>, #tpu.dimension_semantics<arbitrary>], iteration_bounds = array<i64: 1, 1>, scalar_prefetch = 0 : i64, scratch_operands = 1 : i64, tpu.core_type = #tpu.core_type<tc>, window_params = [{transform_indices = @transform_0, window_bounds = array<i64: 32, 576>}, {transform_indices = @transform_1, window_bounds = array<i64: 576, 64>}, {pipeline_mode = #tpu.pipeline_mode<synchronous>, transform_indices = @transform_2, window_bounds = array<i64: 1, 64>}, {transform_indices = @transform_3, window_bounds = array<i64: 32, 64>}, {transform_indices = @transform_4, window_bounds = array<i64: 1, 2, 64>}]} {
    %c0_i32 = arith.constant 0 : i32
    %0 = arith.cmpi eq, %arg1, %c0_i32 : i32
    %1 = arith.extui %0 : i1 to i32
    %c0_i32_0 = arith.constant 0 : i32
    %2 = arith.cmpi ne, %1, %c0_i32_0 : i32
    scf.if %2 {
      %c0_10 = arith.constant 0 : index
      %c0_11 = arith.constant 0 : index
      %12 = vector.load %arg4[%c0_10, %c0_11] : memref<1x64xf32, #tpu.memory_space<vmem>>, vector<1x64xf32>
      %13 = vector.shape_cast %12 : vector<1x64xf32> to vector<1x64xf32>
      %14 = vector.broadcast %13 : vector<1x64xf32> to vector<32x64xf32>
      %c0_12 = arith.constant 0 : index
      %c0_13 = arith.constant 0 : index
      %15 = vector.load %arg7[%c0_12, %c0_13] : memref<32x64xf32, #tpu.memory_space<vmem>>, vector<32x64xf32>
      tpu.vector_store %arg7[%c0_12, %c0_13], %14 {strides = array<i32>} : memref<32x64xf32, #tpu.memory_space<vmem>>, vector<32x64xf32>,
    } else {
    }
    %c0 = arith.constant 0 : index
    %c0_1 = arith.constant 0 : index
    %3 = vector.load %arg7[%c0, %c0_1] : memref<32x64xf32, #tpu.memory_space<vmem>>, vector<32x64xf32>
    %c0_2 = arith.constant 0 : index
    %c0_3 = arith.constant 0 : index
    %4 = vector.load %arg2[%c0_2, %c0_3] : memref<32x576xbf16, #tpu.memory_space<vmem>>, vector<32x576xbf16>
    %c0_4 = arith.constant 0 : index
    %c0_5 = arith.constant 0 : index
    %5 = vector.load %arg3[%c0_4, %c0_5] : memref<576x64xbf16, #tpu.memory_space<vmem>>, vector<576x64xbf16>
    %cst = arith.constant dense<0.000000e+00> : vector<32x64xf32>
    %6 = tpu.matmul %4, %5, %cst {dimension_numbers = #tpu.dot_dimension_numbers<[1], [0], [0], [1], [0, 0, 1, 1], [], []>} : vector<32x576xbf16>, vector<576x64xbf16>, vector<32x64xf32> -> vector<32x64xf32>
    %7 = arith.addf %3, %6 : vector<32x64xf32>
    %c0_6 = arith.constant 0 : index
    %c0_7 = arith.constant 0 : index
    %8 = vector.load %arg7[%c0_6, %c0_7] : memref<32x64xf32, #tpu.memory_space<vmem>>, vector<32x64xf32>
    tpu.vector_store %arg7[%c0_6, %c0_7], %7 {strides = array<i32>} : memref<32x64xf32, #tpu.memory_space<vmem>>, vector<32x64xf32>,
    %c0_i32_8 = arith.constant 0 : i32
    %9 = arith.cmpi eq, %arg1, %c0_i32_8 : i32
    %10 = arith.extui %9 : i1 to i32
    %c0_i32_9 = arith.constant 0 : i32
    %11 = arith.cmpi ne, %10, %c0_i32_9 : i32
    scf.if %11 {
      %c0_10 = arith.constant 0 : index
      %c0_11 = arith.constant 0 : index
      %12 = vector.load %arg7[%c0_10, %c0_11] : memref<32x64xf32, #tpu.memory_space<vmem>>, vector<32x64xf32>
      %13 = arith.truncf %12 : vector<32x64xf32> to vector<32x64xbf16>
      %c0_12 = arith.constant 0 : index
      %c0_13 = arith.constant 0 : index
      %14 = vector.load %arg5[%c0_12, %c0_13] : memref<32x64xbf16, #tpu.memory_space<vmem>>, vector<32x64xbf16>
      tpu.vector_store %arg5[%c0_12, %c0_13], %13 {strides = array<i32>} : memref<32x64xbf16, #tpu.memory_space<vmem>>, vector<32x64xbf16>,
      %cst_14 = arith.constant dense<0.000000e+00> : vector<64xf32>
      %15 = vector.multi_reduction <add>, %12, %cst_14 [0] : vector<32x64xf32> to vector<64xf32>
      %16 = vector.shape_cast %15 : vector<64xf32> to vector<1x64xf32>
      %c0_15 = arith.constant 0 : index
      %c0_16 = arith.constant 0 : index
      %c0_17 = arith.constant 0 : index
      %17 = vector.load %arg6[%c0_15, %c0_16, %c0_17] : memref<1x2x64xf32, #tpu.memory_space<vmem>>, vector<1x1x64xf32>
      %18 = vector.shape_cast %17 : vector<1x1x64xf32> to vector<1x64xf32>
      %19 = vector.shape_cast %16 : vector<1x64xf32> to vector<1x1x64xf32>
      tpu.vector_store %arg6[%c0_15, %c0_16, %c0_17], %19 {strides = array<i32>} : memref<1x2x64xf32, #tpu.memory_space<vmem>>, vector<1x1x64xf32>,
      %20 = arith.mulf %12, %12 : vector<32x64xf32>
      %cst_18 = arith.constant dense<0.000000e+00> : vector<64xf32>
      %21 = vector.multi_reduction <add>, %20, %cst_18 [0] : vector<32x64xf32> to vector<64xf32>
      %22 = vector.shape_cast %21 : vector<64xf32> to vector<1x64xf32>
      %c0_19 = arith.constant 0 : index
      %c1 = arith.constant 1 : index
      %c0_20 = arith.constant 0 : index
      %23 = vector.load %arg6[%c0_19, %c1, %c0_20] : memref<1x2x64xf32, #tpu.memory_space<vmem>>, vector<1x1x64xf32>
      %24 = vector.shape_cast %23 : vector<1x1x64xf32> to vector<1x64xf32>
      %25 = vector.shape_cast %22 : vector<1x64xf32> to vector<1x1x64xf32>
      tpu.vector_store %arg6[%c0_19, %c1, %c0_20], %25 {strides = array<i32>} : memref<1x2x64xf32, #tpu.memory_space<vmem>>, vector<1x1x64xf32>,
    } else {
    }
    return
  }
  func.func @transform_0(%arg0: i32, %arg1: i32) -> (i32, i32) {
    %c0_i32 = arith.constant 0 : i32
    return %arg0, %arg1 : i32, i32
  }
  func.func @transform_1(%arg0: i32, %arg1: i32) -> (i32, i32) {
    %c0_i32 = arith.constant 0 : i32
    %c0_i32_0 = arith.constant 0 : i32
    return %arg1, %c0_i32 : i32, i32
  }
  func.func @transform_2(%arg0: i32, %arg1: i32) -> (i32, i32) {
    %c0_i32 = arith.constant 0 : i32
    %c0_i32_0 = arith.constant 0 : i32
    %c0_i32_1 = arith.constant 0 : i32
    return %c0_i32, %c0_i32_0 : i32, i32
  }
  func.func @transform_3(%arg0: i32, %arg1: i32) -> (i32, i32) {
    %c0_i32 = arith.constant 0 : i32
    %c0_i32_0 = arith.constant 0 : i32
    return %arg0, %c0_i32 : i32, i32
  }
  func.func @transform_4(%arg0: i32, %arg1: i32) -> (i32, i32, i32) {
    %c0_i32 = arith.constant 0 : i32
    %c0_i32_0 = arith.constant 0 : i32
    %c0_i32_1 = arith.constant 0 : i32
    return %arg0, %c0_i32, %c0_i32_0 : i32, i32, i32
  }
}

module attributes {stable_mosaic.version = 11 : i64} {
  func.func @_conv_stats_kernel(%arg0: i32, %arg1: i32, %arg2: memref<128x288xbf16, #tpu.memory_space<vmem>>, %arg3: memref<288x32xbf16, #tpu.memory_space<vmem>>, %arg4: memref<1x32xf32, #tpu.memory_space<vmem>>, %arg5: memref<128x32xbf16, #tpu.memory_space<vmem>>, %arg6: memref<1x2x32xf32, #tpu.memory_space<vmem>>, %arg7: memref<128x32xf32, #tpu.memory_space<vmem>>) attributes {dimension_semantics = [#tpu.dimension_semantics<parallel>, #tpu.dimension_semantics<arbitrary>], iteration_bounds = array<i64: 1, 1>, scalar_prefetch = 0 : i64, scratch_operands = 1 : i64, tpu.core_type = #tpu.core_type<tc>, window_params = [{transform_indices = @transform_0, window_bounds = array<i64: 128, 288>}, {transform_indices = @transform_1, window_bounds = array<i64: 288, 32>}, {pipeline_mode = #tpu.pipeline_mode<synchronous>, transform_indices = @transform_2, window_bounds = array<i64: 1, 32>}, {transform_indices = @transform_3, window_bounds = array<i64: 128, 32>}, {transform_indices = @transform_4, window_bounds = array<i64: 1, 2, 32>}]} {
    %c0_i32 = arith.constant 0 : i32
    %0 = arith.cmpi eq, %arg1, %c0_i32 : i32
    %1 = arith.extui %0 : i1 to i32
    %c0_i32_0 = arith.constant 0 : i32
    %2 = arith.cmpi ne, %1, %c0_i32_0 : i32
    scf.if %2 {
      %c0_10 = arith.constant 0 : index
      %c0_11 = arith.constant 0 : index
      %12 = vector.load %arg4[%c0_10, %c0_11] : memref<1x32xf32, #tpu.memory_space<vmem>>, vector<1x32xf32>
      %13 = vector.shape_cast %12 : vector<1x32xf32> to vector<1x32xf32>
      %14 = vector.broadcast %13 : vector<1x32xf32> to vector<128x32xf32>
      %c0_12 = arith.constant 0 : index
      %c0_13 = arith.constant 0 : index
      %15 = vector.load %arg7[%c0_12, %c0_13] : memref<128x32xf32, #tpu.memory_space<vmem>>, vector<128x32xf32>
      tpu.vector_store %arg7[%c0_12, %c0_13], %14 {strides = array<i32>} : memref<128x32xf32, #tpu.memory_space<vmem>>, vector<128x32xf32>,
    } else {
    }
    %c0 = arith.constant 0 : index
    %c0_1 = arith.constant 0 : index
    %3 = vector.load %arg7[%c0, %c0_1] : memref<128x32xf32, #tpu.memory_space<vmem>>, vector<128x32xf32>
    %c0_2 = arith.constant 0 : index
    %c0_3 = arith.constant 0 : index
    %4 = vector.load %arg2[%c0_2, %c0_3] : memref<128x288xbf16, #tpu.memory_space<vmem>>, vector<128x288xbf16>
    %c0_4 = arith.constant 0 : index
    %c0_5 = arith.constant 0 : index
    %5 = vector.load %arg3[%c0_4, %c0_5] : memref<288x32xbf16, #tpu.memory_space<vmem>>, vector<288x32xbf16>
    %cst = arith.constant dense<0.000000e+00> : vector<128x32xf32>
    %6 = tpu.matmul %4, %5, %cst {dimension_numbers = #tpu.dot_dimension_numbers<[1], [0], [0], [1], [0, 0, 1, 1], [], []>} : vector<128x288xbf16>, vector<288x32xbf16>, vector<128x32xf32> -> vector<128x32xf32>
    %7 = arith.addf %3, %6 : vector<128x32xf32>
    %c0_6 = arith.constant 0 : index
    %c0_7 = arith.constant 0 : index
    %8 = vector.load %arg7[%c0_6, %c0_7] : memref<128x32xf32, #tpu.memory_space<vmem>>, vector<128x32xf32>
    tpu.vector_store %arg7[%c0_6, %c0_7], %7 {strides = array<i32>} : memref<128x32xf32, #tpu.memory_space<vmem>>, vector<128x32xf32>,
    %c0_i32_8 = arith.constant 0 : i32
    %9 = arith.cmpi eq, %arg1, %c0_i32_8 : i32
    %10 = arith.extui %9 : i1 to i32
    %c0_i32_9 = arith.constant 0 : i32
    %11 = arith.cmpi ne, %10, %c0_i32_9 : i32
    scf.if %11 {
      %c0_10 = arith.constant 0 : index
      %c0_11 = arith.constant 0 : index
      %12 = vector.load %arg7[%c0_10, %c0_11] : memref<128x32xf32, #tpu.memory_space<vmem>>, vector<128x32xf32>
      %13 = arith.truncf %12 : vector<128x32xf32> to vector<128x32xbf16>
      %c0_12 = arith.constant 0 : index
      %c0_13 = arith.constant 0 : index
      %14 = vector.load %arg5[%c0_12, %c0_13] : memref<128x32xbf16, #tpu.memory_space<vmem>>, vector<128x32xbf16>
      tpu.vector_store %arg5[%c0_12, %c0_13], %13 {strides = array<i32>} : memref<128x32xbf16, #tpu.memory_space<vmem>>, vector<128x32xbf16>,
      %cst_14 = arith.constant dense<0.000000e+00> : vector<32xf32>
      %15 = vector.multi_reduction <add>, %12, %cst_14 [0] : vector<128x32xf32> to vector<32xf32>
      %16 = vector.shape_cast %15 : vector<32xf32> to vector<1x32xf32>
      %c0_15 = arith.constant 0 : index
      %c0_16 = arith.constant 0 : index
      %c0_17 = arith.constant 0 : index
      %17 = vector.load %arg6[%c0_15, %c0_16, %c0_17] : memref<1x2x32xf32, #tpu.memory_space<vmem>>, vector<1x1x32xf32>
      %18 = vector.shape_cast %17 : vector<1x1x32xf32> to vector<1x32xf32>
      %19 = vector.shape_cast %16 : vector<1x32xf32> to vector<1x1x32xf32>
      tpu.vector_store %arg6[%c0_15, %c0_16, %c0_17], %19 {strides = array<i32>} : memref<1x2x32xf32, #tpu.memory_space<vmem>>, vector<1x1x32xf32>,
      %20 = arith.mulf %12, %12 : vector<128x32xf32>
      %cst_18 = arith.constant dense<0.000000e+00> : vector<32xf32>
      %21 = vector.multi_reduction <add>, %20, %cst_18 [0] : vector<128x32xf32> to vector<32xf32>
      %22 = vector.shape_cast %21 : vector<32xf32> to vector<1x32xf32>
      %c0_19 = arith.constant 0 : index
      %c1 = arith.constant 1 : index
      %c0_20 = arith.constant 0 : index
      %23 = vector.load %arg6[%c0_19, %c1, %c0_20] : memref<1x2x32xf32, #tpu.memory_space<vmem>>, vector<1x1x32xf32>
      %24 = vector.shape_cast %23 : vector<1x1x32xf32> to vector<1x32xf32>
      %25 = vector.shape_cast %22 : vector<1x32xf32> to vector<1x1x32xf32>
      tpu.vector_store %arg6[%c0_19, %c1, %c0_20], %25 {strides = array<i32>} : memref<1x2x32xf32, #tpu.memory_space<vmem>>, vector<1x1x32xf32>,
    } else {
    }
    return
  }
  func.func @transform_0(%arg0: i32, %arg1: i32) -> (i32, i32) {
    %c0_i32 = arith.constant 0 : i32
    return %arg0, %arg1 : i32, i32
  }
  func.func @transform_1(%arg0: i32, %arg1: i32) -> (i32, i32) {
    %c0_i32 = arith.constant 0 : i32
    %c0_i32_0 = arith.constant 0 : i32
    return %arg1, %c0_i32 : i32, i32
  }
  func.func @transform_2(%arg0: i32, %arg1: i32) -> (i32, i32) {
    %c0_i32 = arith.constant 0 : i32
    %c0_i32_0 = arith.constant 0 : i32
    %c0_i32_1 = arith.constant 0 : i32
    return %c0_i32, %c0_i32_0 : i32, i32
  }
  func.func @transform_3(%arg0: i32, %arg1: i32) -> (i32, i32) {
    %c0_i32 = arith.constant 0 : i32
    %c0_i32_0 = arith.constant 0 : i32
    return %arg0, %c0_i32 : i32, i32
  }
  func.func @transform_4(%arg0: i32, %arg1: i32) -> (i32, i32, i32) {
    %c0_i32 = arith.constant 0 : i32
    %c0_i32_0 = arith.constant 0 : i32
    %c0_i32_1 = arith.constant 0 : i32
    return %arg0, %c0_i32, %c0_i32_0 : i32, i32, i32
  }
}

module attributes {stable_mosaic.version = 11 : i64} {
  func.func @_conv_kernel(%arg0: i32, %arg1: i32, %arg2: memref<512x144xbf16, #tpu.memory_space<vmem>>, %arg3: memref<144x12xbf16, #tpu.memory_space<vmem>>, %arg4: memref<1x12xf32, #tpu.memory_space<vmem>>, %arg5: memref<512x12xbf16, #tpu.memory_space<vmem>>, %arg6: memref<512x12xf32, #tpu.memory_space<vmem>>) attributes {dimension_semantics = [#tpu.dimension_semantics<parallel>, #tpu.dimension_semantics<arbitrary>], iteration_bounds = array<i64: 1, 1>, scalar_prefetch = 0 : i64, scratch_operands = 1 : i64, tpu.core_type = #tpu.core_type<tc>, window_params = [{transform_indices = @transform_0, window_bounds = array<i64: 512, 144>}, {transform_indices = @transform_1, window_bounds = array<i64: 144, 12>}, {pipeline_mode = #tpu.pipeline_mode<synchronous>, transform_indices = @transform_2, window_bounds = array<i64: 1, 12>}, {transform_indices = @transform_3, window_bounds = array<i64: 512, 12>}]} {
    %c0_i32 = arith.constant 0 : i32
    %0 = arith.cmpi eq, %arg1, %c0_i32 : i32
    %1 = arith.extui %0 : i1 to i32
    %c0_i32_0 = arith.constant 0 : i32
    %2 = arith.cmpi ne, %1, %c0_i32_0 : i32
    scf.if %2 {
      %c0_10 = arith.constant 0 : index
      %c0_11 = arith.constant 0 : index
      %12 = vector.load %arg4[%c0_10, %c0_11] : memref<1x12xf32, #tpu.memory_space<vmem>>, vector<1x12xf32>
      %13 = vector.shape_cast %12 : vector<1x12xf32> to vector<1x12xf32>
      %14 = vector.broadcast %13 : vector<1x12xf32> to vector<512x12xf32>
      %c0_12 = arith.constant 0 : index
      %c0_13 = arith.constant 0 : index
      %15 = vector.load %arg6[%c0_12, %c0_13] : memref<512x12xf32, #tpu.memory_space<vmem>>, vector<512x12xf32>
      tpu.vector_store %arg6[%c0_12, %c0_13], %14 {strides = array<i32>} : memref<512x12xf32, #tpu.memory_space<vmem>>, vector<512x12xf32>,
    } else {
    }
    %c0 = arith.constant 0 : index
    %c0_1 = arith.constant 0 : index
    %3 = vector.load %arg6[%c0, %c0_1] : memref<512x12xf32, #tpu.memory_space<vmem>>, vector<512x12xf32>
    %c0_2 = arith.constant 0 : index
    %c0_3 = arith.constant 0 : index
    %4 = vector.load %arg2[%c0_2, %c0_3] : memref<512x144xbf16, #tpu.memory_space<vmem>>, vector<512x144xbf16>
    %c0_4 = arith.constant 0 : index
    %c0_5 = arith.constant 0 : index
    %5 = vector.load %arg3[%c0_4, %c0_5] : memref<144x12xbf16, #tpu.memory_space<vmem>>, vector<144x12xbf16>
    %cst = arith.constant dense<0.000000e+00> : vector<512x12xf32>
    %6 = tpu.matmul %4, %5, %cst {dimension_numbers = #tpu.dot_dimension_numbers<[1], [0], [0], [1], [0, 0, 1, 1], [], []>} : vector<512x144xbf16>, vector<144x12xbf16>, vector<512x12xf32> -> vector<512x12xf32>
    %7 = arith.addf %3, %6 : vector<512x12xf32>
    %c0_6 = arith.constant 0 : index
    %c0_7 = arith.constant 0 : index
    %8 = vector.load %arg6[%c0_6, %c0_7] : memref<512x12xf32, #tpu.memory_space<vmem>>, vector<512x12xf32>
    tpu.vector_store %arg6[%c0_6, %c0_7], %7 {strides = array<i32>} : memref<512x12xf32, #tpu.memory_space<vmem>>, vector<512x12xf32>,
    %c0_i32_8 = arith.constant 0 : i32
    %9 = arith.cmpi eq, %arg1, %c0_i32_8 : i32
    %10 = arith.extui %9 : i1 to i32
    %c0_i32_9 = arith.constant 0 : i32
    %11 = arith.cmpi ne, %10, %c0_i32_9 : i32
    scf.if %11 {
      %c0_10 = arith.constant 0 : index
      %c0_11 = arith.constant 0 : index
      %12 = vector.load %arg6[%c0_10, %c0_11] : memref<512x12xf32, #tpu.memory_space<vmem>>, vector<512x12xf32>
      %13 = arith.truncf %12 : vector<512x12xf32> to vector<512x12xbf16>
      %c0_12 = arith.constant 0 : index
      %c0_13 = arith.constant 0 : index
      %14 = vector.load %arg5[%c0_12, %c0_13] : memref<512x12xbf16, #tpu.memory_space<vmem>>, vector<512x12xbf16>
      tpu.vector_store %arg5[%c0_12, %c0_13], %13 {strides = array<i32>} : memref<512x12xbf16, #tpu.memory_space<vmem>>, vector<512x12xbf16>,
    } else {
    }
    return
  }
  func.func @transform_0(%arg0: i32, %arg1: i32) -> (i32, i32) {
    %c0_i32 = arith.constant 0 : i32
    return %arg0, %arg1 : i32, i32
  }
  func.func @transform_1(%arg0: i32, %arg1: i32) -> (i32, i32) {
    %c0_i32 = arith.constant 0 : i32
    %c0_i32_0 = arith.constant 0 : i32
    return %arg1, %c0_i32 : i32, i32
  }
  func.func @transform_2(%arg0: i32, %arg1: i32) -> (i32, i32) {
    %c0_i32 = arith.constant 0 : i32
    %c0_i32_0 = arith.constant 0 : i32
    %c0_i32_1 = arith.constant 0 : i32
    return %c0_i32, %c0_i32_0 : i32, i32
  }
  func.func @transform_3(%arg0: i32, %arg1: i32) -> (i32, i32) {
    %c0_i32 = arith.constant 0 : i32
    %c0_i32_0 = arith.constant 0 : i32
    return %arg0, %c0_i32 : i32, i32
  }
}

</mosaic_0001>

<llo_original>
// kernel: unet_generator.10
$region0: #{unet_generator.10}
  #allocation0 [shape = 'u32[]', space=smem, size = 0x4, offset = 0x4, fixed_abs, tag = 'smem constant byte address 0x4 - core index']
  #allocation1 [shape = 'u32[144,128]{1,0:T(1,128)}', space=vmem, size = 0x12000, scoped, tag = 'internal scratch']
  #allocation2 [shape = 'f32[512,8]{1,0:T(8,128)}', space=vmem, size = 0x40000, scoped, tag = 'scratch operand']
  %s0 = inlined_call_operand.vmem [shape: bf16[512,64], index: 0, kind: input, shape index: {}]
  %s1 = inlined_call_operand.vmem [shape: bf16[64,8], index: 1, kind: input, shape index: {}]
  %s2 = inlined_call_operand.vmem [shape: f32[1,8], index: 2, kind: input, shape index: {}]
  %s3 = inlined_call_operand.vmem [shape: bf16[512,8], index: 3, kind: output, shape index: {}]
  %s4 = sld [smem:[#allocation0]]
  $region30: #{unet_generator.10} parent=0
    _
  %s6 = ssub.s32 1, %s4
  %s7 = scalar_select 0, %s6, %s4
  // Predicated region
  $region2: #{unet_generator.10} parent=0 // pred_check
    _
  $region3: #{unet_generator.10} parent=0 // pred_check_branch
    %9 = sbr.rel (0) target = $region5
  $region4: #{unet_generator.10} parent=0 // pred_region
    _
  $region5: #{unet_generator.10} parent=0 // pred_fallthru
    _
  // Predicated region
  $region6: #{unet_generator.10} parent=0 // pred_check
    _
  $region7: #{unet_generator.10} parent=0 // pred_check_branch
    %11 = sbr.rel (0) target = $region9
  $region8: #{unet_generator.10} parent=0 // pred_region
    _
  $region9: #{unet_generator.10} parent=0 // pred_fallthru
    _
  // Predicated region
  $region10: #{unet_generator.10} parent=0 // pred_check
    _
  $region11: #{unet_generator.10} parent=0 // pred_check_branch
    %13 = sbr.rel (0) target = $region13
  $region12: #{unet_generator.10} parent=0 // pred_region
    _
  $region13: #{unet_generator.10} parent=0 // pred_fallthru
    _
  %p15 = scmp.eq.s32.totalorder 0, 0
  // Predicated region
  $region14: #{unet_generator.10} parent=0 // pred_check
    %p16 = pneg %p15
  $region15: #{unet_generator.10} parent=0 // pred_check_branch
    %18 = sbr.rel (%p16) target = $region17
  $region16: #{unet_generator.10} parent=0 // pred_region
    %v19 = vld [vmem:[%s2] sm:$0x1]
    %v21 = vlaneseq
    %v22 = vshrl.u32 %v21, 7
    %v23 = vsub.s32 0, %v22
    %v24 = vrot.slane %v19, %v23
    %vm26 = vcmask 64512
    %27 = vst.msk [vmem:[#allocation2] sm:$0xff] %vm26, %v24
    %28 = vst.msk [vmem:[#allocation2 + $0x8] sm:$0xff] %vm26, %v24
    %29 = vst.msk [vmem:[#allocation2 + $0x10] sm:$0xff] %vm26, %v24
    %30 = vst.msk [vmem:[#allocation2 + $0x18] sm:$0xff] %vm26, %v24
    %31 = vst.msk [vmem:[#allocation2 + $0x20] sm:$0xff] %vm26, %v24
    %32 = vst.msk [vmem:[#allocation2 + $0x28] sm:$0xff] %vm26, %v24
    %33 = vst.msk [vmem:[#allocation2 + $0x30] sm:$0xff] %vm26, %v24
    %34 = vst.msk [vmem:[#allocation2 + $0x38] sm:$0xff] %vm26, %v24
    %35 = vst.msk [vmem:[#allocation2 + $0x40] sm:$0xff] %vm26, %v24
    %36 = vst.msk [vmem:[#allocation2 + $0x48] sm:$0xff] %vm26, %v24
    %37 = vst.msk [vmem:[#allocation2 + $0x50] sm:$0xff] %vm26, %v24
    %38 = vst.msk [vmem:[#allocation2 + $0x58] sm:$0xff] %vm26, %v24
    %39 = vst.msk [vmem:[#allocation2 + $0x60] sm:$0xff] %vm26, %v24
    %40 = vst.msk [vmem:[#allocation2 + $0x68] sm:$0xff] %vm26, %v24
    %41 = vst.msk [vmem:[#allocation2 + $0x70] sm:$0xff] %vm26, %v24
    %42 = vst.msk [vmem:[#allocation2 + $0x78] sm:$0xff] %vm26, %v24
    %43 = vst.msk [vmem:[#allocation2 + $0x80] sm:$0xff] %vm26, %v24
    %44 = vst.msk [vmem:[#allocation2 + $0x88] sm:$0xff] %vm26, %v24
    %45 = vst.msk [vmem:[#allocation2 + $0x90] sm:$0xff] %vm26, %v24
    %46 = vst.msk [vmem:[#allocation2 + $0x98] sm:$0xff] %vm26, %v24
    %47 = vst.msk [vmem:[#allocation2 + $0xa0] sm:$0xff] %vm26, %v24
    %48 = vst.msk [vmem:[#allocation2 + $0xa8] sm:$0xff] %vm26, %v24
    %49 = vst.msk [vmem:[#allocation2 + $0xb0] sm:$0xff] %vm26, %v24
    %50 = vst.msk [vmem:[#allocation2 + $0xb8] sm:$0xff] %vm26, %v24
    %51 = vst.msk [vmem:[#allocation2 + $0xc0] sm:$0xff] %vm26, %v24
    %52 = vst.msk [vmem:[#allocation2 + $0xc8] sm:$0xff] %vm26, %v24
    %53 = vst.msk [vmem:[#allocation2 + $0xd0] sm:$0xff] %vm26, %v24
    %54 = vst.msk [vmem:[#allocation2 + $0xd8] sm:$0xff] %vm26, %v24
    %55 = vst.msk [vmem:[#allocation2 + $0xe0] sm:$0xff] %vm26, %v24
    %56 = vst.msk [vmem:[#allocation2 + $0xe8] sm:$0xff] %vm26, %v24
    %57 = vst.msk [vmem:[#allocation2 + $0xf0] sm:$0xff] %vm26, %v24
    %58 = vst.msk [vmem:[#allocation2 + $0xf8] sm:$0xff] %vm26, %v24
    %59 = vst.msk [vmem:[#allocation2 + $0x100] sm:$0xff] %vm26, %v24
    %60 = vst.msk [vmem:[#allocation2 + $0x108] sm:$0xff] %vm26, %v24
    %61 = vst.msk [vmem:[#allocation2 + $0x110] sm:$0xff] %vm26, %v24
    %62 = vst.msk [vmem:[#allocation2 + $0x118] sm:$0xff] %vm26, %v24
    %63 = vst.msk [vmem:[#allocation2 + $0x120] sm:$0xff] %vm26, %v24
    %64 = vst.msk [vmem:[#allocation2 + $0x128] sm:$0xff] %vm26, %v24
    %65 = vst.msk [vmem:[#allocation2 + $0x130] sm:$0xff] %vm26, %v24
    %66 = vst.msk [vmem:[#allocation2 + $0x138] sm:$0xff] %vm26, %v24
    %67 = vst.msk [vmem:[#allocation2 + $0x140] sm:$0xff] %vm26, %v24
    %68 = vst.msk [vmem:[#allocation2 + $0x148] sm:$0xff] %vm26, %v24
    %69 = vst.msk [vmem:[#allocation2 + $0x150] sm:$0xff] %vm26, %v24
    %70 = vst.msk [vmem:[#allocation2 + $0x158] sm:$0xff] %vm26, %v24
    %71 = vst.msk [vmem:[#allocation2 + $0x160] sm:$0xff] %vm26, %v24
    %72 = vst.msk [vmem:[#allocation2 + $0x168] sm:$0xff] %vm26, %v24
    %73 = vst.msk [vmem:[#allocation2 + $0x170] sm:$0xff] %vm26, %v24
    %74 = vst.msk [vmem:[#allocation2 + $0x178] sm:$0xff] %vm26, %v24
    %75 = vst.msk [vmem:[#allocation2 + $0x180] sm:$0xff] %vm26, %v24
    %76 = vst.msk [vmem:[#allocation2 + $0x188] sm:$0xff] %vm26, %v24
    %77 = vst.msk [vmem:[#allocation2 + $0x190] sm:$0xff] %vm26, %v24
    %78 = vst.msk [vmem:[#allocation2 + $0x198] sm:$0xff] %vm26, %v24
    %79 = vst.msk [vmem:[#allocation2 + $0x1a0] sm:$0xff] %vm26, %v24
    %80 = vst.msk [vmem:[#allocation2 + $0x1a8] sm:$0xff] %vm26, %v24
    %81 = vst.msk [vmem:[#allocation2 + $0x1b0] sm:$0xff] %vm26, %v24
    %82 = vst.msk [vmem:[#allocation2 + $0x1b8] sm:$0xff] %vm26, %v24
    %83 = vst.msk [vmem:[#allocation2 + $0x1c0] sm:$0xff] %vm26, %v24
    %84 = vst.msk [vmem:[#allocation2 + $0x1c8] sm:$0xff] %vm26, %v24
    %85 = vst.msk [vmem:[#allocation2 + $0x1d0] sm:$0xff] %vm26, %v24
    %86 = vst.msk [vmem:[#allocation2 + $0x1d8] sm:$0xff] %vm26, %v24
    %87 = vst.msk [vmem:[#allocation2 + $0x1e0] sm:$0xff] %vm26, %v24
    %88 = vst.msk [vmem:[#allocation2 + $0x1e8] sm:$0xff] %vm26, %v24
    %89 = vst.msk [vmem:[#allocation2 + $0x1f0] sm:$0xff] %vm26, %v24
    %90 = vst.msk [vmem:[#allocation2 + $0x1f8] sm:$0xff] %vm26, %v24
  $region17: #{unet_generator.10} parent=0 // pred_fallthru
    _
  %v91 = vld [vmem:[#allocation2] sm:$0xff]
  %v92 = vld [vmem:[#allocation2 + $0x8] sm:$0xff]
  %v93 = vld [vmem:[#allocation2 + $0x10] sm:$0xff]
  %v94 = vld [vmem:[#allocation2 + $0x18] sm:$0xff]
  %v95 = vld [vmem:[#allocation2 + $0x20] sm:$0xff]
  %v96 = vld [vmem:[#allocation2 + $0x28] sm:$0xff]
  %v97 = vld [vmem:[#allocation2 + $0x30] sm:$0xff]
  %v98 = vld [vmem:[#allocation2 + $0x38] sm:$0xff]
  %v99 = vld [vmem:[#allocation2 + $0x40] sm:$0xff]
  %v100 = vld [vmem:[#allocation2 + $0x48] sm:$0xff]
  %v101 = vld [vmem:[#allocation2 + $0x50] sm:$0xff]
  %v102 = vld [vmem:[#allocation2 + $0x58] sm:$0xff]
  %v103 = vld [vmem:[#allocation2 + $0x60] sm:$0xff]
  %v104 = vld [vmem:[#allocation2 + $0x68] sm:$0xff]
  %v105 = vld [vmem:[#allocation2 + $0x70] sm:$0xff]
  %v106 = vld [vmem:[#allocation2 + $0x78] sm:$0xff]
  %v107 = vld [vmem:[#allocation2 + $0x80] sm:$0xff]
  %v108 = vld [vmem:[#allocation2 + $0x88] sm:$0xff]
  %v109 = vld [vmem:[#allocation2 + $0x90] sm:$0xff]
  %v110 = vld [vmem:[#allocation2 + $0x98] sm:$0xff]
  %v111 = vld [vmem:[#allocation2 + $0xa0] sm:$0xff]
  %v112 = vld [vmem:[#allocation2 + $0xa8] sm:$0xff]
  %v113 = vld [vmem:[#allocation2 + $0xb0] sm:$0xff]
  %v114 = vld [vmem:[#allocation2 + $0xb8] sm:$0xff]
  %v115 = vld [vmem:[#allocation2 + $0xc0] sm:$0xff]
  %v116 = vld [vmem:[#allocation2 + $0xc8] sm:$0xff]
  %v117 = vld [vmem:[#allocation2 + $0xd0] sm:$0xff]
  %v118 = vld [vmem:[#allocation2 + $0xd8] sm:$0xff]
  %v119 = vld [vmem:[#allocation2 + $0xe0] sm:$0xff]
  %v120 = vld [vmem:[#allocation2 + $0xe8] sm:$0xff]
  %v121 = vld [vmem:[#allocation2 + $0xf0] sm:$0xff]
  %v122 = vld [vmem:[#allocation2 + $0xf8] sm:$0xff]
  %v123 = vld [vmem:[#allocation2 + $0x100] sm:$0xff]
  %v124 = vld [vmem:[#allocation2 + $0x108] sm:$0xff]
  %v125 = vld [vmem:[#allocation2 + $0x110] sm:$0xff]
  %v126 = vld [vmem:[#allocation2 + $0x118] sm:$0xff]
  %v127 = vld [vmem:[#allocation2 + $0x120] sm:$0xff]
  %v128 = vld [vmem:[#allocation2 + $0x128] sm:$0xff]
  %v129 = vld [vmem:[#allocation2 + $0x130] sm:$0xff]
  %v130 = vld [vmem:[#allocation2 + $0x138] sm:$0xff]
  %v131 = vld [vmem:[#allocation2 + $0x140] sm:$0xff]
  %v132 = vld [vmem:[#allocation2 + $0x148] sm:$0xff]
  %v133 = vld [vmem:[#allocation2 + $0x150] sm:$0xff]
  %v134 = vld [vmem:[#allocation2 + $0x158] sm:$0xff]
  %v135 = vld [vmem:[#allocation2 + $0x160] sm:$0xff]
  %v136 = vld [vmem:[#allocation2 + $0x168] sm:$0xff]
  %v137 = vld [vmem:[#allocation2 + $0x170] sm:$0xff]
  %v138 = vld [vmem:[#allocation2 + $0x178] sm:$0xff]
  %v139 = vld [vmem:[#allocation2 + $0x180] sm:$0xff]
  %v140 = vld [vmem:[#allocation2 + $0x188] sm:$0xff]
  %v141 = vld [vmem:[#allocation2 + $0x190] sm:$0xff]
  %v142 = vld [vmem:[#allocation2 + $0x198] sm:$0xff]
  %v143 = vld [vmem:[#allocation2 + $0x1a0] sm:$0xff]
  %v144 = vld [vmem:[#allocation2 + $0x1a8] sm:$0xff]
  %v145 = vld [vmem:[#allocation2 + $0x1b0] sm:$0xff]
  %v146 = vld [vmem:[#allocation2 + $0x1b8] sm:$0xff]
  %v147 = vld [vmem:[#allocation2 + $0x1c0] sm:$0xff]
  %v148 = vld [vmem:[#allocation2 + $0x1c8] sm:$0xff]
  %v149 = vld [vmem:[#allocation2 + $0x1d0] sm:$0xff]
  %v150 = vld [vmem:[#allocation2 + $0x1d8] sm:$0xff]
  %v151 = vld [vmem:[#allocation2 + $0x1e0] sm:$0xff]
  %v152 = vld [vmem:[#allocation2 + $0x1e8] sm:$0xff]
  %v153 = vld [vmem:[#allocation2 + $0x1f0] sm:$0xff]
  %v154 = vld [vmem:[#allocation2 + $0x1f8] sm:$0xff]
  %v155 = vld [vmem:[%s0] sm:$0xf]
  %v156 = vld [vmem:[%s0 + $0x4] sm:$0xf]
  %v157 = vld [vmem:[%s0 + $0x8] sm:$0xf]
  %v158 = vld [vmem:[%s0 + $0xc] sm:$0xf]
  %v159 = vld [vmem:[%s0 + $0x10] sm:$0xf]
  %v160 = vld [vmem:[%s0 + $0x14] sm:$0xf]
  %v161 = vld [vmem:[%s0 + $0x18] sm:$0xf]
  %v162 = vld [vmem:[%s0 + $0x1c] sm:$0xf]
  %v163 = vld [vmem:[%s0 + $0x20] sm:$0xf]
  %v164 = vld [vmem:[%s0 + $0x24] sm:$0xf]
  %v165 = vld [vmem:[%s0 + $0x28] sm:$0xf]
  %v166 = vld [vmem:[%s0 + $0x2c] sm:$0xf]
  %v167 = vld [vmem:[%s0 + $0x30] sm:$0xf]
  %v168 = vld [vmem:[%s0 + $0x34] sm:$0xf]
  %v169 = vld [vmem:[%s0 + $0x38] sm:$0xf]
  %v170 = vld [vmem:[%s0 + $0x3c] sm:$0xf]
  %v171 = vld [vmem:[%s0 + $0x40] sm:$0xf]
  %v172 = vld [vmem:[%s0 + $0x44] sm:$0xf]
  %v173 = vld [vmem:[%s0 + $0x48] sm:$0xf]
  %v174 = vld [vmem:[%s0 + $0x4c] sm:$0xf]
  %v175 = vld [vmem:[%s0 + $0x50] sm:$0xf]
  %v176 = vld [vmem:[%s0 + $0x54] sm:$0xf]
  %v177 = vld [vmem:[%s0 + $0x58] sm:$0xf]
  %v178 = vld [vmem:[%s0 + $0x5c] sm:$0xf]
  %v179 = vld [vmem:[%s0 + $0x60] sm:$0xf]
  %v180 = vld [vmem:[%s0 + $0x64] sm:$0xf]
  %v181 = vld [vmem:[%s0 + $0x68] sm:$0xf]
  %v182 = vld [vmem:[%s0 + $0x6c] sm:$0xf]
  %v183 = vld [vmem:[%s0 + $0x70] sm:$0xf]
  %v184 = vld [vmem:[%s0 + $0x74] sm:$0xf]
  %v185 = vld [vmem:[%s0 + $0x78] sm:$0xf]
  %v186 = vld [vmem:[%s0 + $0x7c] sm:$0xf]
  %v187 = vld [vmem:[%s0 + $0x80] sm:$0xf]
  %v188 = vld [vmem:[%s0 + $0x84] sm:$0xf]
  %v189 = vld [vmem:[%s0 + $0x88] sm:$0xf]
  %v190 = vld [vmem:[%s0 + $0x8c] sm:$0xf]
  %v191 = vld [vmem:[%s0 + $0x90] sm:$0xf]
  %v192 = vld [vmem:[%s0 + $0x94] sm:$0xf]
  %v193 = vld [vmem:[%s0 + $0x98] sm:$0xf]
  %v194 = vld [vmem:[%s0 + $0x9c] sm:$0xf]
  %v195 = vld [vmem:[%s0 + $0xa0] sm:$0xf]
  %v196 = vld [vmem:[%s0 + $0xa4] sm:$0xf]
  %v197 = vld [vmem:[%s0 + $0xa8] sm:$0xf]
  %v198 = vld [vmem:[%s0 + $0xac] sm:$0xf]
  %v199 = vld [vmem:[%s0 + $0xb0] sm:$0xf]
  %v200 = vld [vmem:[%s0 + $0xb4] sm:$0xf]
  %v201 = vld [vmem:[%s0 + $0xb8] sm:$0xf]
  %v202 = vld [vmem:[%s0 + $0xbc] sm:$0xf]
  %v203 = vld [vmem:[%s0 + $0xc0] sm:$0xf]
  %v204 = vld [vmem:[%s0 + $0xc4] sm:$0xf]
  %v205 = vld [vmem:[%s0 + $0xc8] sm:$0xf]
  %v206 = vld [vmem:[%s0 + $0xcc] sm:$0xf]
  %v207 = vld [vmem:[%s0 + $0xd0] sm:$0xf]
  %v208 = vld [vmem:[%s0 + $0xd4] sm:$0xf]
  %v209 = vld [vmem:[%s0 + $0xd8] sm:$0xf]
  %v210 = vld [vmem:[%s0 + $0xdc] sm:$0xf]
  %v211 = vld [vmem:[%s0 + $0xe0] sm:$0xf]
  %v212 = vld [vmem:[%s0 + $0xe4] sm:$0xf]
  %v213 = vld [vmem:[%s0 + $0xe8] sm:$0xf]
  %v214 = vld [vmem:[%s0 + $0xec] sm:$0xf]
  %v215 = vld [vmem:[%s0 + $0xf0] sm:$0xf]
  %v216 = vld [vmem:[%s0 + $0xf4] sm:$0xf]
  %v217 = vld [vmem:[%s0 + $0xf8] sm:$0xf]
  %v218 = vld [vmem:[%s0 + $0xfc] sm:$0xf]
  %v219 = vld [vmem:[%s1] sm:$0xf]
  %v220 = vld [vmem:[%s1 + $0x4] sm:$0xf]
  %v221 = vld [vmem:[%s1 + $0x8] sm:$0xf]
  %v222 = vld [vmem:[%s1 + $0xc] sm:$0xf]
  %v223 = vld [vmem:[%s1 + $0x10] sm:$0xf]
  %v224 = vld [vmem:[%s1 + $0x14] sm:$0xf]
  %v225 = vld [vmem:[%s1 + $0x18] sm:$0xf]
  %v226 = vld [vmem:[%s1 + $0x1c] sm:$0xf]
  %v291 = vunpack.c.l.b16 %v155
  %v292 = vunpack.c.l.b16 %v156
  %v293 = vunpack.c.l.b16 %v157
  %v294 = vunpack.c.l.b16 %v158
  %v295 = vunpack.c.l.b16 %v159
  %v296 = vunpack.c.l.b16 %v160
  %v297 = vunpack.c.l.b16 %v161
  %v298 = vunpack.c.l.b16 %v162
  %v299 = vunpack.c.l.b16 %v163
  %v300 = vunpack.c.l.b16 %v164
  %v301 = vunpack.c.l.b16 %v165
  %v302 = vunpack.c.l.b16 %v166
  %v303 = vunpack.c.l.b16 %v167
  %v304 = vunpack.c.l.b16 %v168
  %v305 = vunpack.c.l.b16 %v169
  %v306 = vunpack.c.l.b16 %v170
  %v307 = vunpack.c.l.b16 %v171
  %v308 = vunpack.c.l.b16 %v172
  %v309 = vunpack.c.l.b16 %v173
  %v310 = vunpack.c.l.b16 %v174
  %v311 = vunpack.c.l.b16 %v175
  %v312 = vunpack.c.l.b16 %v176
  %v313 = vunpack.c.l.b16 %v177
  %v314 = vunpack.c.l.b16 %v178
  %v315 = vunpack.c.l.b16 %v179
  %v316 = vunpack.c.l.b16 %v180
  %v317 = vunpack.c.l.b16 %v181
  %v318 = vunpack.c.l.b16 %v182
  %v319 = vunpack.c.l.b16 %v183
  %v320 = vunpack.c.l.b16 %v184
  %v321 = vunpack.c.l.b16 %v185
  %v322 = vunpack.c.l.b16 %v186
  %v323 = vunpack.c.l.b16 %v187
  %v324 = vunpack.c.l.b16 %v188
  %v325 = vunpack.c.l.b16 %v189
  %v326 = vunpack.c.l.b16 %v190
  %v327 = vunpack.c.l.b16 %v191
  %v328 = vunpack.c.l.b16 %v192
  %v329 = vunpack.c.l.b16 %v193
  %v330 = vunpack.c.l.b16 %v194
  %v331 = vunpack.c.l.b16 %v195
  %v332 = vunpack.c.l.b16 %v196
  %v333 = vunpack.c.l.b16 %v197
  %v334 = vunpack.c.l.b16 %v198
  %v335 = vunpack.c.l.b16 %v199
  %v336 = vunpack.c.l.b16 %v200
  %v337 = vunpack.c.l.b16 %v201
  %v338 = vunpack.c.l.b16 %v202
  %v339 = vunpack.c.l.b16 %v203
  %v340 = vunpack.c.l.b16 %v204
  %v341 = vunpack.c.l.b16 %v205
  %v342 = vunpack.c.l.b16 %v206
  %v343 = vunpack.c.l.b16 %v207
  %v344 = vunpack.c.l.b16 %v208
  %v345 = vunpack.c.l.b16 %v209
  %v346 = vunpack.c.l.b16 %v210
  %v347 = vunpack.c.l.b16 %v211
  %v348 = vunpack.c.l.b16 %v212
  %v349 = vunpack.c.l.b16 %v213
  %v350 = vunpack.c.l.b16 %v214
  %v351 = vunpack.c.l.b16 %v215
  %v352 = vunpack.c.l.b16 %v216
  %v353 = vunpack.c.l.b16 %v217
  %v354 = vunpack.c.l.b16 %v218
  %v355 = vpack.c.b16 %v292, %v291
  %v356 = vpack.c.b16 %v294, %v293
  %v357 = vpack.c.b16 %v296, %v295
  %v358 = vpack.c.b16 %v298, %v297
  %v359 = vpack.c.b16 %v300, %v299
  %v360 = vpack.c.b16 %v302, %v301
  %v361 = vpack.c.b16 %v304, %v303
  %v362 = vpack.c.b16 %v306, %v305
  %v363 = vpack.c.b16 %v308, %v307
  %v364 = vpack.c.b16 %v310, %v309
  %v365 = vpack.c.b16 %v312, %v311
  %v366 = vpack.c.b16 %v314, %v313
  %v367 = vpack.c.b16 %v316, %v315
  %v368 = vpack.c.b16 %v318, %v317
  %v369 = vpack.c.b16 %v320, %v319
  %v370 = vpack.c.b16 %v322, %v321
  %v371 = vpack.c.b16 %v324, %v323
  %v372 = vpack.c.b16 %v326, %v325
  %v373 = vpack.c.b16 %v328, %v327
  %v374 = vpack.c.b16 %v330, %v329
  %v375 = vpack.c.b16 %v332, %v331
  %v376 = vpack.c.b16 %v334, %v333
  %v377 = vpack.c.b16 %v336, %v335
  %v378 = vpack.c.b16 %v338, %v337
  %v379 = vpack.c.b16 %v340, %v339
  %v380 = vpack.c.b16 %v342, %v341
  %v381 = vpack.c.b16 %v344, %v343
  %v382 = vpack.c.b16 %v346, %v345
  %v383 = vpack.c.b16 %v348, %v347
  %v384 = vpack.c.b16 %v350, %v349
  %v385 = vpack.c.b16 %v352, %v351
  %v386 = vpack.c.b16 %v354, %v353
  %v395 = vunpack.c.l.b16 %v219
  %v396 = vunpack.c.l.b16 %v220
  %v397 = vunpack.c.l.b16 %v221
  %v398 = vunpack.c.l.b16 %v222
  %v399 = vunpack.c.l.b16 %v223
  %v400 = vunpack.c.l.b16 %v224
  %v401 = vunpack.c.l.b16 %v225
  %v402 = vunpack.c.l.b16 %v226
  %v403 = vpack.c.b16 %v396, %v395
  %v404 = vpack.c.b16 %v398, %v397
  %v405 = vpack.c.b16 %v400, %v399
  %v406 = vpack.c.b16 %v402, %v401
  %vm411 = vcmask 523264
  %v413 = vsel %vm411, %v355, 0
  %v416 = vsel %vm411, %v356, 0
  %v419 = vsel %vm411, %v357, 0
  %v422 = vsel %vm411, %v358, 0
  %v425 = vsel %vm411, %v359, 0
  %v428 = vsel %vm411, %v360, 0
  %v431 = vsel %vm411, %v361, 0
  %v434 = vsel %vm411, %v362, 0
  %v437 = vsel %vm411, %v363, 0
  %v440 = vsel %vm411, %v364, 0
  %v443 = vsel %vm411, %v365, 0
  %v446 = vsel %vm411, %v366, 0
  %v449 = vsel %vm411, %v367, 0
  %v452 = vsel %vm411, %v368, 0
  %v455 = vsel %vm411, %v369, 0
  %v458 = vsel %vm411, %v370, 0
  %v461 = vsel %vm411, %v371, 0
  %v464 = vsel %vm411, %v372, 0
  %v467 = vsel %vm411, %v373, 0
  %v470 = vsel %vm411, %v374, 0
  %v473 = vsel %vm411, %v375, 0
  %v476 = vsel %vm411, %v376, 0
  %v479 = vsel %vm411, %v377, 0
  %v482 = vsel %vm411, %v378, 0
  %v485 = vsel %vm411, %v379, 0
  %v488 = vsel %vm411, %v380, 0
  %v491 = vsel %vm411, %v381, 0
  %v494 = vsel %vm411, %v382, 0
  %v497 = vsel %vm411, %v383, 0
  %v500 = vsel %vm411, %v384, 0
  %v503 = vsel %vm411, %v385, 0
  %v506 = vsel %vm411, %v386, 0
  %508 = vmatprep.subr.bf16.mxu0 0
  %509 = vmatpush1.bf16.msra.mxu0 0
  %510 = vmatprep.subr.bf16.mxu0 0
  %511 = vmatpush1.bf16.msra.mxu0 0
  %512 = vmatprep.subr.bf16.mxu0 0
  %513 = vmatpush1.bf16.msra.mxu0 0
  %514 = vmatprep.subr.bf16.mxu0 0
  %515 = vmatpush1.bf16.msra.mxu0 0
  %516 = vmatprep.subr.bf16.mxu0 0
  %517 = vmatpush1.bf16.msra.mxu0 %v406
  %518 = vmatprep.subr.bf16.mxu0 0
  %519 = vmatpush1.bf16.msra.mxu0 %v405
  %520 = vmatprep.subr.bf16.mxu0 0
  %521 = vmatpush1.bf16.msra.mxu0 %v404
  %522 = vmatprep.subr.bf16.mxu0 0
  %523 = vmatpush1.bf16.msra.mxu0 %v403
  %524 = vmatprep.subr.bf16.mxu0 0
  %525 = vmatpush2.bf16.msra.mxu0 0
  %526 = vmatprep.subr.bf16.mxu0 0
  %527 = vmatpush2.bf16.msra.mxu0 0
  %528 = vmatprep.subr.bf16.mxu0 0
  %529 = vmatpush2.bf16.msra.mxu0 0
  %530 = vmatprep.subr.bf16.mxu0 0
  %531 = vmatpush2.bf16.msra.mxu0 0
  %532 = vmatprep.subr.bf16.mxu0 0
  %533 = vmatpush2.bf16.msra.mxu0 0
  %534 = vmatprep.subr.bf16.mxu0 0
  %535 = vmatpush2.bf16.msra.mxu0 0
  %536 = vmatprep.subr.bf16.mxu0 0
  %537 = vmatpush2.bf16.msra.mxu0 0
  %538 = vmatprep.subr.bf16.mxu0 0
  %539 = vmatpush2.bf16.msra.mxu0 0
  %540 = vmatprep.mubr.bf16.mxu0 0
  %541 = vmatmul.mubr.bf16.gmra.mxu0 %v413
  %v542 = vpop.f32.mrf.mxu0
  %v543 = vadd.f32 0.0, %v542
  %v544 = vpop.f32.mrf.mxu0
  %v545 = vpop.f32.mrf.mxu0
  %v546 = vadd.f32 0.0, %v545
  %v547 = vpop.f32.mrf.mxu0
  %548 = vmatprep.mubr.bf16.mxu0 0
  %549 = vmatmul.mubr.bf16.gmra.mxu0 %v416
  %v550 = vpop.f32.mrf.mxu0
  %v551 = vadd.f32 0.0, %v550
  %v552 = vpop.f32.mrf.mxu0
  %v553 = vpop.f32.mrf.mxu0
  %v554 = vadd.f32 0.0, %v553
  %v555 = vpop.f32.mrf.mxu0
  %556 = vmatprep.mubr.bf16.mxu0 0
  %557 = vmatmul.mubr.bf16.gmra.mxu0 %v419
  %v558 = vpop.f32.mrf.mxu0
  %v559 = vadd.f32 0.0, %v558
  %v560 = vpop.f32.mrf.mxu0
  %v561 = vpop.f32.mrf.mxu0
  %v562 = vadd.f32 0.0, %v561
  %v563 = vpop.f32.mrf.mxu0
  %564 = vmatprep.mubr.bf16.mxu0 0
  %565 = vmatmul.mubr.bf16.gmra.mxu0 %v422
  %v566 = vpop.f32.mrf.mxu0
  %v567 = vadd.f32 0.0, %v566
  %v568 = vpop.f32.mrf.mxu0
  %v569 = vpop.f32.mrf.mxu0
  %v570 = vadd.f32 0.0, %v569
  %v571 = vpop.f32.mrf.mxu0
  %572 = vmatprep.mubr.bf16.mxu0 0
  %573 = vmatmul.mubr.bf16.gmra.mxu0 %v425
  %v574 = vpop.f32.mrf.mxu0
  %v575 = vadd.f32 0.0, %v574
  %v576 = vpop.f32.mrf.mxu0
  %v577 = vpop.f32.mrf.mxu0
  %v578 = vadd.f32 0.0, %v577
  %v579 = vpop.f32.mrf.mxu0
  %580 = vmatprep.mubr.bf16.mxu0 0
  %581 = vmatmul.mubr.bf16.gmra.mxu0 %v428
  %v582 = vpop.f32.mrf.mxu0
  %v583 = vadd.f32 0.0, %v582
  %v584 = vpop.f32.mrf.mxu0
  %v585 = vpop.f32.mrf.mxu0
  %v586 = vadd.f32 0.0, %v585
  %v587 = vpop.f32.mrf.mxu0
  %588 = vmatprep.mubr.bf16.mxu0 0
  %589 = vmatmul.mubr.bf16.gmra.mxu0 %v431
  %v590 = vpop.f32.mrf.mxu0
  %v591 = vadd.f32 0.0, %v590
  %v592 = vpop.f32.mrf.mxu0
  %v593 = vpop.f32.mrf.mxu0
  %v594 = vadd.f32 0.0, %v593
  %v595 = vpop.f32.mrf.mxu0
  %596 = vmatprep.mubr.bf16.mxu0 0
  %597 = vmatmul.mubr.bf16.gmra.mxu0 %v434
  %v598 = vpop.f32.mrf.mxu0
  %v599 = vadd.f32 0.0, %v598
  %v600 = vpop.f32.mrf.mxu0
  %v601 = vpop.f32.mrf.mxu0
  %v602 = vadd.f32 0.0, %v601
  %v603 = vpop.f32.mrf.mxu0
  %604 = vmatprep.mubr.bf16.mxu0 0
  %605 = vmatmul.mubr.bf16.gmra.mxu0 %v437
  %v606 = vpop.f32.mrf.mxu0
  %v607 = vadd.f32 0.0, %v606
  %v608 = vpop.f32.mrf.mxu0
  %v609 = vpop.f32.mrf.mxu0
  %v610 = vadd.f32 0.0, %v609
  %v611 = vpop.f32.mrf.mxu0
  %612 = vmatprep.mubr.bf16.mxu0 0
  %613 = vmatmul.mubr.bf16.gmra.mxu0 %v440
  %v614 = vpop.f32.mrf.mxu0
  %v615 = vadd.f32 0.0, %v614
  %v616 = vpop.f32.mrf.mxu0
  %v617 = vpop.f32.mrf.mxu0
  %v618 = vadd.f32 0.0, %v617
  %v619 = vpop.f32.mrf.mxu0
  %620 = vmatprep.mubr.bf16.mxu0 0
  %621 = vmatmul.mubr.bf16.gmra.mxu0 %v443
  %v622 = vpop.f32.mrf.mxu0
  %v623 = vadd.f32 0.0, %v622
  %v624 = vpop.f32.mrf.mxu0
  %v625 = vpop.f32.mrf.mxu0
  %v626 = vadd.f32 0.0, %v625
  %v627 = vpop.f32.mrf.mxu0
  %628 = vmatprep.mubr.bf16.mxu0 0
  %629 = vmatmul.mubr.bf16.gmra.mxu0 %v446
  %v630 = vpop.f32.mrf.mxu0
  %v631 = vadd.f32 0.0, %v630
  %v632 = vpop.f32.mrf.mxu0
  %v633 = vpop.f32.mrf.mxu0
  %v634 = vadd.f32 0.0, %v633
  %v635 = vpop.f32.mrf.mxu0
  %636 = vmatprep.mubr.bf16.mxu0 0
  %637 = vmatmul.mubr.bf16.gmra.mxu0 %v449
  %v638 = vpop.f32.mrf.mxu0
  %v639 = vadd.f32 0.0, %v638
  %v640 = vpop.f32.mrf.mxu0
  %v641 = vpop.f32.mrf.mxu0
  %v642 = vadd.f32 0.0, %v641
  %v643 = vpop.f32.mrf.mxu0
  %644 = vmatprep.mubr.bf16.mxu0 0
  %645 = vmatmul.mubr.bf16.gmra.mxu0 %v452
  %v646 = vpop.f32.mrf.mxu0
  %v647 = vadd.f32 0.0, %v646
  %v648 = vpop.f32.mrf.mxu0
  %v649 = vpop.f32.mrf.mxu0
  %v650 = vadd.f32 0.0, %v649
  %v651 = vpop.f32.mrf.mxu0
  %652 = vmatprep.mubr.bf16.mxu0 0
  %653 = vmatmul.mubr.bf16.gmra.mxu0 %v455
  %v654 = vpop.f32.mrf.mxu0
  %v655 = vadd.f32 0.0, %v654
  %v656 = vpop.f32.mrf.mxu0
  %v657 = vpop.f32.mrf.mxu0
  %v658 = vadd.f32 0.0, %v657
  %v659 = vpop.f32.mrf.mxu0
  %660 = vmatprep.mubr.bf16.mxu0 0
  %661 = vmatmul.mubr.bf16.gmra.mxu0 %v458
  %v662 = vpop.f32.mrf.mxu0
  %v663 = vadd.f32 0.0, %v662
  %v664 = vpop.f32.mrf.mxu0
  %v665 = vpop.f32.mrf.mxu0
  %v666 = vadd.f32 0.0, %v665
  %v667 = vpop.f32.mrf.mxu0
  %668 = vmatprep.mubr.bf16.mxu0 0
  %669 = vmatmul.mubr.bf16.gmra.mxu0 %v461
  %v670 = vpop.f32.mrf.mxu0
  %v671 = vadd.f32 0.0, %v670
  %v672 = vpop.f32.mrf.mxu0
  %v673 = vpop.f32.mrf.mxu0
  %v674 = vadd.f32 0.0, %v673
  %v675 = vpop.f32.mrf.mxu0
  %676 = vmatprep.mubr.bf16.mxu0 0
  %677 = vmatmul.mubr.bf16.gmra.mxu0 %v464
  %v678 = vpop.f32.mrf.mxu0
  %v679 = vadd.f32 0.0, %v678
  %v680 = vpop.f32.mrf.mxu0
  %v681 = vpop.f32.mrf.mxu0
  %v682 = vadd.f32 0.0, %v681
  %v683 = vpop.f32.mrf.mxu0
  %684 = vmatprep.mubr.bf16.mxu0 0
  %685 = vmatmul.mubr.bf16.gmra.mxu0 %v467
  %v686 = vpop.f32.mrf.mxu0
  %v687 = vadd.f32 0.0, %v686
  %v688 = vpop.f32.mrf.mxu0
  %v689 = vpop.f32.mrf.mxu0
  %v690 = vadd.f32 0.0, %v689
  %v691 = vpop.f32.mrf.mxu0
  %692 = vmatprep.mubr.bf16.mxu0 0
  %693 = vmatmul.mubr.bf16.gmra.mxu0 %v470
  %v694 = vpop.f32.mrf.mxu0
  %v695 = vadd.f32 0.0, %v694
  %v696 = vpop.f32.mrf.mxu0
  %v697 = vpop.f32.mrf.mxu0
  %v698 = vadd.f32 0.0, %v697
  %v699 = vpop.f32.mrf.mxu0
  %700 = vmatprep.mubr.bf16.mxu0 0
  %701 = vmatmul.mubr.bf16.gmra.mxu0 %v473
  %v702 = vpop.f32.mrf.mxu0
  %v703 = vadd.f32 0.0, %v702
  %v704 = vpop.f32.mrf.mxu0
  %v705 = vpop.f32.mrf.mxu0
  %v706 = vadd.f32 0.0, %v705
  %v707 = vpop.f32.mrf.mxu0
  %708 = vmatprep.mubr.bf16.mxu0 0
  %709 = vmatmul.mubr.bf16.gmra.mxu0 %v476
  %v710 = vpop.f32.mrf.mxu0
  %v711 = vadd.f32 0.0, %v710
  %v712 = vpop.f32.mrf.mxu0
  %v713 = vpop.f32.mrf.mxu0
  %v714 = vadd.f32 0.0, %v713
  %v715 = vpop.f32.mrf.mxu0
  %716 = vmatprep.mubr.bf16.mxu0 0
  %717 = vmatmul.mubr.bf16.gmra.mxu0 %v479
  %v718 = vpop.f32.mrf.mxu0
  %v719 = vadd.f32 0.0, %v718
  %v720 = vpop.f32.mrf.mxu0
  %v721 = vpop.f32.mrf.mxu0
  %v722 = vadd.f32 0.0, %v721
  %v723 = vpop.f32.mrf.mxu0
  %724 = vmatprep.mubr.bf16.mxu0 0
  %725 = vmatmul.mubr.bf16.gmra.mxu0 %v482
  %v726 = vpop.f32.mrf.mxu0
  %v727 = vadd.f32 0.0, %v726
  %v728 = vpop.f32.mrf.mxu0
  %v729 = vpop.f32.mrf.mxu0
  %v730 = vadd.f32 0.0, %v729
  %v731 = vpop.f32.mrf.mxu0
  %732 = vmatprep.mubr.bf16.mxu0 0
  %733 = vmatmul.mubr.bf16.gmra.mxu0 %v485
  %v734 = vpop.f32.mrf.mxu0
  %v735 = vadd.f32 0.0, %v734
  %v736 = vpop.f32.mrf.mxu0
  %v737 = vpop.f32.mrf.mxu0
  %v738 = vadd.f32 0.0, %v737
  %v739 = vpop.f32.mrf.mxu0
  %740 = vmatprep.mubr.bf16.mxu0 0
  %741 = vmatmul.mubr.bf16.gmra.mxu0 %v488
  %v742 = vpop.f32.mrf.mxu0
  %v743 = vadd.f32 0.0, %v742
  %v744 = vpop.f32.mrf.mxu0
  %v745 = vpop.f32.mrf.mxu0
  %v746 = vadd.f32 0.0, %v745
  %v747 = vpop.f32.mrf.mxu0
  %748 = vmatprep.mubr.bf16.mxu0 0
  %749 = vmatmul.mubr.bf16.gmra.mxu0 %v491
  %v750 = vpop.f32.mrf.mxu0
  %v751 = vadd.f32 0.0, %v750
  %v752 = vpop.f32.mrf.mxu0
  %v753 = vpop.f32.mrf.mxu0
  %v754 = vadd.f32 0.0, %v753
  %v755 = vpop.f32.mrf.mxu0
  %756 = vmatprep.mubr.bf16.mxu0 0
  %757 = vmatmul.mubr.bf16.gmra.mxu0 %v494
  %v758 = vpop.f32.mrf.mxu0
  %v759 = vadd.f32 0.0, %v758
  %v760 = vpop.f32.mrf.mxu0
  %v761 = vpop.f32.mrf.mxu0
  %v762 = vadd.f32 0.0, %v761
  %v763 = vpop.f32.mrf.mxu0
  %764 = vmatprep.mubr.bf16.mxu0 0
  %765 = vmatmul.mubr.bf16.gmra.mxu0 %v497
  %v766 = vpop.f32.mrf.mxu0
  %v767 = vadd.f32 0.0, %v766
  %v768 = vpop.f32.mrf.mxu0
  %v769 = vpop.f32.mrf.mxu0
  %v770 = vadd.f32 0.0, %v769
  %v771 = vpop.f32.mrf.mxu0
  %772 = vmatprep.mubr.bf16.mxu0 0
  %773 = vmatmul.mubr.bf16.gmra.mxu0 %v500
  %v774 = vpop.f32.mrf.mxu0
  %v775 = vadd.f32 0.0, %v774
  %v776 = vpop.f32.mrf.mxu0
  %v777 = vpop.f32.mrf.mxu0
  %v778 = vadd.f32 0.0, %v777
  %v779 = vpop.f32.mrf.mxu0
  %780 = vmatprep.mubr.bf16.mxu0 0
  %781 = vmatmul.mubr.bf16.gmra.mxu0 %v503
  %v782 = vpop.f32.mrf.mxu0
  %v783 = vadd.f32 0.0, %v782
  %v784 = vpop.f32.mrf.mxu0
  %v785 = vpop.f32.mrf.mxu0
  %v786 = vadd.f32 0.0, %v785
  %v787 = vpop.f32.mrf.mxu0
  %788 = vmatprep.mubr.bf16.mxu0 0
  %789 = vmatmul.mubr.bf16.gmra.mxu0 %v506
  %v790 = vpop.f32.mrf.mxu0
  %v791 = vadd.f32 0.0, %v790
  %v792 = vpop.f32.mrf.mxu0
  %v793 = vpop.f32.mrf.mxu0
  %v794 = vadd.f32 0.0, %v793
  %v795 = vpop.f32.mrf.mxu0
  %796 = vdwg.mxu0
  %v797 = vadd.f32 %v91, %v543
  %v798 = vadd.f32 %v92, %v546
  %v799 = vadd.f32 %v93, %v551
  %v800 = vadd.f32 %v94, %v554
  %v801 = vadd.f32 %v95, %v559
  %v802 = vadd.f32 %v96, %v562
  %v803 = vadd.f32 %v97, %v567
  %v804 = vadd.f32 %v98, %v570
  %v805 = vadd.f32 %v99, %v575
  %v806 = vadd.f32 %v100, %v578
  %v807 = vadd.f32 %v101, %v583
  %v808 = vadd.f32 %v102, %v586
  %v809 = vadd.f32 %v103, %v591
  %v810 = vadd.f32 %v104, %v594
  %v811 = vadd.f32 %v105, %v599
  %v812 = vadd.f32 %v106, %v602
  %v813 = vadd.f32 %v107, %v607
  %v814 = vadd.f32 %v108, %v610
  %v815 = vadd.f32 %v109, %v615
  %v816 = vadd.f32 %v110, %v618
  %v817 = vadd.f32 %v111, %v623
  %v818 = vadd.f32 %v112, %v626
  %v819 = vadd.f32 %v113, %v631
  %v820 = vadd.f32 %v114, %v634
  %v821 = vadd.f32 %v115, %v639
  %v822 = vadd.f32 %v116, %v642
  %v823 = vadd.f32 %v117, %v647
  %v824 = vadd.f32 %v118, %v650
  %v825 = vadd.f32 %v119, %v655
  %v826 = vadd.f32 %v120, %v658
  %v827 = vadd.f32 %v121, %v663
  %v828 = vadd.f32 %v122, %v666
  %v829 = vadd.f32 %v123, %v671
  %v830 = vadd.f32 %v124, %v674
  %v831 = vadd.f32 %v125, %v679
  %v832 = vadd.f32 %v126, %v682
  %v833 = vadd.f32 %v127, %v687
  %v834 = vadd.f32 %v128, %v690
  %v835 = vadd.f32 %v129, %v695
  %v836 = vadd.f32 %v130, %v698
  %v837 = vadd.f32 %v131, %v703
  %v838 = vadd.f32 %v132, %v706
  %v839 = vadd.f32 %v133, %v711
  %v840 = vadd.f32 %v134, %v714
  %v841 = vadd.f32 %v135, %v719
  %v842 = vadd.f32 %v136, %v722
  %v843 = vadd.f32 %v137, %v727
  %v844 = vadd.f32 %v138, %v730
  %v845 = vadd.f32 %v139, %v735
  %v846 = vadd.f32 %v140, %v738
  %v847 = vadd.f32 %v141, %v743
  %v848 = vadd.f32 %v142, %v746
  %v849 = vadd.f32 %v143, %v751
  %v850 = vadd.f32 %v144, %v754
  %v851 = vadd.f32 %v145, %v759
  %v852 = vadd.f32 %v146, %v762
  %v853 = vadd.f32 %v147, %v767
  %v854 = vadd.f32 %v148, %v770
  %v855 = vadd.f32 %v149, %v775
  %v856 = vadd.f32 %v150, %v778
  %v857 = vadd.f32 %v151, %v783
  %v858 = vadd.f32 %v152, %v786
  %v859 = vadd.f32 %v153, %v791
  %v860 = vadd.f32 %v154, %v794
  %vm861 = vcmask 64512
  %862 = vst.msk [vmem:[#allocation2] sm:$0xff] %vm861, %v797
  %863 = vst.msk [vmem:[#allocation2 + $0x8] sm:$0xff] %vm861, %v798
  %864 = vst.msk [vmem:[#allocation2 + $0x10] sm:$0xff] %vm861, %v799
  %865 = vst.msk [vmem:[#allocation2 + $0x18] sm:$0xff] %vm861, %v800
  %866 = vst.msk [vmem:[#allocation2 + $0x20] sm:$0xff] %vm861, %v801
  %867 = vst.msk [vmem:[#allocation2 + $0x28] sm:$0xff] %vm861, %v802
  %868 = vst.msk [vmem:[#allocation2 + $0x30] sm:$0xff] %vm861, %v803
  %869 = vst.msk [vmem:[#allocation2 + $0x38] sm:$0xff] %vm861, %v804
  %870 = vst.msk [vmem:[#allocation2 + $0x40] sm:$0xff] %vm861, %v805
  %871 = vst.msk [vmem:[#allocation2 + $0x48] sm:$0xff] %vm861, %v806
  %872 = vst.msk [vmem:[#allocation2 + $0x50] sm:$0xff] %vm861, %v807
  %873 = vst.msk [vmem:[#allocation2 + $0x58] sm:$0xff] %vm861, %v808
  %874 = vst.msk [vmem:[#allocation2 + $0x60] sm:$0xff] %vm861, %v809
  %875 = vst.msk [vmem:[#allocation2 + $0x68] sm:$0xff] %vm861, %v810
  %876 = vst.msk [vmem:[#allocation2 + $0x70] sm:$0xff] %vm861, %v811
  %877 = vst.msk [vmem:[#allocation2 + $0x78] sm:$0xff] %vm861, %v812
  %878 = vst.msk [vmem:[#allocation2 + $0x80] sm:$0xff] %vm861, %v813
  %879 = vst.msk [vmem:[#allocation2 + $0x88] sm:$0xff] %vm861, %v814
  %880 = vst.msk [vmem:[#allocation2 + $0x90] sm:$0xff] %vm861, %v815
  %881 = vst.msk [vmem:[#allocation2 + $0x98] sm:$0xff] %vm861, %v816
  %882 = vst.msk [vmem:[#allocation2 + $0xa0] sm:$0xff] %vm861, %v817
  %883 = vst.msk [vmem:[#allocation2 + $0xa8] sm:$0xff] %vm861, %v818
  %884 = vst.msk [vmem:[#allocation2 + $0xb0] sm:$0xff] %vm861, %v819
  %885 = vst.msk [vmem:[#allocation2 + $0xb8] sm:$0xff] %vm861, %v820
  %886 = vst.msk [vmem:[#allocation2 + $0xc0] sm:$0xff] %vm861, %v821
  %887 = vst.msk [vmem:[#allocation2 + $0xc8] sm:$0xff] %vm861, %v822
  %888 = vst.msk [vmem:[#allocation2 + $0xd0] sm:$0xff] %vm861, %v823
  %889 = vst.msk [vmem:[#allocation2 + $0xd8] sm:$0xff] %vm861, %v824
  %890 = vst.msk [vmem:[#allocation2 + $0xe0] sm:$0xff] %vm861, %v825
  %891 = vst.msk [vmem:[#allocation2 + $0xe8] sm:$0xff] %vm861, %v826
  %892 = vst.msk [vmem:[#allocation2 + $0xf0] sm:$0xff] %vm861, %v827
  %893 = vst.msk [vmem:[#allocation2 + $0xf8] sm:$0xff] %vm861, %v828
  %894 = vst.msk [vmem:[#allocation2 + $0x100] sm:$0xff] %vm861, %v829
  %895 = vst.msk [vmem:[#allocation2 + $0x108] sm:$0xff] %vm861, %v830
  %896 = vst.msk [vmem:[#allocation2 + $0x110] sm:$0xff] %vm861, %v831
  %897 = vst.msk [vmem:[#allocation2 + $0x118] sm:$0xff] %vm861, %v832
  %898 = vst.msk [vmem:[#allocation2 + $0x120] sm:$0xff] %vm861, %v833
  %899 = vst.msk [vmem:[#allocation2 + $0x128] sm:$0xff] %vm861, %v834
  %900 = vst.msk [vmem:[#allocation2 + $0x130] sm:$0xff] %vm861, %v835
  %901 = vst.msk [vmem:[#allocation2 + $0x138] sm:$0xff] %vm861, %v836
  %902 = vst.msk [vmem:[#allocation2 + $0x140] sm:$0xff] %vm861, %v837
  %903 = vst.msk [vmem:[#allocation2 + $0x148] sm:$0xff] %vm861, %v838
  %904 = vst.msk [vmem:[#allocation2 + $0x150] sm:$0xff] %vm861, %v839
  %905 = vst.msk [vmem:[#allocation2 + $0x158] sm:$0xff] %vm861, %v840
  %906 = vst.msk [vmem:[#allocation2 + $0x160] sm:$0xff] %vm861, %v841
  %907 = vst.msk [vmem:[#allocation2 + $0x168] sm:$0xff] %vm861, %v842
  %908 = vst.msk [vmem:[#allocation2 + $0x170] sm:$0xff] %vm861, %v843
  %909 = vst.msk [vmem:[#allocation2 + $0x178] sm:$0xff] %vm861, %v844
  %910 = vst.msk [vmem:[#allocation2 + $0x180] sm:$0xff] %vm861, %v845
  %911 = vst.msk [vmem:[#allocation2 + $0x188] sm:$0xff] %vm861, %v846
  %912 = vst.msk [vmem:[#allocation2 + $0x190] sm:$0xff] %vm861, %v847
  %913 = vst.msk [vmem:[#allocation2 + $0x198] sm:$0xff] %vm861, %v848
  %914 = vst.msk [vmem:[#allocation2 + $0x1a0] sm:$0xff] %vm861, %v849
  %915 = vst.msk [vmem:[#allocation2 + $0x1a8] sm:$0xff] %vm861, %v850
  %916 = vst.msk [vmem:[#allocation2 + $0x1b0] sm:$0xff] %vm861, %v851
  %917 = vst.msk [vmem:[#allocation2 + $0x1b8] sm:$0xff] %vm861, %v852
  %918 = vst.msk [vmem:[#allocation2 + $0x1c0] sm:$0xff] %vm861, %v853
  %919 = vst.msk [vmem:[#allocation2 + $0x1c8] sm:$0xff] %vm861, %v854
  %920 = vst.msk [vmem:[#allocation2 + $0x1d0] sm:$0xff] %vm861, %v855
  %921 = vst.msk [vmem:[#allocation2 + $0x1d8] sm:$0xff] %vm861, %v856
  %922 = vst.msk [vmem:[#allocation2 + $0x1e0] sm:$0xff] %vm861, %v857
  %923 = vst.msk [vmem:[#allocation2 + $0x1e8] sm:$0xff] %vm861, %v858
  %924 = vst.msk [vmem:[#allocation2 + $0x1f0] sm:$0xff] %vm861, %v859
  %925 = vst.msk [vmem:[#allocation2 + $0x1f8] sm:$0xff] %vm861, %v860
  // Predicated region
  $region18: #{unet_generator.10} parent=0 // pred_check
    %p926 = pneg %p15
  $region19: #{unet_generator.10} parent=0 // pred_check_branch
    %928 = sbr.rel (%p926) target = $region21
  $region20: #{unet_generator.10} parent=0 // pred_region
    %v929 = vld [vmem:[#allocation2] sm:$0xff]
    %v930 = vld [vmem:[#allocation2 + $0x8] sm:$0xff]
    %v931 = vld [vmem:[#allocation2 + $0x10] sm:$0xff]
    %v932 = vld [vmem:[#allocation2 + $0x18] sm:$0xff]
    %v933 = vld [vmem:[#allocation2 + $0x20] sm:$0xff]
    %v934 = vld [vmem:[#allocation2 + $0x28] sm:$0xff]
    %v935 = vld [vmem:[#allocation2 + $0x30] sm:$0xff]
    %v936 = vld [vmem:[#allocation2 + $0x38] sm:$0xff]
    %v937 = vld [vmem:[#allocation2 + $0x40] sm:$0xff]
    %v938 = vld [vmem:[#allocation2 + $0x48] sm:$0xff]
    %v939 = vld [vmem:[#allocation2 + $0x50] sm:$0xff]
    %v940 = vld [vmem:[#allocation2 + $0x58] sm:$0xff]
    %v941 = vld [vmem:[#allocation2 + $0x60] sm:$0xff]
    %v942 = vld [vmem:[#allocation2 + $0x68] sm:$0xff]
    %v943 = vld [vmem:[#allocation2 + $0x70] sm:$0xff]
    %v944 = vld [vmem:[#allocation2 + $0x78] sm:$0xff]
    %v945 = vld [vmem:[#allocation2 + $0x80] sm:$0xff]
    %v946 = vld [vmem:[#allocation2 + $0x88] sm:$0xff]
    %v947 = vld [vmem:[#allocation2 + $0x90] sm:$0xff]
    %v948 = vld [vmem:[#allocation2 + $0x98] sm:$0xff]
    %v949 = vld [vmem:[#allocation2 + $0xa0] sm:$0xff]
    %v950 = vld [vmem:[#allocation2 + $0xa8] sm:$0xff]
    %v951 = vld [vmem:[#allocation2 + $0xb0] sm:$0xff]
    %v952 = vld [vmem:[#allocation2 + $0xb8] sm:$0xff]
    %v953 = vld [vmem:[#allocation2 + $0xc0] sm:$0xff]
    %v954 = vld [vmem:[#allocation2 + $0xc8] sm:$0xff]
    %v955 = vld [vmem:[#allocation2 + $0xd0] sm:$0xff]
    %v956 = vld [vmem:[#allocation2 + $0xd8] sm:$0xff]
    %v957 = vld [vmem:[#allocation2 + $0xe0] sm:$0xff]
    %v958 = vld [vmem:[#allocation2 + $0xe8] sm:$0xff]
    %v959 = vld [vmem:[#allocation2 + $0xf0] sm:$0xff]
    %v960 = vld [vmem:[#allocation2 + $0xf8] sm:$0xff]
    %v961 = vld [vmem:[#allocation2 + $0x100] sm:$0xff]
    %v962 = vld [vmem:[#allocation2 + $0x108] sm:$0xff]
    %v963 = vld [vmem:[#allocation2 + $0x110] sm:$0xff]
    %v964 = vld [vmem:[#allocation2 + $0x118] sm:$0xff]
    %v965 = vld [vmem:[#allocation2 + $0x120] sm:$0xff]
    %v966 = vld [vmem:[#allocation2 + $0x128] sm:$0xff]
    %v967 = vld [vmem:[#allocation2 + $0x130] sm:$0xff]
    %v968 = vld [vmem:[#allocation2 + $0x138] sm:$0xff]
    %v969 = vld [vmem:[#allocation2 + $0x140] sm:$0xff]
    %v970 = vld [vmem:[#allocation2 + $0x148] sm:$0xff]
    %v971 = vld [vmem:[#allocation2 + $0x150] sm:$0xff]
    %v972 = vld [vmem:[#allocation2 + $0x158] sm:$0xff]
    %v973 = vld [vmem:[#allocation2 + $0x160] sm:$0xff]
    %v974 = vld [vmem:[#allocation2 + $0x168] sm:$0xff]
    %v975 = vld [vmem:[#allocation2 + $0x170] sm:$0xff]
    %v976 = vld [vmem:[#allocation2 + $0x178] sm:$0xff]
    %v977 = vld [vmem:[#allocation2 + $0x180] sm:$0xff]
    %v978 = vld [vmem:[#allocation2 + $0x188] sm:$0xff]
    %v979 = vld [vmem:[#allocation2 + $0x190] sm:$0xff]
    %v980 = vld [vmem:[#allocation2 + $0x198] sm:$0xff]
    %v981 = vld [vmem:[#allocation2 + $0x1a0] sm:$0xff]
    %v982 = vld [vmem:[#allocation2 + $0x1a8] sm:$0xff]
    %v983 = vld [vmem:[#allocation2 + $0x1b0] sm:$0xff]
    %v984 = vld [vmem:[#allocation2 + $0x1b8] sm:$0xff]
    %v985 = vld [vmem:[#allocation2 + $0x1c0] sm:$0xff]
    %v986 = vld [vmem:[#allocation2 + $0x1c8] sm:$0xff]
    %v987 = vld [vmem:[#allocation2 + $0x1d0] sm:$0xff]
    %v988 = vld [vmem:[#allocation2 + $0x1d8] sm:$0xff]
    %v989 = vld [vmem:[#allocation2 + $0x1e0] sm:$0xff]
    %v990 = vld [vmem:[#allocation2 + $0x1e8] sm:$0xff]
    %v991 = vld [vmem:[#allocation2 + $0x1f0] sm:$0xff]
    %v992 = vld [vmem:[#allocation2 + $0x1f8] sm:$0xff]
    %v993 = vpack.c.bf16 %v930, %v929
    %v994 = vpack.c.bf16 %v932, %v931
    %v995 = vpack.c.bf16 %v934, %v933
    %v996 = vpack.c.bf16 %v936, %v935
    %v997 = vpack.c.bf16 %v938, %v937
    %v998 = vpack.c.bf16 %v940, %v939
    %v999 = vpack.c.bf16 %v942, %v941
    %v1000 = vpack.c.bf16 %v944, %v943
    %v1001 = vpack.c.bf16 %v946, %v945
    %v1002 = vpack.c.bf16 %v948, %v947
    %v1003 = vpack.c.bf16 %v950, %v949
    %v1004 = vpack.c.bf16 %v952, %v951
    %v1005 = vpack.c.bf16 %v954, %v953
    %v1006 = vpack.c.bf16 %v956, %v955
    %v1007 = vpack.c.bf16 %v958, %v957
    %v1008 = vpack.c.bf16 %v960, %v959
    %v1009 = vpack.c.bf16 %v962, %v961
    %v1010 = vpack.c.bf16 %v964, %v963
    %v1011 = vpack.c.bf16 %v966, %v965
    %v1012 = vpack.c.bf16 %v968, %v967
    %v1013 = vpack.c.bf16 %v970, %v969
    %v1014 = vpack.c.bf16 %v972, %v971
    %v1015 = vpack.c.bf16 %v974, %v973
    %v1016 = vpack.c.bf16 %v976, %v975
    %v1017 = vpack.c.bf16 %v978, %v977
    %v1018 = vpack.c.bf16 %v980, %v979
    %v1019 = vpack.c.bf16 %v982, %v981
    %v1020 = vpack.c.bf16 %v984, %v983
    %v1021 = vpack.c.bf16 %v986, %v985
    %v1022 = vpack.c.bf16 %v988, %v987
    %v1023 = vpack.c.bf16 %v990, %v989
    %v1024 = vpack.c.bf16 %v992, %v991
    %v1057 = vunpack.c.l.b16 %v993
    %v1058 = vunpack.c.h.b16 %v993
    %v1059 = vunpack.c.l.b16 %v994
    %v1060 = vunpack.c.h.b16 %v994
    %v1061 = vunpack.c.l.b16 %v995
    %v1062 = vunpack.c.h.b16 %v995
    %v1063 = vunpack.c.l.b16 %v996
    %v1064 = vunpack.c.h.b16 %v996
    %v1065 = vunpack.c.l.b16 %v997
    %v1066 = vunpack.c.h.b16 %v997
    %v1067 = vunpack.c.l.b16 %v998
    %v1068 = vunpack.c.h.b16 %v998
    %v1069 = vunpack.c.l.b16 %v999
    %v1070 = vunpack.c.h.b16 %v999
    %v1071 = vunpack.c.l.b16 %v1000
    %v1072 = vunpack.c.h.b16 %v1000
    %v1073 = vunpack.c.l.b16 %v1001
    %v1074 = vunpack.c.h.b16 %v1001
    %v1075 = vunpack.c.l.b16 %v1002
    %v1076 = vunpack.c.h.b16 %v1002
    %v1077 = vunpack.c.l.b16 %v1003
    %v1078 = vunpack.c.h.b16 %v1003
    %v1079 = vunpack.c.l.b16 %v1004
    %v1080 = vunpack.c.h.b16 %v1004
    %v1081 = vunpack.c.l.b16 %v1005
    %v1082 = vunpack.c.h.b16 %v1005
    %v1083 = vunpack.c.l.b16 %v1006
    %v1084 = vunpack.c.h.b16 %v1006
    %v1085 = vunpack.c.l.b16 %v1007
    %v1086 = vunpack.c.h.b16 %v1007
    %v1087 = vunpack.c.l.b16 %v1008
    %v1088 = vunpack.c.h.b16 %v1008
    %v1089 = vunpack.c.l.b16 %v1009
    %v1090 = vunpack.c.h.b16 %v1009
    %v1091 = vunpack.c.l.b16 %v1010
    %v1092 = vunpack.c.h.b16 %v1010
    %v1093 = vunpack.c.l.b16 %v1011
    %v1094 = vunpack.c.h.b16 %v1011
    %v1095 = vunpack.c.l.b16 %v1012
    %v1096 = vunpack.c.h.b16 %v1012
    %v1097 = vunpack.c.l.b16 %v1013
    %v1098 = vunpack.c.h.b16 %v1013
    %v1099 = vunpack.c.l.b16 %v1014
    %v1100 = vunpack.c.h.b16 %v1014
    %v1101 = vunpack.c.l.b16 %v1015
    %v1102 = vunpack.c.h.b16 %v1015
    %v1103 = vunpack.c.l.b16 %v1016
    %v1104 = vunpack.c.h.b16 %v1016
    %v1105 = vunpack.c.l.b16 %v1017
    %v1106 = vunpack.c.h.b16 %v1017
    %v1107 = vunpack.c.l.b16 %v1018
    %v1108 = vunpack.c.h.b16 %v1018
    %v1109 = vunpack.c.l.b16 %v1019
    %v1110 = vunpack.c.h.b16 %v1019
    %v1111 = vunpack.c.l.b16 %v1020
    %v1112 = vunpack.c.h.b16 %v1020
    %v1113 = vunpack.c.l.b16 %v1021
    %v1114 = vunpack.c.h.b16 %v1021
    %v1115 = vunpack.c.l.b16 %v1022
    %v1116 = vunpack.c.h.b16 %v1022
    %v1117 = vunpack.c.l.b16 %v1023
    %v1118 = vunpack.c.h.b16 %v1023
    %v1119 = vunpack.c.l.b16 %v1024
    %v1120 = vunpack.c.h.b16 %v1024
    %v1121 = vpack.c.b16 %v1057, %v1057
    %v1122 = vpack.c.b16 %v1058, %v1058
    %v1123 = vpack.c.b16 %v1059, %v1059
    %v1124 = vpack.c.b16 %v1060, %v1060
    %v1125 = vpack.c.b16 %v1061, %v1061
    %v1126 = vpack.c.b16 %v1062, %v1062
    %v1127 = vpack.c.b16 %v1063, %v1063
    %v1128 = vpack.c.b16 %v1064, %v1064
    %v1129 = vpack.c.b16 %v1065, %v1065
    %v1130 = vpack.c.b16 %v1066, %v1066
    %v1131 = vpack.c.b16 %v1067, %v1067
    %v1132 = vpack.c.b16 %v1068, %v1068
    %v1133 = vpack.c.b16 %v1069, %v1069
    %v1134 = vpack.c.b16 %v1070, %v1070
    %v1135 = vpack.c.b16 %v1071, %v1071
    %v1136 = vpack.c.b16 %v1072, %v1072
    %v1137 = vpack.c.b16 %v1073, %v1073
    %v1138 = vpack.c.b16 %v1074, %v1074
    %v1139 = vpack.c.b16 %v1075, %v1075
    %v1140 = vpack.c.b16 %v1076, %v1076
    %v1141 = vpack.c.b16 %v1077, %v1077
    %v1142 = vpack.c.b16 %v1078, %v1078
    %v1143 = vpack.c.b16 %v1079, %v1079
    %v1144 = vpack.c.b16 %v1080, %v1080
    %v1145 = vpack.c.b16 %v1081, %v1081
    %v1146 = vpack.c.b16 %v1082, %v1082
    %v1147 = vpack.c.b16 %v1083, %v1083
    %v1148 = vpack.c.b16 %v1084, %v1084
    %v1149 = vpack.c.b16 %v1085, %v1085
    %v1150 = vpack.c.b16 %v1086, %v1086
    %v1151 = vpack.c.b16 %v1087, %v1087
    %v1152 = vpack.c.b16 %v1088, %v1088
    %v1153 = vpack.c.b16 %v1089, %v1089
    %v1154 = vpack.c.b16 %v1090, %v1090
    %v1155 = vpack.c.b16 %v1091, %v1091
    %v1156 = vpack.c.b16 %v1092, %v1092
    %v1157 = vpack.c.b16 %v1093, %v1093
    %v1158 = vpack.c.b16 %v1094, %v1094
    %v1159 = vpack.c.b16 %v1095, %v1095
    %v1160 = vpack.c.b16 %v1096, %v1096
    %v1161 = vpack.c.b16 %v1097, %v1097
    %v1162 = vpack.c.b16 %v1098, %v1098
    %v1163 = vpack.c.b16 %v1099, %v1099
    %v1164 = vpack.c.b16 %v1100, %v1100
    %v1165 = vpack.c.b16 %v1101, %v1101
    %v1166 = vpack.c.b16 %v1102, %v1102
    %v1167 = vpack.c.b16 %v1103, %v1103
    %v1168 = vpack.c.b16 %v1104, %v1104
    %v1169 = vpack.c.b16 %v1105, %v1105
    %v1170 = vpack.c.b16 %v1106, %v1106
    %v1171 = vpack.c.b16 %v1107, %v1107
    %v1172 = vpack.c.b16 %v1108, %v1108
    %v1173 = vpack.c.b16 %v1109, %v1109
    %v1174 = vpack.c.b16 %v1110, %v1110
    %v1175 = vpack.c.b16 %v1111, %v1111
    %v1176 = vpack.c.b16 %v1112, %v1112
    %v1177 = vpack.c.b16 %v1113, %v1113
    %v1178 = vpack.c.b16 %v1114, %v1114
    %v1179 = vpack.c.b16 %v1115, %v1115
    %v1180 = vpack.c.b16 %v1116, %v1116
    %v1181 = vpack.c.b16 %v1117, %v1117
    %v1182 = vpack.c.b16 %v1118, %v1118
    %v1183 = vpack.c.b16 %v1119, %v1119
    %v1184 = vpack.c.b16 %v1120, %v1120
    %vm1249 = vcmask 60416
    %1250 = vst.msk [vmem:[%s3] sm:$0xf] %vm1249, %v1121
    %1251 = vst.msk [vmem:[%s3 + $0x4] sm:$0xf] %vm1249, %v1122
    %1252 = vst.msk [vmem:[%s3 + $0x8] sm:$0xf] %vm1249, %v1123
    %1253 = vst.msk [vmem:[%s3 + $0xc] sm:$0xf] %vm1249, %v1124
    %1254 = vst.msk [vmem:[%s3 + $0x10] sm:$0xf] %vm1249, %v1125
    %1255 = vst.msk [vmem:[%s3 + $0x14] sm:$0xf] %vm1249, %v1126
    %1256 = vst.msk [vmem:[%s3 + $0x18] sm:$0xf] %vm1249, %v1127
    %1257 = vst.msk [vmem:[%s3 + $0x1c] sm:$0xf] %vm1249, %v1128
    %1258 = vst.msk [vmem:[%s3 + $0x20] sm:$0xf] %vm1249, %v1129
    %1259 = vst.msk [vmem:[%s3 + $0x24] sm:$0xf] %vm1249, %v1130
    %1260 = vst.msk [vmem:[%s3 + $0x28] sm:$0xf] %vm1249, %v1131
    %1261 = vst.msk [vmem:[%s3 + $0x2c] sm:$0xf] %vm1249, %v1132
    %1262 = vst.msk [vmem:[%s3 + $0x30] sm:$0xf] %vm1249, %v1133
    %1263 = vst.msk [vmem:[%s3 + $0x34] sm:$0xf] %vm1249, %v1134
    %1264 = vst.msk [vmem:[%s3 + $0x38] sm:$0xf] %vm1249, %v1135
    %1265 = vst.msk [vmem:[%s3 + $0x3c] sm:$0xf] %vm1249, %v1136
    %1266 = vst.msk [vmem:[%s3 + $0x40] sm:$0xf] %vm1249, %v1137
    %1267 = vst.msk [vmem:[%s3 + $0x44] sm:$0xf] %vm1249, %v1138
    %1268 = vst.msk [vmem:[%s3 + $0x48] sm:$0xf] %vm1249, %v1139
    %1269 = vst.msk [vmem:[%s3 + $0x4c] sm:$0xf] %vm1249, %v1140
    %1270 = vst.msk [vmem:[%s3 + $0x50] sm:$0xf] %vm1249, %v1141
    %1271 = vst.msk [vmem:[%s3 + $0x54] sm:$0xf] %vm1249, %v1142
    %1272 = vst.msk [vmem:[%s3 + $0x58] sm:$0xf] %vm1249, %v1143
    %1273 = vst.msk [vmem:[%s3 + $0x5c] sm:$0xf] %vm1249, %v1144
    %1274 = vst.msk [vmem:[%s3 + $0x60] sm:$0xf] %vm1249, %v1145
    %1275 = vst.msk [vmem:[%s3 + $0x64] sm:$0xf] %vm1249, %v1146
    %1276 = vst.msk [vmem:[%s3 + $0x68] sm:$0xf] %vm1249, %v1147
    %1277 = vst.msk [vmem:[%s3 + $0x6c] sm:$0xf] %vm1249, %v1148
    %1278 = vst.msk [vmem:[%s3 + $0x70] sm:$0xf] %vm1249, %v1149
    %1279 = vst.msk [vmem:[%s3 + $0x74] sm:$0xf] %vm1249, %v1150
    %1280 = vst.msk [vmem:[%s3 + $0x78] sm:$0xf] %vm1249, %v1151
    %1281 = vst.msk [vmem:[%s3 + $0x7c] sm:$0xf] %vm1249, %v1152
    %1282 = vst.msk [vmem:[%s3 + $0x80] sm:$0xf] %vm1249, %v1153
    %1283 = vst.msk [vmem:[%s3 + $0x84] sm:$0xf] %vm1249, %v1154
    %1284 = vst.msk [vmem:[%s3 + $0x88] sm:$0xf] %vm1249, %v1155
    %1285 = vst.msk [vmem:[%s3 + $0x8c] sm:$0xf] %vm1249, %v1156
    %1286 = vst.msk [vmem:[%s3 + $0x90] sm:$0xf] %vm1249, %v1157
    %1287 = vst.msk [vmem:[%s3 + $0x94] sm:$0xf] %vm1249, %v1158
    %1288 = vst.msk [vmem:[%s3 + $0x98] sm:$0xf] %vm1249, %v1159
    %1289 = vst.msk [vmem:[%s3 + $0x9c] sm:$0xf] %vm1249, %v1160
    %1290 = vst.msk [vmem:[%s3 + $0xa0] sm:$0xf] %vm1249, %v1161
    %1291 = vst.msk [vmem:[%s3 + $0xa4] sm:$0xf] %vm1249, %v1162
    %1292 = vst.msk [vmem:[%s3 + $0xa8] sm:$0xf] %vm1249, %v1163
    %1293 = vst.msk [vmem:[%s3 + $0xac] sm:$0xf] %vm1249, %v1164
    %1294 = vst.msk [vmem:[%s3 + $0xb0] sm:$0xf] %vm1249, %v1165
    %1295 = vst.msk [vmem:[%s3 + $0xb4] sm:$0xf] %vm1249, %v1166
    %1296 = vst.msk [vmem:[%s3 + $0xb8] sm:$0xf] %vm1249, %v1167
    %1297 = vst.msk [vmem:[%s3 + $0xbc] sm:$0xf] %vm1249, %v1168
    %1298 = vst.msk [vmem:[%s3 + $0xc0] sm:$0xf] %vm1249, %v1169
    %1299 = vst.msk [vmem:[%s3 + $0xc4] sm:$0xf] %vm1249, %v1170
    %1300 = vst.msk [vmem:[%s3 + $0xc8] sm:$0xf] %vm1249, %v1171
    %1301 = vst.msk [vmem:[%s3 + $0xcc] sm:$0xf] %vm1249, %v1172
    %1302 = vst.msk [vmem:[%s3 + $0xd0] sm:$0xf] %vm1249, %v1173
    %1303 = vst.msk [vmem:[%s3 + $0xd4] sm:$0xf] %vm1249, %v1174
    %1304 = vst.msk [vmem:[%s3 + $0xd8] sm:$0xf] %vm1249, %v1175
    %1305 = vst.msk [vmem:[%s3 + $0xdc] sm:$0xf] %vm1249, %v1176
    %1306 = vst.msk [vmem:[%s3 + $0xe0] sm:$0xf] %vm1249, %v1177
    %1307 = vst.msk [vmem:[%s3 + $0xe4] sm:$0xf] %vm1249, %v1178
    %1308 = vst.msk [vmem:[%s3 + $0xe8] sm:$0xf] %vm1249, %v1179
    %1309 = vst.msk [vmem:[%s3 + $0xec] sm:$0xf] %vm1249, %v1180
    %1310 = vst.msk [vmem:[%s3 + $0xf0] sm:$0xf] %vm1249, %v1181
    %1311 = vst.msk [vmem:[%s3 + $0xf4] sm:$0xf] %vm1249, %v1182
    %1312 = vst.msk [vmem:[%s3 + $0xf8] sm:$0xf] %vm1249, %v1183
    %1313 = vst.msk [vmem:[%s3 + $0xfc] sm:$0xf] %vm1249, %v1184
  $region21: #{unet_generator.10} parent=0 // pred_fallthru
    _
  // Predicated region
  $region22: #{unet_generator.10} parent=0 // pred_check
    _
  $region23: #{unet_generator.10} parent=0 // pred_check_branch
    %1315 = sbr.rel (0) target = $region25
  $region24: #{unet_generator.10} parent=0 // pred_region
    _
  $region25: #{unet_generator.10} parent=0 // pred_fallthru
    _
  // Predicated region
  $region26: #{unet_generator.10} parent=0 // pred_check
    _
  $region27: #{unet_generator.10} parent=0 // pred_check_branch
    %1317 = sbr.rel (0) target = $region29
  $region28: #{unet_generator.10} parent=0 // pred_region
    _
  $region29: #{unet_generator.10} parent=0 // pred_fallthru
    _

// kernel: unet_generator.11
$region0: #{unet_generator.11}
  #allocation0 [shape = 'u32[]', space=smem, size = 0x4, offset = 0x4, fixed_abs, tag = 'smem constant byte address 0x4 - core index']
  #allocation1 [shape = 'u32[144,128]{1,0:T(1,128)}', space=vmem, size = 0x12000, scoped, tag = 'internal scratch']
  #allocation2 [shape = 'f32[128,16]{1,0:T(8,128)}', space=vmem, size = 0x10000, scoped, tag = 'scratch operand']
  %s0 = inlined_call_operand.vmem [shape: bf16[128,128], index: 0, kind: input, shape index: {}]
  %s1 = inlined_call_operand.vmem [shape: bf16[128,16], index: 1, kind: input, shape index: {}]
  %s2 = inlined_call_operand.vmem [shape: f32[1,16], index: 2, kind: input, shape index: {}]
  %s3 = inlined_call_operand.vmem [shape: bf16[128,16], index: 3, kind: output, shape index: {0}]
  %s4 = inlined_call_operand.vmem [shape: f32[1,2,16], index: 4, kind: output, shape index: {1}]
  %5 = xla_tuple %s3, %s4
  %s6 = sld [smem:[#allocation0]]
  $region38: #{unet_generator.11} parent=0
    _
  %s8 = ssub.s32 1, %s6
  %s9 = scalar_select 0, %s8, %s6
  // Predicated region
  $region2: #{unet_generator.11} parent=0 // pred_check
    _
  $region3: #{unet_generator.11} parent=0 // pred_check_branch
    %11 = sbr.rel (0) target = $region5
  $region4: #{unet_generator.11} parent=0 // pred_region
    _
  $region5: #{unet_generator.11} parent=0 // pred_fallthru
    _
  // Predicated region
  $region6: #{unet_generator.11} parent=0 // pred_check
    _
  $region7: #{unet_generator.11} parent=0 // pred_check_branch
    %13 = sbr.rel (0) target = $region9
  $region8: #{unet_generator.11} parent=0 // pred_region
    _
  $region9: #{unet_generator.11} parent=0 // pred_fallthru
    _
  // Predicated region
  $region10: #{unet_generator.11} parent=0 // pred_check
    _
  $region11: #{unet_generator.11} parent=0 // pred_check_branch
    %15 = sbr.rel (0) target = $region13
  $region12: #{unet_generator.11} parent=0 // pred_region
    _
  $region13: #{unet_generator.11} parent=0 // pred_fallthru
    _
  %p17 = scmp.eq.s32.totalorder 0, 0
  // Predicated region
  $region14: #{unet_generator.11} parent=0 // pred_check
    %p18 = pneg %p17
  $region15: #{unet_generator.11} parent=0 // pred_check_branch
    %20 = sbr.rel (%p18) target = $region17
  $region16: #{unet_generator.11} parent=0 // pred_region
    %v21 = vld [vmem:[%s2] sm:$0x1]
    %v23 = vlaneseq
    %v24 = vshrl.u32 %v23, 7
    %v25 = vsub.s32 0, %v24
    %v26 = vrot.slane %v21, %v25
    %vm28 = vcmask 130048
    %29 = vst.msk [vmem:[#allocation2] sm:$0xff] %vm28, %v26
    %30 = vst.msk [vmem:[#allocation2 + $0x8] sm:$0xff] %vm28, %v26
    %31 = vst.msk [vmem:[#allocation2 + $0x10] sm:$0xff] %vm28, %v26
    %32 = vst.msk [vmem:[#allocation2 + $0x18] sm:$0xff] %vm28, %v26
    %33 = vst.msk [vmem:[#allocation2 + $0x20] sm:$0xff] %vm28, %v26
    %34 = vst.msk [vmem:[#allocation2 + $0x28] sm:$0xff] %vm28, %v26
    %35 = vst.msk [vmem:[#allocation2 + $0x30] sm:$0xff] %vm28, %v26
    %36 = vst.msk [vmem:[#allocation2 + $0x38] sm:$0xff] %vm28, %v26
    %37 = vst.msk [vmem:[#allocation2 + $0x40] sm:$0xff] %vm28, %v26
    %38 = vst.msk [vmem:[#allocation2 + $0x48] sm:$0xff] %vm28, %v26
    %39 = vst.msk [vmem:[#allocation2 + $0x50] sm:$0xff] %vm28, %v26
    %40 = vst.msk [vmem:[#allocation2 + $0x58] sm:$0xff] %vm28, %v26
    %41 = vst.msk [vmem:[#allocation2 + $0x60] sm:$0xff] %vm28, %v26
    %42 = vst.msk [vmem:[#allocation2 + $0x68] sm:$0xff] %vm28, %v26
    %43 = vst.msk [vmem:[#allocation2 + $0x70] sm:$0xff] %vm28, %v26
    %44 = vst.msk [vmem:[#allocation2 + $0x78] sm:$0xff] %vm28, %v26
  $region17: #{unet_generator.11} parent=0 // pred_fallthru
    _
  %v45 = vld [vmem:[#allocation2] sm:$0xff]
  %v46 = vld [vmem:[#allocation2 + $0x8] sm:$0xff]
  %v47 = vld [vmem:[#allocation2 + $0x10] sm:$0xff]
  %v48 = vld [vmem:[#allocation2 + $0x18] sm:$0xff]
  %v49 = vld [vmem:[#allocation2 + $0x20] sm:$0xff]
  %v50 = vld [vmem:[#allocation2 + $0x28] sm:$0xff]
  %v51 = vld [vmem:[#allocation2 + $0x30] sm:$0xff]
  %v52 = vld [vmem:[#allocation2 + $0x38] sm:$0xff]
  %v53 = vld [vmem:[#allocation2 + $0x40] sm:$0xff]
  %v54 = vld [vmem:[#allocation2 + $0x48] sm:$0xff]
  %v55 = vld [vmem:[#allocation2 + $0x50] sm:$0xff]
  %v56 = vld [vmem:[#allocation2 + $0x58] sm:$0xff]
  %v57 = vld [vmem:[#allocation2 + $0x60] sm:$0xff]
  %v58 = vld [vmem:[#allocation2 + $0x68] sm:$0xff]
  %v59 = vld [vmem:[#allocation2 + $0x70] sm:$0xff]
  %v60 = vld [vmem:[#allocation2 + $0x78] sm:$0xff]
  %v61 = vld [vmem:[%s0] sm:$0xf]
  %v62 = vld [vmem:[%s0 + $0x4] sm:$0xf]
  %v63 = vld [vmem:[%s0 + $0x8] sm:$0xf]
  %v64 = vld [vmem:[%s0 + $0xc] sm:$0xf]
  %v65 = vld [vmem:[%s0 + $0x10] sm:$0xf]
  %v66 = vld [vmem:[%s0 + $0x14] sm:$0xf]
  %v67 = vld [vmem:[%s0 + $0x18] sm:$0xf]
  %v68 = vld [vmem:[%s0 + $0x1c] sm:$0xf]
  %v69 = vld [vmem:[%s0 + $0x20] sm:$0xf]
  %v70 = vld [vmem:[%s0 + $0x24] sm:$0xf]
  %v71 = vld [vmem:[%s0 + $0x28] sm:$0xf]
  %v72 = vld [vmem:[%s0 + $0x2c] sm:$0xf]
  %v73 = vld [vmem:[%s0 + $0x30] sm:$0xf]
  %v74 = vld [vmem:[%s0 + $0x34] sm:$0xf]
  %v75 = vld [vmem:[%s0 + $0x38] sm:$0xf]
  %v76 = vld [vmem:[%s0 + $0x3c] sm:$0xf]
  %v77 = vld [vmem:[%s1] sm:$0xf]
  %v78 = vld [vmem:[%s1 + $0x4] sm:$0xf]
  %v79 = vld [vmem:[%s1 + $0x8] sm:$0xf]
  %v80 = vld [vmem:[%s1 + $0xc] sm:$0xf]
  %v81 = vld [vmem:[%s1 + $0x10] sm:$0xf]
  %v82 = vld [vmem:[%s1 + $0x14] sm:$0xf]
  %v83 = vld [vmem:[%s1 + $0x18] sm:$0xf]
  %v84 = vld [vmem:[%s1 + $0x1c] sm:$0xf]
  %v85 = vld [vmem:[%s1 + $0x20] sm:$0xf]
  %v86 = vld [vmem:[%s1 + $0x24] sm:$0xf]
  %v87 = vld [vmem:[%s1 + $0x28] sm:$0xf]
  %v88 = vld [vmem:[%s1 + $0x2c] sm:$0xf]
  %v89 = vld [vmem:[%s1 + $0x30] sm:$0xf]
  %v90 = vld [vmem:[%s1 + $0x34] sm:$0xf]
  %v91 = vld [vmem:[%s1 + $0x38] sm:$0xf]
  %v92 = vld [vmem:[%s1 + $0x3c] sm:$0xf]
  %v109 = vunpack.c.l.b16 %v61
  %v110 = vunpack.c.l.b16 %v62
  %v111 = vunpack.c.l.b16 %v63
  %v112 = vunpack.c.l.b16 %v64
  %v113 = vunpack.c.l.b16 %v65
  %v114 = vunpack.c.l.b16 %v66
  %v115 = vunpack.c.l.b16 %v67
  %v116 = vunpack.c.l.b16 %v68
  %v117 = vunpack.c.l.b16 %v69
  %v118 = vunpack.c.l.b16 %v70
  %v119 = vunpack.c.l.b16 %v71
  %v120 = vunpack.c.l.b16 %v72
  %v121 = vunpack.c.l.b16 %v73
  %v122 = vunpack.c.l.b16 %v74
  %v123 = vunpack.c.l.b16 %v75
  %v124 = vunpack.c.l.b16 %v76
  %v125 = vpack.c.b16 %v110, %v109
  %v126 = vpack.c.b16 %v112, %v111
  %v127 = vpack.c.b16 %v114, %v113
  %v128 = vpack.c.b16 %v116, %v115
  %v129 = vpack.c.b16 %v118, %v117
  %v130 = vpack.c.b16 %v120, %v119
  %v131 = vpack.c.b16 %v122, %v121
  %v132 = vpack.c.b16 %v124, %v123
  %v157 = vunpack.c.l.b16 %v77
  %v158 = vunpack.c.l.b16 %v78
  %v159 = vunpack.c.l.b16 %v79
  %v160 = vunpack.c.l.b16 %v80
  %v161 = vunpack.c.l.b16 %v81
  %v162 = vunpack.c.l.b16 %v82
  %v163 = vunpack.c.l.b16 %v83
  %v164 = vunpack.c.l.b16 %v84
  %v165 = vunpack.c.l.b16 %v85
  %v166 = vunpack.c.l.b16 %v86
  %v167 = vunpack.c.l.b16 %v87
  %v168 = vunpack.c.l.b16 %v88
  %v169 = vunpack.c.l.b16 %v89
  %v170 = vunpack.c.l.b16 %v90
  %v171 = vunpack.c.l.b16 %v91
  %v172 = vunpack.c.l.b16 %v92
  %v173 = vpack.c.b16 %v158, %v157
  %v174 = vpack.c.b16 %v160, %v159
  %v175 = vpack.c.b16 %v162, %v161
  %v176 = vpack.c.b16 %v164, %v163
  %v177 = vpack.c.b16 %v166, %v165
  %v178 = vpack.c.b16 %v168, %v167
  %v179 = vpack.c.b16 %v170, %v169
  %v180 = vpack.c.b16 %v172, %v171
  %189 = vmatprep.subr.bf16.mxu0 0
  %190 = vmatpush1.bf16.msra.mxu0 %v180
  %191 = vmatprep.subr.bf16.mxu0 0
  %192 = vmatpush1.bf16.msra.mxu0 %v179
  %193 = vmatprep.subr.bf16.mxu0 0
  %194 = vmatpush1.bf16.msra.mxu0 %v178
  %195 = vmatprep.subr.bf16.mxu0 0
  %196 = vmatpush1.bf16.msra.mxu0 %v177
  %197 = vmatprep.subr.bf16.mxu0 0
  %198 = vmatpush1.bf16.msra.mxu0 %v176
  %199 = vmatprep.subr.bf16.mxu0 0
  %200 = vmatpush1.bf16.msra.mxu0 %v175
  %201 = vmatprep.subr.bf16.mxu0 0
  %202 = vmatpush1.bf16.msra.mxu0 %v174
  %203 = vmatprep.subr.bf16.mxu0 0
  %204 = vmatpush1.bf16.msra.mxu0 %v173
  %205 = vmatprep.subr.bf16.mxu0 0
  %206 = vmatpush2.bf16.msra.mxu0 0
  %207 = vmatprep.subr.bf16.mxu0 0
  %208 = vmatpush2.bf16.msra.mxu0 0
  %209 = vmatprep.subr.bf16.mxu0 0
  %210 = vmatpush2.bf16.msra.mxu0 0
  %211 = vmatprep.subr.bf16.mxu0 0
  %212 = vmatpush2.bf16.msra.mxu0 0
  %213 = vmatprep.subr.bf16.mxu0 0
  %214 = vmatpush2.bf16.msra.mxu0 0
  %215 = vmatprep.subr.bf16.mxu0 0
  %216 = vmatpush2.bf16.msra.mxu0 0
  %217 = vmatprep.subr.bf16.mxu0 0
  %218 = vmatpush2.bf16.msra.mxu0 0
  %219 = vmatprep.subr.bf16.mxu0 0
  %220 = vmatpush2.bf16.msra.mxu0 0
  %221 = vmatprep.mubr.bf16.mxu0 0
  %222 = vmatmul.mubr.bf16.gmra.mxu0 %v125
  %v223 = vpop.f32.mrf.mxu0
  %v224 = vadd.f32 0.0, %v223
  %v225 = vpop.f32.mrf.mxu0
  %v226 = vpop.f32.mrf.mxu0
  %v227 = vadd.f32 0.0, %v226
  %v228 = vpop.f32.mrf.mxu0
  %229 = vmatprep.mubr.bf16.mxu0 0
  %230 = vmatmul.mubr.bf16.gmra.mxu0 %v126
  %v231 = vpop.f32.mrf.mxu0
  %v232 = vadd.f32 0.0, %v231
  %v233 = vpop.f32.mrf.mxu0
  %v234 = vpop.f32.mrf.mxu0
  %v235 = vadd.f32 0.0, %v234
  %v236 = vpop.f32.mrf.mxu0
  %237 = vmatprep.mubr.bf16.mxu0 0
  %238 = vmatmul.mubr.bf16.gmra.mxu0 %v127
  %v239 = vpop.f32.mrf.mxu0
  %v240 = vadd.f32 0.0, %v239
  %v241 = vpop.f32.mrf.mxu0
  %v242 = vpop.f32.mrf.mxu0
  %v243 = vadd.f32 0.0, %v242
  %v244 = vpop.f32.mrf.mxu0
  %245 = vmatprep.mubr.bf16.mxu0 0
  %246 = vmatmul.mubr.bf16.gmra.mxu0 %v128
  %v247 = vpop.f32.mrf.mxu0
  %v248 = vadd.f32 0.0, %v247
  %v249 = vpop.f32.mrf.mxu0
  %v250 = vpop.f32.mrf.mxu0
  %v251 = vadd.f32 0.0, %v250
  %v252 = vpop.f32.mrf.mxu0
  %253 = vmatprep.mubr.bf16.mxu0 0
  %254 = vmatmul.mubr.bf16.gmra.mxu0 %v129
  %v255 = vpop.f32.mrf.mxu0
  %v256 = vadd.f32 0.0, %v255
  %v257 = vpop.f32.mrf.mxu0
  %v258 = vpop.f32.mrf.mxu0
  %v259 = vadd.f32 0.0, %v258
  %v260 = vpop.f32.mrf.mxu0
  %261 = vmatprep.mubr.bf16.mxu0 0
  %262 = vmatmul.mubr.bf16.gmra.mxu0 %v130
  %v263 = vpop.f32.mrf.mxu0
  %v264 = vadd.f32 0.0, %v263
  %v265 = vpop.f32.mrf.mxu0
  %v266 = vpop.f32.mrf.mxu0
  %v267 = vadd.f32 0.0, %v266
  %v268 = vpop.f32.mrf.mxu0
  %269 = vmatprep.mubr.bf16.mxu0 0
  %270 = vmatmul.mubr.bf16.gmra.mxu0 %v131
  %v271 = vpop.f32.mrf.mxu0
  %v272 = vadd.f32 0.0, %v271
  %v273 = vpop.f32.mrf.mxu0
  %v274 = vpop.f32.mrf.mxu0
  %v275 = vadd.f32 0.0, %v274
  %v276 = vpop.f32.mrf.mxu0
  %277 = vmatprep.mubr.bf16.mxu0 0
  %278 = vmatmul.mubr.bf16.gmra.mxu0 %v132
  %v279 = vpop.f32.mrf.mxu0
  %v280 = vadd.f32 0.0, %v279
  %v281 = vpop.f32.mrf.mxu0
  %v282 = vpop.f32.mrf.mxu0
  %v283 = vadd.f32 0.0, %v282
  %v284 = vpop.f32.mrf.mxu0
  %285 = vdwg.mxu0
  %v286 = vadd.f32 %v45, %v224
  %v287 = vadd.f32 %v46, %v227
  %v288 = vadd.f32 %v47, %v232
  %v289 = vadd.f32 %v48, %v235
  %v290 = vadd.f32 %v49, %v240
  %v291 = vadd.f32 %v50, %v243
  %v292 = vadd.f32 %v51, %v248
  %v293 = vadd.f32 %v52, %v251
  %v294 = vadd.f32 %v53, %v256
  %v295 = vadd.f32 %v54, %v259
  %v296 = vadd.f32 %v55, %v264
  %v297 = vadd.f32 %v56, %v267
  %v298 = vadd.f32 %v57, %v272
  %v299 = vadd.f32 %v58, %v275
  %v300 = vadd.f32 %v59, %v280
  %v301 = vadd.f32 %v60, %v283
  %vm302 = vcmask 130048
  %303 = vst.msk [vmem:[#allocation2] sm:$0xff] %vm302, %v286
  %304 = vst.msk [vmem:[#allocation2 + $0x8] sm:$0xff] %vm302, %v287
  %305 = vst.msk [vmem:[#allocation2 + $0x10] sm:$0xff] %vm302, %v288
  %306 = vst.msk [vmem:[#allocation2 + $0x18] sm:$0xff] %vm302, %v289
  %307 = vst.msk [vmem:[#allocation2 + $0x20] sm:$0xff] %vm302, %v290
  %308 = vst.msk [vmem:[#allocation2 + $0x28] sm:$0xff] %vm302, %v291
  %309 = vst.msk [vmem:[#allocation2 + $0x30] sm:$0xff] %vm302, %v292
  %310 = vst.msk [vmem:[#allocation2 + $0x38] sm:$0xff] %vm302, %v293
  %311 = vst.msk [vmem:[#allocation2 + $0x40] sm:$0xff] %vm302, %v294
  %312 = vst.msk [vmem:[#allocation2 + $0x48] sm:$0xff] %vm302, %v295
  %313 = vst.msk [vmem:[#allocation2 + $0x50] sm:$0xff] %vm302, %v296
  %314 = vst.msk [vmem:[#allocation2 + $0x58] sm:$0xff] %vm302, %v297
  %315 = vst.msk [vmem:[#allocation2 + $0x60] sm:$0xff] %vm302, %v298
  %316 = vst.msk [vmem:[#allocation2 + $0x68] sm:$0xff] %vm302, %v299
  %317 = vst.msk [vmem:[#allocation2 + $0x70] sm:$0xff] %vm302, %v300
  %318 = vst.msk [vmem:[#allocation2 + $0x78] sm:$0xff] %vm302, %v301
  // Predicated region
  $region18: #{unet_generator.11} parent=0 // pred_check
    %p319 = pneg %p17
  $region19: #{unet_generator.11} parent=0 // pred_check_branch
    %321 = sbr.rel (%p319) target = $region21
  $region20: #{unet_generator.11} parent=0 // pred_region
    %v322 = vld [vmem:[#allocation2] sm:$0xff]
    %v323 = vld [vmem:[#allocation2 + $0x8] sm:$0xff]
    %v324 = vld [vmem:[#allocation2 + $0x10] sm:$0xff]
    %v325 = vld [vmem:[#allocation2 + $0x18] sm:$0xff]
    %v326 = vld [vmem:[#allocation2 + $0x20] sm:$0xff]
    %v327 = vld [vmem:[#allocation2 + $0x28] sm:$0xff]
    %v328 = vld [vmem:[#allocation2 + $0x30] sm:$0xff]
    %v329 = vld [vmem:[#allocation2 + $0x38] sm:$0xff]
    %v330 = vld [vmem:[#allocation2 + $0x40] sm:$0xff]
    %v331 = vld [vmem:[#allocation2 + $0x48] sm:$0xff]
    %v332 = vld [vmem:[#allocation2 + $0x50] sm:$0xff]
    %v333 = vld [vmem:[#allocation2 + $0x58] sm:$0xff]
    %v334 = vld [vmem:[#allocation2 + $0x60] sm:$0xff]
    %v335 = vld [vmem:[#allocation2 + $0x68] sm:$0xff]
    %v336 = vld [vmem:[#allocation2 + $0x70] sm:$0xff]
    %v337 = vld [vmem:[#allocation2 + $0x78] sm:$0xff]
    %v338 = vpack.c.bf16 %v323, %v322
    %v339 = vpack.c.bf16 %v325, %v324
    %v340 = vpack.c.bf16 %v327, %v326
    %v341 = vpack.c.bf16 %v329, %v328
    %v342 = vpack.c.bf16 %v331, %v330
    %v343 = vpack.c.bf16 %v333, %v332
    %v344 = vpack.c.bf16 %v335, %v334
    %v345 = vpack.c.bf16 %v337, %v336
    %v354 = vunpack.c.l.b16 %v338
    %v355 = vunpack.c.h.b16 %v338
    %v356 = vunpack.c.l.b16 %v339
    %v357 = vunpack.c.h.b16 %v339
    %v358 = vunpack.c.l.b16 %v340
    %v359 = vunpack.c.h.b16 %v340
    %v360 = vunpack.c.l.b16 %v341
    %v361 = vunpack.c.h.b16 %v341
    %v362 = vunpack.c.l.b16 %v342
    %v363 = vunpack.c.h.b16 %v342
    %v364 = vunpack.c.l.b16 %v343
    %v365 = vunpack.c.h.b16 %v343
    %v366 = vunpack.c.l.b16 %v344
    %v367 = vunpack.c.h.b16 %v344
    %v368 = vunpack.c.l.b16 %v345
    %v369 = vunpack.c.h.b16 %v345
    %v370 = vpack.c.b16 %v354, %v354
    %v371 = vpack.c.b16 %v355, %v355
    %v372 = vpack.c.b16 %v356, %v356
    %v373 = vpack.c.b16 %v357, %v357
    %v374 = vpack.c.b16 %v358, %v358
    %v375 = vpack.c.b16 %v359, %v359
    %v376 = vpack.c.b16 %v360, %v360
    %v377 = vpack.c.b16 %v361, %v361
    %v378 = vpack.c.b16 %v362, %v362
    %v379 = vpack.c.b16 %v363, %v363
    %v380 = vpack.c.b16 %v364, %v364
    %v381 = vpack.c.b16 %v365, %v365
    %v382 = vpack.c.b16 %v366, %v366
    %v383 = vpack.c.b16 %v367, %v367
    %v384 = vpack.c.b16 %v368, %v368
    %v385 = vpack.c.b16 %v369, %v369
    %vm402 = vcmask 125952
    %403 = vst.msk [vmem:[%s3] sm:$0xf] %vm402, %v370
    %404 = vst.msk [vmem:[%s3 + $0x4] sm:$0xf] %vm402, %v371
    %405 = vst.msk [vmem:[%s3 + $0x8] sm:$0xf] %vm402, %v372
    %406 = vst.msk [vmem:[%s3 + $0xc] sm:$0xf] %vm402, %v373
    %407 = vst.msk [vmem:[%s3 + $0x10] sm:$0xf] %vm402, %v374
    %408 = vst.msk [vmem:[%s3 + $0x14] sm:$0xf] %vm402, %v375
    %409 = vst.msk [vmem:[%s3 + $0x18] sm:$0xf] %vm402, %v376
    %410 = vst.msk [vmem:[%s3 + $0x1c] sm:$0xf] %vm402, %v377
    %411 = vst.msk [vmem:[%s3 + $0x20] sm:$0xf] %vm402, %v378
    %412 = vst.msk [vmem:[%s3 + $0x24] sm:$0xf] %vm402, %v379
    %413 = vst.msk [vmem:[%s3 + $0x28] sm:$0xf] %vm402, %v380
    %414 = vst.msk [vmem:[%s3 + $0x2c] sm:$0xf] %vm402, %v381
    %415 = vst.msk [vmem:[%s3 + $0x30] sm:$0xf] %vm402, %v382
    %416 = vst.msk [vmem:[%s3 + $0x34] sm:$0xf] %vm402, %v383
    %417 = vst.msk [vmem:[%s3 + $0x38] sm:$0xf] %vm402, %v384
    %418 = vst.msk [vmem:[%s3 + $0x3c] sm:$0xf] %vm402, %v385
    %v419 = vsel %vm302, %v322, 0.0
    %v420 = vsel %vm302, %v323, 0.0
    %v421 = vadd.f32 %v419, %v420
    %v422 = vsel %vm302, %v324, 0.0
    %v423 = vadd.f32 %v421, %v422
    %v424 = vsel %vm302, %v325, 0.0
    %v425 = vadd.f32 %v423, %v424
    %v426 = vsel %vm302, %v326, 0.0
    %v427 = vadd.f32 %v425, %v426
    %v428 = vsel %vm302, %v327, 0.0
    %v429 = vadd.f32 %v427, %v428
    %v430 = vsel %vm302, %v328, 0.0
    %v431 = vadd.f32 %v429, %v430
    %v432 = vsel %vm302, %v329, 0.0
    %v433 = vadd.f32 %v431, %v432
    %v434 = vsel %vm302, %v330, 0.0
    %v435 = vadd.f32 %v433, %v434
    %v436 = vsel %vm302, %v331, 0.0
    %v437 = vadd.f32 %v435, %v436
    %v438 = vsel %vm302, %v332, 0.0
    %v439 = vadd.f32 %v437, %v438
    %v440 = vsel %vm302, %v333, 0.0
    %v441 = vadd.f32 %v439, %v440
    %v442 = vsel %vm302, %v334, 0.0
    %v443 = vadd.f32 %v441, %v442
    %v444 = vsel %vm302, %v335, 0.0
    %v445 = vadd.f32 %v443, %v444
    %v446 = vsel %vm302, %v336, 0.0
    %v447 = vadd.f32 %v445, %v446
    %v448 = vsel %vm302, %v337, 0.0
    %v449 = vadd.f32 %v447, %v448
    %v450 = vrot.slane %v449, 4
    %v451 = vadd.f32 %v449, %v450
    %v452 = vrot.slane %v451, 2
    %v453 = vadd.f32 %v451, %v452
    %v454 = vrot.slane %v453, 1
    %v455 = vadd.f32 %v453, %v454
    %vm456 = vcmask 122880
    %457 = vst.msk [vmem:[%s4] sm:$0x1] %vm456, %v455
    %v458 = vmul.f32 %v322, %v322
    %v459 = vmul.f32 %v323, %v323
    %v460 = vmul.f32 %v324, %v324
    %v461 = vmul.f32 %v325, %v325
    %v462 = vmul.f32 %v326, %v326
    %v463 = vmul.f32 %v327, %v327
    %v464 = vmul.f32 %v328, %v328
    %v465 = vmul.f32 %v329, %v329
    %v466 = vmul.f32 %v330, %v330
    %v467 = vmul.f32 %v331, %v331
    %v468 = vmul.f32 %v332, %v332
    %v469 = vmul.f32 %v333, %v333
    %v470 = vmul.f32 %v334, %v334
    %v471 = vmul.f32 %v335, %v335
    %v472 = vmul.f32 %v336, %v336
    %v473 = vmul.f32 %v337, %v337
    %v474 = vsel %vm302, %v458, 0.0
    %v475 = vsel %vm302, %v459, 0.0
    %v476 = vadd.f32 %v474, %v475
    %v477 = vsel %vm302, %v460, 0.0
    %v478 = vadd.f32 %v476, %v477
    %v479 = vsel %vm302, %v461, 0.0
    %v480 = vadd.f32 %v478, %v479
    %v481 = vsel %vm302, %v462, 0.0
    %v482 = vadd.f32 %v480, %v481
    %v483 = vsel %vm302, %v463, 0.0
    %v484 = vadd.f32 %v482, %v483
    %v485 = vsel %vm302, %v464, 0.0
    %v486 = vadd.f32 %v484, %v485
    %v487 = vsel %vm302, %v465, 0.0
    %v488 = vadd.f32 %v486, %v487
    %v489 = vsel %vm302, %v466, 0.0
    %v490 = vadd.f32 %v488, %v489
    %v491 = vsel %vm302, %v467, 0.0
    %v492 = vadd.f32 %v490, %v491
    %v493 = vsel %vm302, %v468, 0.0
    %v494 = vadd.f32 %v492, %v493
    %v495 = vsel %vm302, %v469, 0.0
    %v496 = vadd.f32 %v494, %v495
    %v497 = vsel %vm302, %v470, 0.0
    %v498 = vadd.f32 %v496, %v497
    %v499 = vsel %vm302, %v471, 0.0
    %v500 = vadd.f32 %v498, %v499
    %v501 = vsel %vm302, %v472, 0.0
    %v502 = vadd.f32 %v500, %v501
    %v503 = vsel %vm302, %v473, 0.0
    %v504 = vadd.f32 %v502, %v503
    %v505 = vrot.slane %v504, 4
    %v506 = vadd.f32 %v504, %v505
    %v507 = vrot.slane %v506, 2
    %v508 = vadd.f32 %v506, %v507
    %v509 = vrot.slane %v508, 1
    %v510 = vadd.f32 %v508, %v509
    %511 = vst.msk [vmem:[%s4 + $0x1] sm:$0x1] %vm456, %v510
  $region21: #{unet_generator.11} parent=0 // pred_fallthru
    _
  // Predicated region
  $region22: #{unet_generator.11} parent=0 // pred_check
    _
  $region23: #{unet_generator.11} parent=0 // pred_check_branch
    %513 = sbr.rel (0) target = $region25
  $region24: #{unet_generator.11} parent=0 // pred_region
    _
  $region25: #{unet_generator.11} parent=0 // pred_fallthru
    _
  // Predicated region
  $region26: #{unet_generator.11} parent=0 // pred_check
    _
  $region27: #{unet_generator.11} parent=0 // pred_check_branch
    %515 = sbr.rel (0) target = $region29
  $region28: #{unet_generator.11} parent=0 // pred_region
    _
  $region29: #{unet_generator.11} parent=0 // pred_fallthru
    _
  // Predicated region
  $region30: #{unet_generator.11} parent=0 // pred_check
    _
  $region31: #{unet_generator.11} parent=0 // pred_check_branch
    %517 = sbr.rel (0) target = $region33
  $region32: #{unet_generator.11} parent=0 // pred_region
    _
  $region33: #{unet_generator.11} parent=0 // pred_fallthru
    _
  // Predicated region
  $region34: #{unet_generator.11} parent=0 // pred_check
    _
  $region35: #{unet_generator.11} parent=0 // pred_check_branch
    %519 = sbr.rel (0) target = $region37
  $region36: #{unet_generator.11} parent=0 // pred_region
    _
  $region37: #{unet_generator.11} parent=0 // pred_fallthru
    _

// kernel: unet_generator.12
$region0: #{unet_generator.12}
  #allocation0 [shape = 'u32[]', space=smem, size = 0x4, offset = 0x4, fixed_abs, tag = 'smem constant byte address 0x4 - core index']
  #allocation1 [shape = 'u32[144,128]{1,0:T(1,128)}', space=vmem, size = 0x12000, scoped, tag = 'internal scratch']
  #allocation2 [shape = 'f32[32,32]{1,0:T(8,128)}', space=vmem, size = 0x4000, scoped, tag = 'scratch operand']
  %s0 = inlined_call_operand.vmem [shape: bf16[32,256], index: 0, kind: input, shape index: {}]
  %s1 = inlined_call_operand.vmem [shape: bf16[256,32], index: 1, kind: input, shape index: {}]
  %s2 = inlined_call_operand.vmem [shape: f32[1,32], index: 2, kind: input, shape index: {}]
  %s3 = inlined_call_operand.vmem [shape: bf16[32,32], index: 3, kind: output, shape index: {0}]
  %s4 = inlined_call_operand.vmem [shape: f32[1,2,32], index: 4, kind: output, shape index: {1}]
  %5 = xla_tuple %s3, %s4
  %s6 = sld [smem:[#allocation0]]
  $region38: #{unet_generator.12} parent=0
    _
  %s8 = ssub.s32 1, %s6
  %s9 = scalar_select 0, %s8, %s6
  // Predicated region
  $region2: #{unet_generator.12} parent=0 // pred_check
    _
  $region3: #{unet_generator.12} parent=0 // pred_check_branch
    %11 = sbr.rel (0) target = $region5
  $region4: #{unet_generator.12} parent=0 // pred_region
    _
  $region5: #{unet_generator.12} parent=0 // pred_fallthru
    _
  // Predicated region
  $region6: #{unet_generator.12} parent=0 // pred_check
    _
  $region7: #{unet_generator.12} parent=0 // pred_check_branch
    %13 = sbr.rel (0) target = $region9
  $region8: #{unet_generator.12} parent=0 // pred_region
    _
  $region9: #{unet_generator.12} parent=0 // pred_fallthru
    _
  // Predicated region
  $region10: #{unet_generator.12} parent=0 // pred_check
    _
  $region11: #{unet_generator.12} parent=0 // pred_check_branch
    %15 = sbr.rel (0) target = $region13
  $region12: #{unet_generator.12} parent=0 // pred_region
    _
  $region13: #{unet_generator.12} parent=0 // pred_fallthru
    _
  %p17 = scmp.eq.s32.totalorder 0, 0
  // Predicated region
  $region14: #{unet_generator.12} parent=0 // pred_check
    %p18 = pneg %p17
  $region15: #{unet_generator.12} parent=0 // pred_check_branch
    %20 = sbr.rel (%p18) target = $region17
  $region16: #{unet_generator.12} parent=0 // pred_region
    %v21 = vld [vmem:[%s2] sm:$0x1]
    %v23 = vlaneseq
    %v24 = vshrl.u32 %v23, 7
    %v25 = vsub.s32 0, %v24
    %v26 = vrot.slane %v21, %v25
    %vm28 = vcmask 261120
    %29 = vst.msk [vmem:[#allocation2] sm:$0xff] %vm28, %v26
    %30 = vst.msk [vmem:[#allocation2 + $0x8] sm:$0xff] %vm28, %v26
    %31 = vst.msk [vmem:[#allocation2 + $0x10] sm:$0xff] %vm28, %v26
    %32 = vst.msk [vmem:[#allocation2 + $0x18] sm:$0xff] %vm28, %v26
  $region17: #{unet_generator.12} parent=0 // pred_fallthru
    _
  %v33 = vld [vmem:[#allocation2] sm:$0xff]
  %v34 = vld [vmem:[#allocation2 + $0x8] sm:$0xff]
  %v35 = vld [vmem:[#allocation2 + $0x10] sm:$0xff]
  %v36 = vld [vmem:[#allocation2 + $0x18] sm:$0xff]
  %v37 = vld [vmem:[%s0] sm:$0xff]
  %v38 = vld [vmem:[%s0 + $0x8] sm:$0xff]
  %v39 = vld [vmem:[%s0 + $0x10] sm:$0xff]
  %v40 = vld [vmem:[%s0 + $0x18] sm:$0xff]
  %v41 = vld [vmem:[%s1] sm:$0xf]
  %v42 = vld [vmem:[%s1 + $0x4] sm:$0xf]
  %v43 = vld [vmem:[%s1 + $0x8] sm:$0xf]
  %v44 = vld [vmem:[%s1 + $0xc] sm:$0xf]
  %v45 = vld [vmem:[%s1 + $0x10] sm:$0xf]
  %v46 = vld [vmem:[%s1 + $0x14] sm:$0xf]
  %v47 = vld [vmem:[%s1 + $0x18] sm:$0xf]
  %v48 = vld [vmem:[%s1 + $0x1c] sm:$0xf]
  %v49 = vld [vmem:[%s1 + $0x20] sm:$0xf]
  %v50 = vld [vmem:[%s1 + $0x24] sm:$0xf]
  %v51 = vld [vmem:[%s1 + $0x28] sm:$0xf]
  %v52 = vld [vmem:[%s1 + $0x2c] sm:$0xf]
  %v53 = vld [vmem:[%s1 + $0x30] sm:$0xf]
  %v54 = vld [vmem:[%s1 + $0x34] sm:$0xf]
  %v55 = vld [vmem:[%s1 + $0x38] sm:$0xf]
  %v56 = vld [vmem:[%s1 + $0x3c] sm:$0xf]
  %v57 = vld [vmem:[%s1 + $0x40] sm:$0xf]
  %v58 = vld [vmem:[%s1 + $0x44] sm:$0xf]
  %v59 = vld [vmem:[%s1 + $0x48] sm:$0xf]
  %v60 = vld [vmem:[%s1 + $0x4c] sm:$0xf]
  %v61 = vld [vmem:[%s1 + $0x50] sm:$0xf]
  %v62 = vld [vmem:[%s1 + $0x54] sm:$0xf]
  %v63 = vld [vmem:[%s1 + $0x58] sm:$0xf]
  %v64 = vld [vmem:[%s1 + $0x5c] sm:$0xf]
  %v65 = vld [vmem:[%s1 + $0x60] sm:$0xf]
  %v66 = vld [vmem:[%s1 + $0x64] sm:$0xf]
  %v67 = vld [vmem:[%s1 + $0x68] sm:$0xf]
  %v68 = vld [vmem:[%s1 + $0x6c] sm:$0xf]
  %v69 = vld [vmem:[%s1 + $0x70] sm:$0xf]
  %v70 = vld [vmem:[%s1 + $0x74] sm:$0xf]
  %v71 = vld [vmem:[%s1 + $0x78] sm:$0xf]
  %v72 = vld [vmem:[%s1 + $0x7c] sm:$0xf]
  %v77 = vunpack.c.l.b16 %v37
  %v78 = vunpack.c.h.b16 %v37
  %v79 = vunpack.c.l.b16 %v38
  %v80 = vunpack.c.h.b16 %v38
  %v81 = vunpack.c.l.b16 %v39
  %v82 = vunpack.c.h.b16 %v39
  %v83 = vunpack.c.l.b16 %v40
  %v84 = vunpack.c.h.b16 %v40
  %v85 = vpack.c.b16 %v79, %v77
  %v86 = vpack.c.b16 %v80, %v78
  %v87 = vpack.c.b16 %v83, %v81
  %v88 = vpack.c.b16 %v84, %v82
  %v125 = vunpack.c.l.b16 %v41
  %v126 = vunpack.c.l.b16 %v42
  %v127 = vunpack.c.l.b16 %v43
  %v128 = vunpack.c.l.b16 %v44
  %v129 = vunpack.c.l.b16 %v45
  %v130 = vunpack.c.l.b16 %v46
  %v131 = vunpack.c.l.b16 %v47
  %v132 = vunpack.c.l.b16 %v48
  %v133 = vunpack.c.l.b16 %v49
  %v134 = vunpack.c.l.b16 %v50
  %v135 = vunpack.c.l.b16 %v51
  %v136 = vunpack.c.l.b16 %v52
  %v137 = vunpack.c.l.b16 %v53
  %v138 = vunpack.c.l.b16 %v54
  %v139 = vunpack.c.l.b16 %v55
  %v140 = vunpack.c.l.b16 %v56
  %v141 = vunpack.c.l.b16 %v57
  %v142 = vunpack.c.l.b16 %v58
  %v143 = vunpack.c.l.b16 %v59
  %v144 = vunpack.c.l.b16 %v60
  %v145 = vunpack.c.l.b16 %v61
  %v146 = vunpack.c.l.b16 %v62
  %v147 = vunpack.c.l.b16 %v63
  %v148 = vunpack.c.l.b16 %v64
  %v149 = vunpack.c.l.b16 %v65
  %v150 = vunpack.c.l.b16 %v66
  %v151 = vunpack.c.l.b16 %v67
  %v152 = vunpack.c.l.b16 %v68
  %v153 = vunpack.c.l.b16 %v69
  %v154 = vunpack.c.l.b16 %v70
  %v155 = vunpack.c.l.b16 %v71
  %v156 = vunpack.c.l.b16 %v72
  %v157 = vpack.c.b16 %v126, %v125
  %v158 = vpack.c.b16 %v128, %v127
  %v159 = vpack.c.b16 %v130, %v129
  %v160 = vpack.c.b16 %v132, %v131
  %v161 = vpack.c.b16 %v134, %v133
  %v162 = vpack.c.b16 %v136, %v135
  %v163 = vpack.c.b16 %v138, %v137
  %v164 = vpack.c.b16 %v140, %v139
  %v165 = vpack.c.b16 %v142, %v141
  %v166 = vpack.c.b16 %v144, %v143
  %v167 = vpack.c.b16 %v146, %v145
  %v168 = vpack.c.b16 %v148, %v147
  %v169 = vpack.c.b16 %v150, %v149
  %v170 = vpack.c.b16 %v152, %v151
  %v171 = vpack.c.b16 %v154, %v153
  %v172 = vpack.c.b16 %v156, %v155
  %189 = vmatprep.subr.bf16.mxu0 0
  %190 = vmatpush1.bf16.msra.mxu0 %v164
  %191 = vmatprep.subr.bf16.mxu0 0
  %192 = vmatpush1.bf16.msra.mxu0 %v163
  %193 = vmatprep.subr.bf16.mxu0 0
  %194 = vmatpush1.bf16.msra.mxu0 %v162
  %195 = vmatprep.subr.bf16.mxu0 0
  %196 = vmatpush1.bf16.msra.mxu0 %v161
  %197 = vmatprep.subr.bf16.mxu0 0
  %198 = vmatpush1.bf16.msra.mxu0 %v160
  %199 = vmatprep.subr.bf16.mxu0 0
  %200 = vmatpush1.bf16.msra.mxu0 %v159
  %201 = vmatprep.subr.bf16.mxu0 0
  %202 = vmatpush1.bf16.msra.mxu0 %v158
  %203 = vmatprep.subr.bf16.mxu0 0
  %204 = vmatpush1.bf16.msra.mxu0 %v157
  %205 = vmatprep.subr.bf16.mxu0 0
  %206 = vmatpush2.bf16.msra.mxu0 %v172
  %207 = vmatprep.subr.bf16.mxu0 0
  %208 = vmatpush2.bf16.msra.mxu0 %v171
  %209 = vmatprep.subr.bf16.mxu0 0
  %210 = vmatpush2.bf16.msra.mxu0 %v170
  %211 = vmatprep.subr.bf16.mxu0 0
  %212 = vmatpush2.bf16.msra.mxu0 %v169
  %213 = vmatprep.subr.bf16.mxu0 0
  %214 = vmatpush2.bf16.msra.mxu0 %v168
  %215 = vmatprep.subr.bf16.mxu0 0
  %216 = vmatpush2.bf16.msra.mxu0 %v167
  %217 = vmatprep.subr.bf16.mxu0 0
  %218 = vmatpush2.bf16.msra.mxu0 %v166
  %219 = vmatprep.subr.bf16.mxu0 0
  %220 = vmatpush2.bf16.msra.mxu0 %v165
  %221 = vmatprep.mubr.bf16.mxu0 %v86
  %222 = vmatmul.mubr.bf16.gmra.mxu0 %v85
  %v223 = vpop.f32.mrf.mxu0
  %v224 = vadd.f32 0.0, %v223
  %v225 = vpop.f32.mrf.mxu0
  %v226 = vpop.f32.mrf.mxu0
  %v227 = vadd.f32 0.0, %v226
  %v228 = vpop.f32.mrf.mxu0
  %229 = vmatprep.mubr.bf16.mxu0 %v88
  %230 = vmatmul.mubr.bf16.gmra.mxu0 %v87
  %v231 = vpop.f32.mrf.mxu0
  %v232 = vadd.f32 0.0, %v231
  %v233 = vpop.f32.mrf.mxu0
  %v234 = vpop.f32.mrf.mxu0
  %v235 = vadd.f32 0.0, %v234
  %v236 = vpop.f32.mrf.mxu0
  %237 = vdwg.mxu0
  %v238 = vadd.f32 %v33, %v224
  %v239 = vadd.f32 %v34, %v227
  %v240 = vadd.f32 %v35, %v232
  %v241 = vadd.f32 %v36, %v235
  %vm242 = vcmask 261120
  %243 = vst.msk [vmem:[#allocation2] sm:$0xff] %vm242, %v238
  %244 = vst.msk [vmem:[#allocation2 + $0x8] sm:$0xff] %vm242, %v239
  %245 = vst.msk [vmem:[#allocation2 + $0x10] sm:$0xff] %vm242, %v240
  %246 = vst.msk [vmem:[#allocation2 + $0x18] sm:$0xff] %vm242, %v241
  // Predicated region
  $region18: #{unet_generator.12} parent=0 // pred_check
    %p247 = pneg %p17
  $region19: #{unet_generator.12} parent=0 // pred_check_branch
    %249 = sbr.rel (%p247) target = $region21
  $region20: #{unet_generator.12} parent=0 // pred_region
    %v250 = vld [vmem:[#allocation2] sm:$0xff]
    %v251 = vld [vmem:[#allocation2 + $0x8] sm:$0xff]
    %v252 = vld [vmem:[#allocation2 + $0x10] sm:$0xff]
    %v253 = vld [vmem:[#allocation2 + $0x18] sm:$0xff]
    %v254 = vpack.c.bf16 %v251, %v250
    %v255 = vpack.c.bf16 %v253, %v252
    %v258 = vunpack.c.l.b16 %v254
    %v259 = vunpack.c.h.b16 %v254
    %v260 = vunpack.c.l.b16 %v255
    %v261 = vunpack.c.h.b16 %v255
    %v262 = vpack.c.b16 %v258, %v258
    %v263 = vpack.c.b16 %v259, %v259
    %v264 = vpack.c.b16 %v260, %v260
    %v265 = vpack.c.b16 %v261, %v261
    %vm270 = vcmask 257024
    %271 = vst.msk [vmem:[%s3] sm:$0xf] %vm270, %v262
    %272 = vst.msk [vmem:[%s3 + $0x4] sm:$0xf] %vm270, %v263
    %273 = vst.msk [vmem:[%s3 + $0x8] sm:$0xf] %vm270, %v264
    %274 = vst.msk [vmem:[%s3 + $0xc] sm:$0xf] %vm270, %v265
    %v275 = vsel %vm242, %v250, 0.0
    %v276 = vsel %vm242, %v251, 0.0
    %v277 = vadd.f32 %v275, %v276
    %v278 = vsel %vm242, %v252, 0.0
    %v279 = vadd.f32 %v277, %v278
    %v280 = vsel %vm242, %v253, 0.0
    %v281 = vadd.f32 %v279, %v280
    %v282 = vrot.slane %v281, 4
    %v283 = vadd.f32 %v281, %v282
    %v284 = vrot.slane %v283, 2
    %v285 = vadd.f32 %v283, %v284
    %v286 = vrot.slane %v285, 1
    %v287 = vadd.f32 %v285, %v286
    %vm288 = vcmask 253952
    %289 = vst.msk [vmem:[%s4] sm:$0x1] %vm288, %v287
    %v290 = vmul.f32 %v250, %v250
    %v291 = vmul.f32 %v251, %v251
    %v292 = vmul.f32 %v252, %v252
    %v293 = vmul.f32 %v253, %v253
    %v294 = vsel %vm242, %v290, 0.0
    %v295 = vsel %vm242, %v291, 0.0
    %v296 = vadd.f32 %v294, %v295
    %v297 = vsel %vm242, %v292, 0.0
    %v298 = vadd.f32 %v296, %v297
    %v299 = vsel %vm242, %v293, 0.0
    %v300 = vadd.f32 %v298, %v299
    %v301 = vrot.slane %v300, 4
    %v302 = vadd.f32 %v300, %v301
    %v303 = vrot.slane %v302, 2
    %v304 = vadd.f32 %v302, %v303
    %v305 = vrot.slane %v304, 1
    %v306 = vadd.f32 %v304, %v305
    %307 = vst.msk [vmem:[%s4 + $0x1] sm:$0x1] %vm288, %v306
  $region21: #{unet_generator.12} parent=0 // pred_fallthru
    _
  // Predicated region
  $region22: #{unet_generator.12} parent=0 // pred_check
    _
  $region23: #{unet_generator.12} parent=0 // pred_check_branch
    %309 = sbr.rel (0) target = $region25
  $region24: #{unet_generator.12} parent=0 // pred_region
    _
  $region25: #{unet_generator.12} parent=0 // pred_fallthru
    _
  // Predicated region
  $region26: #{unet_generator.12} parent=0 // pred_check
    _
  $region27: #{unet_generator.12} parent=0 // pred_check_branch
    %311 = sbr.rel (0) target = $region29
  $region28: #{unet_generator.12} parent=0 // pred_region
    _
  $region29: #{unet_generator.12} parent=0 // pred_fallthru
    _
  // Predicated region
  $region30: #{unet_generator.12} parent=0 // pred_check
    _
  $region31: #{unet_generator.12} parent=0 // pred_check_branch
    %313 = sbr.rel (0) target = $region33
  $region32: #{unet_generator.12} parent=0 // pred_region
    _
  $region33: #{unet_generator.12} parent=0 // pred_fallthru
    _
  // Predicated region
  $region34: #{unet_generator.12} parent=0 // pred_check
    _
  $region35: #{unet_generator.12} parent=0 // pred_check_branch
    %315 = sbr.rel (0) target = $region37
  $region36: #{unet_generator.12} parent=0 // pred_region
    _
  $region37: #{unet_generator.12} parent=0 // pred_fallthru
    _

// kernel: unet_generator.13
$region0: #{unet_generator.13}
  #allocation0 [shape = 'u32[]', space=smem, size = 0x4, offset = 0x4, fixed_abs, tag = 'smem constant byte address 0x4 - core index']
  #allocation1 [shape = 'u32[144,128]{1,0:T(1,128)}', space=vmem, size = 0x12000, scoped, tag = 'internal scratch']
  #allocation2 [shape = 'f32[8,64]{1,0:T(8,128)}', space=vmem, size = 0x1000, scoped, tag = 'scratch operand']
  %s0 = inlined_call_operand.vmem [shape: bf16[8,512], index: 0, kind: input, shape index: {}]
  %s1 = inlined_call_operand.vmem [shape: bf16[512,64], index: 1, kind: input, shape index: {}]
  %s2 = inlined_call_operand.vmem [shape: f32[1,64], index: 2, kind: input, shape index: {}]
  %s3 = inlined_call_operand.vmem [shape: bf16[8,64], index: 3, kind: output, shape index: {0}]
  %s4 = inlined_call_operand.vmem [shape: f32[1,2,64], index: 4, kind: output, shape index: {1}]
  %5 = xla_tuple %s3, %s4
  %s6 = sld [smem:[#allocation0]]
  $region38: #{unet_generator.13} parent=0
    _
  %s8 = ssub.s32 1, %s6
  %s9 = scalar_select 0, %s8, %s6
  // Predicated region
  $region2: #{unet_generator.13} parent=0 // pred_check
    _
  $region3: #{unet_generator.13} parent=0 // pred_check_branch
    %11 = sbr.rel (0) target = $region5
  $region4: #{unet_generator.13} parent=0 // pred_region
    _
  $region5: #{unet_generator.13} parent=0 // pred_fallthru
    _
  // Predicated region
  $region6: #{unet_generator.13} parent=0 // pred_check
    _
  $region7: #{unet_generator.13} parent=0 // pred_check_branch
    %13 = sbr.rel (0) target = $region9
  $region8: #{unet_generator.13} parent=0 // pred_region
    _
  $region9: #{unet_generator.13} parent=0 // pred_fallthru
    _
  // Predicated region
  $region10: #{unet_generator.13} parent=0 // pred_check
    _
  $region11: #{unet_generator.13} parent=0 // pred_check_branch
    %15 = sbr.rel (0) target = $region13
  $region12: #{unet_generator.13} parent=0 // pred_region
    _
  $region13: #{unet_generator.13} parent=0 // pred_fallthru
    _
  %p17 = scmp.eq.s32.totalorder 0, 0
  // Predicated region
  $region14: #{unet_generator.13} parent=0 // pred_check
    %p18 = pneg %p17
  $region15: #{unet_generator.13} parent=0 // pred_check_branch
    %20 = sbr.rel (%p18) target = $region17
  $region16: #{unet_generator.13} parent=0 // pred_region
    %v21 = vld [vmem:[%s2] sm:$0x1]
    %v23 = vlaneseq
    %v24 = vshrl.u32 %v23, 7
    %v25 = vsub.s32 0, %v24
    %v26 = vrot.slane %v21, %v25
    %vm28 = vcmask 523264
    %29 = vst.msk [vmem:[#allocation2] sm:$0xff] %vm28, %v26
  $region17: #{unet_generator.13} parent=0 // pred_fallthru
    _
  %v30 = vld [vmem:[#allocation2] sm:$0xff]
  %v31 = vld [vmem:[%s0] sm:$0xff]
  %v32 = vld [vmem:[%s0 + $0x8] sm:$0xff]
  %v33 = vld [vmem:[%s1] sm:$0xf]
  %v34 = vld [vmem:[%s1 + $0x4] sm:$0xf]
  %v35 = vld [vmem:[%s1 + $0x8] sm:$0xf]
  %v36 = vld [vmem:[%s1 + $0xc] sm:$0xf]
  %v37 = vld [vmem:[%s1 + $0x10] sm:$0xf]
  %v38 = vld [vmem:[%s1 + $0x14] sm:$0xf]
  %v39 = vld [vmem:[%s1 + $0x18] sm:$0xf]
  %v40 = vld [vmem:[%s1 + $0x1c] sm:$0xf]
  %v41 = vld [vmem:[%s1 + $0x20] sm:$0xf]
  %v42 = vld [vmem:[%s1 + $0x24] sm:$0xf]
  %v43 = vld [vmem:[%s1 + $0x28] sm:$0xf]
  %v44 = vld [vmem:[%s1 + $0x2c] sm:$0xf]
  %v45 = vld [vmem:[%s1 + $0x30] sm:$0xf]
  %v46 = vld [vmem:[%s1 + $0x34] sm:$0xf]
  %v47 = vld [vmem:[%s1 + $0x38] sm:$0xf]
  %v48 = vld [vmem:[%s1 + $0x3c] sm:$0xf]
  %v49 = vld [vmem:[%s1 + $0x40] sm:$0xf]
  %v50 = vld [vmem:[%s1 + $0x44] sm:$0xf]
  %v51 = vld [vmem:[%s1 + $0x48] sm:$0xf]
  %v52 = vld [vmem:[%s1 + $0x4c] sm:$0xf]
  %v53 = vld [vmem:[%s1 + $0x50] sm:$0xf]
  %v54 = vld [vmem:[%s1 + $0x54] sm:$0xf]
  %v55 = vld [vmem:[%s1 + $0x58] sm:$0xf]
  %v56 = vld [vmem:[%s1 + $0x5c] sm:$0xf]
  %v57 = vld [vmem:[%s1 + $0x60] sm:$0xf]
  %v58 = vld [vmem:[%s1 + $0x64] sm:$0xf]
  %v59 = vld [vmem:[%s1 + $0x68] sm:$0xf]
  %v60 = vld [vmem:[%s1 + $0x6c] sm:$0xf]
  %v61 = vld [vmem:[%s1 + $0x70] sm:$0xf]
  %v62 = vld [vmem:[%s1 + $0x74] sm:$0xf]
  %v63 = vld [vmem:[%s1 + $0x78] sm:$0xf]
  %v64 = vld [vmem:[%s1 + $0x7c] sm:$0xf]
  %v65 = vld [vmem:[%s1 + $0x80] sm:$0xf]
  %v66 = vld [vmem:[%s1 + $0x84] sm:$0xf]
  %v67 = vld [vmem:[%s1 + $0x88] sm:$0xf]
  %v68 = vld [vmem:[%s1 + $0x8c] sm:$0xf]
  %v69 = vld [vmem:[%s1 + $0x90] sm:$0xf]
  %v70 = vld [vmem:[%s1 + $0x94] sm:$0xf]
  %v71 = vld [vmem:[%s1 + $0x98] sm:$0xf]
  %v72 = vld [vmem:[%s1 + $0x9c] sm:$0xf]
  %v73 = vld [vmem:[%s1 + $0xa0] sm:$0xf]
  %v74 = vld [vmem:[%s1 + $0xa4] sm:$0xf]
  %v75 = vld [vmem:[%s1 + $0xa8] sm:$0xf]
  %v76 = vld [vmem:[%s1 + $0xac] sm:$0xf]
  %v77 = vld [vmem:[%s1 + $0xb0] sm:$0xf]
  %v78 = vld [vmem:[%s1 + $0xb4] sm:$0xf]
  %v79 = vld [vmem:[%s1 + $0xb8] sm:$0xf]
  %v80 = vld [vmem:[%s1 + $0xbc] sm:$0xf]
  %v81 = vld [vmem:[%s1 + $0xc0] sm:$0xf]
  %v82 = vld [vmem:[%s1 + $0xc4] sm:$0xf]
  %v83 = vld [vmem:[%s1 + $0xc8] sm:$0xf]
  %v84 = vld [vmem:[%s1 + $0xcc] sm:$0xf]
  %v85 = vld [vmem:[%s1 + $0xd0] sm:$0xf]
  %v86 = vld [vmem:[%s1 + $0xd4] sm:$0xf]
  %v87 = vld [vmem:[%s1 + $0xd8] sm:$0xf]
  %v88 = vld [vmem:[%s1 + $0xdc] sm:$0xf]
  %v89 = vld [vmem:[%s1 + $0xe0] sm:$0xf]
  %v90 = vld [vmem:[%s1 + $0xe4] sm:$0xf]
  %v91 = vld [vmem:[%s1 + $0xe8] sm:$0xf]
  %v92 = vld [vmem:[%s1 + $0xec] sm:$0xf]
  %v93 = vld [vmem:[%s1 + $0xf0] sm:$0xf]
  %v94 = vld [vmem:[%s1 + $0xf4] sm:$0xf]
  %v95 = vld [vmem:[%s1 + $0xf8] sm:$0xf]
  %v96 = vld [vmem:[%s1 + $0xfc] sm:$0xf]
  %v99 = vunpack.c.l.b16 %v31
  %v100 = vunpack.c.h.b16 %v31
  %v101 = vunpack.c.l.b16 %v32
  %v102 = vunpack.c.h.b16 %v32
  %v103 = vpack.c.b16 %v99, %v99
  %v104 = vpack.c.b16 %v100, %v100
  %v105 = vpack.c.b16 %v101, %v101
  %v106 = vpack.c.b16 %v102, %v102
  %v175 = vunpack.c.l.b16 %v33
  %v176 = vunpack.c.l.b16 %v34
  %v177 = vunpack.c.l.b16 %v35
  %v178 = vunpack.c.l.b16 %v36
  %v179 = vunpack.c.l.b16 %v37
  %v180 = vunpack.c.l.b16 %v38
  %v181 = vunpack.c.l.b16 %v39
  %v182 = vunpack.c.l.b16 %v40
  %v183 = vunpack.c.l.b16 %v41
  %v184 = vunpack.c.l.b16 %v42
  %v185 = vunpack.c.l.b16 %v43
  %v186 = vunpack.c.l.b16 %v44
  %v187 = vunpack.c.l.b16 %v45
  %v188 = vunpack.c.l.b16 %v46
  %v189 = vunpack.c.l.b16 %v47
  %v190 = vunpack.c.l.b16 %v48
  %v191 = vunpack.c.l.b16 %v49
  %v192 = vunpack.c.l.b16 %v50
  %v193 = vunpack.c.l.b16 %v51
  %v194 = vunpack.c.l.b16 %v52
  %v195 = vunpack.c.l.b16 %v53
  %v196 = vunpack.c.l.b16 %v54
  %v197 = vunpack.c.l.b16 %v55
  %v198 = vunpack.c.l.b16 %v56
  %v199 = vunpack.c.l.b16 %v57
  %v200 = vunpack.c.l.b16 %v58
  %v201 = vunpack.c.l.b16 %v59
  %v202 = vunpack.c.l.b16 %v60
  %v203 = vunpack.c.l.b16 %v61
  %v204 = vunpack.c.l.b16 %v62
  %v205 = vunpack.c.l.b16 %v63
  %v206 = vunpack.c.l.b16 %v64
  %v207 = vunpack.c.l.b16 %v65
  %v208 = vunpack.c.l.b16 %v66
  %v209 = vunpack.c.l.b16 %v67
  %v210 = vunpack.c.l.b16 %v68
  %v211 = vunpack.c.l.b16 %v69
  %v212 = vunpack.c.l.b16 %v70
  %v213 = vunpack.c.l.b16 %v71
  %v214 = vunpack.c.l.b16 %v72
  %v215 = vunpack.c.l.b16 %v73
  %v216 = vunpack.c.l.b16 %v74
  %v217 = vunpack.c.l.b16 %v75
  %v218 = vunpack.c.l.b16 %v76
  %v219 = vunpack.c.l.b16 %v77
  %v220 = vunpack.c.l.b16 %v78
  %v221 = vunpack.c.l.b16 %v79
  %v222 = vunpack.c.l.b16 %v80
  %v223 = vunpack.c.l.b16 %v81
  %v224 = vunpack.c.l.b16 %v82
  %v225 = vunpack.c.l.b16 %v83
  %v226 = vunpack.c.l.b16 %v84
  %v227 = vunpack.c.l.b16 %v85
  %v228 = vunpack.c.l.b16 %v86
  %v229 = vunpack.c.l.b16 %v87
  %v230 = vunpack.c.l.b16 %v88
  %v231 = vunpack.c.l.b16 %v89
  %v232 = vunpack.c.l.b16 %v90
  %v233 = vunpack.c.l.b16 %v91
  %v234 = vunpack.c.l.b16 %v92
  %v235 = vunpack.c.l.b16 %v93
  %v236 = vunpack.c.l.b16 %v94
  %v237 = vunpack.c.l.b16 %v95
  %v238 = vunpack.c.l.b16 %v96
  %v239 = vpack.c.b16 %v176, %v175
  %v240 = vpack.c.b16 %v178, %v177
  %v241 = vpack.c.b16 %v180, %v179
  %v242 = vpack.c.b16 %v182, %v181
  %v243 = vpack.c.b16 %v184, %v183
  %v244 = vpack.c.b16 %v186, %v185
  %v245 = vpack.c.b16 %v188, %v187
  %v246 = vpack.c.b16 %v190, %v189
  %v247 = vpack.c.b16 %v192, %v191
  %v248 = vpack.c.b16 %v194, %v193
  %v249 = vpack.c.b16 %v196, %v195
  %v250 = vpack.c.b16 %v198, %v197
  %v251 = vpack.c.b16 %v200, %v199
  %v252 = vpack.c.b16 %v202, %v201
  %v253 = vpack.c.b16 %v204, %v203
  %v254 = vpack.c.b16 %v206, %v205
  %v255 = vpack.c.b16 %v208, %v207
  %v256 = vpack.c.b16 %v210, %v209
  %v257 = vpack.c.b16 %v212, %v211
  %v258 = vpack.c.b16 %v214, %v213
  %v259 = vpack.c.b16 %v216, %v215
  %v260 = vpack.c.b16 %v218, %v217
  %v261 = vpack.c.b16 %v220, %v219
  %v262 = vpack.c.b16 %v222, %v221
  %v263 = vpack.c.b16 %v224, %v223
  %v264 = vpack.c.b16 %v226, %v225
  %v265 = vpack.c.b16 %v228, %v227
  %v266 = vpack.c.b16 %v230, %v229
  %v267 = vpack.c.b16 %v232, %v231
  %v268 = vpack.c.b16 %v234, %v233
  %v269 = vpack.c.b16 %v236, %v235
  %v270 = vpack.c.b16 %v238, %v237
  %303 = vmatprep.subr.bf16.mxu0 0
  %304 = vmatpush1.bf16.msra.mxu0 %v246
  %305 = vmatprep.subr.bf16.mxu0 0
  %306 = vmatpush1.bf16.msra.mxu0 %v245
  %307 = vmatprep.subr.bf16.mxu0 0
  %308 = vmatpush1.bf16.msra.mxu0 %v244
  %309 = vmatprep.subr.bf16.mxu0 0
  %310 = vmatpush1.bf16.msra.mxu0 %v243
  %311 = vmatprep.subr.bf16.mxu0 0
  %312 = vmatpush1.bf16.msra.mxu0 %v242
  %313 = vmatprep.subr.bf16.mxu0 0
  %314 = vmatpush1.bf16.msra.mxu0 %v241
  %315 = vmatprep.subr.bf16.mxu0 0
  %316 = vmatpush1.bf16.msra.mxu0 %v240
  %317 = vmatprep.subr.bf16.mxu0 0
  %318 = vmatpush1.bf16.msra.mxu0 %v239
  %319 = vmatprep.subr.bf16.mxu0 0
  %320 = vmatpush2.bf16.msra.mxu0 %v254
  %321 = vmatprep.subr.bf16.mxu0 0
  %322 = vmatpush2.bf16.msra.mxu0 %v253
  %323 = vmatprep.subr.bf16.mxu0 0
  %324 = vmatpush2.bf16.msra.mxu0 %v252
  %325 = vmatprep.subr.bf16.mxu0 0
  %326 = vmatpush2.bf16.msra.mxu0 %v251
  %327 = vmatprep.subr.bf16.mxu0 0
  %328 = vmatpush2.bf16.msra.mxu0 %v250
  %329 = vmatprep.subr.bf16.mxu0 0
  %330 = vmatpush2.bf16.msra.mxu0 %v249
  %331 = vmatprep.subr.bf16.mxu0 0
  %332 = vmatpush2.bf16.msra.mxu0 %v248
  %333 = vmatprep.subr.bf16.mxu0 0
  %334 = vmatpush2.bf16.msra.mxu0 %v247
  %335 = vmatprep.mubr.bf16.mxu0 %v104
  %336 = vmatmul.mubr.bf16.gmra.mxu0 %v103
  %v337 = vpop.f32.mrf.mxu0
  %v338 = vadd.f32 0.0, %v337
  %v339 = vpop.f32.mrf.mxu0
  %v340 = vpop.f32.mrf.mxu0
  %v341 = vpop.f32.mrf.mxu0
  %342 = vdwg.mxu0
  %343 = vmatprep.subr.bf16.mxu0 0
  %344 = vmatpush1.bf16.msra.mxu0 %v262
  %345 = vmatprep.subr.bf16.mxu0 0
  %346 = vmatpush1.bf16.msra.mxu0 %v261
  %347 = vmatprep.subr.bf16.mxu0 0
  %348 = vmatpush1.bf16.msra.mxu0 %v260
  %349 = vmatprep.subr.bf16.mxu0 0
  %350 = vmatpush1.bf16.msra.mxu0 %v259
  %351 = vmatprep.subr.bf16.mxu0 0
  %352 = vmatpush1.bf16.msra.mxu0 %v258
  %353 = vmatprep.subr.bf16.mxu0 0
  %354 = vmatpush1.bf16.msra.mxu0 %v257
  %355 = vmatprep.subr.bf16.mxu0 0
  %356 = vmatpush1.bf16.msra.mxu0 %v256
  %357 = vmatprep.subr.bf16.mxu0 0
  %358 = vmatpush1.bf16.msra.mxu0 %v255
  %359 = vmatprep.subr.bf16.mxu0 0
  %360 = vmatpush2.bf16.msra.mxu0 %v270
  %361 = vmatprep.subr.bf16.mxu0 0
  %362 = vmatpush2.bf16.msra.mxu0 %v269
  %363 = vmatprep.subr.bf16.mxu0 0
  %364 = vmatpush2.bf16.msra.mxu0 %v268
  %365 = vmatprep.subr.bf16.mxu0 0
  %366 = vmatpush2.bf16.msra.mxu0 %v267
  %367 = vmatprep.subr.bf16.mxu0 0
  %368 = vmatpush2.bf16.msra.mxu0 %v266
  %369 = vmatprep.subr.bf16.mxu0 0
  %370 = vmatpush2.bf16.msra.mxu0 %v265
  %371 = vmatprep.subr.bf16.mxu0 0
  %372 = vmatpush2.bf16.msra.mxu0 %v264
  %373 = vmatprep.subr.bf16.mxu0 0
  %374 = vmatpush2.bf16.msra.mxu0 %v263
  %375 = vmatprep.mubr.bf16.mxu0 %v106
  %376 = vmatmul.mubr.bf16.gmra.mxu0 %v105
  %v377 = vpop.f32.mrf.mxu0
  %v378 = vadd.f32 %v338, %v377
  %v379 = vpop.f32.mrf.mxu0
  %v380 = vpop.f32.mrf.mxu0
  %v381 = vpop.f32.mrf.mxu0
  %382 = vdwg.mxu0
  %v383 = vadd.f32 %v30, %v378
  %vm384 = vcmask 523264
  %385 = vst.msk [vmem:[#allocation2] sm:$0xff] %vm384, %v383
  // Predicated region
  $region18: #{unet_generator.13} parent=0 // pred_check
    %p386 = pneg %p17
  $region19: #{unet_generator.13} parent=0 // pred_check_branch
    %388 = sbr.rel (%p386) target = $region21
  $region20: #{unet_generator.13} parent=0 // pred_region
    %v389 = vld [vmem:[#allocation2] sm:$0xff]
    %v390 = vpack.c.bf16 %v389, %v389
    %vm391 = vcmask 519168
    %392 = vst.msk [vmem:[%s3] sm:$0xf] %vm391, %v390
    %v393 = vsel %vm384, %v389, 0.0
    %v394 = vrot.slane %v393, 4
    %v395 = vadd.f32 %v393, %v394
    %v396 = vrot.slane %v395, 2
    %v397 = vadd.f32 %v395, %v396
    %v398 = vrot.slane %v397, 1
    %v399 = vadd.f32 %v397, %v398
    %vm400 = vcmask 516096
    %401 = vst.msk [vmem:[%s4] sm:$0x1] %vm400, %v399
    %v402 = vmul.f32 %v389, %v389
    %v403 = vsel %vm384, %v402, 0.0
    %v404 = vrot.slane %v403, 4
    %v405 = vadd.f32 %v403, %v404
    %v406 = vrot.slane %v405, 2
    %v407 = vadd.f32 %v405, %v406
    %v408 = vrot.slane %v407, 1
    %v409 = vadd.f32 %v407, %v408
    %410 = vst.msk [vmem:[%s4 + $0x1] sm:$0x1] %vm400, %v409
  $region21: #{unet_generator.13} parent=0 // pred_fallthru
    _
  // Predicated region
  $region22: #{unet_generator.13} parent=0 // pred_check
    _
  $region23: #{unet_generator.13} parent=0 // pred_check_branch
    %412 = sbr.rel (0) target = $region25
  $region24: #{unet_generator.13} parent=0 // pred_region
    _
  $region25: #{unet_generator.13} parent=0 // pred_fallthru
    _
  // Predicated region
  $region26: #{unet_generator.13} parent=0 // pred_check
    _
  $region27: #{unet_generator.13} parent=0 // pred_check_branch
    %414 = sbr.rel (0) target = $region29
  $region28: #{unet_generator.13} parent=0 // pred_region
    _
  $region29: #{unet_generator.13} parent=0 // pred_fallthru
    _
  // Predicated region
  $region30: #{unet_generator.13} parent=0 // pred_check
    _
  $region31: #{unet_generator.13} parent=0 // pred_check_branch
    %416 = sbr.rel (0) target = $region33
  $region32: #{unet_generator.13} parent=0 // pred_region
    _
  $region33: #{unet_generator.13} parent=0 // pred_fallthru
    _
  // Predicated region
  $region34: #{unet_generator.13} parent=0 // pred_check
    _
  $region35: #{unet_generator.13} parent=0 // pred_check_branch
    %418 = sbr.rel (0) target = $region37
  $region36: #{unet_generator.13} parent=0 // pred_region
    _
  $region37: #{unet_generator.13} parent=0 // pred_fallthru
    _

// kernel: unet_generator.14
$region0: #{unet_generator.14}
  #allocation0 [shape = 'u32[]', space=smem, size = 0x4, offset = 0x4, fixed_abs, tag = 'smem constant byte address 0x4 - core index']
  #allocation1 [shape = 'u32[144,128]{1,0:T(1,128)}', space=vmem, size = 0x12000, scoped, tag = 'internal scratch']
  #allocation2 [shape = 'f32[2,64]{1,0:T(2,128)}', space=vmem, size = 0x400, scoped, tag = 'scratch operand']
  %s0 = inlined_call_operand.vmem [shape: bf16[2,1024], index: 0, kind: input, shape index: {}]
  %s1 = inlined_call_operand.vmem [shape: bf16[1024,64], index: 1, kind: input, shape index: {}]
  %s2 = inlined_call_operand.vmem [shape: f32[1,64], index: 2, kind: input, shape index: {}]
  %s3 = inlined_call_operand.vmem [shape: bf16[2,64], index: 3, kind: output, shape index: {}]
  %s4 = sld [smem:[#allocation0]]
  $region53: #{unet_generator.14} parent=0
    _
  %s6 = ssub.s32 1, %s4
  %s7 = scalar_select 0, %s6, %s4
  loop: start=0, step=1, limit=4
  $region2: #{unet_generator.14} parent=0 // loop_pre_header
    _
  $region3: #{unet_generator.14} parent=0 // loop_header
    %s9 = sphi 0, %s13
    %p10 = scmp.ge.s32.totalorder %s9, 4
    %s16 = sphi 0, %s28
    %s17 = sphi 0, %s24
    %s18 = sphi 0, %s16
    %s19 = sphi 0, %s17
    %s20 = sphi 0, %s18
    %s21 = sphi 0, %s19
    %s33 = sphi 0, %s35
    %s36 = sphi 0, %s33
    %s37 = sphi 0, %s36
    %s53 = sphi 0, %s37
    %s59 = sphi 0, %s61
    %s62 = sphi 0, %s59
    %s63 = sphi 0, %s62
    %s79 = sphi 0, %s63
    %s83 = sphi 0, %s83
    %s85 = sphi 0, %s83
    %s86 = sphi 0, %s85
    %s100 = sphi 0, %s86
    %s106 = sphi 0, %s108
    %s109 = sphi 0, %s106
    %s110 = sphi 0, %s109
    %s126 = sphi 0, %s110
  $region4: #{unet_generator.14} parent=0 // loop_header_branch
    %12 = sbr.rel (%p10) target = $region8
  $region5: #{unet_generator.14} parent=0 // loop_body
    %s14 = ssub.s32 %s9, 1
    %s15 = ssub.s32 %s9, 2
    %s22 = sadd.s32 1, %s17
    %p23 = scmp.ge.s32.totalorder %s22, 2
    %s24 = scalar_select %p23, 0, %s22
    %s25 = sadd.s32 1, %s16
    %s26 = scalar_select %p23, %s25, %s16
    %p27 = scmp.ge.s32.totalorder %s26, 1
    %s28 = scalar_select %p27, 0, %s26
    %s29 = ssub.s32 %s16, %s28
    %s30 = ssub.s32 %s17, %s24
    %s31 = sor.u32 %s29, %s30
    %p32 = scmp.eq.s32.totalorder %s31, 0
    %s34 = sadd.s32 %s33, 1
    %s35 = scalar_select %p32, %s33, %s34
    %p38 = pneg %p32
    %p39 = scmp.eq.s32.totalorder %s9, 1
    %p40 = por %p38, %p39
    %p41 = scmp.ne.s32.totalorder %s33, %s36
    %p42 = scmp.eq.s32.totalorder %s9, 0
    %p43 = por %p41, %p42
    %p44 = scmp.ne.s32.totalorder %s33, %s36
    %p45 = scmp.eq.s32.totalorder %s14, 1
    %p46 = por %p44, %p45
    %p47 = scmp.ne.s32.totalorder %s36, %s37
    %p48 = scmp.eq.s32.totalorder %s14, 0
    %p49 = por %p47, %p48
    %p50 = scmp.ne.s32.totalorder %s36, %s37
    %p51 = scmp.eq.s32.totalorder %s15, 1
    %p52 = por %p50, %p51
    %p54 = scmp.ne.s32.totalorder %s37, %s53
    %p55 = scmp.eq.s32.totalorder %s15, 0
    %p56 = por %p54, %p55
    %s57 = ssub.s32 %s17, %s24
    %p58 = scmp.eq.s32.totalorder %s57, 0
    %s60 = sadd.s32 %s59, 1
    %s61 = scalar_select %p58, %s59, %s60
    %p64 = pneg %p58
    %p65 = scmp.eq.s32.totalorder %s9, 1
    %p66 = por %p64, %p65
    %p67 = scmp.ne.s32.totalorder %s59, %s62
    %p68 = scmp.eq.s32.totalorder %s9, 0
    %p69 = por %p67, %p68
    %p70 = scmp.ne.s32.totalorder %s59, %s62
    %p71 = scmp.eq.s32.totalorder %s14, 1
    %p72 = por %p70, %p71
    %p73 = scmp.ne.s32.totalorder %s62, %s63
    %p74 = scmp.eq.s32.totalorder %s14, 0
    %p75 = por %p73, %p74
    %p76 = scmp.ne.s32.totalorder %s62, %s63
    %p77 = scmp.eq.s32.totalorder %s15, 1
    %p78 = por %p76, %p77
    %p80 = scmp.ne.s32.totalorder %s63, %s79
    %p81 = scmp.eq.s32.totalorder %s15, 0
    %p82 = por %p80, %p81
    %s84 = sadd.s32 %s83, 1
    %p87 = scmp.eq.s32.totalorder %s9, 1
    %p88 = scmp.ne.s32.totalorder %s83, %s85
    %p89 = scmp.eq.s32.totalorder %s9, 0
    %p90 = por %p88, %p89
    %p91 = scmp.ne.s32.totalorder %s83, %s85
    %p92 = scmp.eq.s32.totalorder %s14, 1
    %p93 = por %p91, %p92
    %p94 = scmp.ne.s32.totalorder %s85, %s86
    %p95 = scmp.eq.s32.totalorder %s14, 0
    %p96 = por %p94, %p95
    %p97 = scmp.ne.s32.totalorder %s85, %s86
    %p98 = scmp.eq.s32.totalorder %s15, 1
    %p99 = por %p97, %p98
    %p101 = scmp.ne.s32.totalorder %s86, %s100
    %p102 = scmp.eq.s32.totalorder %s15, 0
    %p103 = por %p101, %p102
    %s104 = ssub.s32 %s16, %s28
    %p105 = scmp.eq.s32.totalorder %s104, 0
    %s107 = sadd.s32 %s106, 1
    %s108 = scalar_select %p105, %s106, %s107
    %p111 = pneg %p105
    %p112 = scmp.eq.s32.totalorder %s9, 1
    %p113 = por %p111, %p112
    %p114 = scmp.ne.s32.totalorder %s106, %s109
    %p115 = scmp.eq.s32.totalorder %s9, 0
    %p116 = por %p114, %p115
    %p117 = scmp.ne.s32.totalorder %s106, %s109
    %p118 = scmp.eq.s32.totalorder %s14, 1
    %p119 = por %p117, %p118
    %p120 = scmp.ne.s32.totalorder %s109, %s110
    %p121 = scmp.eq.s32.totalorder %s14, 0
    %p122 = por %p120, %p121
    %p123 = scmp.ne.s32.totalorder %s109, %s110
    %p124 = scmp.eq.s32.totalorder %s15, 1
    %p125 = por %p123, %p124
    %p127 = scmp.ne.s32.totalorder %s110, %s126
    %p128 = scmp.eq.s32.totalorder %s15, 0
    %p129 = por %p127, %p128
    %p130 = scmp.le.s32.totalorder 1, %s9
    %p131 = scmp.lt.s32.totalorder %s9, 3
    %p132 = pnand %p130, %p131
    %p133 = pneg %p132
    // Predicated region
    $region9: #{unet_generator.14} parent=5 // pred_check
      _
    $region10: #{unet_generator.14} parent=5 // pred_check_branch
      %135 = sbr.rel (%p132) target = $region12
    $region11: #{unet_generator.14} parent=5 // pred_region
      %s136 = ssub.s32 %s9, 1
      // Predicated region
      $region13: #{unet_generator.14} parent=11 // pred_check
        %p137 = pneg %p96
      $region14: #{unet_generator.14} parent=11 // pred_check_branch
        %139 = sbr.rel (%p137) target = $region16
      $region15: #{unet_generator.14} parent=11 // pred_region
        _
      $region16: #{unet_generator.14} parent=11 // pred_fallthru
        _
    $region12: #{unet_generator.14} parent=5 // pred_fallthru
      _
    %p140 = scmp.lt.s32.totalorder %s9, 2
    // Predicated region
    $region17: #{unet_generator.14} parent=5 // pred_check
      %p141 = pneg %p140
    $region18: #{unet_generator.14} parent=5 // pred_check_branch
      %143 = sbr.rel (%p141) target = $region20
    $region19: #{unet_generator.14} parent=5 // pred_region
      // Predicated region
      $region21: #{unet_generator.14} parent=19 // pred_check
        %p144 = pneg %p43
      $region22: #{unet_generator.14} parent=19 // pred_check_branch
        %146 = sbr.rel (%p144) target = $region24
      $region23: #{unet_generator.14} parent=19 // pred_region
        %s147 = smul.u32 4, %s17
        %p148 = scmp.lt.s32.totalorder %s16, 0
        %s149 = scalar_select %p148, %s16, 0
        %p150 = scmp.lt.s32.totalorder %s147, 7
        %s151 = scalar_select %p150, %s147, 7
        %s152 = smul.addr %s149, 8
        %s153 = sadd.s32 %s151, %s152
        %s154 = scalar_lea.vmem %s0, %s153
        %s155 = smul.u32 4, %s17
      $region24: #{unet_generator.14} parent=19 // pred_fallthru
        _
      // Predicated region
      $region25: #{unet_generator.14} parent=19 // pred_check
        %p156 = pneg %p69
      $region26: #{unet_generator.14} parent=19 // pred_check_branch
        %158 = sbr.rel (%p156) target = $region28
      $region27: #{unet_generator.14} parent=19 // pred_region
        %s159 = smul.u32 64, %s17
        %p160 = scmp.lt.s32.totalorder %s159, 127
        %s161 = scalar_select %p160, %s159, 127
        %s162 = smul.addr %s161, 4
        %s163 = scalar_lea.vmem %s1, %s162
        %s164 = smul.u32 64, %s17
      $region28: #{unet_generator.14} parent=19 // pred_fallthru
        _
    $region20: #{unet_generator.14} parent=5 // pred_fallthru
      _
    %p165 = scmp.le.s32.totalorder 1, %s9
    %p166 = scmp.lt.s32.totalorder %s9, 3
    %p167 = pnand %p165, %p166
    %p168 = pneg %p167
    // Predicated region
    $region29: #{unet_generator.14} parent=5 // pred_check
      _
    $region30: #{unet_generator.14} parent=5 // pred_check_branch
      %170 = sbr.rel (%p167) target = $region32
    $region31: #{unet_generator.14} parent=5 // pred_region
      %s171 = ssub.s32 %s9, 1
      %s172 = smul.u32 4, %s19
      %p173 = scmp.lt.s32.totalorder %s18, 0
      %s174 = scalar_select %p173, %s18, 0
      %p175 = scmp.lt.s32.totalorder %s172, 7
      %s176 = scalar_select %p175, %s172, 7
      %s177 = smul.addr %s174, 8
      %s178 = sadd.s32 %s176, %s177
      %s179 = scalar_lea.vmem %s0, %s178
      %p180 = pneg %p49
      %p181 = pneg %p46
      %s182 = smul.u32 64, %s19
      %p183 = scmp.lt.s32.totalorder %s182, 127
      %s184 = scalar_select %p183, %s182, 127
      %s185 = smul.addr %s184, 4
      %s186 = scalar_lea.vmem %s1, %s185
      %p187 = pneg %p75
      %p188 = pneg %p72
      %p189 = pneg %p96
      %p190 = pneg %p93
      %p191 = pneg %p122
      %p192 = pneg %p119
      %p193 = scmp.lt.s32.totalorder %s18, 0
      %s194 = scalar_select %p193, %s18, 0
      %s195 = scalar_lea.vmem %s3, %s194
      %s196 = smul.u32 4, %s19
      %p197 = scmp.lt.s32.totalorder %s18, 0
      %s198 = scalar_select %p197, %s18, 0
      %p199 = scmp.lt.s32.totalorder %s196, 7
      %s200 = scalar_select %p199, %s196, 7
      %s201 = smul.addr %s198, 8
      %s202 = sadd.s32 %s200, %s201
      %s203 = scalar_lea.vmem %s0, %s202
      %s204 = smul.u32 4, %s19
      %s205 = smul.u32 64, %s19
      %p206 = scmp.lt.s32.totalorder %s205, 127
      %s207 = scalar_select %p206, %s205, 127
      %s208 = smul.addr %s207, 4
      %s209 = scalar_lea.vmem %s1, %s208
      %s210 = smul.u32 64, %s19
      %p211 = scmp.lt.s32.totalorder %s18, 0
      %s212 = scalar_select %p211, %s18, 0
      %s213 = scalar_lea.vmem %s3, %s212
      %p215 = scmp.eq.s32.totalorder %s19, 0
      // Predicated region
      $region33: #{unet_generator.14} parent=31 // pred_check
        %p216 = pneg %p215
      $region34: #{unet_generator.14} parent=31 // pred_check_branch
        %218 = sbr.rel (%p216) target = $region36
      $region35: #{unet_generator.14} parent=31 // pred_region
        %v219 = vld [vmem:[%s2] sm:$0x1]
        %v221 = vlaneseq
        %v222 = vshrl.u32 %v221, 7
        %v223 = vsub.s32 0, %v222
        %v224 = vrot.slane %v219, %v223
        %vm226 = vcmask 517120
        %227 = vst.msk [vmem:[#allocation2] sm:$0x3] %vm226, %v224
      $region36: #{unet_generator.14} parent=31 // pred_fallthru
        _
      %v228 = vld [vmem:[#allocation2] sm:$0x3]
      %v229 = vld [vmem:[%s203] sm:$0xf]
      %v230 = vld [vmem:[%s209] sm:$0xf]
      %v231 = vld [vmem:[%s209 + $0x4] sm:$0xf]
      %v232 = vld [vmem:[%s209 + $0x8] sm:$0xf]
      %v233 = vld [vmem:[%s209 + $0xc] sm:$0xf]
      %v234 = vld [vmem:[%s209 + $0x10] sm:$0xf]
      %v235 = vld [vmem:[%s209 + $0x14] sm:$0xf]
      %v236 = vld [vmem:[%s209 + $0x18] sm:$0xf]
      %v237 = vld [vmem:[%s209 + $0x1c] sm:$0xf]
      %v238 = vld [vmem:[%s209 + $0x20] sm:$0xf]
      %v239 = vld [vmem:[%s209 + $0x24] sm:$0xf]
      %v240 = vld [vmem:[%s209 + $0x28] sm:$0xf]
      %v241 = vld [vmem:[%s209 + $0x2c] sm:$0xf]
      %v242 = vld [vmem:[%s209 + $0x30] sm:$0xf]
      %v243 = vld [vmem:[%s209 + $0x34] sm:$0xf]
      %v244 = vld [vmem:[%s209 + $0x38] sm:$0xf]
      %v245 = vld [vmem:[%s209 + $0x3c] sm:$0xf]
      %v246 = vld [vmem:[%s209 + $0x40] sm:$0xf]
      %v247 = vld [vmem:[%s209 + $0x44] sm:$0xf]
      %v248 = vld [vmem:[%s209 + $0x48] sm:$0xf]
      %v249 = vld [vmem:[%s209 + $0x4c] sm:$0xf]
      %v250 = vld [vmem:[%s209 + $0x50] sm:$0xf]
      %v251 = vld [vmem:[%s209 + $0x54] sm:$0xf]
      %v252 = vld [vmem:[%s209 + $0x58] sm:$0xf]
      %v253 = vld [vmem:[%s209 + $0x5c] sm:$0xf]
      %v254 = vld [vmem:[%s209 + $0x60] sm:$0xf]
      %v255 = vld [vmem:[%s209 + $0x64] sm:$0xf]
      %v256 = vld [vmem:[%s209 + $0x68] sm:$0xf]
      %v257 = vld [vmem:[%s209 + $0x6c] sm:$0xf]
      %v258 = vld [vmem:[%s209 + $0x70] sm:$0xf]
      %v259 = vld [vmem:[%s209 + $0x74] sm:$0xf]
      %v260 = vld [vmem:[%s209 + $0x78] sm:$0xf]
      %v261 = vld [vmem:[%s209 + $0x7c] sm:$0xf]
      %v262 = vld [vmem:[%s209 + $0x80] sm:$0xf]
      %v263 = vld [vmem:[%s209 + $0x84] sm:$0xf]
      %v264 = vld [vmem:[%s209 + $0x88] sm:$0xf]
      %v265 = vld [vmem:[%s209 + $0x8c] sm:$0xf]
      %v266 = vld [vmem:[%s209 + $0x90] sm:$0xf]
      %v267 = vld [vmem:[%s209 + $0x94] sm:$0xf]
      %v268 = vld [vmem:[%s209 + $0x98] sm:$0xf]
      %v269 = vld [vmem:[%s209 + $0x9c] sm:$0xf]
      %v270 = vld [vmem:[%s209 + $0xa0] sm:$0xf]
      %v271 = vld [vmem:[%s209 + $0xa4] sm:$0xf]
      %v272 = vld [vmem:[%s209 + $0xa8] sm:$0xf]
      %v273 = vld [vmem:[%s209 + $0xac] sm:$0xf]
      %v274 = vld [vmem:[%s209 + $0xb0] sm:$0xf]
      %v275 = vld [vmem:[%s209 + $0xb4] sm:$0xf]
      %v276 = vld [vmem:[%s209 + $0xb8] sm:$0xf]
      %v277 = vld [vmem:[%s209 + $0xbc] sm:$0xf]
      %v278 = vld [vmem:[%s209 + $0xc0] sm:$0xf]
      %v279 = vld [vmem:[%s209 + $0xc4] sm:$0xf]
      %v280 = vld [vmem:[%s209 + $0xc8] sm:$0xf]
      %v281 = vld [vmem:[%s209 + $0xcc] sm:$0xf]
      %v282 = vld [vmem:[%s209 + $0xd0] sm:$0xf]
      %v283 = vld [vmem:[%s209 + $0xd4] sm:$0xf]
      %v284 = vld [vmem:[%s209 + $0xd8] sm:$0xf]
      %v285 = vld [vmem:[%s209 + $0xdc] sm:$0xf]
      %v286 = vld [vmem:[%s209 + $0xe0] sm:$0xf]
      %v287 = vld [vmem:[%s209 + $0xe4] sm:$0xf]
      %v288 = vld [vmem:[%s209 + $0xe8] sm:$0xf]
      %v289 = vld [vmem:[%s209 + $0xec] sm:$0xf]
      %v290 = vld [vmem:[%s209 + $0xf0] sm:$0xf]
      %v291 = vld [vmem:[%s209 + $0xf4] sm:$0xf]
      %v292 = vld [vmem:[%s209 + $0xf8] sm:$0xf]
      %v293 = vld [vmem:[%s209 + $0xfc] sm:$0xf]
      %v296 = vunpack.c.l.s4 1966171168
      %v297 = vunpack.c.0.s8 %v296
      %v298 = vlaneseq
      %v299 = vshrl.u32 %v298, 7
      %v300 = vsub.s32 %v297, %v299
      %v301 = vrot.slane %v229, %v300
      %v302 = vcombine.high %v301, %v301
      %v304 = vunpack.c.l.s4 1966171168
      %v305 = vunpack.c.0.s8 %v304
      %v306 = vlaneseq
      %v307 = vshrl.u32 %v306, 7
      %v308 = vsub.s32 %v305, %v307
      %v309 = vrot.slane %v301, %v308
      %v311 = vunpack.c.l.s4 1966171168
      %v312 = vunpack.c.0.s8 %v311
      %v313 = vlaneseq
      %v314 = vshrl.u32 %v313, 7
      %v315 = vsub.s32 %v312, %v314
      %v316 = vrot.slane %v302, %v315
      %v317 = vcombine.high %v309, %v309
      %v318 = vcombine.high %v316, %v316
      %v387 = vunpack.c.l.b16 %v230
      %v388 = vunpack.c.l.b16 %v231
      %v389 = vunpack.c.l.b16 %v232
      %v390 = vunpack.c.l.b16 %v233
      %v391 = vunpack.c.l.b16 %v234
      %v392 = vunpack.c.l.b16 %v235
      %v393 = vunpack.c.l.b16 %v236
      %v394 = vunpack.c.l.b16 %v237
      %v395 = vunpack.c.l.b16 %v238
      %v396 = vunpack.c.l.b16 %v239
      %v397 = vunpack.c.l.b16 %v240
      %v398 = vunpack.c.l.b16 %v241
      %v399 = vunpack.c.l.b16 %v242
      %v400 = vunpack.c.l.b16 %v243
      %v401 = vunpack.c.l.b16 %v244
      %v402 = vunpack.c.l.b16 %v245
      %v403 = vunpack.c.l.b16 %v246
      %v404 = vunpack.c.l.b16 %v247
      %v405 = vunpack.c.l.b16 %v248
      %v406 = vunpack.c.l.b16 %v249
      %v407 = vunpack.c.l.b16 %v250
      %v408 = vunpack.c.l.b16 %v251
      %v409 = vunpack.c.l.b16 %v252
      %v410 = vunpack.c.l.b16 %v253
      %v411 = vunpack.c.l.b16 %v254
      %v412 = vunpack.c.l.b16 %v255
      %v413 = vunpack.c.l.b16 %v256
      %v414 = vunpack.c.l.b16 %v257
      %v415 = vunpack.c.l.b16 %v258
      %v416 = vunpack.c.l.b16 %v259
      %v417 = vunpack.c.l.b16 %v260
      %v418 = vunpack.c.l.b16 %v261
      %v419 = vunpack.c.l.b16 %v262
      %v420 = vunpack.c.l.b16 %v263
      %v421 = vunpack.c.l.b16 %v264
      %v422 = vunpack.c.l.b16 %v265
      %v423 = vunpack.c.l.b16 %v266
      %v424 = vunpack.c.l.b16 %v267
      %v425 = vunpack.c.l.b16 %v268
      %v426 = vunpack.c.l.b16 %v269
      %v427 = vunpack.c.l.b16 %v270
      %v428 = vunpack.c.l.b16 %v271
      %v429 = vunpack.c.l.b16 %v272
      %v430 = vunpack.c.l.b16 %v273
      %v431 = vunpack.c.l.b16 %v274
      %v432 = vunpack.c.l.b16 %v275
      %v433 = vunpack.c.l.b16 %v276
      %v434 = vunpack.c.l.b16 %v277
      %v435 = vunpack.c.l.b16 %v278
      %v436 = vunpack.c.l.b16 %v279
      %v437 = vunpack.c.l.b16 %v280
      %v438 = vunpack.c.l.b16 %v281
      %v439 = vunpack.c.l.b16 %v282
      %v440 = vunpack.c.l.b16 %v283
      %v441 = vunpack.c.l.b16 %v284
      %v442 = vunpack.c.l.b16 %v285
      %v443 = vunpack.c.l.b16 %v286
      %v444 = vunpack.c.l.b16 %v287
      %v445 = vunpack.c.l.b16 %v288
      %v446 = vunpack.c.l.b16 %v289
      %v447 = vunpack.c.l.b16 %v290
      %v448 = vunpack.c.l.b16 %v291
      %v449 = vunpack.c.l.b16 %v292
      %v450 = vunpack.c.l.b16 %v293
      %v451 = vpack.c.b16 %v388, %v387
      %v452 = vpack.c.b16 %v390, %v389
      %v453 = vpack.c.b16 %v392, %v391
      %v454 = vpack.c.b16 %v394, %v393
      %v455 = vpack.c.b16 %v396, %v395
      %v456 = vpack.c.b16 %v398, %v397
      %v457 = vpack.c.b16 %v400, %v399
      %v458 = vpack.c.b16 %v402, %v401
      %v459 = vpack.c.b16 %v404, %v403
      %v460 = vpack.c.b16 %v406, %v405
      %v461 = vpack.c.b16 %v408, %v407
      %v462 = vpack.c.b16 %v410, %v409
      %v463 = vpack.c.b16 %v412, %v411
      %v464 = vpack.c.b16 %v414, %v413
      %v465 = vpack.c.b16 %v416, %v415
      %v466 = vpack.c.b16 %v418, %v417
      %v467 = vpack.c.b16 %v420, %v419
      %v468 = vpack.c.b16 %v422, %v421
      %v469 = vpack.c.b16 %v424, %v423
      %v470 = vpack.c.b16 %v426, %v425
      %v471 = vpack.c.b16 %v428, %v427
      %v472 = vpack.c.b16 %v430, %v429
      %v473 = vpack.c.b16 %v432, %v431
      %v474 = vpack.c.b16 %v434, %v433
      %v475 = vpack.c.b16 %v436, %v435
      %v476 = vpack.c.b16 %v438, %v437
      %v477 = vpack.c.b16 %v440, %v439
      %v478 = vpack.c.b16 %v442, %v441
      %v479 = vpack.c.b16 %v444, %v443
      %v480 = vpack.c.b16 %v446, %v445
      %v481 = vpack.c.b16 %v448, %v447
      %v482 = vpack.c.b16 %v450, %v449
      %515 = vmatprep.subr.bf16.mxu0 0
      %516 = vmatpush1.bf16.msra.mxu0 %v458
      %517 = vmatprep.subr.bf16.mxu0 0
      %518 = vmatpush1.bf16.msra.mxu0 %v457
      %519 = vmatprep.subr.bf16.mxu0 0
      %520 = vmatpush1.bf16.msra.mxu0 %v456
      %521 = vmatprep.subr.bf16.mxu0 0
      %522 = vmatpush1.bf16.msra.mxu0 %v455
      %523 = vmatprep.subr.bf16.mxu0 0
      %524 = vmatpush1.bf16.msra.mxu0 %v454
      %525 = vmatprep.subr.bf16.mxu0 0
      %526 = vmatpush1.bf16.msra.mxu0 %v453
      %527 = vmatprep.subr.bf16.mxu0 0
      %528 = vmatpush1.bf16.msra.mxu0 %v452
      %529 = vmatprep.subr.bf16.mxu0 0
      %530 = vmatpush1.bf16.msra.mxu0 %v451
      %531 = vmatprep.subr.bf16.mxu0 0
      %532 = vmatpush2.bf16.msra.mxu0 %v466
      %533 = vmatprep.subr.bf16.mxu0 0
      %534 = vmatpush2.bf16.msra.mxu0 %v465
      %535 = vmatprep.subr.bf16.mxu0 0
      %536 = vmatpush2.bf16.msra.mxu0 %v464
      %537 = vmatprep.subr.bf16.mxu0 0
      %538 = vmatpush2.bf16.msra.mxu0 %v463
      %539 = vmatprep.subr.bf16.mxu0 0
      %540 = vmatpush2.bf16.msra.mxu0 %v462
      %541 = vmatprep.subr.bf16.mxu0 0
      %542 = vmatpush2.bf16.msra.mxu0 %v461
      %543 = vmatprep.subr.bf16.mxu0 0
      %544 = vmatpush2.bf16.msra.mxu0 %v460
      %545 = vmatprep.subr.bf16.mxu0 0
      %546 = vmatpush2.bf16.msra.mxu0 %v459
      %547 = vmatprep.mubr.bf16.mxu0 %v316
      %548 = vmatmul.mubr.bf16.gmra.mxu0 %v309
      %v549 = vpop.f32.mrf.mxu0
      %v550 = vadd.f32 0.0, %v549
      %v551 = vpop.f32.mrf.mxu0
      %v552 = vpop.f32.mrf.mxu0
      %v553 = vpop.f32.mrf.mxu0
      %554 = vdwg.mxu0
      %555 = vmatprep.subr.bf16.mxu0 0
      %556 = vmatpush1.bf16.msra.mxu0 %v474
      %557 = vmatprep.subr.bf16.mxu0 0
      %558 = vmatpush1.bf16.msra.mxu0 %v473
      %559 = vmatprep.subr.bf16.mxu0 0
      %560 = vmatpush1.bf16.msra.mxu0 %v472
      %561 = vmatprep.subr.bf16.mxu0 0
      %562 = vmatpush1.bf16.msra.mxu0 %v471
      %563 = vmatprep.subr.bf16.mxu0 0
      %564 = vmatpush1.bf16.msra.mxu0 %v470
      %565 = vmatprep.subr.bf16.mxu0 0
      %566 = vmatpush1.bf16.msra.mxu0 %v469
      %567 = vmatprep.subr.bf16.mxu0 0
      %568 = vmatpush1.bf16.msra.mxu0 %v468
      %569 = vmatprep.subr.bf16.mxu0 0
      %570 = vmatpush1.bf16.msra.mxu0 %v467
      %571 = vmatprep.subr.bf16.mxu0 0
      %572 = vmatpush2.bf16.msra.mxu0 %v482
      %573 = vmatprep.subr.bf16.mxu0 0
      %574 = vmatpush2.bf16.msra.mxu0 %v481
      %575 = vmatprep.subr.bf16.mxu0 0
      %576 = vmatpush2.bf16.msra.mxu0 %v480
      %577 = vmatprep.subr.bf16.mxu0 0
      %578 = vmatpush2.bf16.msra.mxu0 %v479
      %579 = vmatprep.subr.bf16.mxu0 0
      %580 = vmatpush2.bf16.msra.mxu0 %v478
      %581 = vmatprep.subr.bf16.mxu0 0
      %582 = vmatpush2.bf16.msra.mxu0 %v477
      %583 = vmatprep.subr.bf16.mxu0 0
      %584 = vmatpush2.bf16.msra.mxu0 %v476
      %585 = vmatprep.subr.bf16.mxu0 0
      %586 = vmatpush2.bf16.msra.mxu0 %v475
      %587 = vmatprep.mubr.bf16.mxu0 %v318
      %588 = vmatmul.mubr.bf16.gmra.mxu0 %v317
      %v589 = vpop.f32.mrf.mxu0
      %v590 = vadd.f32 %v550, %v589
      %v591 = vpop.f32.mrf.mxu0
      %v592 = vpop.f32.mrf.mxu0
      %v593 = vpop.f32.mrf.mxu0
      %594 = vdwg.mxu0
      %v595 = vadd.f32 %v228, %v590
      %vm596 = vcmask 517120
      %597 = vst.msk [vmem:[#allocation2] sm:$0x3] %vm596, %v595
      %p598 = scmp.eq.s32.totalorder %s19, 1
      // Predicated region
      $region37: #{unet_generator.14} parent=31 // pred_check
        %p599 = pneg %p598
      $region38: #{unet_generator.14} parent=31 // pred_check_branch
        %601 = sbr.rel (%p599) target = $region40
      $region39: #{unet_generator.14} parent=31 // pred_region
        %v602 = vld [vmem:[#allocation2] sm:$0x3]
        %v603 = vpack.c.bf16 %v602, %v602
        %vm604 = vcmask 516096
        %605 = vst.msk [vmem:[%s213] sm:$0x1] %vm604, %v603
      $region40: #{unet_generator.14} parent=31 // pred_fallthru
        _
      %p606 = scmp.lt.s32.totalorder %s18, 0
      %s607 = scalar_select %p606, %s18, 0
      %s608 = scalar_lea.vmem %s3, %s607
      // Predicated region
      $region41: #{unet_generator.14} parent=31 // pred_check
        %p609 = pneg %p119
      $region42: #{unet_generator.14} parent=31 // pred_check_branch
        %611 = sbr.rel (%p609) target = $region44
      $region43: #{unet_generator.14} parent=31 // pred_region
        _
      $region44: #{unet_generator.14} parent=31 // pred_fallthru
        _
      // Predicated region
      $region45: #{unet_generator.14} parent=31 // pred_check
        %p612 = pneg %p119
      $region46: #{unet_generator.14} parent=31 // pred_check_branch
        %614 = sbr.rel (%p612) target = $region48
      $region47: #{unet_generator.14} parent=31 // pred_region
        %p615 = scmp.lt.s32.totalorder %s18, 0
        %s616 = scalar_select %p615, %s18, 0
        %s617 = scalar_lea.vmem %s3, %s616
      $region48: #{unet_generator.14} parent=31 // pred_fallthru
        _
    $region32: #{unet_generator.14} parent=5 // pred_fallthru
      _
    %p618 = scmp.le.s32.totalorder 2, %s9
    // Predicated region
    $region49: #{unet_generator.14} parent=5 // pred_check
      %p619 = pneg %p618
    $region50: #{unet_generator.14} parent=5 // pred_check_branch
      %621 = sbr.rel (%p619) target = $region52
    $region51: #{unet_generator.14} parent=5 // pred_region
      %s622 = ssub.s32 %s9, 2
    $region52: #{unet_generator.14} parent=5 // pred_fallthru
      _
  $region6: #{unet_generator.14} parent=0 // loop_footer
    %s13 = sadd.s32 1, %s9
  $region7: #{unet_generator.14} parent=0 // loop_footer_branch
    %8 = sbr.rel target = $region3
  $region8: #{unet_generator.14} parent=0 // loop_exit
    _

// kernel: tile.28
$region0: #{tile.28}
  #allocation0 [shape = 's32[1]{0}', space=sflag, size = 0x4, scoped, tag = 'scoped memory for tile.28']
  %s0 = inlined_call_operand.vmem [shape: f32[64], index: 0, kind: input, shape index: {}]
  %s1 = inlined_call_operand.vmem [shape: f32[4,64], index: 1, kind: output, shape index: {}]
  // Predicated region
  $region2: #{tile.28} parent=0 // pred_check
    _
  $region3: #{tile.28} parent=0 // pred_check_branch
    %3 = sbr.rel (0) target = $region5
  $region4: #{tile.28} parent=0 // pred_region
    _
  $region5: #{tile.28} parent=0 // pred_fallthru
    _
  %v4 = vld [vmem:[%s0] ss:$0 sm:$0xff]
  %5 = vst [vmem:[%s1] sm:$0xf] %v4

// kernel: tile.29
$region0: #{tile.29}
  %s0 = inlined_call_operand.vmem [shape: f32[4,64], index: 0, kind: input, shape index: {}]
  %s1 = inlined_call_operand.vmem [shape: f32[1,256], index: 1, kind: output, shape index: {}]
  $region1: #{tile.29} parent=0
    #allocation0 [shape = 'u8[8192]{0}', space=vmem, size = 0x2000, scoped, tag = 'scoped mem for output reshape']
    #allocation1 [shape = 'u8[4096]{0}', space=vmem, size = 0x1000, scoped, tag = 'scoped mem for input reshape']
    %s3 = sshll.u32 1, 4
    %s4 = ssub.s32 %s3, 1
    %v5 = vld [vmem:[%s0] sm:%s4]
    %6 = vst [vmem:[#allocation1] sm:%s4] %v5
    %s7 = smov 3
    %v8 = vld [vmem:[#allocation1] ss:$2 sm:%s7]
    %vm9 = vcmask 523264
    %10 = vst.msk [vmem:[#allocation0] ss:$8 sm:$0x3] %vm9, %v8
    %s11 = scalar_lea.vmem [#allocation1], 1
    %s12 = smov 3
    %v13 = vld [vmem:[%s11] ss:$2 sm:%s12]
    %14 = vrot.lane.b32.xlu0 %v13, 64
    %v15 = vpop.permute.xlu0 %14
    %vm16 = vcmask 1048064
    %17 = vst.msk [vmem:[#allocation0] ss:$8 sm:$0x3] %vm16, %v15
    %s19 = sshll.u32 1, 1
    %s20 = ssub.s32 %s19, 1
    %v22 = vld [vmem:[#allocation0] sm:%s20]
    %s23 = sshll.u32 1, 1
    %s24 = ssub.s32 %s23, 1
    %25 = vst [vmem:[%s1] sm:%s24] %v22
    %s26 = scalar_lea.vmem [#allocation0], 8
    %v27 = vld [vmem:[%s26] sm:%s20]
    %s28 = sshll.u32 1, 1
    %s29 = ssub.s32 %s28, 1
    %s30 = scalar_lea.vmem %s1, 1
    %31 = vst [vmem:[%s30] sm:%s29] %v27

// kernel: unet_generator.15
$region0: #{unet_generator.15}
  #allocation0 [shape = 'u32[]', space=smem, size = 0x4, offset = 0x4, fixed_abs, tag = 'smem constant byte address 0x4 - core index']
  #allocation1 [shape = 'u32[144,128]{1,0:T(1,128)}', space=vmem, size = 0x12000, scoped, tag = 'internal scratch']
  #allocation2 [shape = 'f32[2,256]{1,0:T(2,128)}', space=vmem, size = 0x800, scoped, tag = 'scratch operand']
  %s0 = inlined_call_operand.vmem [shape: bf16[2,576], index: 0, kind: input, shape index: {}]
  %s1 = inlined_call_operand.vmem [shape: bf16[576,256], index: 1, kind: input, shape index: {}]
  %s2 = inlined_call_operand.vmem [shape: f32[1,256], index: 2, kind: input, shape index: {}]
  %s3 = inlined_call_operand.vmem [shape: bf16[2,256], index: 3, kind: output, shape index: {0}]
  %s4 = inlined_call_operand.vmem [shape: f32[1,2,256], index: 4, kind: output, shape index: {1}]
  %5 = xla_tuple %s3, %s4
  %s6 = sld [smem:[#allocation0]]
  $region38: #{unet_generator.15} parent=0
    _
  %s8 = ssub.s32 1, %s6
  %s9 = scalar_select 0, %s8, %s6
  // Predicated region
  $region2: #{unet_generator.15} parent=0 // pred_check
    _
  $region3: #{unet_generator.15} parent=0 // pred_check_branch
    %11 = sbr.rel (0) target = $region5
  $region4: #{unet_generator.15} parent=0 // pred_region
    _
  $region5: #{unet_generator.15} parent=0 // pred_fallthru
    _
  // Predicated region
  $region6: #{unet_generator.15} parent=0 // pred_check
    _
  $region7: #{unet_generator.15} parent=0 // pred_check_branch
    %13 = sbr.rel (0) target = $region9
  $region8: #{unet_generator.15} parent=0 // pred_region
    _
  $region9: #{unet_generator.15} parent=0 // pred_fallthru
    _
  // Predicated region
  $region10: #{unet_generator.15} parent=0 // pred_check
    _
  $region11: #{unet_generator.15} parent=0 // pred_check_branch
    %15 = sbr.rel (0) target = $region13
  $region12: #{unet_generator.15} parent=0 // pred_region
    _
  $region13: #{unet_generator.15} parent=0 // pred_fallthru
    _
  %p17 = scmp.eq.s32.totalorder 0, 0
  // Predicated region
  $region14: #{unet_generator.15} parent=0 // pred_check
    %p18 = pneg %p17
  $region15: #{unet_generator.15} parent=0 // pred_check_branch
    %20 = sbr.rel (%p18) target = $region17
  $region16: #{unet_generator.15} parent=0 // pred_region
    %v21 = vld [vmem:[%s2] sm:$0x3]
    %v23 = vlaneseq
    %v24 = vshrl.u32 %v23, 7
    %v25 = vsub.s32 0, %v24
    %v26 = vrot.slane %v21, %v25
    %v27 = vlaneseq
    %v28 = vshrl.u32 %v27, 7
    %v29 = vsub.s32 1, %v28
    %v30 = vrot.slane %v21, %v29
    %v31 = vcombine.low %v26, %v30
    %v33 = vunpack.c.l.s4 1983009808
    %v34 = vunpack.c.0.s8 %v33
    %v35 = vlaneseq
    %v36 = vshrl.u32 %v35, 7
    %v37 = vsub.s32 %v34, %v36
    %v38 = vrot.slane %v31, %v37
    %40 = vst [vmem:[#allocation2] sm:$0xf] %v38
  $region17: #{unet_generator.15} parent=0 // pred_fallthru
    _
  %v41 = vld [vmem:[#allocation2] sm:$0xf]
  %v42 = vld [vmem:[%s0] sm:$0x1f]
  %v43 = vld [vmem:[%s1] sm:$0xff]
  %v44 = vld [vmem:[%s1 + $0x8] sm:$0xff]
  %v45 = vld [vmem:[%s1 + $0x10] sm:$0xff]
  %v46 = vld [vmem:[%s1 + $0x18] sm:$0xff]
  %v47 = vld [vmem:[%s1 + $0x20] sm:$0xff]
  %v48 = vld [vmem:[%s1 + $0x28] sm:$0xff]
  %v49 = vld [vmem:[%s1 + $0x30] sm:$0xff]
  %v50 = vld [vmem:[%s1 + $0x38] sm:$0xff]
  %v51 = vld [vmem:[%s1 + $0x40] sm:$0xff]
  %v52 = vld [vmem:[%s1 + $0x48] sm:$0xff]
  %v53 = vld [vmem:[%s1 + $0x50] sm:$0xff]
  %v54 = vld [vmem:[%s1 + $0x58] sm:$0xff]
  %v55 = vld [vmem:[%s1 + $0x60] sm:$0xff]
  %v56 = vld [vmem:[%s1 + $0x68] sm:$0xff]
  %v57 = vld [vmem:[%s1 + $0x70] sm:$0xff]
  %v58 = vld [vmem:[%s1 + $0x78] sm:$0xff]
  %v59 = vld [vmem:[%s1 + $0x80] sm:$0xff]
  %v60 = vld [vmem:[%s1 + $0x88] sm:$0xff]
  %v61 = vld [vmem:[%s1 + $0x90] sm:$0xff]
  %v62 = vld [vmem:[%s1 + $0x98] sm:$0xff]
  %v63 = vld [vmem:[%s1 + $0xa0] sm:$0xff]
  %v64 = vld [vmem:[%s1 + $0xa8] sm:$0xff]
  %v65 = vld [vmem:[%s1 + $0xb0] sm:$0xff]
  %v66 = vld [vmem:[%s1 + $0xb8] sm:$0xff]
  %v67 = vld [vmem:[%s1 + $0xc0] sm:$0xff]
  %v68 = vld [vmem:[%s1 + $0xc8] sm:$0xff]
  %v69 = vld [vmem:[%s1 + $0xd0] sm:$0xff]
  %v70 = vld [vmem:[%s1 + $0xd8] sm:$0xff]
  %v71 = vld [vmem:[%s1 + $0xe0] sm:$0xff]
  %v72 = vld [vmem:[%s1 + $0xe8] sm:$0xff]
  %v73 = vld [vmem:[%s1 + $0xf0] sm:$0xff]
  %v74 = vld [vmem:[%s1 + $0xf8] sm:$0xff]
  %v75 = vld [vmem:[%s1 + $0x100] sm:$0xff]
  %v76 = vld [vmem:[%s1 + $0x108] sm:$0xff]
  %v77 = vld [vmem:[%s1 + $0x110] sm:$0xff]
  %v78 = vld [vmem:[%s1 + $0x118] sm:$0xff]
  %v79 = vld [vmem:[%s1 + $0x120] sm:$0xff]
  %v80 = vld [vmem:[%s1 + $0x128] sm:$0xff]
  %v81 = vld [vmem:[%s1 + $0x130] sm:$0xff]
  %v82 = vld [vmem:[%s1 + $0x138] sm:$0xff]
  %v83 = vld [vmem:[%s1 + $0x140] sm:$0xff]
  %v84 = vld [vmem:[%s1 + $0x148] sm:$0xff]
  %v85 = vld [vmem:[%s1 + $0x150] sm:$0xff]
  %v86 = vld [vmem:[%s1 + $0x158] sm:$0xff]
  %v87 = vld [vmem:[%s1 + $0x160] sm:$0xff]
  %v88 = vld [vmem:[%s1 + $0x168] sm:$0xff]
  %v89 = vld [vmem:[%s1 + $0x170] sm:$0xff]
  %v90 = vld [vmem:[%s1 + $0x178] sm:$0xff]
  %v91 = vld [vmem:[%s1 + $0x180] sm:$0xff]
  %v92 = vld [vmem:[%s1 + $0x188] sm:$0xff]
  %v93 = vld [vmem:[%s1 + $0x190] sm:$0xff]
  %v94 = vld [vmem:[%s1 + $0x198] sm:$0xff]
  %v95 = vld [vmem:[%s1 + $0x1a0] sm:$0xff]
  %v96 = vld [vmem:[%s1 + $0x1a8] sm:$0xff]
  %v97 = vld [vmem:[%s1 + $0x1b0] sm:$0xff]
  %v98 = vld [vmem:[%s1 + $0x1b8] sm:$0xff]
  %v99 = vld [vmem:[%s1 + $0x1c0] sm:$0xff]
  %v100 = vld [vmem:[%s1 + $0x1c8] sm:$0xff]
  %v101 = vld [vmem:[%s1 + $0x1d0] sm:$0xff]
  %v102 = vld [vmem:[%s1 + $0x1d8] sm:$0xff]
  %v103 = vld [vmem:[%s1 + $0x1e0] sm:$0xff]
  %v104 = vld [vmem:[%s1 + $0x1e8] sm:$0xff]
  %v105 = vld [vmem:[%s1 + $0x1f0] sm:$0xff]
  %v106 = vld [vmem:[%s1 + $0x1f8] sm:$0xff]
  %v107 = vld [vmem:[%s1 + $0x200] sm:$0xff]
  %v108 = vld [vmem:[%s1 + $0x208] sm:$0xff]
  %v109 = vld [vmem:[%s1 + $0x210] sm:$0xff]
  %v110 = vld [vmem:[%s1 + $0x218] sm:$0xff]
  %v111 = vld [vmem:[%s1 + $0x220] sm:$0xff]
  %v112 = vld [vmem:[%s1 + $0x228] sm:$0xff]
  %v113 = vld [vmem:[%s1 + $0x230] sm:$0xff]
  %v114 = vld [vmem:[%s1 + $0x238] sm:$0xff]
  %v116 = vcombine.high %v42, %v42
  %v118 = vunpack.c.l.s4 1966171168
  %v119 = vunpack.c.0.s8 %v118
  %v120 = vlaneseq
  %v121 = vshrl.u32 %v120, 7
  %v122 = vsub.s32 %v119, %v121
  %v123 = vrot.slane %v42, %v122
  %v125 = vunpack.c.l.s4 1966171168
  %v126 = vunpack.c.0.s8 %v125
  %v127 = vlaneseq
  %v128 = vshrl.u32 %v127, 7
  %v129 = vsub.s32 %v126, %v128
  %v130 = vrot.slane %v116, %v129
  %v131 = vcombine.high %v123, %v123
  %v133 = vunpack.c.l.s4 1966171168
  %v134 = vunpack.c.0.s8 %v133
  %v135 = vlaneseq
  %v136 = vshrl.u32 %v135, 7
  %v137 = vsub.s32 %v134, %v136
  %v138 = vrot.slane %v123, %v137
  %v140 = vunpack.c.l.s4 1966171168
  %v141 = vunpack.c.0.s8 %v140
  %v142 = vlaneseq
  %v143 = vshrl.u32 %v142, 7
  %v144 = vsub.s32 %v141, %v143
  %v145 = vrot.slane %v130, %v144
  %v147 = vunpack.c.l.s4 1966171168
  %v148 = vunpack.c.0.s8 %v147
  %v149 = vlaneseq
  %v150 = vshrl.u32 %v149, 7
  %v151 = vsub.s32 %v148, %v150
  %v152 = vrot.slane %v131, %v151
  %v153 = vcombine.high %v138, %v138
  %v154 = vcombine.high %v152, %v152
  %v231 = vunpack.c.l.b16 %v43
  %v232 = vunpack.c.h.b16 %v43
  %v233 = vunpack.c.l.b16 %v44
  %v234 = vunpack.c.h.b16 %v44
  %v235 = vunpack.c.l.b16 %v45
  %v236 = vunpack.c.h.b16 %v45
  %v237 = vunpack.c.l.b16 %v46
  %v238 = vunpack.c.h.b16 %v46
  %v239 = vunpack.c.l.b16 %v47
  %v240 = vunpack.c.h.b16 %v47
  %v241 = vunpack.c.l.b16 %v48
  %v242 = vunpack.c.h.b16 %v48
  %v243 = vunpack.c.l.b16 %v49
  %v244 = vunpack.c.h.b16 %v49
  %v245 = vunpack.c.l.b16 %v50
  %v246 = vunpack.c.h.b16 %v50
  %v247 = vunpack.c.l.b16 %v51
  %v248 = vunpack.c.h.b16 %v51
  %v249 = vunpack.c.l.b16 %v52
  %v250 = vunpack.c.h.b16 %v52
  %v251 = vunpack.c.l.b16 %v53
  %v252 = vunpack.c.h.b16 %v53
  %v253 = vunpack.c.l.b16 %v54
  %v254 = vunpack.c.h.b16 %v54
  %v255 = vunpack.c.l.b16 %v55
  %v256 = vunpack.c.h.b16 %v55
  %v257 = vunpack.c.l.b16 %v56
  %v258 = vunpack.c.h.b16 %v56
  %v259 = vunpack.c.l.b16 %v57
  %v260 = vunpack.c.h.b16 %v57
  %v261 = vunpack.c.l.b16 %v58
  %v262 = vunpack.c.h.b16 %v58
  %v263 = vunpack.c.l.b16 %v59
  %v264 = vunpack.c.h.b16 %v59
  %v265 = vunpack.c.l.b16 %v60
  %v266 = vunpack.c.h.b16 %v60
  %v267 = vunpack.c.l.b16 %v61
  %v268 = vunpack.c.h.b16 %v61
  %v269 = vunpack.c.l.b16 %v62
  %v270 = vunpack.c.h.b16 %v62
  %v271 = vunpack.c.l.b16 %v63
  %v272 = vunpack.c.h.b16 %v63
  %v273 = vunpack.c.l.b16 %v64
  %v274 = vunpack.c.h.b16 %v64
  %v275 = vunpack.c.l.b16 %v65
  %v276 = vunpack.c.h.b16 %v65
  %v277 = vunpack.c.l.b16 %v66
  %v278 = vunpack.c.h.b16 %v66
  %v279 = vunpack.c.l.b16 %v67
  %v280 = vunpack.c.h.b16 %v67
  %v281 = vunpack.c.l.b16 %v68
  %v282 = vunpack.c.h.b16 %v68
  %v283 = vunpack.c.l.b16 %v69
  %v284 = vunpack.c.h.b16 %v69
  %v285 = vunpack.c.l.b16 %v70
  %v286 = vunpack.c.h.b16 %v70
  %v287 = vunpack.c.l.b16 %v71
  %v288 = vunpack.c.h.b16 %v71
  %v289 = vunpack.c.l.b16 %v72
  %v290 = vunpack.c.h.b16 %v72
  %v291 = vunpack.c.l.b16 %v73
  %v292 = vunpack.c.h.b16 %v73
  %v293 = vunpack.c.l.b16 %v74
  %v294 = vunpack.c.h.b16 %v74
  %v295 = vunpack.c.l.b16 %v75
  %v296 = vunpack.c.h.b16 %v75
  %v297 = vunpack.c.l.b16 %v76
  %v298 = vunpack.c.h.b16 %v76
  %v299 = vunpack.c.l.b16 %v77
  %v300 = vunpack.c.h.b16 %v77
  %v301 = vunpack.c.l.b16 %v78
  %v302 = vunpack.c.h.b16 %v78
  %v303 = vunpack.c.l.b16 %v79
  %v304 = vunpack.c.h.b16 %v79
  %v305 = vunpack.c.l.b16 %v80
  %v306 = vunpack.c.h.b16 %v80
  %v307 = vunpack.c.l.b16 %v81
  %v308 = vunpack.c.h.b16 %v81
  %v309 = vunpack.c.l.b16 %v82
  %v310 = vunpack.c.h.b16 %v82
  %v311 = vunpack.c.l.b16 %v83
  %v312 = vunpack.c.h.b16 %v83
  %v313 = vunpack.c.l.b16 %v84
  %v314 = vunpack.c.h.b16 %v84
  %v315 = vunpack.c.l.b16 %v85
  %v316 = vunpack.c.h.b16 %v85
  %v317 = vunpack.c.l.b16 %v86
  %v318 = vunpack.c.h.b16 %v86
  %v319 = vunpack.c.l.b16 %v87
  %v320 = vunpack.c.h.b16 %v87
  %v321 = vunpack.c.l.b16 %v88
  %v322 = vunpack.c.h.b16 %v88
  %v323 = vunpack.c.l.b16 %v89
  %v324 = vunpack.c.h.b16 %v89
  %v325 = vunpack.c.l.b16 %v90
  %v326 = vunpack.c.h.b16 %v90
  %v327 = vunpack.c.l.b16 %v91
  %v328 = vunpack.c.h.b16 %v91
  %v329 = vunpack.c.l.b16 %v92
  %v330 = vunpack.c.h.b16 %v92
  %v331 = vunpack.c.l.b16 %v93
  %v332 = vunpack.c.h.b16 %v93
  %v333 = vunpack.c.l.b16 %v94
  %v334 = vunpack.c.h.b16 %v94
  %v335 = vunpack.c.l.b16 %v95
  %v336 = vunpack.c.h.b16 %v95
  %v337 = vunpack.c.l.b16 %v96
  %v338 = vunpack.c.h.b16 %v96
  %v339 = vunpack.c.l.b16 %v97
  %v340 = vunpack.c.h.b16 %v97
  %v341 = vunpack.c.l.b16 %v98
  %v342 = vunpack.c.h.b16 %v98
  %v343 = vunpack.c.l.b16 %v99
  %v344 = vunpack.c.h.b16 %v99
  %v345 = vunpack.c.l.b16 %v100
  %v346 = vunpack.c.h.b16 %v100
  %v347 = vunpack.c.l.b16 %v101
  %v348 = vunpack.c.h.b16 %v101
  %v349 = vunpack.c.l.b16 %v102
  %v350 = vunpack.c.h.b16 %v102
  %v351 = vunpack.c.l.b16 %v103
  %v352 = vunpack.c.h.b16 %v103
  %v353 = vunpack.c.l.b16 %v104
  %v354 = vunpack.c.h.b16 %v104
  %v355 = vunpack.c.l.b16 %v105
  %v356 = vunpack.c.h.b16 %v105
  %v357 = vunpack.c.l.b16 %v106
  %v358 = vunpack.c.h.b16 %v106
  %v359 = vunpack.c.l.b16 %v107
  %v360 = vunpack.c.h.b16 %v107
  %v361 = vunpack.c.l.b16 %v108
  %v362 = vunpack.c.h.b16 %v108
  %v363 = vunpack.c.l.b16 %v109
  %v364 = vunpack.c.h.b16 %v109
  %v365 = vunpack.c.l.b16 %v110
  %v366 = vunpack.c.h.b16 %v110
  %v367 = vunpack.c.l.b16 %v111
  %v368 = vunpack.c.h.b16 %v111
  %v369 = vunpack.c.l.b16 %v112
  %v370 = vunpack.c.h.b16 %v112
  %v371 = vunpack.c.l.b16 %v113
  %v372 = vunpack.c.h.b16 %v113
  %v373 = vunpack.c.l.b16 %v114
  %v374 = vunpack.c.h.b16 %v114
  %v375 = vpack.c.b16 %v233, %v231
  %v376 = vpack.c.b16 %v234, %v232
  %v377 = vpack.c.b16 %v237, %v235
  %v378 = vpack.c.b16 %v238, %v236
  %v379 = vpack.c.b16 %v241, %v239
  %v380 = vpack.c.b16 %v242, %v240
  %v381 = vpack.c.b16 %v245, %v243
  %v382 = vpack.c.b16 %v246, %v244
  %v383 = vpack.c.b16 %v249, %v247
  %v384 = vpack.c.b16 %v250, %v248
  %v385 = vpack.c.b16 %v253, %v251
  %v386 = vpack.c.b16 %v254, %v252
  %v387 = vpack.c.b16 %v257, %v255
  %v388 = vpack.c.b16 %v258, %v256
  %v389 = vpack.c.b16 %v261, %v259
  %v390 = vpack.c.b16 %v262, %v260
  %v391 = vpack.c.b16 %v265, %v263
  %v392 = vpack.c.b16 %v266, %v264
  %v393 = vpack.c.b16 %v269, %v267
  %v394 = vpack.c.b16 %v270, %v268
  %v395 = vpack.c.b16 %v273, %v271
  %v396 = vpack.c.b16 %v274, %v272
  %v397 = vpack.c.b16 %v277, %v275
  %v398 = vpack.c.b16 %v278, %v276
  %v399 = vpack.c.b16 %v281, %v279
  %v400 = vpack.c.b16 %v282, %v280
  %v401 = vpack.c.b16 %v285, %v283
  %v402 = vpack.c.b16 %v286, %v284
  %v403 = vpack.c.b16 %v289, %v287
  %v404 = vpack.c.b16 %v290, %v288
  %v405 = vpack.c.b16 %v293, %v291
  %v406 = vpack.c.b16 %v294, %v292
  %v407 = vpack.c.b16 %v297, %v295
  %v408 = vpack.c.b16 %v298, %v296
  %v409 = vpack.c.b16 %v301, %v299
  %v410 = vpack.c.b16 %v302, %v300
  %v411 = vpack.c.b16 %v305, %v303
  %v412 = vpack.c.b16 %v306, %v304
  %v413 = vpack.c.b16 %v309, %v307
  %v414 = vpack.c.b16 %v310, %v308
  %v415 = vpack.c.b16 %v313, %v311
  %v416 = vpack.c.b16 %v314, %v312
  %v417 = vpack.c.b16 %v317, %v315
  %v418 = vpack.c.b16 %v318, %v316
  %v419 = vpack.c.b16 %v321, %v319
  %v420 = vpack.c.b16 %v322, %v320
  %v421 = vpack.c.b16 %v325, %v323
  %v422 = vpack.c.b16 %v326, %v324
  %v423 = vpack.c.b16 %v329, %v327
  %v424 = vpack.c.b16 %v330, %v328
  %v425 = vpack.c.b16 %v333, %v331
  %v426 = vpack.c.b16 %v334, %v332
  %v427 = vpack.c.b16 %v337, %v335
  %v428 = vpack.c.b16 %v338, %v336
  %v429 = vpack.c.b16 %v341, %v339
  %v430 = vpack.c.b16 %v342, %v340
  %v431 = vpack.c.b16 %v345, %v343
  %v432 = vpack.c.b16 %v346, %v344
  %v433 = vpack.c.b16 %v349, %v347
  %v434 = vpack.c.b16 %v350, %v348
  %v435 = vpack.c.b16 %v353, %v351
  %v436 = vpack.c.b16 %v354, %v352
  %v437 = vpack.c.b16 %v357, %v355
  %v438 = vpack.c.b16 %v358, %v356
  %v439 = vpack.c.b16 %v361, %v359
  %v440 = vpack.c.b16 %v362, %v360
  %v441 = vpack.c.b16 %v365, %v363
  %v442 = vpack.c.b16 %v366, %v364
  %v443 = vpack.c.b16 %v369, %v367
  %v444 = vpack.c.b16 %v370, %v368
  %v445 = vpack.c.b16 %v373, %v371
  %v446 = vpack.c.b16 %v374, %v372
  %vm519 = vcmask 523264
  %v521 = vsel %vm519, %v145, 0
  %523 = vmatprep.subr.bf16.mxu0 %v390
  %524 = vmatpush1.bf16.msra.mxu0 %v389
  %525 = vmatprep.subr.bf16.mxu0 %v388
  %526 = vmatpush1.bf16.msra.mxu0 %v387
  %527 = vmatprep.subr.bf16.mxu0 %v386
  %528 = vmatpush1.bf16.msra.mxu0 %v385
  %529 = vmatprep.subr.bf16.mxu0 %v384
  %530 = vmatpush1.bf16.msra.mxu0 %v383
  %531 = vmatprep.subr.bf16.mxu0 %v382
  %532 = vmatpush1.bf16.msra.mxu0 %v381
  %533 = vmatprep.subr.bf16.mxu0 %v380
  %534 = vmatpush1.bf16.msra.mxu0 %v379
  %535 = vmatprep.subr.bf16.mxu0 %v378
  %536 = vmatpush1.bf16.msra.mxu0 %v377
  %537 = vmatprep.subr.bf16.mxu0 %v376
  %538 = vmatpush1.bf16.msra.mxu0 %v375
  %539 = vmatprep.subr.bf16.mxu0 %v406
  %540 = vmatpush2.bf16.msra.mxu0 %v405
  %541 = vmatprep.subr.bf16.mxu0 %v404
  %542 = vmatpush2.bf16.msra.mxu0 %v403
  %543 = vmatprep.subr.bf16.mxu0 %v402
  %544 = vmatpush2.bf16.msra.mxu0 %v401
  %545 = vmatprep.subr.bf16.mxu0 %v400
  %546 = vmatpush2.bf16.msra.mxu0 %v399
  %547 = vmatprep.subr.bf16.mxu0 %v398
  %548 = vmatpush2.bf16.msra.mxu0 %v397
  %549 = vmatprep.subr.bf16.mxu0 %v396
  %550 = vmatpush2.bf16.msra.mxu0 %v395
  %551 = vmatprep.subr.bf16.mxu0 %v394
  %552 = vmatpush2.bf16.msra.mxu0 %v393
  %553 = vmatprep.subr.bf16.mxu0 %v392
  %554 = vmatpush2.bf16.msra.mxu0 %v391
  %555 = vmatprep.mubr.bf16.mxu0 %v152
  %556 = vmatmul.mubr.bf16.gmra.mxu0 %v138
  %v557 = vpop.f32.mrf.mxu0
  %v558 = vadd.f32 0.0, %v557
  %v559 = vpop.f32.mrf.mxu0
  %v560 = vadd.f32 0.0, %v559
  %v561 = vpop.f32.mrf.mxu0
  %v562 = vpop.f32.mrf.mxu0
  %563 = vdwg.mxu0
  %564 = vmatprep.subr.bf16.mxu0 %v422
  %565 = vmatpush1.bf16.msra.mxu0 %v421
  %566 = vmatprep.subr.bf16.mxu0 %v420
  %567 = vmatpush1.bf16.msra.mxu0 %v419
  %568 = vmatprep.subr.bf16.mxu0 %v418
  %569 = vmatpush1.bf16.msra.mxu0 %v417
  %570 = vmatprep.subr.bf16.mxu0 %v416
  %571 = vmatpush1.bf16.msra.mxu0 %v415
  %572 = vmatprep.subr.bf16.mxu0 %v414
  %573 = vmatpush1.bf16.msra.mxu0 %v413
  %574 = vmatprep.subr.bf16.mxu0 %v412
  %575 = vmatpush1.bf16.msra.mxu0 %v411
  %576 = vmatprep.subr.bf16.mxu0 %v410
  %577 = vmatpush1.bf16.msra.mxu0 %v409
  %578 = vmatprep.subr.bf16.mxu0 %v408
  %579 = vmatpush1.bf16.msra.mxu0 %v407
  %580 = vmatprep.subr.bf16.mxu0 %v438
  %581 = vmatpush2.bf16.msra.mxu0 %v437
  %582 = vmatprep.subr.bf16.mxu0 %v436
  %583 = vmatpush2.bf16.msra.mxu0 %v435
  %584 = vmatprep.subr.bf16.mxu0 %v434
  %585 = vmatpush2.bf16.msra.mxu0 %v433
  %586 = vmatprep.subr.bf16.mxu0 %v432
  %587 = vmatpush2.bf16.msra.mxu0 %v431
  %588 = vmatprep.subr.bf16.mxu0 %v430
  %589 = vmatpush2.bf16.msra.mxu0 %v429
  %590 = vmatprep.subr.bf16.mxu0 %v428
  %591 = vmatpush2.bf16.msra.mxu0 %v427
  %592 = vmatprep.subr.bf16.mxu0 %v426
  %593 = vmatpush2.bf16.msra.mxu0 %v425
  %594 = vmatprep.subr.bf16.mxu0 %v424
  %595 = vmatpush2.bf16.msra.mxu0 %v423
  %596 = vmatprep.mubr.bf16.mxu0 %v154
  %597 = vmatmul.mubr.bf16.gmra.mxu0 %v153
  %v598 = vpop.f32.mrf.mxu0
  %v599 = vadd.f32 %v558, %v598
  %v600 = vpop.f32.mrf.mxu0
  %v601 = vadd.f32 %v560, %v600
  %v602 = vpop.f32.mrf.mxu0
  %v603 = vpop.f32.mrf.mxu0
  %604 = vdwg.mxu0
  %605 = vmatprep.subr.bf16.mxu0 0
  %606 = vmatpush1.bf16.msra.mxu0 0
  %607 = vmatprep.subr.bf16.mxu0 0
  %608 = vmatpush1.bf16.msra.mxu0 0
  %609 = vmatprep.subr.bf16.mxu0 0
  %610 = vmatpush1.bf16.msra.mxu0 0
  %611 = vmatprep.subr.bf16.mxu0 0
  %612 = vmatpush1.bf16.msra.mxu0 0
  %613 = vmatprep.subr.bf16.mxu0 %v446
  %614 = vmatpush1.bf16.msra.mxu0 %v445
  %615 = vmatprep.subr.bf16.mxu0 %v444
  %616 = vmatpush1.bf16.msra.mxu0 %v443
  %617 = vmatprep.subr.bf16.mxu0 %v442
  %618 = vmatpush1.bf16.msra.mxu0 %v441
  %619 = vmatprep.subr.bf16.mxu0 %v440
  %620 = vmatpush1.bf16.msra.mxu0 %v439
  %621 = vmatprep.subr.bf16.mxu0 0
  %622 = vmatpush2.bf16.msra.mxu0 0
  %623 = vmatprep.subr.bf16.mxu0 0
  %624 = vmatpush2.bf16.msra.mxu0 0
  %625 = vmatprep.subr.bf16.mxu0 0
  %626 = vmatpush2.bf16.msra.mxu0 0
  %627 = vmatprep.subr.bf16.mxu0 0
  %628 = vmatpush2.bf16.msra.mxu0 0
  %629 = vmatprep.subr.bf16.mxu0 0
  %630 = vmatpush2.bf16.msra.mxu0 0
  %631 = vmatprep.subr.bf16.mxu0 0
  %632 = vmatpush2.bf16.msra.mxu0 0
  %633 = vmatprep.subr.bf16.mxu0 0
  %634 = vmatpush2.bf16.msra.mxu0 0
  %635 = vmatprep.subr.bf16.mxu0 0
  %636 = vmatpush2.bf16.msra.mxu0 0
  %637 = vmatprep.mubr.bf16.mxu0 0
  %638 = vmatmul.mubr.bf16.gmra.mxu0 %v521
  %v639 = vpop.f32.mrf.mxu0
  %v640 = vadd.f32 %v599, %v639
  %v641 = vpop.f32.mrf.mxu0
  %v642 = vadd.f32 %v601, %v641
  %v643 = vpop.f32.mrf.mxu0
  %v644 = vpop.f32.mrf.mxu0
  %645 = vdwg.mxu0
  %v648 = vcombine.low %v640, %v642
  %v650 = vunpack.c.l.s4 1983009808
  %v651 = vunpack.c.0.s8 %v650
  %v652 = vlaneseq
  %v653 = vshrl.u32 %v652, 7
  %v654 = vsub.s32 %v651, %v653
  %v655 = vrot.slane %v648, %v654
  %v657 = vadd.f32 %v41, %v655
  %658 = vst [vmem:[#allocation2] sm:$0xf] %v657
  // Predicated region
  $region18: #{unet_generator.15} parent=0 // pred_check
    %p659 = pneg %p17
  $region19: #{unet_generator.15} parent=0 // pred_check_branch
    %661 = sbr.rel (%p659) target = $region21
  $region20: #{unet_generator.15} parent=0 // pred_region
    %v662 = vld [vmem:[#allocation2] sm:$0xf]
    %v665 = vunpack.c.l.s4 1983009808
    %v666 = vunpack.c.0.s8 %v665
    %v667 = vlaneseq
    %v668 = vshrl.u32 %v667, 7
    %v669 = vsub.s32 %v666, %v668
    %v670 = vrot.slane %v662, %v669
    %v671 = vcombine.high %v670, %v670
    %v674 = vpack.c.bf16 %v670, %v670
    %v675 = vpack.c.bf16 %v671, %v671
    %v678 = vcombine.low %v674, %v675
    %v680 = vunpack.c.l.s4 1966171168
    %v681 = vunpack.c.0.s8 %v680
    %v682 = vlaneseq
    %v683 = vshrl.u32 %v682, 7
    %v684 = vsub.s32 %v681, %v683
    %v685 = vrot.slane %v678, %v684
    %v687 = vunpack.c.l.s4 1966171168
    %v688 = vunpack.c.0.s8 %v687
    %v689 = vlaneseq
    %v690 = vshrl.u32 %v689, 7
    %v691 = vsub.s32 %v688, %v690
    %v692 = vrot.slane %v685, %v691
    %694 = vst [vmem:[%s3] sm:$0x3] %v692
    %vm695 = vcmask 1041408
    %v696 = vsel %vm695, %v670, 0.0
    %v697 = vrot.slane %v696, 4
    %v698 = vadd.f32 %v696, %v697
    %v699 = vrot.slane %v698, 2
    %v700 = vadd.f32 %v698, %v699
    %v701 = vrot.slane %v700, 1
    %v702 = vadd.f32 %v700, %v701
    %v703 = vsel %vm695, %v671, 0.0
    %v704 = vrot.slane %v703, 4
    %v705 = vadd.f32 %v703, %v704
    %v706 = vrot.slane %v705, 2
    %v707 = vadd.f32 %v705, %v706
    %v708 = vrot.slane %v707, 1
    %v709 = vadd.f32 %v707, %v708
    %v712 = vcombine.low %v702, %v709
    %v714 = vunpack.c.l.s4 1966171168
    %v715 = vunpack.c.0.s8 %v714
    %v716 = vlaneseq
    %v717 = vshrl.u32 %v716, 7
    %v718 = vsub.s32 %v715, %v717
    %v719 = vrot.slane %v712, %v718
    %v721 = vunpack.c.l.s4 1966171168
    %v722 = vunpack.c.0.s8 %v721
    %v723 = vlaneseq
    %v724 = vshrl.u32 %v723, 7
    %v725 = vsub.s32 %v722, %v724
    %v726 = vrot.slane %v719, %v725
    %v728 = vlaneseq
    %vm729 = vcmp.ge.s32.totalorder %v728, 0
    %vm730 = vcmp.lt.s32.totalorder %v728, 256
    %vm731 = vmand %vm729, %vm730
    %732 = vst.msk [vmem:[%s4] ss:$2 sm:$0x3] %vm731, %v726
    %v733 = vmul.f32 %v662, %v662
    %v736 = vunpack.c.l.s4 1983009808
    %v737 = vunpack.c.0.s8 %v736
    %v738 = vlaneseq
    %v739 = vshrl.u32 %v738, 7
    %v740 = vsub.s32 %v737, %v739
    %v741 = vrot.slane %v733, %v740
    %v742 = vcombine.high %v741, %v741
    %v745 = vsel %vm695, %v741, 0.0
    %v746 = vrot.slane %v745, 4
    %v747 = vadd.f32 %v745, %v746
    %v748 = vrot.slane %v747, 2
    %v749 = vadd.f32 %v747, %v748
    %v750 = vrot.slane %v749, 1
    %v751 = vadd.f32 %v749, %v750
    %v752 = vsel %vm695, %v742, 0.0
    %v753 = vrot.slane %v752, 4
    %v754 = vadd.f32 %v752, %v753
    %v755 = vrot.slane %v754, 2
    %v756 = vadd.f32 %v754, %v755
    %v757 = vrot.slane %v756, 1
    %v758 = vadd.f32 %v756, %v757
    %v761 = vcombine.low %v751, %v758
    %v763 = vunpack.c.l.s4 1966171168
    %v764 = vunpack.c.0.s8 %v763
    %v765 = vlaneseq
    %v766 = vshrl.u32 %v765, 7
    %v767 = vsub.s32 %v764, %v766
    %v768 = vrot.slane %v761, %v767
    %v770 = vunpack.c.l.s4 1966171168
    %v771 = vunpack.c.0.s8 %v770
    %v772 = vlaneseq
    %v773 = vshrl.u32 %v772, 7
    %v774 = vsub.s32 %v771, %v773
    %v775 = vrot.slane %v768, %v774
    %s777 = scalar_lea.vmem %s4, 1
    %778 = vst.msk [vmem:[%s777] ss:$2 sm:$0x3] %vm731, %v775
  $region21: #{unet_generator.15} parent=0 // pred_fallthru
    _
  // Predicated region
  $region22: #{unet_generator.15} parent=0 // pred_check
    _
  $region23: #{unet_generator.15} parent=0 // pred_check_branch
    %780 = sbr.rel (0) target = $region25
  $region24: #{unet_generator.15} parent=0 // pred_region
    _
  $region25: #{unet_generator.15} parent=0 // pred_fallthru
    _
  // Predicated region
  $region26: #{unet_generator.15} parent=0 // pred_check
    _
  $region27: #{unet_generator.15} parent=0 // pred_check_branch
    %782 = sbr.rel (0) target = $region29
  $region28: #{unet_generator.15} parent=0 // pred_region
    _
  $region29: #{unet_generator.15} parent=0 // pred_fallthru
    _
  // Predicated region
  $region30: #{unet_generator.15} parent=0 // pred_check
    _
  $region31: #{unet_generator.15} parent=0 // pred_check_branch
    %784 = sbr.rel (0) target = $region33
  $region32: #{unet_generator.15} parent=0 // pred_region
    _
  $region33: #{unet_generator.15} parent=0 // pred_fallthru
    _
  // Predicated region
  $region34: #{unet_generator.15} parent=0 // pred_check
    _
  $region35: #{unet_generator.15} parent=0 // pred_check_branch
    %786 = sbr.rel (0) target = $region37
  $region36: #{unet_generator.15} parent=0 // pred_region
    _
  $region37: #{unet_generator.15} parent=0 // pred_fallthru
    _

// kernel: tile.33
$region0: #{tile.33}
  #allocation0 [shape = 's32[1]{0}', space=sflag, size = 0x4, scoped, tag = 'scoped memory for tile.33']
  %s0 = inlined_call_operand.vmem [shape: f32[32], index: 0, kind: input, shape index: {}]
  %s1 = inlined_call_operand.vmem [shape: f32[4,32], index: 1, kind: output, shape index: {}]
  // Predicated region
  $region2: #{tile.33} parent=0 // pred_check
    _
  $region3: #{tile.33} parent=0 // pred_check_branch
    %3 = sbr.rel (0) target = $region5
  $region4: #{tile.33} parent=0 // pred_region
    _
  $region5: #{tile.33} parent=0 // pred_fallthru
    _
  %v4 = vld [vmem:[%s0] ss:$0 sm:$0xff]
  %5 = vst [vmem:[%s1] sm:$0xf] %v4

// kernel: tile.34
$region0: #{tile.34}
  %s0 = inlined_call_operand.vmem [shape: f32[4,32], index: 0, kind: input, shape index: {}]
  %s1 = inlined_call_operand.vmem [shape: f32[1,128], index: 1, kind: output, shape index: {}]
  $region1: #{tile.34} parent=0
    #allocation0 [shape = 'u8[4096]{0}', space=vmem, size = 0x1000, scoped, tag = 'scoped mem for output reshape']
    #allocation1 [shape = 'u8[4096]{0}', space=vmem, size = 0x1000, scoped, tag = 'scoped mem for input reshape']
    %s3 = sshll.u32 1, 4
    %s4 = ssub.s32 %s3, 1
    %v5 = vld [vmem:[%s0] sm:%s4]
    %6 = vst [vmem:[#allocation1] sm:%s4] %v5
    %v7 = vld [vmem:[#allocation1] sm:$0x1]
    %vm8 = vcmask 261120
    %9 = vst.msk [vmem:[#allocation0] sm:$0x1] %vm8, %v7
    %s10 = scalar_lea.vmem [#allocation1], 3
    %v11 = vld [vmem:[%s10] sm:$0x1]
    %12 = vrot.lane.b32.xlu0 %v11, 96
    %v13 = vpop.permute.xlu0 %12
    %vm14 = vcmask 1048320
    %15 = vst.msk [vmem:[#allocation0] sm:$0x1] %vm14, %v13
    %s16 = scalar_lea.vmem [#allocation1], 2
    %v17 = vld [vmem:[%s16] sm:$0x1]
    %18 = vrot.lane.b32.xlu0 %v17, 64
    %v19 = vpop.permute.xlu0 %18
    %vm20 = vcmask 785920
    %21 = vst.msk [vmem:[#allocation0] sm:$0x1] %vm20, %v19
    %s22 = scalar_lea.vmem [#allocation1], 1
    %v23 = vld [vmem:[%s22] sm:$0x1]
    %24 = vrot.lane.b32.xlu0 %v23, 32
    %v25 = vpop.permute.xlu0 %24
    %vm26 = vcmask 523520
    %27 = vst.msk [vmem:[#allocation0] sm:$0x1] %vm26, %v25
    %s29 = sshll.u32 1, 1
    %s30 = ssub.s32 %s29, 1
    %v32 = vld [vmem:[#allocation0] sm:%s30]
    %s33 = sshll.u32 1, 1
    %s34 = ssub.s32 %s33, 1
    %35 = vst [vmem:[%s1] sm:%s34] %v32

// kernel: unet_generator.16
$region0: #{unet_generator.16}
  #allocation0 [shape = 'u32[]', space=smem, size = 0x4, offset = 0x4, fixed_abs, tag = 'smem constant byte address 0x4 - core index']
  #allocation1 [shape = 'u32[144,128]{1,0:T(1,128)}', space=vmem, size = 0x12000, scoped, tag = 'internal scratch']
  #allocation2 [shape = 'f32[8,128]{1,0:T(8,128)}', space=vmem, size = 0x1000, scoped, tag = 'scratch operand']
  %s0 = inlined_call_operand.vmem [shape: bf16[8,1152], index: 0, kind: input, shape index: {}]
  %s1 = inlined_call_operand.vmem [shape: bf16[1152,128], index: 1, kind: input, shape index: {}]
  %s2 = inlined_call_operand.vmem [shape: f32[1,128], index: 2, kind: input, shape index: {}]
  %s3 = inlined_call_operand.vmem [shape: bf16[8,128], index: 3, kind: output, shape index: {0}]
  %s4 = inlined_call_operand.vmem [shape: f32[1,2,128], index: 4, kind: output, shape index: {1}]
  %5 = xla_tuple %s3, %s4
  %s6 = sld [smem:[#allocation0]]
  $region61: #{unet_generator.16} parent=0
    _
  %s8 = ssub.s32 1, %s6
  %s9 = scalar_select 0, %s8, %s6
  loop: start=0, step=1, limit=5
  $region2: #{unet_generator.16} parent=0 // loop_pre_header
    _
  $region3: #{unet_generator.16} parent=0 // loop_header
    %s11 = sphi 0, %s15
    %p12 = scmp.ge.s32.totalorder %s11, 5
    %s18 = sphi 0, %s30
    %s19 = sphi 0, %s26
    %s20 = sphi 0, %s18
    %s21 = sphi 0, %s19
    %s22 = sphi 0, %s20
    %s23 = sphi 0, %s21
    %s35 = sphi 0, %s37
    %s38 = sphi 0, %s35
    %s39 = sphi 0, %s38
    %s55 = sphi 0, %s39
    %s61 = sphi 0, %s63
    %s64 = sphi 0, %s61
    %s65 = sphi 0, %s64
    %s81 = sphi 0, %s65
    %s85 = sphi 0, %s85
    %s87 = sphi 0, %s85
    %s88 = sphi 0, %s87
    %s102 = sphi 0, %s88
    %s108 = sphi 0, %s110
    %s111 = sphi 0, %s108
    %s112 = sphi 0, %s111
    %s128 = sphi 0, %s112
    %s134 = sphi 0, %s136
    %s137 = sphi 0, %s134
    %s138 = sphi 0, %s137
    %s154 = sphi 0, %s138
  $region4: #{unet_generator.16} parent=0 // loop_header_branch
    %14 = sbr.rel (%p12) target = $region8
  $region5: #{unet_generator.16} parent=0 // loop_body
    %s16 = ssub.s32 %s11, 1
    %s17 = ssub.s32 %s11, 2
    %s24 = sadd.s32 1, %s19
    %p25 = scmp.ge.s32.totalorder %s24, 3
    %s26 = scalar_select %p25, 0, %s24
    %s27 = sadd.s32 1, %s18
    %s28 = scalar_select %p25, %s27, %s18
    %p29 = scmp.ge.s32.totalorder %s28, 1
    %s30 = scalar_select %p29, 0, %s28
    %s31 = ssub.s32 %s18, %s30
    %s32 = ssub.s32 %s19, %s26
    %s33 = sor.u32 %s31, %s32
    %p34 = scmp.eq.s32.totalorder %s33, 0
    %s36 = sadd.s32 %s35, 1
    %s37 = scalar_select %p34, %s35, %s36
    %p40 = pneg %p34
    %p41 = scmp.eq.s32.totalorder %s11, 2
    %p42 = por %p40, %p41
    %p43 = scmp.ne.s32.totalorder %s35, %s38
    %p44 = scmp.eq.s32.totalorder %s11, 0
    %p45 = por %p43, %p44
    %p46 = scmp.ne.s32.totalorder %s35, %s38
    %p47 = scmp.eq.s32.totalorder %s16, 2
    %p48 = por %p46, %p47
    %p49 = scmp.ne.s32.totalorder %s38, %s39
    %p50 = scmp.eq.s32.totalorder %s16, 0
    %p51 = por %p49, %p50
    %p52 = scmp.ne.s32.totalorder %s38, %s39
    %p53 = scmp.eq.s32.totalorder %s17, 2
    %p54 = por %p52, %p53
    %p56 = scmp.ne.s32.totalorder %s39, %s55
    %p57 = scmp.eq.s32.totalorder %s17, 0
    %p58 = por %p56, %p57
    %s59 = ssub.s32 %s19, %s26
    %p60 = scmp.eq.s32.totalorder %s59, 0
    %s62 = sadd.s32 %s61, 1
    %s63 = scalar_select %p60, %s61, %s62
    %p66 = pneg %p60
    %p67 = scmp.eq.s32.totalorder %s11, 2
    %p68 = por %p66, %p67
    %p69 = scmp.ne.s32.totalorder %s61, %s64
    %p70 = scmp.eq.s32.totalorder %s11, 0
    %p71 = por %p69, %p70
    %p72 = scmp.ne.s32.totalorder %s61, %s64
    %p73 = scmp.eq.s32.totalorder %s16, 2
    %p74 = por %p72, %p73
    %p75 = scmp.ne.s32.totalorder %s64, %s65
    %p76 = scmp.eq.s32.totalorder %s16, 0
    %p77 = por %p75, %p76
    %p78 = scmp.ne.s32.totalorder %s64, %s65
    %p79 = scmp.eq.s32.totalorder %s17, 2
    %p80 = por %p78, %p79
    %p82 = scmp.ne.s32.totalorder %s65, %s81
    %p83 = scmp.eq.s32.totalorder %s17, 0
    %p84 = por %p82, %p83
    %s86 = sadd.s32 %s85, 1
    %p89 = scmp.eq.s32.totalorder %s11, 2
    %p90 = scmp.ne.s32.totalorder %s85, %s87
    %p91 = scmp.eq.s32.totalorder %s11, 0
    %p92 = por %p90, %p91
    %p93 = scmp.ne.s32.totalorder %s85, %s87
    %p94 = scmp.eq.s32.totalorder %s16, 2
    %p95 = por %p93, %p94
    %p96 = scmp.ne.s32.totalorder %s87, %s88
    %p97 = scmp.eq.s32.totalorder %s16, 0
    %p98 = por %p96, %p97
    %p99 = scmp.ne.s32.totalorder %s87, %s88
    %p100 = scmp.eq.s32.totalorder %s17, 2
    %p101 = por %p99, %p100
    %p103 = scmp.ne.s32.totalorder %s88, %s102
    %p104 = scmp.eq.s32.totalorder %s17, 0
    %p105 = por %p103, %p104
    %s106 = ssub.s32 %s18, %s30
    %p107 = scmp.eq.s32.totalorder %s106, 0
    %s109 = sadd.s32 %s108, 1
    %s110 = scalar_select %p107, %s108, %s109
    %p113 = pneg %p107
    %p114 = scmp.eq.s32.totalorder %s11, 2
    %p115 = por %p113, %p114
    %p116 = scmp.ne.s32.totalorder %s108, %s111
    %p117 = scmp.eq.s32.totalorder %s11, 0
    %p118 = por %p116, %p117
    %p119 = scmp.ne.s32.totalorder %s108, %s111
    %p120 = scmp.eq.s32.totalorder %s16, 2
    %p121 = por %p119, %p120
    %p122 = scmp.ne.s32.totalorder %s111, %s112
    %p123 = scmp.eq.s32.totalorder %s16, 0
    %p124 = por %p122, %p123
    %p125 = scmp.ne.s32.totalorder %s111, %s112
    %p126 = scmp.eq.s32.totalorder %s17, 2
    %p127 = por %p125, %p126
    %p129 = scmp.ne.s32.totalorder %s112, %s128
    %p130 = scmp.eq.s32.totalorder %s17, 0
    %p131 = por %p129, %p130
    %s132 = ssub.s32 %s18, %s30
    %p133 = scmp.eq.s32.totalorder %s132, 0
    %s135 = sadd.s32 %s134, 1
    %s136 = scalar_select %p133, %s134, %s135
    %p139 = pneg %p133
    %p140 = scmp.eq.s32.totalorder %s11, 2
    %p141 = por %p139, %p140
    %p142 = scmp.ne.s32.totalorder %s134, %s137
    %p143 = scmp.eq.s32.totalorder %s11, 0
    %p144 = por %p142, %p143
    %p145 = scmp.ne.s32.totalorder %s134, %s137
    %p146 = scmp.eq.s32.totalorder %s16, 2
    %p147 = por %p145, %p146
    %p148 = scmp.ne.s32.totalorder %s137, %s138
    %p149 = scmp.eq.s32.totalorder %s16, 0
    %p150 = por %p148, %p149
    %p151 = scmp.ne.s32.totalorder %s137, %s138
    %p152 = scmp.eq.s32.totalorder %s17, 2
    %p153 = por %p151, %p152
    %p155 = scmp.ne.s32.totalorder %s138, %s154
    %p156 = scmp.eq.s32.totalorder %s17, 0
    %p157 = por %p155, %p156
    %p158 = scmp.le.s32.totalorder 1, %s11
    %p159 = scmp.lt.s32.totalorder %s11, 4
    %p160 = pnand %p158, %p159
    %p161 = pneg %p160
    // Predicated region
    $region9: #{unet_generator.16} parent=5 // pred_check
      _
    $region10: #{unet_generator.16} parent=5 // pred_check_branch
      %163 = sbr.rel (%p160) target = $region12
    $region11: #{unet_generator.16} parent=5 // pred_region
      %s164 = ssub.s32 %s11, 1
      // Predicated region
      $region13: #{unet_generator.16} parent=11 // pred_check
        %p165 = pneg %p98
      $region14: #{unet_generator.16} parent=11 // pred_check_branch
        %167 = sbr.rel (%p165) target = $region16
      $region15: #{unet_generator.16} parent=11 // pred_region
        _
      $region16: #{unet_generator.16} parent=11 // pred_fallthru
        _
    $region12: #{unet_generator.16} parent=5 // pred_fallthru
      _
    %p168 = scmp.lt.s32.totalorder %s11, 3
    // Predicated region
    $region17: #{unet_generator.16} parent=5 // pred_check
      %p169 = pneg %p168
    $region18: #{unet_generator.16} parent=5 // pred_check_branch
      %171 = sbr.rel (%p169) target = $region20
    $region19: #{unet_generator.16} parent=5 // pred_region
      // Predicated region
      $region21: #{unet_generator.16} parent=19 // pred_check
        %p172 = pneg %p45
      $region22: #{unet_generator.16} parent=19 // pred_check_branch
        %174 = sbr.rel (%p172) target = $region24
      $region23: #{unet_generator.16} parent=19 // pred_region
        %s175 = smul.u32 3, %s19
        %p176 = scmp.lt.s32.totalorder %s18, 0
        %s177 = scalar_select %p176, %s18, 0
        %p178 = scmp.lt.s32.totalorder %s175, 8
        %s179 = scalar_select %p178, %s175, 8
        %s180 = smul.addr %s177, 9
        %s181 = sadd.s32 %s179, %s180
        %s182 = smul.addr %s181, 4
        %s183 = scalar_lea.vmem %s0, %s182
        %s184 = smul.u32 3, %s19
      $region24: #{unet_generator.16} parent=19 // pred_fallthru
        _
      // Predicated region
      $region25: #{unet_generator.16} parent=19 // pred_check
        %p185 = pneg %p71
      $region26: #{unet_generator.16} parent=19 // pred_check_branch
        %187 = sbr.rel (%p185) target = $region28
      $region27: #{unet_generator.16} parent=19 // pred_region
        %s188 = smul.u32 48, %s19
        %p189 = scmp.lt.s32.totalorder %s188, 143
        %s190 = scalar_select %p189, %s188, 143
        %s191 = smul.addr %s190, 4
        %s192 = scalar_lea.vmem %s1, %s191
        %s193 = smul.u32 48, %s19
      $region28: #{unet_generator.16} parent=19 // pred_fallthru
        _
    $region20: #{unet_generator.16} parent=5 // pred_fallthru
      _
    %p194 = scmp.le.s32.totalorder 1, %s11
    %p195 = scmp.lt.s32.totalorder %s11, 4
    %p196 = pnand %p194, %p195
    %p197 = pneg %p196
    // Predicated region
    $region29: #{unet_generator.16} parent=5 // pred_check
      _
    $region30: #{unet_generator.16} parent=5 // pred_check_branch
      %199 = sbr.rel (%p196) target = $region32
    $region31: #{unet_generator.16} parent=5 // pred_region
      %s200 = ssub.s32 %s11, 1
      %s201 = smul.u32 3, %s21
      %p202 = scmp.lt.s32.totalorder %s20, 0
      %s203 = scalar_select %p202, %s20, 0
      %p204 = scmp.lt.s32.totalorder %s201, 8
      %s205 = scalar_select %p204, %s201, 8
      %s206 = smul.addr %s203, 9
      %s207 = sadd.s32 %s205, %s206
      %s208 = smul.addr %s207, 4
      %s209 = scalar_lea.vmem %s0, %s208
      %p210 = pneg %p51
      %p211 = pneg %p48
      %s212 = smul.u32 48, %s21
      %p213 = scmp.lt.s32.totalorder %s212, 143
      %s214 = scalar_select %p213, %s212, 143
      %s215 = smul.addr %s214, 4
      %s216 = scalar_lea.vmem %s1, %s215
      %p217 = pneg %p77
      %p218 = pneg %p74
      %p219 = pneg %p98
      %p220 = pneg %p95
      %p221 = pneg %p124
      %p222 = pneg %p121
      %p223 = scmp.lt.s32.totalorder %s20, 0
      %s224 = scalar_select %p223, %s20, 0
      %s225 = smul.addr %s224, 4
      %s226 = scalar_lea.vmem %s3, %s225
      %p227 = pneg %p150
      %p228 = pneg %p147
      %p229 = scmp.lt.s32.totalorder %s20, 0
      %s230 = scalar_select %p229, %s20, 0
      %s231 = smul.addr %s230, 2
      %s232 = scalar_lea.vmem %s4, %s231
      %s233 = smul.u32 3, %s21
      %p234 = scmp.lt.s32.totalorder %s20, 0
      %s235 = scalar_select %p234, %s20, 0
      %p236 = scmp.lt.s32.totalorder %s233, 8
      %s237 = scalar_select %p236, %s233, 8
      %s238 = smul.addr %s235, 9
      %s239 = sadd.s32 %s237, %s238
      %s240 = smul.addr %s239, 4
      %s241 = scalar_lea.vmem %s0, %s240
      %s242 = smul.u32 3, %s21
      %s243 = smul.u32 48, %s21
      %p244 = scmp.lt.s32.totalorder %s243, 143
      %s245 = scalar_select %p244, %s243, 143
      %s246 = smul.addr %s245, 4
      %s247 = scalar_lea.vmem %s1, %s246
      %s248 = smul.u32 48, %s21
      %p249 = scmp.lt.s32.totalorder %s20, 0
      %s250 = scalar_select %p249, %s20, 0
      %s251 = smul.addr %s250, 4
      %s252 = scalar_lea.vmem %s3, %s251
      %p253 = scmp.lt.s32.totalorder %s20, 0
      %s254 = scalar_select %p253, %s20, 0
      %s255 = smul.addr %s254, 2
      %s256 = scalar_lea.vmem %s4, %s255
      %p258 = scmp.eq.s32.totalorder %s21, 0
      // Predicated region
      $region33: #{unet_generator.16} parent=31 // pred_check
        %p259 = pneg %p258
      $region34: #{unet_generator.16} parent=31 // pred_check_branch
        %261 = sbr.rel (%p259) target = $region36
      $region35: #{unet_generator.16} parent=31 // pred_region
        %v262 = vld [vmem:[%s2] sm:$0x1]
        %v264 = vlaneseq
        %v265 = vshrl.u32 %v264, 7
        %v266 = vsub.s32 0, %v265
        %v267 = vrot.slane %v262, %v266
        %269 = vst [vmem:[#allocation2] sm:$0xff] %v267
      $region36: #{unet_generator.16} parent=31 // pred_fallthru
        _
      %v270 = vld [vmem:[#allocation2] sm:$0xff]
      %v271 = vld [vmem:[%s241] sm:$0xff]
      %v272 = vld [vmem:[%s241 + $0x8] sm:$0xf]
      %v273 = vld [vmem:[%s247] sm:$0xf]
      %v274 = vld [vmem:[%s247 + $0x4] sm:$0xf]
      %v275 = vld [vmem:[%s247 + $0x8] sm:$0xf]
      %v276 = vld [vmem:[%s247 + $0xc] sm:$0xf]
      %v277 = vld [vmem:[%s247 + $0x10] sm:$0xf]
      %v278 = vld [vmem:[%s247 + $0x14] sm:$0xf]
      %v279 = vld [vmem:[%s247 + $0x18] sm:$0xf]
      %v280 = vld [vmem:[%s247 + $0x1c] sm:$0xf]
      %v281 = vld [vmem:[%s247 + $0x20] sm:$0xf]
      %v282 = vld [vmem:[%s247 + $0x24] sm:$0xf]
      %v283 = vld [vmem:[%s247 + $0x28] sm:$0xf]
      %v284 = vld [vmem:[%s247 + $0x2c] sm:$0xf]
      %v285 = vld [vmem:[%s247 + $0x30] sm:$0xf]
      %v286 = vld [vmem:[%s247 + $0x34] sm:$0xf]
      %v287 = vld [vmem:[%s247 + $0x38] sm:$0xf]
      %v288 = vld [vmem:[%s247 + $0x3c] sm:$0xf]
      %v289 = vld [vmem:[%s247 + $0x40] sm:$0xf]
      %v290 = vld [vmem:[%s247 + $0x44] sm:$0xf]
      %v291 = vld [vmem:[%s247 + $0x48] sm:$0xf]
      %v292 = vld [vmem:[%s247 + $0x4c] sm:$0xf]
      %v293 = vld [vmem:[%s247 + $0x50] sm:$0xf]
      %v294 = vld [vmem:[%s247 + $0x54] sm:$0xf]
      %v295 = vld [vmem:[%s247 + $0x58] sm:$0xf]
      %v296 = vld [vmem:[%s247 + $0x5c] sm:$0xf]
      %v297 = vld [vmem:[%s247 + $0x60] sm:$0xf]
      %v298 = vld [vmem:[%s247 + $0x64] sm:$0xf]
      %v299 = vld [vmem:[%s247 + $0x68] sm:$0xf]
      %v300 = vld [vmem:[%s247 + $0x6c] sm:$0xf]
      %v301 = vld [vmem:[%s247 + $0x70] sm:$0xf]
      %v302 = vld [vmem:[%s247 + $0x74] sm:$0xf]
      %v303 = vld [vmem:[%s247 + $0x78] sm:$0xf]
      %v304 = vld [vmem:[%s247 + $0x7c] sm:$0xf]
      %v305 = vld [vmem:[%s247 + $0x80] sm:$0xf]
      %v306 = vld [vmem:[%s247 + $0x84] sm:$0xf]
      %v307 = vld [vmem:[%s247 + $0x88] sm:$0xf]
      %v308 = vld [vmem:[%s247 + $0x8c] sm:$0xf]
      %v309 = vld [vmem:[%s247 + $0x90] sm:$0xf]
      %v310 = vld [vmem:[%s247 + $0x94] sm:$0xf]
      %v311 = vld [vmem:[%s247 + $0x98] sm:$0xf]
      %v312 = vld [vmem:[%s247 + $0x9c] sm:$0xf]
      %v313 = vld [vmem:[%s247 + $0xa0] sm:$0xf]
      %v314 = vld [vmem:[%s247 + $0xa4] sm:$0xf]
      %v315 = vld [vmem:[%s247 + $0xa8] sm:$0xf]
      %v316 = vld [vmem:[%s247 + $0xac] sm:$0xf]
      %v317 = vld [vmem:[%s247 + $0xb0] sm:$0xf]
      %v318 = vld [vmem:[%s247 + $0xb4] sm:$0xf]
      %v319 = vld [vmem:[%s247 + $0xb8] sm:$0xf]
      %v320 = vld [vmem:[%s247 + $0xbc] sm:$0xf]
      %v323 = vunpack.c.l.b16 %v271
      %v324 = vunpack.c.h.b16 %v271
      %v325 = vunpack.c.l.b16 %v272
      %v326 = vpack.c.b16 %v323, %v323
      %v327 = vpack.c.b16 %v324, %v324
      %v328 = vpack.c.b16 %v325, %v325
      %v380 = vunpack.c.l.b16 %v273
      %v381 = vunpack.c.l.b16 %v274
      %v382 = vunpack.c.l.b16 %v275
      %v383 = vunpack.c.l.b16 %v276
      %v384 = vunpack.c.l.b16 %v277
      %v385 = vunpack.c.l.b16 %v278
      %v386 = vunpack.c.l.b16 %v279
      %v387 = vunpack.c.l.b16 %v280
      %v388 = vunpack.c.l.b16 %v281
      %v389 = vunpack.c.l.b16 %v282
      %v390 = vunpack.c.l.b16 %v283
      %v391 = vunpack.c.l.b16 %v284
      %v392 = vunpack.c.l.b16 %v285
      %v393 = vunpack.c.l.b16 %v286
      %v394 = vunpack.c.l.b16 %v287
      %v395 = vunpack.c.l.b16 %v288
      %v396 = vunpack.c.l.b16 %v289
      %v397 = vunpack.c.l.b16 %v290
      %v398 = vunpack.c.l.b16 %v291
      %v399 = vunpack.c.l.b16 %v292
      %v400 = vunpack.c.l.b16 %v293
      %v401 = vunpack.c.l.b16 %v294
      %v402 = vunpack.c.l.b16 %v295
      %v403 = vunpack.c.l.b16 %v296
      %v404 = vunpack.c.l.b16 %v297
      %v405 = vunpack.c.l.b16 %v298
      %v406 = vunpack.c.l.b16 %v299
      %v407 = vunpack.c.l.b16 %v300
      %v408 = vunpack.c.l.b16 %v301
      %v409 = vunpack.c.l.b16 %v302
      %v410 = vunpack.c.l.b16 %v303
      %v411 = vunpack.c.l.b16 %v304
      %v412 = vunpack.c.l.b16 %v305
      %v413 = vunpack.c.l.b16 %v306
      %v414 = vunpack.c.l.b16 %v307
      %v415 = vunpack.c.l.b16 %v308
      %v416 = vunpack.c.l.b16 %v309
      %v417 = vunpack.c.l.b16 %v310
      %v418 = vunpack.c.l.b16 %v311
      %v419 = vunpack.c.l.b16 %v312
      %v420 = vunpack.c.l.b16 %v313
      %v421 = vunpack.c.l.b16 %v314
      %v422 = vunpack.c.l.b16 %v315
      %v423 = vunpack.c.l.b16 %v316
      %v424 = vunpack.c.l.b16 %v317
      %v425 = vunpack.c.l.b16 %v318
      %v426 = vunpack.c.l.b16 %v319
      %v427 = vunpack.c.l.b16 %v320
      %v428 = vpack.c.b16 %v381, %v380
      %v429 = vpack.c.b16 %v383, %v382
      %v430 = vpack.c.b16 %v385, %v384
      %v431 = vpack.c.b16 %v387, %v386
      %v432 = vpack.c.b16 %v389, %v388
      %v433 = vpack.c.b16 %v391, %v390
      %v434 = vpack.c.b16 %v393, %v392
      %v435 = vpack.c.b16 %v395, %v394
      %v436 = vpack.c.b16 %v397, %v396
      %v437 = vpack.c.b16 %v399, %v398
      %v438 = vpack.c.b16 %v401, %v400
      %v439 = vpack.c.b16 %v403, %v402
      %v440 = vpack.c.b16 %v405, %v404
      %v441 = vpack.c.b16 %v407, %v406
      %v442 = vpack.c.b16 %v409, %v408
      %v443 = vpack.c.b16 %v411, %v410
      %v444 = vpack.c.b16 %v413, %v412
      %v445 = vpack.c.b16 %v415, %v414
      %v446 = vpack.c.b16 %v417, %v416
      %v447 = vpack.c.b16 %v419, %v418
      %v448 = vpack.c.b16 %v421, %v420
      %v449 = vpack.c.b16 %v423, %v422
      %v450 = vpack.c.b16 %v425, %v424
      %v451 = vpack.c.b16 %v427, %v426
      %476 = vmatprep.subr.bf16.mxu0 0
      %477 = vmatpush1.bf16.msra.mxu0 %v435
      %478 = vmatprep.subr.bf16.mxu0 0
      %479 = vmatpush1.bf16.msra.mxu0 %v434
      %480 = vmatprep.subr.bf16.mxu0 0
      %481 = vmatpush1.bf16.msra.mxu0 %v433
      %482 = vmatprep.subr.bf16.mxu0 0
      %483 = vmatpush1.bf16.msra.mxu0 %v432
      %484 = vmatprep.subr.bf16.mxu0 0
      %485 = vmatpush1.bf16.msra.mxu0 %v431
      %486 = vmatprep.subr.bf16.mxu0 0
      %487 = vmatpush1.bf16.msra.mxu0 %v430
      %488 = vmatprep.subr.bf16.mxu0 0
      %489 = vmatpush1.bf16.msra.mxu0 %v429
      %490 = vmatprep.subr.bf16.mxu0 0
      %491 = vmatpush1.bf16.msra.mxu0 %v428
      %492 = vmatprep.subr.bf16.mxu0 0
      %493 = vmatpush2.bf16.msra.mxu0 %v443
      %494 = vmatprep.subr.bf16.mxu0 0
      %495 = vmatpush2.bf16.msra.mxu0 %v442
      %496 = vmatprep.subr.bf16.mxu0 0
      %497 = vmatpush2.bf16.msra.mxu0 %v441
      %498 = vmatprep.subr.bf16.mxu0 0
      %499 = vmatpush2.bf16.msra.mxu0 %v440
      %500 = vmatprep.subr.bf16.mxu0 0
      %501 = vmatpush2.bf16.msra.mxu0 %v439
      %502 = vmatprep.subr.bf16.mxu0 0
      %503 = vmatpush2.bf16.msra.mxu0 %v438
      %504 = vmatprep.subr.bf16.mxu0 0
      %505 = vmatpush2.bf16.msra.mxu0 %v437
      %506 = vmatprep.subr.bf16.mxu0 0
      %507 = vmatpush2.bf16.msra.mxu0 %v436
      %508 = vmatprep.mubr.bf16.mxu0 %v327
      %509 = vmatmul.mubr.bf16.gmra.mxu0 %v326
      %v510 = vpop.f32.mrf.mxu0
      %v511 = vadd.f32 0.0, %v510
      %v512 = vpop.f32.mrf.mxu0
      %v513 = vpop.f32.mrf.mxu0
      %v514 = vpop.f32.mrf.mxu0
      %515 = vdwg.mxu0
      %516 = vmatprep.subr.bf16.mxu0 0
      %517 = vmatpush1.bf16.msra.mxu0 %v451
      %518 = vmatprep.subr.bf16.mxu0 0
      %519 = vmatpush1.bf16.msra.mxu0 %v450
      %520 = vmatprep.subr.bf16.mxu0 0
      %521 = vmatpush1.bf16.msra.mxu0 %v449
      %522 = vmatprep.subr.bf16.mxu0 0
      %523 = vmatpush1.bf16.msra.mxu0 %v448
      %524 = vmatprep.subr.bf16.mxu0 0
      %525 = vmatpush1.bf16.msra.mxu0 %v447
      %526 = vmatprep.subr.bf16.mxu0 0
      %527 = vmatpush1.bf16.msra.mxu0 %v446
      %528 = vmatprep.subr.bf16.mxu0 0
      %529 = vmatpush1.bf16.msra.mxu0 %v445
      %530 = vmatprep.subr.bf16.mxu0 0
      %531 = vmatpush1.bf16.msra.mxu0 %v444
      %532 = vmatprep.subr.bf16.mxu0 0
      %533 = vmatpush2.bf16.msra.mxu0 0
      %534 = vmatprep.subr.bf16.mxu0 0
      %535 = vmatpush2.bf16.msra.mxu0 0
      %536 = vmatprep.subr.bf16.mxu0 0
      %537 = vmatpush2.bf16.msra.mxu0 0
      %538 = vmatprep.subr.bf16.mxu0 0
      %539 = vmatpush2.bf16.msra.mxu0 0
      %540 = vmatprep.subr.bf16.mxu0 0
      %541 = vmatpush2.bf16.msra.mxu0 0
      %542 = vmatprep.subr.bf16.mxu0 0
      %543 = vmatpush2.bf16.msra.mxu0 0
      %544 = vmatprep.subr.bf16.mxu0 0
      %545 = vmatpush2.bf16.msra.mxu0 0
      %546 = vmatprep.subr.bf16.mxu0 0
      %547 = vmatpush2.bf16.msra.mxu0 0
      %548 = vmatprep.mubr.bf16.mxu0 0
      %549 = vmatmul.mubr.bf16.gmra.mxu0 %v328
      %v550 = vpop.f32.mrf.mxu0
      %v551 = vadd.f32 %v511, %v550
      %v552 = vpop.f32.mrf.mxu0
      %v553 = vpop.f32.mrf.mxu0
      %v554 = vpop.f32.mrf.mxu0
      %555 = vdwg.mxu0
      %v556 = vadd.f32 %v270, %v551
      %557 = vst [vmem:[#allocation2] sm:$0xff] %v556
      %p558 = scmp.eq.s32.totalorder %s21, 2
      // Predicated region
      $region37: #{unet_generator.16} parent=31 // pred_check
        %p559 = pneg %p558
      $region38: #{unet_generator.16} parent=31 // pred_check_branch
        %561 = sbr.rel (%p559) target = $region40
      $region39: #{unet_generator.16} parent=31 // pred_region
        %v562 = vld [vmem:[#allocation2] sm:$0xff]
        %v563 = vpack.c.bf16 %v562, %v562
        %564 = vst [vmem:[%s252] sm:$0xf] %v563
        %v565 = vrot.slane %v562, 4
        %v566 = vadd.f32 %v562, %v565
        %v567 = vrot.slane %v566, 2
        %v568 = vadd.f32 %v566, %v567
        %v569 = vrot.slane %v568, 1
        %v570 = vadd.f32 %v568, %v569
        %571 = vst [vmem:[%s256] sm:$0x1] %v570
        %v572 = vmul.f32 %v562, %v562
        %v573 = vrot.slane %v572, 4
        %v574 = vadd.f32 %v572, %v573
        %v575 = vrot.slane %v574, 2
        %v576 = vadd.f32 %v574, %v575
        %v577 = vrot.slane %v576, 1
        %v578 = vadd.f32 %v576, %v577
        %579 = vst [vmem:[%s256 + $0x1] sm:$0x1] %v578
      $region40: #{unet_generator.16} parent=31 // pred_fallthru
        _
      %p580 = scmp.lt.s32.totalorder %s20, 0
      %s581 = scalar_select %p580, %s20, 0
      %s582 = smul.addr %s581, 4
      %s583 = scalar_lea.vmem %s3, %s582
      %p584 = scmp.lt.s32.totalorder %s20, 0
      %s585 = scalar_select %p584, %s20, 0
      %s586 = smul.addr %s585, 2
      %s587 = scalar_lea.vmem %s4, %s586
      // Predicated region
      $region41: #{unet_generator.16} parent=31 // pred_check
        %p588 = pneg %p121
      $region42: #{unet_generator.16} parent=31 // pred_check_branch
        %590 = sbr.rel (%p588) target = $region44
      $region43: #{unet_generator.16} parent=31 // pred_region
        _
      $region44: #{unet_generator.16} parent=31 // pred_fallthru
        _
      // Predicated region
      $region45: #{unet_generator.16} parent=31 // pred_check
        %p591 = pneg %p147
      $region46: #{unet_generator.16} parent=31 // pred_check_branch
        %593 = sbr.rel (%p591) target = $region48
      $region47: #{unet_generator.16} parent=31 // pred_region
        _
      $region48: #{unet_generator.16} parent=31 // pred_fallthru
        _
      // Predicated region
      $region49: #{unet_generator.16} parent=31 // pred_check
        %p594 = pneg %p121
      $region50: #{unet_generator.16} parent=31 // pred_check_branch
        %596 = sbr.rel (%p594) target = $region52
      $region51: #{unet_generator.16} parent=31 // pred_region
        %p597 = scmp.lt.s32.totalorder %s20, 0
        %s598 = scalar_select %p597, %s20, 0
        %s599 = smul.addr %s598, 4
        %s600 = scalar_lea.vmem %s3, %s599
      $region52: #{unet_generator.16} parent=31 // pred_fallthru
        _
      // Predicated region
      $region53: #{unet_generator.16} parent=31 // pred_check
        %p601 = pneg %p147
      $region54: #{unet_generator.16} parent=31 // pred_check_branch
        %603 = sbr.rel (%p601) target = $region56
      $region55: #{unet_generator.16} parent=31 // pred_region
        %p604 = scmp.lt.s32.totalorder %s20, 0
        %s605 = scalar_select %p604, %s20, 0
        %s606 = smul.addr %s605, 2
        %s607 = scalar_lea.vmem %s4, %s606
      $region56: #{unet_generator.16} parent=31 // pred_fallthru
        _
    $region32: #{unet_generator.16} parent=5 // pred_fallthru
      _
    %p608 = scmp.le.s32.totalorder 2, %s11
    // Predicated region
    $region57: #{unet_generator.16} parent=5 // pred_check
      %p609 = pneg %p608
    $region58: #{unet_generator.16} parent=5 // pred_check_branch
      %611 = sbr.rel (%p609) target = $region60
    $region59: #{unet_generator.16} parent=5 // pred_region
      %s612 = ssub.s32 %s11, 2
    $region60: #{unet_generator.16} parent=5 // pred_fallthru
      _
  $region6: #{unet_generator.16} parent=0 // loop_footer
    %s15 = sadd.s32 1, %s11
  $region7: #{unet_generator.16} parent=0 // loop_footer_branch
    %10 = sbr.rel target = $region3
  $region8: #{unet_generator.16} parent=0 // loop_exit
    _

// kernel: tile.38
$region0: #{tile.38}
  #allocation0 [shape = 's32[1]{0}', space=sflag, size = 0x4, scoped, tag = 'scoped memory for tile.38']
  %s0 = inlined_call_operand.vmem [shape: f32[16], index: 0, kind: input, shape index: {}]
  %s1 = inlined_call_operand.vmem [shape: f32[4,16], index: 1, kind: output, shape index: {}]
  // Predicated region
  $region2: #{tile.38} parent=0 // pred_check
    _
  $region3: #{tile.38} parent=0 // pred_check_branch
    %3 = sbr.rel (0) target = $region5
  $region4: #{tile.38} parent=0 // pred_region
    _
  $region5: #{tile.38} parent=0 // pred_fallthru
    _
  %v4 = vld [vmem:[%s0] ss:$0 sm:$0xff]
  %5 = vst [vmem:[%s1] sm:$0xf] %v4

// kernel: tile.39
$region0: #{tile.39}
  %s0 = inlined_call_operand.vmem [shape: f32[4,16], index: 0, kind: input, shape index: {}]
  %s1 = inlined_call_operand.vmem [shape: f32[1,64], index: 1, kind: output, shape index: {}]
  $region1: #{tile.39} parent=0
    #allocation0 [shape = 'u8[4096]{0}', space=vmem, size = 0x1000, scoped, tag = 'scoped mem for output reshape']
    #allocation1 [shape = 'u8[4096]{0}', space=vmem, size = 0x1000, scoped, tag = 'scoped mem for input reshape']
    %s3 = sshll.u32 1, 4
    %s4 = ssub.s32 %s3, 1
    %v5 = vld [vmem:[%s0] sm:%s4]
    %6 = vst [vmem:[#allocation1] sm:%s4] %v5
    %v7 = vld [vmem:[#allocation1] sm:$0x1]
    %vm8 = vcmask 130048
    %9 = vst.msk [vmem:[#allocation0] sm:$0x1] %vm8, %v7
    %s10 = scalar_lea.vmem [#allocation1], 3
    %v11 = vld [vmem:[%s10] sm:$0x1]
    %12 = vrot.lane.b32.xlu0 %v11, 48
    %v13 = vpop.permute.xlu0 %12
    %vm14 = vcmask 523648
    %15 = vst.msk [vmem:[#allocation0] sm:$0x1] %vm14, %v13
    %s16 = scalar_lea.vmem [#allocation1], 2
    %v17 = vld [vmem:[%s16] sm:$0x1]
    %18 = vrot.lane.b32.xlu0 %v17, 32
    %v19 = vpop.permute.xlu0 %18
    %vm20 = vcmask 392448
    %21 = vst.msk [vmem:[#allocation0] sm:$0x1] %vm20, %v19
    %s22 = scalar_lea.vmem [#allocation1], 1
    %v23 = vld [vmem:[%s22] sm:$0x1]
    %24 = vrot.lane.b32.xlu0 %v23, 16
    %v25 = vpop.permute.xlu0 %24
    %vm26 = vcmask 261248
    %27 = vst.msk [vmem:[#allocation0] sm:$0x1] %vm26, %v25
    %s29 = sshll.u32 1, 1
    %s30 = ssub.s32 %s29, 1
    %v32 = vld [vmem:[#allocation0] sm:%s30]
    %s33 = sshll.u32 1, 1
    %s34 = ssub.s32 %s33, 1
    %35 = vst [vmem:[%s1] sm:%s34] %v32

// kernel: tile.43
$region0: #{tile.43}
  #allocation0 [shape = 's32[1]{0}', space=sflag, size = 0x4, scoped, tag = 'scoped memory for tile.43']
  %s0 = inlined_call_operand.vmem [shape: f32[8], index: 0, kind: input, shape index: {}]
  %s1 = inlined_call_operand.vmem [shape: f32[4,8], index: 1, kind: output, shape index: {}]
  // Predicated region
  $region2: #{tile.43} parent=0 // pred_check
    _
  $region3: #{tile.43} parent=0 // pred_check_branch
    %3 = sbr.rel (0) target = $region5
  $region4: #{tile.43} parent=0 // pred_region
    _
  $region5: #{tile.43} parent=0 // pred_fallthru
    _
  %v4 = vld [vmem:[%s0] ss:$0 sm:$0xff]
  %5 = vst [vmem:[%s1] sm:$0xf] %v4

// kernel: unet_generator.17
$region0: #{unet_generator.17}
  #allocation0 [shape = 'u32[]', space=smem, size = 0x4, offset = 0x4, fixed_abs, tag = 'smem constant byte address 0x4 - core index']
  #allocation1 [shape = 'u32[144,128]{1,0:T(1,128)}', space=vmem, size = 0x12000, scoped, tag = 'internal scratch']
  #allocation2 [shape = 'f32[32,64]{1,0:T(8,128)}', space=vmem, size = 0x4000, scoped, tag = 'scratch operand']
  %s0 = inlined_call_operand.vmem [shape: bf16[32,576], index: 0, kind: input, shape index: {}]
  %s1 = inlined_call_operand.vmem [shape: bf16[576,64], index: 1, kind: input, shape index: {}]
  %s2 = inlined_call_operand.vmem [shape: f32[1,64], index: 2, kind: input, shape index: {}]
  %s3 = inlined_call_operand.vmem [shape: bf16[32,64], index: 3, kind: output, shape index: {0}]
  %s4 = inlined_call_operand.vmem [shape: f32[1,2,64], index: 4, kind: output, shape index: {1}]
  %5 = xla_tuple %s3, %s4
  %s6 = sld [smem:[#allocation0]]
  $region38: #{unet_generator.17} parent=0
    _
  %s8 = ssub.s32 1, %s6
  %s9 = scalar_select 0, %s8, %s6
  // Predicated region
  $region2: #{unet_generator.17} parent=0 // pred_check
    _
  $region3: #{unet_generator.17} parent=0 // pred_check_branch
    %11 = sbr.rel (0) target = $region5
  $region4: #{unet_generator.17} parent=0 // pred_region
    _
  $region5: #{unet_generator.17} parent=0 // pred_fallthru
    _
  // Predicated region
  $region6: #{unet_generator.17} parent=0 // pred_check
    _
  $region7: #{unet_generator.17} parent=0 // pred_check_branch
    %13 = sbr.rel (0) target = $region9
  $region8: #{unet_generator.17} parent=0 // pred_region
    _
  $region9: #{unet_generator.17} parent=0 // pred_fallthru
    _
  // Predicated region
  $region10: #{unet_generator.17} parent=0 // pred_check
    _
  $region11: #{unet_generator.17} parent=0 // pred_check_branch
    %15 = sbr.rel (0) target = $region13
  $region12: #{unet_generator.17} parent=0 // pred_region
    _
  $region13: #{unet_generator.17} parent=0 // pred_fallthru
    _
  %p17 = scmp.eq.s32.totalorder 0, 0
  // Predicated region
  $region14: #{unet_generator.17} parent=0 // pred_check
    %p18 = pneg %p17
  $region15: #{unet_generator.17} parent=0 // pred_check_branch
    %20 = sbr.rel (%p18) target = $region17
  $region16: #{unet_generator.17} parent=0 // pred_region
    %v21 = vld [vmem:[%s2] sm:$0x1]
    %v23 = vlaneseq
    %v24 = vshrl.u32 %v23, 7
    %v25 = vsub.s32 0, %v24
    %v26 = vrot.slane %v21, %v25
    %vm28 = vcmask 523264
    %29 = vst.msk [vmem:[#allocation2] sm:$0xff] %vm28, %v26
    %30 = vst.msk [vmem:[#allocation2 + $0x8] sm:$0xff] %vm28, %v26
    %31 = vst.msk [vmem:[#allocation2 + $0x10] sm:$0xff] %vm28, %v26
    %32 = vst.msk [vmem:[#allocation2 + $0x18] sm:$0xff] %vm28, %v26
  $region17: #{unet_generator.17} parent=0 // pred_fallthru
    _
  %v33 = vld [vmem:[#allocation2] sm:$0xff]
  %v34 = vld [vmem:[#allocation2 + $0x8] sm:$0xff]
  %v35 = vld [vmem:[#allocation2 + $0x10] sm:$0xff]
  %v36 = vld [vmem:[#allocation2 + $0x18] sm:$0xff]
  %v37 = vld [vmem:[%s0] sm:$0xff]
  %v38 = vld [vmem:[%s0 + $0x8] sm:$0xff]
  %v39 = vld [vmem:[%s0 + $0x10] sm:$0xf]
  %v40 = vld [vmem:[%s0 + $0x14] sm:$0xff]
  %v41 = vld [vmem:[%s0 + $0x1c] sm:$0xff]
  %v42 = vld [vmem:[%s0 + $0x24] sm:$0xf]
  %v43 = vld [vmem:[%s0 + $0x28] sm:$0xff]
  %v44 = vld [vmem:[%s0 + $0x30] sm:$0xff]
  %v45 = vld [vmem:[%s0 + $0x38] sm:$0xf]
  %v46 = vld [vmem:[%s0 + $0x3c] sm:$0xff]
  %v47 = vld [vmem:[%s0 + $0x44] sm:$0xff]
  %v48 = vld [vmem:[%s0 + $0x4c] sm:$0xf]
  %v49 = vld [vmem:[%s1] sm:$0xf]
  %v50 = vld [vmem:[%s1 + $0x4] sm:$0xf]
  %v51 = vld [vmem:[%s1 + $0x8] sm:$0xf]
  %v52 = vld [vmem:[%s1 + $0xc] sm:$0xf]
  %v53 = vld [vmem:[%s1 + $0x10] sm:$0xf]
  %v54 = vld [vmem:[%s1 + $0x14] sm:$0xf]
  %v55 = vld [vmem:[%s1 + $0x18] sm:$0xf]
  %v56 = vld [vmem:[%s1 + $0x1c] sm:$0xf]
  %v57 = vld [vmem:[%s1 + $0x20] sm:$0xf]
  %v58 = vld [vmem:[%s1 + $0x24] sm:$0xf]
  %v59 = vld [vmem:[%s1 + $0x28] sm:$0xf]
  %v60 = vld [vmem:[%s1 + $0x2c] sm:$0xf]
  %v61 = vld [vmem:[%s1 + $0x30] sm:$0xf]
  %v62 = vld [vmem:[%s1 + $0x34] sm:$0xf]
  %v63 = vld [vmem:[%s1 + $0x38] sm:$0xf]
  %v64 = vld [vmem:[%s1 + $0x3c] sm:$0xf]
  %v65 = vld [vmem:[%s1 + $0x40] sm:$0xf]
  %v66 = vld [vmem:[%s1 + $0x44] sm:$0xf]
  %v67 = vld [vmem:[%s1 + $0x48] sm:$0xf]
  %v68 = vld [vmem:[%s1 + $0x4c] sm:$0xf]
  %v69 = vld [vmem:[%s1 + $0x50] sm:$0xf]
  %v70 = vld [vmem:[%s1 + $0x54] sm:$0xf]
  %v71 = vld [vmem:[%s1 + $0x58] sm:$0xf]
  %v72 = vld [vmem:[%s1 + $0x5c] sm:$0xf]
  %v73 = vld [vmem:[%s1 + $0x60] sm:$0xf]
  %v74 = vld [vmem:[%s1 + $0x64] sm:$0xf]
  %v75 = vld [vmem:[%s1 + $0x68] sm:$0xf]
  %v76 = vld [vmem:[%s1 + $0x6c] sm:$0xf]
  %v77 = vld [vmem:[%s1 + $0x70] sm:$0xf]
  %v78 = vld [vmem:[%s1 + $0x74] sm:$0xf]
  %v79 = vld [vmem:[%s1 + $0x78] sm:$0xf]
  %v80 = vld [vmem:[%s1 + $0x7c] sm:$0xf]
  %v81 = vld [vmem:[%s1 + $0x80] sm:$0xf]
  %v82 = vld [vmem:[%s1 + $0x84] sm:$0xf]
  %v83 = vld [vmem:[%s1 + $0x88] sm:$0xf]
  %v84 = vld [vmem:[%s1 + $0x8c] sm:$0xf]
  %v85 = vld [vmem:[%s1 + $0x90] sm:$0xf]
  %v86 = vld [vmem:[%s1 + $0x94] sm:$0xf]
  %v87 = vld [vmem:[%s1 + $0x98] sm:$0xf]
  %v88 = vld [vmem:[%s1 + $0x9c] sm:$0xf]
  %v89 = vld [vmem:[%s1 + $0xa0] sm:$0xf]
  %v90 = vld [vmem:[%s1 + $0xa4] sm:$0xf]
  %v91 = vld [vmem:[%s1 + $0xa8] sm:$0xf]
  %v92 = vld [vmem:[%s1 + $0xac] sm:$0xf]
  %v93 = vld [vmem:[%s1 + $0xb0] sm:$0xf]
  %v94 = vld [vmem:[%s1 + $0xb4] sm:$0xf]
  %v95 = vld [vmem:[%s1 + $0xb8] sm:$0xf]
  %v96 = vld [vmem:[%s1 + $0xbc] sm:$0xf]
  %v97 = vld [vmem:[%s1 + $0xc0] sm:$0xf]
  %v98 = vld [vmem:[%s1 + $0xc4] sm:$0xf]
  %v99 = vld [vmem:[%s1 + $0xc8] sm:$0xf]
  %v100 = vld [vmem:[%s1 + $0xcc] sm:$0xf]
  %v101 = vld [vmem:[%s1 + $0xd0] sm:$0xf]
  %v102 = vld [vmem:[%s1 + $0xd4] sm:$0xf]
  %v103 = vld [vmem:[%s1 + $0xd8] sm:$0xf]
  %v104 = vld [vmem:[%s1 + $0xdc] sm:$0xf]
  %v105 = vld [vmem:[%s1 + $0xe0] sm:$0xf]
  %v106 = vld [vmem:[%s1 + $0xe4] sm:$0xf]
  %v107 = vld [vmem:[%s1 + $0xe8] sm:$0xf]
  %v108 = vld [vmem:[%s1 + $0xec] sm:$0xf]
  %v109 = vld [vmem:[%s1 + $0xf0] sm:$0xf]
  %v110 = vld [vmem:[%s1 + $0xf4] sm:$0xf]
  %v111 = vld [vmem:[%s1 + $0xf8] sm:$0xf]
  %v112 = vld [vmem:[%s1 + $0xfc] sm:$0xf]
  %v113 = vld [vmem:[%s1 + $0x100] sm:$0xf]
  %v114 = vld [vmem:[%s1 + $0x104] sm:$0xf]
  %v115 = vld [vmem:[%s1 + $0x108] sm:$0xf]
  %v116 = vld [vmem:[%s1 + $0x10c] sm:$0xf]
  %v117 = vld [vmem:[%s1 + $0x110] sm:$0xf]
  %v118 = vld [vmem:[%s1 + $0x114] sm:$0xf]
  %v119 = vld [vmem:[%s1 + $0x118] sm:$0xf]
  %v120 = vld [vmem:[%s1 + $0x11c] sm:$0xf]
  %v133 = vunpack.c.l.b16 %v37
  %v134 = vunpack.c.h.b16 %v37
  %v135 = vunpack.c.l.b16 %v38
  %v136 = vunpack.c.h.b16 %v38
  %v137 = vunpack.c.l.b16 %v39
  %v138 = vunpack.c.l.b16 %v40
  %v139 = vunpack.c.h.b16 %v40
  %v140 = vunpack.c.l.b16 %v41
  %v141 = vunpack.c.h.b16 %v41
  %v142 = vunpack.c.l.b16 %v42
  %v143 = vunpack.c.l.b16 %v43
  %v144 = vunpack.c.h.b16 %v43
  %v145 = vunpack.c.l.b16 %v44
  %v146 = vunpack.c.h.b16 %v44
  %v147 = vunpack.c.l.b16 %v45
  %v148 = vunpack.c.l.b16 %v46
  %v149 = vunpack.c.h.b16 %v46
  %v150 = vunpack.c.l.b16 %v47
  %v151 = vunpack.c.h.b16 %v47
  %v152 = vunpack.c.l.b16 %v48
  %v153 = vpack.c.b16 %v138, %v133
  %v154 = vpack.c.b16 %v139, %v134
  %v155 = vpack.c.b16 %v140, %v135
  %v156 = vpack.c.b16 %v141, %v136
  %v157 = vpack.c.b16 %v142, %v137
  %v158 = vpack.c.b16 %v148, %v143
  %v159 = vpack.c.b16 %v149, %v144
  %v160 = vpack.c.b16 %v150, %v145
  %v161 = vpack.c.b16 %v151, %v146
  %v162 = vpack.c.b16 %v152, %v147
  %v243 = vunpack.c.l.b16 %v49
  %v244 = vunpack.c.l.b16 %v50
  %v245 = vunpack.c.l.b16 %v51
  %v246 = vunpack.c.l.b16 %v52
  %v247 = vunpack.c.l.b16 %v53
  %v248 = vunpack.c.l.b16 %v54
  %v249 = vunpack.c.l.b16 %v55
  %v250 = vunpack.c.l.b16 %v56
  %v251 = vunpack.c.l.b16 %v57
  %v252 = vunpack.c.l.b16 %v58
  %v253 = vunpack.c.l.b16 %v59
  %v254 = vunpack.c.l.b16 %v60
  %v255 = vunpack.c.l.b16 %v61
  %v256 = vunpack.c.l.b16 %v62
  %v257 = vunpack.c.l.b16 %v63
  %v258 = vunpack.c.l.b16 %v64
  %v259 = vunpack.c.l.b16 %v65
  %v260 = vunpack.c.l.b16 %v66
  %v261 = vunpack.c.l.b16 %v67
  %v262 = vunpack.c.l.b16 %v68
  %v263 = vunpack.c.l.b16 %v69
  %v264 = vunpack.c.l.b16 %v70
  %v265 = vunpack.c.l.b16 %v71
  %v266 = vunpack.c.l.b16 %v72
  %v267 = vunpack.c.l.b16 %v73
  %v268 = vunpack.c.l.b16 %v74
  %v269 = vunpack.c.l.b16 %v75
  %v270 = vunpack.c.l.b16 %v76
  %v271 = vunpack.c.l.b16 %v77
  %v272 = vunpack.c.l.b16 %v78
  %v273 = vunpack.c.l.b16 %v79
  %v274 = vunpack.c.l.b16 %v80
  %v275 = vunpack.c.l.b16 %v81
  %v276 = vunpack.c.l.b16 %v82
  %v277 = vunpack.c.l.b16 %v83
  %v278 = vunpack.c.l.b16 %v84
  %v279 = vunpack.c.l.b16 %v85
  %v280 = vunpack.c.l.b16 %v86
  %v281 = vunpack.c.l.b16 %v87
  %v282 = vunpack.c.l.b16 %v88
  %v283 = vunpack.c.l.b16 %v89
  %v284 = vunpack.c.l.b16 %v90
  %v285 = vunpack.c.l.b16 %v91
  %v286 = vunpack.c.l.b16 %v92
  %v287 = vunpack.c.l.b16 %v93
  %v288 = vunpack.c.l.b16 %v94
  %v289 = vunpack.c.l.b16 %v95
  %v290 = vunpack.c.l.b16 %v96
  %v291 = vunpack.c.l.b16 %v97
  %v292 = vunpack.c.l.b16 %v98
  %v293 = vunpack.c.l.b16 %v99
  %v294 = vunpack.c.l.b16 %v100
  %v295 = vunpack.c.l.b16 %v101
  %v296 = vunpack.c.l.b16 %v102
  %v297 = vunpack.c.l.b16 %v103
  %v298 = vunpack.c.l.b16 %v104
  %v299 = vunpack.c.l.b16 %v105
  %v300 = vunpack.c.l.b16 %v106
  %v301 = vunpack.c.l.b16 %v107
  %v302 = vunpack.c.l.b16 %v108
  %v303 = vunpack.c.l.b16 %v109
  %v304 = vunpack.c.l.b16 %v110
  %v305 = vunpack.c.l.b16 %v111
  %v306 = vunpack.c.l.b16 %v112
  %v307 = vunpack.c.l.b16 %v113
  %v308 = vunpack.c.l.b16 %v114
  %v309 = vunpack.c.l.b16 %v115
  %v310 = vunpack.c.l.b16 %v116
  %v311 = vunpack.c.l.b16 %v117
  %v312 = vunpack.c.l.b16 %v118
  %v313 = vunpack.c.l.b16 %v119
  %v314 = vunpack.c.l.b16 %v120
  %v315 = vpack.c.b16 %v244, %v243
  %v316 = vpack.c.b16 %v246, %v245
  %v317 = vpack.c.b16 %v248, %v247
  %v318 = vpack.c.b16 %v250, %v249
  %v319 = vpack.c.b16 %v252, %v251
  %v320 = vpack.c.b16 %v254, %v253
  %v321 = vpack.c.b16 %v256, %v255
  %v322 = vpack.c.b16 %v258, %v257
  %v323 = vpack.c.b16 %v260, %v259
  %v324 = vpack.c.b16 %v262, %v261
  %v325 = vpack.c.b16 %v264, %v263
  %v326 = vpack.c.b16 %v266, %v265
  %v327 = vpack.c.b16 %v268, %v267
  %v328 = vpack.c.b16 %v270, %v269
  %v329 = vpack.c.b16 %v272, %v271
  %v330 = vpack.c.b16 %v274, %v273
  %v331 = vpack.c.b16 %v276, %v275
  %v332 = vpack.c.b16 %v278, %v277
  %v333 = vpack.c.b16 %v280, %v279
  %v334 = vpack.c.b16 %v282, %v281
  %v335 = vpack.c.b16 %v284, %v283
  %v336 = vpack.c.b16 %v286, %v285
  %v337 = vpack.c.b16 %v288, %v287
  %v338 = vpack.c.b16 %v290, %v289
  %v339 = vpack.c.b16 %v292, %v291
  %v340 = vpack.c.b16 %v294, %v293
  %v341 = vpack.c.b16 %v296, %v295
  %v342 = vpack.c.b16 %v298, %v297
  %v343 = vpack.c.b16 %v300, %v299
  %v344 = vpack.c.b16 %v302, %v301
  %v345 = vpack.c.b16 %v304, %v303
  %v346 = vpack.c.b16 %v306, %v305
  %v347 = vpack.c.b16 %v308, %v307
  %v348 = vpack.c.b16 %v310, %v309
  %v349 = vpack.c.b16 %v312, %v311
  %v350 = vpack.c.b16 %v314, %v313
  %vm387 = vcmask 523264
  %v389 = vsel %vm387, %v157, 0
  %v392 = vsel %vm387, %v162, 0
  %394 = vmatprep.subr.bf16.mxu0 0
  %395 = vmatpush1.bf16.msra.mxu0 %v322
  %396 = vmatprep.subr.bf16.mxu0 0
  %397 = vmatpush1.bf16.msra.mxu0 %v321
  %398 = vmatprep.subr.bf16.mxu0 0
  %399 = vmatpush1.bf16.msra.mxu0 %v320
  %400 = vmatprep.subr.bf16.mxu0 0
  %401 = vmatpush1.bf16.msra.mxu0 %v319
  %402 = vmatprep.subr.bf16.mxu0 0
  %403 = vmatpush1.bf16.msra.mxu0 %v318
  %404 = vmatprep.subr.bf16.mxu0 0
  %405 = vmatpush1.bf16.msra.mxu0 %v317
  %406 = vmatprep.subr.bf16.mxu0 0
  %407 = vmatpush1.bf16.msra.mxu0 %v316
  %408 = vmatprep.subr.bf16.mxu0 0
  %409 = vmatpush1.bf16.msra.mxu0 %v315
  %410 = vmatprep.subr.bf16.mxu0 0
  %411 = vmatpush2.bf16.msra.mxu0 %v330
  %412 = vmatprep.subr.bf16.mxu0 0
  %413 = vmatpush2.bf16.msra.mxu0 %v329
  %414 = vmatprep.subr.bf16.mxu0 0
  %415 = vmatpush2.bf16.msra.mxu0 %v328
  %416 = vmatprep.subr.bf16.mxu0 0
  %417 = vmatpush2.bf16.msra.mxu0 %v327
  %418 = vmatprep.subr.bf16.mxu0 0
  %419 = vmatpush2.bf16.msra.mxu0 %v326
  %420 = vmatprep.subr.bf16.mxu0 0
  %421 = vmatpush2.bf16.msra.mxu0 %v325
  %422 = vmatprep.subr.bf16.mxu0 0
  %423 = vmatpush2.bf16.msra.mxu0 %v324
  %424 = vmatprep.subr.bf16.mxu0 0
  %425 = vmatpush2.bf16.msra.mxu0 %v323
  %426 = vmatprep.mubr.bf16.mxu0 %v154
  %427 = vmatmul.mubr.bf16.gmra.mxu0 %v153
  %v428 = vpop.f32.mrf.mxu0
  %v429 = vadd.f32 0.0, %v428
  %v430 = vpop.f32.mrf.mxu0
  %v431 = vpop.f32.mrf.mxu0
  %v432 = vadd.f32 0.0, %v431
  %v433 = vpop.f32.mrf.mxu0
  %434 = vmatprep.mubr.bf16.mxu0 %v159
  %435 = vmatmul.mubr.bf16.gmra.mxu0 %v158
  %v436 = vpop.f32.mrf.mxu0
  %v437 = vadd.f32 0.0, %v436
  %v438 = vpop.f32.mrf.mxu0
  %v439 = vpop.f32.mrf.mxu0
  %v440 = vadd.f32 0.0, %v439
  %v441 = vpop.f32.mrf.mxu0
  %442 = vdwg.mxu0
  %443 = vmatprep.subr.bf16.mxu0 0
  %444 = vmatpush1.bf16.msra.mxu0 %v338
  %445 = vmatprep.subr.bf16.mxu0 0
  %446 = vmatpush1.bf16.msra.mxu0 %v337
  %447 = vmatprep.subr.bf16.mxu0 0
  %448 = vmatpush1.bf16.msra.mxu0 %v336
  %449 = vmatprep.subr.bf16.mxu0 0
  %450 = vmatpush1.bf16.msra.mxu0 %v335
  %451 = vmatprep.subr.bf16.mxu0 0
  %452 = vmatpush1.bf16.msra.mxu0 %v334
  %453 = vmatprep.subr.bf16.mxu0 0
  %454 = vmatpush1.bf16.msra.mxu0 %v333
  %455 = vmatprep.subr.bf16.mxu0 0
  %456 = vmatpush1.bf16.msra.mxu0 %v332
  %457 = vmatprep.subr.bf16.mxu0 0
  %458 = vmatpush1.bf16.msra.mxu0 %v331
  %459 = vmatprep.subr.bf16.mxu0 0
  %460 = vmatpush2.bf16.msra.mxu0 %v346
  %461 = vmatprep.subr.bf16.mxu0 0
  %462 = vmatpush2.bf16.msra.mxu0 %v345
  %463 = vmatprep.subr.bf16.mxu0 0
  %464 = vmatpush2.bf16.msra.mxu0 %v344
  %465 = vmatprep.subr.bf16.mxu0 0
  %466 = vmatpush2.bf16.msra.mxu0 %v343
  %467 = vmatprep.subr.bf16.mxu0 0
  %468 = vmatpush2.bf16.msra.mxu0 %v342
  %469 = vmatprep.subr.bf16.mxu0 0
  %470 = vmatpush2.bf16.msra.mxu0 %v341
  %471 = vmatprep.subr.bf16.mxu0 0
  %472 = vmatpush2.bf16.msra.mxu0 %v340
  %473 = vmatprep.subr.bf16.mxu0 0
  %474 = vmatpush2.bf16.msra.mxu0 %v339
  %475 = vmatprep.mubr.bf16.mxu0 %v156
  %476 = vmatmul.mubr.bf16.gmra.mxu0 %v155
  %v477 = vpop.f32.mrf.mxu0
  %v478 = vadd.f32 %v429, %v477
  %v479 = vpop.f32.mrf.mxu0
  %v480 = vpop.f32.mrf.mxu0
  %v481 = vadd.f32 %v432, %v480
  %v482 = vpop.f32.mrf.mxu0
  %483 = vmatprep.mubr.bf16.mxu0 %v161
  %484 = vmatmul.mubr.bf16.gmra.mxu0 %v160
  %v485 = vpop.f32.mrf.mxu0
  %v486 = vadd.f32 %v437, %v485
  %v487 = vpop.f32.mrf.mxu0
  %v488 = vpop.f32.mrf.mxu0
  %v489 = vadd.f32 %v440, %v488
  %v490 = vpop.f32.mrf.mxu0
  %491 = vdwg.mxu0
  %492 = vmatprep.subr.bf16.mxu0 0
  %493 = vmatpush1.bf16.msra.mxu0 0
  %494 = vmatprep.subr.bf16.mxu0 0
  %495 = vmatpush1.bf16.msra.mxu0 0
  %496 = vmatprep.subr.bf16.mxu0 0
  %497 = vmatpush1.bf16.msra.mxu0 0
  %498 = vmatprep.subr.bf16.mxu0 0
  %499 = vmatpush1.bf16.msra.mxu0 0
  %500 = vmatprep.subr.bf16.mxu0 0
  %501 = vmatpush1.bf16.msra.mxu0 %v350
  %502 = vmatprep.subr.bf16.mxu0 0
  %503 = vmatpush1.bf16.msra.mxu0 %v349
  %504 = vmatprep.subr.bf16.mxu0 0
  %505 = vmatpush1.bf16.msra.mxu0 %v348
  %506 = vmatprep.subr.bf16.mxu0 0
  %507 = vmatpush1.bf16.msra.mxu0 %v347
  %508 = vmatprep.subr.bf16.mxu0 0
  %509 = vmatpush2.bf16.msra.mxu0 0
  %510 = vmatprep.subr.bf16.mxu0 0
  %511 = vmatpush2.bf16.msra.mxu0 0
  %512 = vmatprep.subr.bf16.mxu0 0
  %513 = vmatpush2.bf16.msra.mxu0 0
  %514 = vmatprep.subr.bf16.mxu0 0
  %515 = vmatpush2.bf16.msra.mxu0 0
  %516 = vmatprep.subr.bf16.mxu0 0
  %517 = vmatpush2.bf16.msra.mxu0 0
  %518 = vmatprep.subr.bf16.mxu0 0
  %519 = vmatpush2.bf16.msra.mxu0 0
  %520 = vmatprep.subr.bf16.mxu0 0
  %521 = vmatpush2.bf16.msra.mxu0 0
  %522 = vmatprep.subr.bf16.mxu0 0
  %523 = vmatpush2.bf16.msra.mxu0 0
  %524 = vmatprep.mubr.bf16.mxu0 0
  %525 = vmatmul.mubr.bf16.gmra.mxu0 %v389
  %v526 = vpop.f32.mrf.mxu0
  %v527 = vadd.f32 %v478, %v526
  %v528 = vpop.f32.mrf.mxu0
  %v529 = vpop.f32.mrf.mxu0
  %v530 = vadd.f32 %v481, %v529
  %v531 = vpop.f32.mrf.mxu0
  %532 = vmatprep.mubr.bf16.mxu0 0
  %533 = vmatmul.mubr.bf16.gmra.mxu0 %v392
  %v534 = vpop.f32.mrf.mxu0
  %v535 = vadd.f32 %v486, %v534
  %v536 = vpop.f32.mrf.mxu0
  %v537 = vpop.f32.mrf.mxu0
  %v538 = vadd.f32 %v489, %v537
  %v539 = vpop.f32.mrf.mxu0
  %540 = vdwg.mxu0
  %v541 = vadd.f32 %v33, %v527
  %v542 = vadd.f32 %v34, %v530
  %v543 = vadd.f32 %v35, %v535
  %v544 = vadd.f32 %v36, %v538
  %545 = vst.msk [vmem:[#allocation2] sm:$0xff] %vm387, %v541
  %546 = vst.msk [vmem:[#allocation2 + $0x8] sm:$0xff] %vm387, %v542
  %547 = vst.msk [vmem:[#allocation2 + $0x10] sm:$0xff] %vm387, %v543
  %548 = vst.msk [vmem:[#allocation2 + $0x18] sm:$0xff] %vm387, %v544
  // Predicated region
  $region18: #{unet_generator.17} parent=0 // pred_check
    %p549 = pneg %p17
  $region19: #{unet_generator.17} parent=0 // pred_check_branch
    %551 = sbr.rel (%p549) target = $region21
  $region20: #{unet_generator.17} parent=0 // pred_region
    %v552 = vld [vmem:[#allocation2] sm:$0xff]
    %v553 = vld [vmem:[#allocation2 + $0x8] sm:$0xff]
    %v554 = vld [vmem:[#allocation2 + $0x10] sm:$0xff]
    %v555 = vld [vmem:[#allocation2 + $0x18] sm:$0xff]
    %v556 = vpack.c.bf16 %v553, %v552
    %v557 = vpack.c.bf16 %v555, %v554
    %v560 = vunpack.c.l.b16 %v556
    %v561 = vunpack.c.h.b16 %v556
    %v562 = vunpack.c.l.b16 %v557
    %v563 = vunpack.c.h.b16 %v557
    %v564 = vpack.c.b16 %v560, %v560
    %v565 = vpack.c.b16 %v561, %v561
    %v566 = vpack.c.b16 %v562, %v562
    %v567 = vpack.c.b16 %v563, %v563
    %vm572 = vcmask 519168
    %573 = vst.msk [vmem:[%s3] sm:$0xf] %vm572, %v564
    %574 = vst.msk [vmem:[%s3 + $0x4] sm:$0xf] %vm572, %v565
    %575 = vst.msk [vmem:[%s3 + $0x8] sm:$0xf] %vm572, %v566
    %576 = vst.msk [vmem:[%s3 + $0xc] sm:$0xf] %vm572, %v567
    %v577 = vsel %vm387, %v552, 0.0
    %v578 = vsel %vm387, %v553, 0.0
    %v579 = vadd.f32 %v577, %v578
    %v580 = vsel %vm387, %v554, 0.0
    %v581 = vadd.f32 %v579, %v580
    %v582 = vsel %vm387, %v555, 0.0
    %v583 = vadd.f32 %v581, %v582
    %v584 = vrot.slane %v583, 4
    %v585 = vadd.f32 %v583, %v584
    %v586 = vrot.slane %v585, 2
    %v587 = vadd.f32 %v585, %v586
    %v588 = vrot.slane %v587, 1
    %v589 = vadd.f32 %v587, %v588
    %vm590 = vcmask 516096
    %591 = vst.msk [vmem:[%s4] sm:$0x1] %vm590, %v589
    %v592 = vmul.f32 %v552, %v552
    %v593 = vmul.f32 %v553, %v553
    %v594 = vmul.f32 %v554, %v554
    %v595 = vmul.f32 %v555, %v555
    %v596 = vsel %vm387, %v592, 0.0
    %v597 = vsel %vm387, %v593, 0.0
    %v598 = vadd.f32 %v596, %v597
    %v599 = vsel %vm387, %v594, 0.0
    %v600 = vadd.f32 %v598, %v599
    %v601 = vsel %vm387, %v595, 0.0
    %v602 = vadd.f32 %v600, %v601
    %v603 = vrot.slane %v602, 4
    %v604 = vadd.f32 %v602, %v603
    %v605 = vrot.slane %v604, 2
    %v606 = vadd.f32 %v604, %v605
    %v607 = vrot.slane %v606, 1
    %v608 = vadd.f32 %v606, %v607
    %609 = vst.msk [vmem:[%s4 + $0x1] sm:$0x1] %vm590, %v608
  $region21: #{unet_generator.17} parent=0 // pred_fallthru
    _
  // Predicated region
  $region22: #{unet_generator.17} parent=0 // pred_check
    _
  $region23: #{unet_generator.17} parent=0 // pred_check_branch
    %611 = sbr.rel (0) target = $region25
  $region24: #{unet_generator.17} parent=0 // pred_region
    _
  $region25: #{unet_generator.17} parent=0 // pred_fallthru
    _
  // Predicated region
  $region26: #{unet_generator.17} parent=0 // pred_check
    _
  $region27: #{unet_generator.17} parent=0 // pred_check_branch
    %613 = sbr.rel (0) target = $region29
  $region28: #{unet_generator.17} parent=0 // pred_region
    _
  $region29: #{unet_generator.17} parent=0 // pred_fallthru
    _
  // Predicated region
  $region30: #{unet_generator.17} parent=0 // pred_check
    _
  $region31: #{unet_generator.17} parent=0 // pred_check_branch
    %615 = sbr.rel (0) target = $region33
  $region32: #{unet_generator.17} parent=0 // pred_region
    _
  $region33: #{unet_generator.17} parent=0 // pred_fallthru
    _
  // Predicated region
  $region34: #{unet_generator.17} parent=0 // pred_check
    _
  $region35: #{unet_generator.17} parent=0 // pred_check_branch
    %617 = sbr.rel (0) target = $region37
  $region36: #{unet_generator.17} parent=0 // pred_region
    _
  $region37: #{unet_generator.17} parent=0 // pred_fallthru
    _

// kernel: tile.44
$region0: #{tile.44}
  %s0 = inlined_call_operand.vmem [shape: f32[4,8], index: 0, kind: input, shape index: {}]
  %s1 = inlined_call_operand.vmem [shape: f32[1,32], index: 1, kind: output, shape index: {}]
  $region1: #{tile.44} parent=0
    #allocation0 [shape = 'u8[4096]{0}', space=vmem, size = 0x1000, scoped, tag = 'scoped mem for output reshape']
    #allocation1 [shape = 'u8[4096]{0}', space=vmem, size = 0x1000, scoped, tag = 'scoped mem for input reshape']
    %s3 = sshll.u32 1, 4
    %s4 = ssub.s32 %s3, 1
    %v5 = vld [vmem:[%s0] sm:%s4]
    %6 = vst [vmem:[#allocation1] sm:%s4] %v5
    %v7 = vld [vmem:[#allocation1] sm:$0x1]
    %vm8 = vcmask 64512
    %9 = vst.msk [vmem:[#allocation0] sm:$0x1] %vm8, %v7
    %s10 = scalar_lea.vmem [#allocation1], 3
    %v11 = vld [vmem:[%s10] sm:$0x1]
    %12 = vrot.lane.b32.xlu0 %v11, 24
    %v13 = vpop.permute.xlu0 %12
    %vm14 = vcmask 261312
    %15 = vst.msk [vmem:[#allocation0] sm:$0x1] %vm14, %v13
    %s16 = scalar_lea.vmem [#allocation1], 2
    %v17 = vld [vmem:[%s16] sm:$0x1]
    %18 = vrot.lane.b32.xlu0 %v17, 16
    %v19 = vpop.permute.xlu0 %18
    %vm20 = vcmask 195712
    %21 = vst.msk [vmem:[#allocation0] sm:$0x1] %vm20, %v19
    %s22 = scalar_lea.vmem [#allocation1], 1
    %v23 = vld [vmem:[%s22] sm:$0x1]
    %24 = vrot.lane.b32.xlu0 %v23, 8
    %v25 = vpop.permute.xlu0 %24
    %vm26 = vcmask 130112
    %27 = vst.msk [vmem:[#allocation0] sm:$0x1] %vm26, %v25
    %s29 = sshll.u32 1, 1
    %s30 = ssub.s32 %s29, 1
    %v32 = vld [vmem:[#allocation0] sm:%s30]
    %s33 = sshll.u32 1, 1
    %s34 = ssub.s32 %s33, 1
    %35 = vst [vmem:[%s1] sm:%s34] %v32

// kernel: unet_generator.18
$region0: #{unet_generator.18}
  #allocation0 [shape = 'u32[]', space=smem, size = 0x4, offset = 0x4, fixed_abs, tag = 'smem constant byte address 0x4 - core index']
  #allocation1 [shape = 'u32[144,128]{1,0:T(1,128)}', space=vmem, size = 0x12000, scoped, tag = 'internal scratch']
  #allocation2 [shape = 'f32[128,32]{1,0:T(8,128)}', space=vmem, size = 0x10000, scoped, tag = 'scratch operand']
  %s0 = inlined_call_operand.vmem [shape: bf16[128,288], index: 0, kind: input, shape index: {}]
  %s1 = inlined_call_operand.vmem [shape: bf16[288,32], index: 1, kind: input, shape index: {}]
  %s2 = inlined_call_operand.vmem [shape: f32[1,32], index: 2, kind: input, shape index: {}]
  %s3 = inlined_call_operand.vmem [shape: bf16[128,32], index: 3, kind: output, shape index: {0}]
  %s4 = inlined_call_operand.vmem [shape: f32[1,2,32], index: 4, kind: output, shape index: {1}]
  %5 = xla_tuple %s3, %s4
  %s6 = sld [smem:[#allocation0]]
  $region38: #{unet_generator.18} parent=0
    _
  %s8 = ssub.s32 1, %s6
  %s9 = scalar_select 0, %s8, %s6
  // Predicated region
  $region2: #{unet_generator.18} parent=0 // pred_check
    _
  $region3: #{unet_generator.18} parent=0 // pred_check_branch
    %11 = sbr.rel (0) target = $region5
  $region4: #{unet_generator.18} parent=0 // pred_region
    _
  $region5: #{unet_generator.18} parent=0 // pred_fallthru
    _
  // Predicated region
  $region6: #{unet_generator.18} parent=0 // pred_check
    _
  $region7: #{unet_generator.18} parent=0 // pred_check_branch
    %13 = sbr.rel (0) target = $region9
  $region8: #{unet_generator.18} parent=0 // pred_region
    _
  $region9: #{unet_generator.18} parent=0 // pred_fallthru
    _
  // Predicated region
  $region10: #{unet_generator.18} parent=0 // pred_check
    _
  $region11: #{unet_generator.18} parent=0 // pred_check_branch
    %15 = sbr.rel (0) target = $region13
  $region12: #{unet_generator.18} parent=0 // pred_region
    _
  $region13: #{unet_generator.18} parent=0 // pred_fallthru
    _
  %p17 = scmp.eq.s32.totalorder 0, 0
  // Predicated region
  $region14: #{unet_generator.18} parent=0 // pred_check
    %p18 = pneg %p17
  $region15: #{unet_generator.18} parent=0 // pred_check_branch
    %20 = sbr.rel (%p18) target = $region17
  $region16: #{unet_generator.18} parent=0 // pred_region
    %v21 = vld [vmem:[%s2] sm:$0x1]
    %v23 = vlaneseq
    %v24 = vshrl.u32 %v23, 7
    %v25 = vsub.s32 0, %v24
    %v26 = vrot.slane %v21, %v25
    %vm28 = vcmask 261120
    %29 = vst.msk [vmem:[#allocation2] sm:$0xff] %vm28, %v26
    %30 = vst.msk [vmem:[#allocation2 + $0x8] sm:$0xff] %vm28, %v26
    %31 = vst.msk [vmem:[#allocation2 + $0x10] sm:$0xff] %vm28, %v26
    %32 = vst.msk [vmem:[#allocation2 + $0x18] sm:$0xff] %vm28, %v26
    %33 = vst.msk [vmem:[#allocation2 + $0x20] sm:$0xff] %vm28, %v26
    %34 = vst.msk [vmem:[#allocation2 + $0x28] sm:$0xff] %vm28, %v26
    %35 = vst.msk [vmem:[#allocation2 + $0x30] sm:$0xff] %vm28, %v26
    %36 = vst.msk [vmem:[#allocation2 + $0x38] sm:$0xff] %vm28, %v26
    %37 = vst.msk [vmem:[#allocation2 + $0x40] sm:$0xff] %vm28, %v26
    %38 = vst.msk [vmem:[#allocation2 + $0x48] sm:$0xff] %vm28, %v26
    %39 = vst.msk [vmem:[#allocation2 + $0x50] sm:$0xff] %vm28, %v26
    %40 = vst.msk [vmem:[#allocation2 + $0x58] sm:$0xff] %vm28, %v26
    %41 = vst.msk [vmem:[#allocation2 + $0x60] sm:$0xff] %vm28, %v26
    %42 = vst.msk [vmem:[#allocation2 + $0x68] sm:$0xff] %vm28, %v26
    %43 = vst.msk [vmem:[#allocation2 + $0x70] sm:$0xff] %vm28, %v26
    %44 = vst.msk [vmem:[#allocation2 + $0x78] sm:$0xff] %vm28, %v26
  $region17: #{unet_generator.18} parent=0 // pred_fallthru
    _
  %v45 = vld [vmem:[#allocation2] sm:$0xff]
  %v46 = vld [vmem:[#allocation2 + $0x8] sm:$0xff]
  %v47 = vld [vmem:[#allocation2 + $0x10] sm:$0xff]
  %v48 = vld [vmem:[#allocation2 + $0x18] sm:$0xff]
  %v49 = vld [vmem:[#allocation2 + $0x20] sm:$0xff]
  %v50 = vld [vmem:[#allocation2 + $0x28] sm:$0xff]
  %v51 = vld [vmem:[#allocation2 + $0x30] sm:$0xff]
  %v52 = vld [vmem:[#allocation2 + $0x38] sm:$0xff]
  %v53 = vld [vmem:[#allocation2 + $0x40] sm:$0xff]
  %v54 = vld [vmem:[#allocation2 + $0x48] sm:$0xff]
  %v55 = vld [vmem:[#allocation2 + $0x50] sm:$0xff]
  %v56 = vld [vmem:[#allocation2 + $0x58] sm:$0xff]
  %v57 = vld [vmem:[#allocation2 + $0x60] sm:$0xff]
  %v58 = vld [vmem:[#allocation2 + $0x68] sm:$0xff]
  %v59 = vld [vmem:[#allocation2 + $0x70] sm:$0xff]
  %v60 = vld [vmem:[#allocation2 + $0x78] sm:$0xff]
  %v61 = vld [vmem:[%s0] sm:$0xff]
  %v62 = vld [vmem:[%s0 + $0x8] sm:$0xf]
  %v63 = vld [vmem:[%s0 + $0xc] sm:$0xff]
  %v64 = vld [vmem:[%s0 + $0x14] sm:$0xf]
  %v65 = vld [vmem:[%s0 + $0x18] sm:$0xff]
  %v66 = vld [vmem:[%s0 + $0x20] sm:$0xf]
  %v67 = vld [vmem:[%s0 + $0x24] sm:$0xff]
  %v68 = vld [vmem:[%s0 + $0x2c] sm:$0xf]
  %v69 = vld [vmem:[%s0 + $0x30] sm:$0xff]
  %v70 = vld [vmem:[%s0 + $0x38] sm:$0xf]
  %v71 = vld [vmem:[%s0 + $0x3c] sm:$0xff]
  %v72 = vld [vmem:[%s0 + $0x44] sm:$0xf]
  %v73 = vld [vmem:[%s0 + $0x48] sm:$0xff]
  %v74 = vld [vmem:[%s0 + $0x50] sm:$0xf]
  %v75 = vld [vmem:[%s0 + $0x54] sm:$0xff]
  %v76 = vld [vmem:[%s0 + $0x5c] sm:$0xf]
  %v77 = vld [vmem:[%s0 + $0x60] sm:$0xff]
  %v78 = vld [vmem:[%s0 + $0x68] sm:$0xf]
  %v79 = vld [vmem:[%s0 + $0x6c] sm:$0xff]
  %v80 = vld [vmem:[%s0 + $0x74] sm:$0xf]
  %v81 = vld [vmem:[%s0 + $0x78] sm:$0xff]
  %v82 = vld [vmem:[%s0 + $0x80] sm:$0xf]
  %v83 = vld [vmem:[%s0 + $0x84] sm:$0xff]
  %v84 = vld [vmem:[%s0 + $0x8c] sm:$0xf]
  %v85 = vld [vmem:[%s0 + $0x90] sm:$0xff]
  %v86 = vld [vmem:[%s0 + $0x98] sm:$0xf]
  %v87 = vld [vmem:[%s0 + $0x9c] sm:$0xff]
  %v88 = vld [vmem:[%s0 + $0xa4] sm:$0xf]
  %v89 = vld [vmem:[%s0 + $0xa8] sm:$0xff]
  %v90 = vld [vmem:[%s0 + $0xb0] sm:$0xf]
  %v91 = vld [vmem:[%s0 + $0xb4] sm:$0xff]
  %v92 = vld [vmem:[%s0 + $0xbc] sm:$0xf]
  %v93 = vld [vmem:[%s1] sm:$0xf]
  %v94 = vld [vmem:[%s1 + $0x4] sm:$0xf]
  %v95 = vld [vmem:[%s1 + $0x8] sm:$0xf]
  %v96 = vld [vmem:[%s1 + $0xc] sm:$0xf]
  %v97 = vld [vmem:[%s1 + $0x10] sm:$0xf]
  %v98 = vld [vmem:[%s1 + $0x14] sm:$0xf]
  %v99 = vld [vmem:[%s1 + $0x18] sm:$0xf]
  %v100 = vld [vmem:[%s1 + $0x1c] sm:$0xf]
  %v101 = vld [vmem:[%s1 + $0x20] sm:$0xf]
  %v102 = vld [vmem:[%s1 + $0x24] sm:$0xf]
  %v103 = vld [vmem:[%s1 + $0x28] sm:$0xf]
  %v104 = vld [vmem:[%s1 + $0x2c] sm:$0xf]
  %v105 = vld [vmem:[%s1 + $0x30] sm:$0xf]
  %v106 = vld [vmem:[%s1 + $0x34] sm:$0xf]
  %v107 = vld [vmem:[%s1 + $0x38] sm:$0xf]
  %v108 = vld [vmem:[%s1 + $0x3c] sm:$0xf]
  %v109 = vld [vmem:[%s1 + $0x40] sm:$0xf]
  %v110 = vld [vmem:[%s1 + $0x44] sm:$0xf]
  %v111 = vld [vmem:[%s1 + $0x48] sm:$0xf]
  %v112 = vld [vmem:[%s1 + $0x4c] sm:$0xf]
  %v113 = vld [vmem:[%s1 + $0x50] sm:$0xf]
  %v114 = vld [vmem:[%s1 + $0x54] sm:$0xf]
  %v115 = vld [vmem:[%s1 + $0x58] sm:$0xf]
  %v116 = vld [vmem:[%s1 + $0x5c] sm:$0xf]
  %v117 = vld [vmem:[%s1 + $0x60] sm:$0xf]
  %v118 = vld [vmem:[%s1 + $0x64] sm:$0xf]
  %v119 = vld [vmem:[%s1 + $0x68] sm:$0xf]
  %v120 = vld [vmem:[%s1 + $0x6c] sm:$0xf]
  %v121 = vld [vmem:[%s1 + $0x70] sm:$0xf]
  %v122 = vld [vmem:[%s1 + $0x74] sm:$0xf]
  %v123 = vld [vmem:[%s1 + $0x78] sm:$0xf]
  %v124 = vld [vmem:[%s1 + $0x7c] sm:$0xf]
  %v125 = vld [vmem:[%s1 + $0x80] sm:$0xf]
  %v126 = vld [vmem:[%s1 + $0x84] sm:$0xf]
  %v127 = vld [vmem:[%s1 + $0x88] sm:$0xf]
  %v128 = vld [vmem:[%s1 + $0x8c] sm:$0xf]
  %v161 = vunpack.c.l.b16 %v61
  %v162 = vunpack.c.h.b16 %v61
  %v163 = vunpack.c.l.b16 %v62
  %v164 = vunpack.c.l.b16 %v63
  %v165 = vunpack.c.h.b16 %v63
  %v166 = vunpack.c.l.b16 %v64
  %v167 = vunpack.c.l.b16 %v65
  %v168 = vunpack.c.h.b16 %v65
  %v169 = vunpack.c.l.b16 %v66
  %v170 = vunpack.c.l.b16 %v67
  %v171 = vunpack.c.h.b16 %v67
  %v172 = vunpack.c.l.b16 %v68
  %v173 = vunpack.c.l.b16 %v69
  %v174 = vunpack.c.h.b16 %v69
  %v175 = vunpack.c.l.b16 %v70
  %v176 = vunpack.c.l.b16 %v71
  %v177 = vunpack.c.h.b16 %v71
  %v178 = vunpack.c.l.b16 %v72
  %v179 = vunpack.c.l.b16 %v73
  %v180 = vunpack.c.h.b16 %v73
  %v181 = vunpack.c.l.b16 %v74
  %v182 = vunpack.c.l.b16 %v75
  %v183 = vunpack.c.h.b16 %v75
  %v184 = vunpack.c.l.b16 %v76
  %v185 = vunpack.c.l.b16 %v77
  %v186 = vunpack.c.h.b16 %v77
  %v187 = vunpack.c.l.b16 %v78
  %v188 = vunpack.c.l.b16 %v79
  %v189 = vunpack.c.h.b16 %v79
  %v190 = vunpack.c.l.b16 %v80
  %v191 = vunpack.c.l.b16 %v81
  %v192 = vunpack.c.h.b16 %v81
  %v193 = vunpack.c.l.b16 %v82
  %v194 = vunpack.c.l.b16 %v83
  %v195 = vunpack.c.h.b16 %v83
  %v196 = vunpack.c.l.b16 %v84
  %v197 = vunpack.c.l.b16 %v85
  %v198 = vunpack.c.h.b16 %v85
  %v199 = vunpack.c.l.b16 %v86
  %v200 = vunpack.c.l.b16 %v87
  %v201 = vunpack.c.h.b16 %v87
  %v202 = vunpack.c.l.b16 %v88
  %v203 = vunpack.c.l.b16 %v89
  %v204 = vunpack.c.h.b16 %v89
  %v205 = vunpack.c.l.b16 %v90
  %v206 = vunpack.c.l.b16 %v91
  %v207 = vunpack.c.h.b16 %v91
  %v208 = vunpack.c.l.b16 %v92
  %v209 = vpack.c.b16 %v164, %v161
  %v210 = vpack.c.b16 %v165, %v162
  %v211 = vpack.c.b16 %v166, %v163
  %v212 = vpack.c.b16 %v170, %v167
  %v213 = vpack.c.b16 %v171, %v168
  %v214 = vpack.c.b16 %v172, %v169
  %v215 = vpack.c.b16 %v176, %v173
  %v216 = vpack.c.b16 %v177, %v174
  %v217 = vpack.c.b16 %v178, %v175
  %v218 = vpack.c.b16 %v182, %v179
  %v219 = vpack.c.b16 %v183, %v180
  %v220 = vpack.c.b16 %v184, %v181
  %v221 = vpack.c.b16 %v188, %v185
  %v222 = vpack.c.b16 %v189, %v186
  %v223 = vpack.c.b16 %v190, %v187
  %v224 = vpack.c.b16 %v194, %v191
  %v225 = vpack.c.b16 %v195, %v192
  %v226 = vpack.c.b16 %v196, %v193
  %v227 = vpack.c.b16 %v200, %v197
  %v228 = vpack.c.b16 %v201, %v198
  %v229 = vpack.c.b16 %v202, %v199
  %v230 = vpack.c.b16 %v206, %v203
  %v231 = vpack.c.b16 %v207, %v204
  %v232 = vpack.c.b16 %v208, %v205
  %v285 = vunpack.c.l.b16 %v93
  %v286 = vunpack.c.l.b16 %v94
  %v287 = vunpack.c.l.b16 %v95
  %v288 = vunpack.c.l.b16 %v96
  %v289 = vunpack.c.l.b16 %v97
  %v290 = vunpack.c.l.b16 %v98
  %v291 = vunpack.c.l.b16 %v99
  %v292 = vunpack.c.l.b16 %v100
  %v293 = vunpack.c.l.b16 %v101
  %v294 = vunpack.c.l.b16 %v102
  %v295 = vunpack.c.l.b16 %v103
  %v296 = vunpack.c.l.b16 %v104
  %v297 = vunpack.c.l.b16 %v105
  %v298 = vunpack.c.l.b16 %v106
  %v299 = vunpack.c.l.b16 %v107
  %v300 = vunpack.c.l.b16 %v108
  %v301 = vunpack.c.l.b16 %v109
  %v302 = vunpack.c.l.b16 %v110
  %v303 = vunpack.c.l.b16 %v111
  %v304 = vunpack.c.l.b16 %v112
  %v305 = vunpack.c.l.b16 %v113
  %v306 = vunpack.c.l.b16 %v114
  %v307 = vunpack.c.l.b16 %v115
  %v308 = vunpack.c.l.b16 %v116
  %v309 = vunpack.c.l.b16 %v117
  %v310 = vunpack.c.l.b16 %v118
  %v311 = vunpack.c.l.b16 %v119
  %v312 = vunpack.c.l.b16 %v120
  %v313 = vunpack.c.l.b16 %v121
  %v314 = vunpack.c.l.b16 %v122
  %v315 = vunpack.c.l.b16 %v123
  %v316 = vunpack.c.l.b16 %v124
  %v317 = vunpack.c.l.b16 %v125
  %v318 = vunpack.c.l.b16 %v126
  %v319 = vunpack.c.l.b16 %v127
  %v320 = vunpack.c.l.b16 %v128
  %v321 = vpack.c.b16 %v286, %v285
  %v322 = vpack.c.b16 %v288, %v287
  %v323 = vpack.c.b16 %v290, %v289
  %v324 = vpack.c.b16 %v292, %v291
  %v325 = vpack.c.b16 %v294, %v293
  %v326 = vpack.c.b16 %v296, %v295
  %v327 = vpack.c.b16 %v298, %v297
  %v328 = vpack.c.b16 %v300, %v299
  %v329 = vpack.c.b16 %v302, %v301
  %v330 = vpack.c.b16 %v304, %v303
  %v331 = vpack.c.b16 %v306, %v305
  %v332 = vpack.c.b16 %v308, %v307
  %v333 = vpack.c.b16 %v310, %v309
  %v334 = vpack.c.b16 %v312, %v311
  %v335 = vpack.c.b16 %v314, %v313
  %v336 = vpack.c.b16 %v316, %v315
  %v337 = vpack.c.b16 %v318, %v317
  %v338 = vpack.c.b16 %v320, %v319
  %vm357 = vcmask 261120
  %v359 = vsel %vm357, %v211, 0
  %v362 = vsel %vm357, %v214, 0
  %v365 = vsel %vm357, %v217, 0
  %v368 = vsel %vm357, %v220, 0
  %v371 = vsel %vm357, %v223, 0
  %v374 = vsel %vm357, %v226, 0
  %v377 = vsel %vm357, %v229, 0
  %v380 = vsel %vm357, %v232, 0
  %382 = vmatprep.subr.bf16.mxu0 0
  %383 = vmatpush1.bf16.msra.mxu0 %v328
  %384 = vmatprep.subr.bf16.mxu0 0
  %385 = vmatpush1.bf16.msra.mxu0 %v327
  %386 = vmatprep.subr.bf16.mxu0 0
  %387 = vmatpush1.bf16.msra.mxu0 %v326
  %388 = vmatprep.subr.bf16.mxu0 0
  %389 = vmatpush1.bf16.msra.mxu0 %v325
  %390 = vmatprep.subr.bf16.mxu0 0
  %391 = vmatpush1.bf16.msra.mxu0 %v324
  %392 = vmatprep.subr.bf16.mxu0 0
  %393 = vmatpush1.bf16.msra.mxu0 %v323
  %394 = vmatprep.subr.bf16.mxu0 0
  %395 = vmatpush1.bf16.msra.mxu0 %v322
  %396 = vmatprep.subr.bf16.mxu0 0
  %397 = vmatpush1.bf16.msra.mxu0 %v321
  %398 = vmatprep.subr.bf16.mxu0 0
  %399 = vmatpush2.bf16.msra.mxu0 %v336
  %400 = vmatprep.subr.bf16.mxu0 0
  %401 = vmatpush2.bf16.msra.mxu0 %v335
  %402 = vmatprep.subr.bf16.mxu0 0
  %403 = vmatpush2.bf16.msra.mxu0 %v334
  %404 = vmatprep.subr.bf16.mxu0 0
  %405 = vmatpush2.bf16.msra.mxu0 %v333
  %406 = vmatprep.subr.bf16.mxu0 0
  %407 = vmatpush2.bf16.msra.mxu0 %v332
  %408 = vmatprep.subr.bf16.mxu0 0
  %409 = vmatpush2.bf16.msra.mxu0 %v331
  %410 = vmatprep.subr.bf16.mxu0 0
  %411 = vmatpush2.bf16.msra.mxu0 %v330
  %412 = vmatprep.subr.bf16.mxu0 0
  %413 = vmatpush2.bf16.msra.mxu0 %v329
  %414 = vmatprep.mubr.bf16.mxu0 %v210
  %415 = vmatmul.mubr.bf16.gmra.mxu0 %v209
  %v416 = vpop.f32.mrf.mxu0
  %v417 = vadd.f32 0.0, %v416
  %v418 = vpop.f32.mrf.mxu0
  %v419 = vpop.f32.mrf.mxu0
  %v420 = vadd.f32 0.0, %v419
  %v421 = vpop.f32.mrf.mxu0
  %422 = vmatprep.mubr.bf16.mxu0 %v213
  %423 = vmatmul.mubr.bf16.gmra.mxu0 %v212
  %v424 = vpop.f32.mrf.mxu0
  %v425 = vadd.f32 0.0, %v424
  %v426 = vpop.f32.mrf.mxu0
  %v427 = vpop.f32.mrf.mxu0
  %v428 = vadd.f32 0.0, %v427
  %v429 = vpop.f32.mrf.mxu0
  %430 = vmatprep.mubr.bf16.mxu0 %v216
  %431 = vmatmul.mubr.bf16.gmra.mxu0 %v215
  %v432 = vpop.f32.mrf.mxu0
  %v433 = vadd.f32 0.0, %v432
  %v434 = vpop.f32.mrf.mxu0
  %v435 = vpop.f32.mrf.mxu0
  %v436 = vadd.f32 0.0, %v435
  %v437 = vpop.f32.mrf.mxu0
  %438 = vmatprep.mubr.bf16.mxu0 %v219
  %439 = vmatmul.mubr.bf16.gmra.mxu0 %v218
  %v440 = vpop.f32.mrf.mxu0
  %v441 = vadd.f32 0.0, %v440
  %v442 = vpop.f32.mrf.mxu0
  %v443 = vpop.f32.mrf.mxu0
  %v444 = vadd.f32 0.0, %v443
  %v445 = vpop.f32.mrf.mxu0
  %446 = vmatprep.mubr.bf16.mxu0 %v222
  %447 = vmatmul.mubr.bf16.gmra.mxu0 %v221
  %v448 = vpop.f32.mrf.mxu0
  %v449 = vadd.f32 0.0, %v448
  %v450 = vpop.f32.mrf.mxu0
  %v451 = vpop.f32.mrf.mxu0
  %v452 = vadd.f32 0.0, %v451
  %v453 = vpop.f32.mrf.mxu0
  %454 = vmatprep.mubr.bf16.mxu0 %v225
  %455 = vmatmul.mubr.bf16.gmra.mxu0 %v224
  %v456 = vpop.f32.mrf.mxu0
  %v457 = vadd.f32 0.0, %v456
  %v458 = vpop.f32.mrf.mxu0
  %v459 = vpop.f32.mrf.mxu0
  %v460 = vadd.f32 0.0, %v459
  %v461 = vpop.f32.mrf.mxu0
  %462 = vmatprep.mubr.bf16.mxu0 %v228
  %463 = vmatmul.mubr.bf16.gmra.mxu0 %v227
  %v464 = vpop.f32.mrf.mxu0
  %v465 = vadd.f32 0.0, %v464
  %v466 = vpop.f32.mrf.mxu0
  %v467 = vpop.f32.mrf.mxu0
  %v468 = vadd.f32 0.0, %v467
  %v469 = vpop.f32.mrf.mxu0
  %470 = vmatprep.mubr.bf16.mxu0 %v231
  %471 = vmatmul.mubr.bf16.gmra.mxu0 %v230
  %v472 = vpop.f32.mrf.mxu0
  %v473 = vadd.f32 0.0, %v472
  %v474 = vpop.f32.mrf.mxu0
  %v475 = vpop.f32.mrf.mxu0
  %v476 = vadd.f32 0.0, %v475
  %v477 = vpop.f32.mrf.mxu0
  %478 = vdwg.mxu0
  %479 = vmatprep.subr.bf16.mxu0 0
  %480 = vmatpush1.bf16.msra.mxu0 0
  %481 = vmatprep.subr.bf16.mxu0 0
  %482 = vmatpush1.bf16.msra.mxu0 0
  %483 = vmatprep.subr.bf16.mxu0 0
  %484 = vmatpush1.bf16.msra.mxu0 0
  %485 = vmatprep.subr.bf16.mxu0 0
  %486 = vmatpush1.bf16.msra.mxu0 0
  %487 = vmatprep.subr.bf16.mxu0 0
  %488 = vmatpush1.bf16.msra.mxu0 0
  %489 = vmatprep.subr.bf16.mxu0 0
  %490 = vmatpush1.bf16.msra.mxu0 0
  %491 = vmatprep.subr.bf16.mxu0 0
  %492 = vmatpush1.bf16.msra.mxu0 %v338
  %493 = vmatprep.subr.bf16.mxu0 0
  %494 = vmatpush1.bf16.msra.mxu0 %v337
  %495 = vmatprep.subr.bf16.mxu0 0
  %496 = vmatpush2.bf16.msra.mxu0 0
  %497 = vmatprep.subr.bf16.mxu0 0
  %498 = vmatpush2.bf16.msra.mxu0 0
  %499 = vmatprep.subr.bf16.mxu0 0
  %500 = vmatpush2.bf16.msra.mxu0 0
  %501 = vmatprep.subr.bf16.mxu0 0
  %502 = vmatpush2.bf16.msra.mxu0 0
  %503 = vmatprep.subr.bf16.mxu0 0
  %504 = vmatpush2.bf16.msra.mxu0 0
  %505 = vmatprep.subr.bf16.mxu0 0
  %506 = vmatpush2.bf16.msra.mxu0 0
  %507 = vmatprep.subr.bf16.mxu0 0
  %508 = vmatpush2.bf16.msra.mxu0 0
  %509 = vmatprep.subr.bf16.mxu0 0
  %510 = vmatpush2.bf16.msra.mxu0 0
  %511 = vmatprep.mubr.bf16.mxu0 0
  %512 = vmatmul.mubr.bf16.gmra.mxu0 %v359
  %v513 = vpop.f32.mrf.mxu0
  %v514 = vadd.f32 %v417, %v513
  %v515 = vpop.f32.mrf.mxu0
  %v516 = vpop.f32.mrf.mxu0
  %v517 = vadd.f32 %v420, %v516
  %v518 = vpop.f32.mrf.mxu0
  %519 = vmatprep.mubr.bf16.mxu0 0
  %520 = vmatmul.mubr.bf16.gmra.mxu0 %v362
  %v521 = vpop.f32.mrf.mxu0
  %v522 = vadd.f32 %v425, %v521
  %v523 = vpop.f32.mrf.mxu0
  %v524 = vpop.f32.mrf.mxu0
  %v525 = vadd.f32 %v428, %v524
  %v526 = vpop.f32.mrf.mxu0
  %527 = vmatprep.mubr.bf16.mxu0 0
  %528 = vmatmul.mubr.bf16.gmra.mxu0 %v365
  %v529 = vpop.f32.mrf.mxu0
  %v530 = vadd.f32 %v433, %v529
  %v531 = vpop.f32.mrf.mxu0
  %v532 = vpop.f32.mrf.mxu0
  %v533 = vadd.f32 %v436, %v532
  %v534 = vpop.f32.mrf.mxu0
  %535 = vmatprep.mubr.bf16.mxu0 0
  %536 = vmatmul.mubr.bf16.gmra.mxu0 %v368
  %v537 = vpop.f32.mrf.mxu0
  %v538 = vadd.f32 %v441, %v537
  %v539 = vpop.f32.mrf.mxu0
  %v540 = vpop.f32.mrf.mxu0
  %v541 = vadd.f32 %v444, %v540
  %v542 = vpop.f32.mrf.mxu0
  %543 = vmatprep.mubr.bf16.mxu0 0
  %544 = vmatmul.mubr.bf16.gmra.mxu0 %v371
  %v545 = vpop.f32.mrf.mxu0
  %v546 = vadd.f32 %v449, %v545
  %v547 = vpop.f32.mrf.mxu0
  %v548 = vpop.f32.mrf.mxu0
  %v549 = vadd.f32 %v452, %v548
  %v550 = vpop.f32.mrf.mxu0
  %551 = vmatprep.mubr.bf16.mxu0 0
  %552 = vmatmul.mubr.bf16.gmra.mxu0 %v374
  %v553 = vpop.f32.mrf.mxu0
  %v554 = vadd.f32 %v457, %v553
  %v555 = vpop.f32.mrf.mxu0
  %v556 = vpop.f32.mrf.mxu0
  %v557 = vadd.f32 %v460, %v556
  %v558 = vpop.f32.mrf.mxu0
  %559 = vmatprep.mubr.bf16.mxu0 0
  %560 = vmatmul.mubr.bf16.gmra.mxu0 %v377
  %v561 = vpop.f32.mrf.mxu0
  %v562 = vadd.f32 %v465, %v561
  %v563 = vpop.f32.mrf.mxu0
  %v564 = vpop.f32.mrf.mxu0
  %v565 = vadd.f32 %v468, %v564
  %v566 = vpop.f32.mrf.mxu0
  %567 = vmatprep.mubr.bf16.mxu0 0
  %568 = vmatmul.mubr.bf16.gmra.mxu0 %v380
  %v569 = vpop.f32.mrf.mxu0
  %v570 = vadd.f32 %v473, %v569
  %v571 = vpop.f32.mrf.mxu0
  %v572 = vpop.f32.mrf.mxu0
  %v573 = vadd.f32 %v476, %v572
  %v574 = vpop.f32.mrf.mxu0
  %575 = vdwg.mxu0
  %v576 = vadd.f32 %v45, %v514
  %v577 = vadd.f32 %v46, %v517
  %v578 = vadd.f32 %v47, %v522
  %v579 = vadd.f32 %v48, %v525
  %v580 = vadd.f32 %v49, %v530
  %v581 = vadd.f32 %v50, %v533
  %v582 = vadd.f32 %v51, %v538
  %v583 = vadd.f32 %v52, %v541
  %v584 = vadd.f32 %v53, %v546
  %v585 = vadd.f32 %v54, %v549
  %v586 = vadd.f32 %v55, %v554
  %v587 = vadd.f32 %v56, %v557
  %v588 = vadd.f32 %v57, %v562
  %v589 = vadd.f32 %v58, %v565
  %v590 = vadd.f32 %v59, %v570
  %v591 = vadd.f32 %v60, %v573
  %592 = vst.msk [vmem:[#allocation2] sm:$0xff] %vm357, %v576
  %593 = vst.msk [vmem:[#allocation2 + $0x8] sm:$0xff] %vm357, %v577
  %594 = vst.msk [vmem:[#allocation2 + $0x10] sm:$0xff] %vm357, %v578
  %595 = vst.msk [vmem:[#allocation2 + $0x18] sm:$0xff] %vm357, %v579
  %596 = vst.msk [vmem:[#allocation2 + $0x20] sm:$0xff] %vm357, %v580
  %597 = vst.msk [vmem:[#allocation2 + $0x28] sm:$0xff] %vm357, %v581
  %598 = vst.msk [vmem:[#allocation2 + $0x30] sm:$0xff] %vm357, %v582
  %599 = vst.msk [vmem:[#allocation2 + $0x38] sm:$0xff] %vm357, %v583
  %600 = vst.msk [vmem:[#allocation2 + $0x40] sm:$0xff] %vm357, %v584
  %601 = vst.msk [vmem:[#allocation2 + $0x48] sm:$0xff] %vm357, %v585
  %602 = vst.msk [vmem:[#allocation2 + $0x50] sm:$0xff] %vm357, %v586
  %603 = vst.msk [vmem:[#allocation2 + $0x58] sm:$0xff] %vm357, %v587
  %604 = vst.msk [vmem:[#allocation2 + $0x60] sm:$0xff] %vm357, %v588
  %605 = vst.msk [vmem:[#allocation2 + $0x68] sm:$0xff] %vm357, %v589
  %606 = vst.msk [vmem:[#allocation2 + $0x70] sm:$0xff] %vm357, %v590
  %607 = vst.msk [vmem:[#allocation2 + $0x78] sm:$0xff] %vm357, %v591
  // Predicated region
  $region18: #{unet_generator.18} parent=0 // pred_check
    %p608 = pneg %p17
  $region19: #{unet_generator.18} parent=0 // pred_check_branch
    %610 = sbr.rel (%p608) target = $region21
  $region20: #{unet_generator.18} parent=0 // pred_region
    %v611 = vld [vmem:[#allocation2] sm:$0xff]
    %v612 = vld [vmem:[#allocation2 + $0x8] sm:$0xff]
    %v613 = vld [vmem:[#allocation2 + $0x10] sm:$0xff]
    %v614 = vld [vmem:[#allocation2 + $0x18] sm:$0xff]
    %v615 = vld [vmem:[#allocation2 + $0x20] sm:$0xff]
    %v616 = vld [vmem:[#allocation2 + $0x28] sm:$0xff]
    %v617 = vld [vmem:[#allocation2 + $0x30] sm:$0xff]
    %v618 = vld [vmem:[#allocation2 + $0x38] sm:$0xff]
    %v619 = vld [vmem:[#allocation2 + $0x40] sm:$0xff]
    %v620 = vld [vmem:[#allocation2 + $0x48] sm:$0xff]
    %v621 = vld [vmem:[#allocation2 + $0x50] sm:$0xff]
    %v622 = vld [vmem:[#allocation2 + $0x58] sm:$0xff]
    %v623 = vld [vmem:[#allocation2 + $0x60] sm:$0xff]
    %v624 = vld [vmem:[#allocation2 + $0x68] sm:$0xff]
    %v625 = vld [vmem:[#allocation2 + $0x70] sm:$0xff]
    %v626 = vld [vmem:[#allocation2 + $0x78] sm:$0xff]
    %v627 = vpack.c.bf16 %v612, %v611
    %v628 = vpack.c.bf16 %v614, %v613
    %v629 = vpack.c.bf16 %v616, %v615
    %v630 = vpack.c.bf16 %v618, %v617
    %v631 = vpack.c.bf16 %v620, %v619
    %v632 = vpack.c.bf16 %v622, %v621
    %v633 = vpack.c.bf16 %v624, %v623
    %v634 = vpack.c.bf16 %v626, %v625
    %v643 = vunpack.c.l.b16 %v627
    %v644 = vunpack.c.h.b16 %v627
    %v645 = vunpack.c.l.b16 %v628
    %v646 = vunpack.c.h.b16 %v628
    %v647 = vunpack.c.l.b16 %v629
    %v648 = vunpack.c.h.b16 %v629
    %v649 = vunpack.c.l.b16 %v630
    %v650 = vunpack.c.h.b16 %v630
    %v651 = vunpack.c.l.b16 %v631
    %v652 = vunpack.c.h.b16 %v631
    %v653 = vunpack.c.l.b16 %v632
    %v654 = vunpack.c.h.b16 %v632
    %v655 = vunpack.c.l.b16 %v633
    %v656 = vunpack.c.h.b16 %v633
    %v657 = vunpack.c.l.b16 %v634
    %v658 = vunpack.c.h.b16 %v634
    %v659 = vpack.c.b16 %v643, %v643
    %v660 = vpack.c.b16 %v644, %v644
    %v661 = vpack.c.b16 %v645, %v645
    %v662 = vpack.c.b16 %v646, %v646
    %v663 = vpack.c.b16 %v647, %v647
    %v664 = vpack.c.b16 %v648, %v648
    %v665 = vpack.c.b16 %v649, %v649
    %v666 = vpack.c.b16 %v650, %v650
    %v667 = vpack.c.b16 %v651, %v651
    %v668 = vpack.c.b16 %v652, %v652
    %v669 = vpack.c.b16 %v653, %v653
    %v670 = vpack.c.b16 %v654, %v654
    %v671 = vpack.c.b16 %v655, %v655
    %v672 = vpack.c.b16 %v656, %v656
    %v673 = vpack.c.b16 %v657, %v657
    %v674 = vpack.c.b16 %v658, %v658
    %vm691 = vcmask 257024
    %692 = vst.msk [vmem:[%s3] sm:$0xf] %vm691, %v659
    %693 = vst.msk [vmem:[%s3 + $0x4] sm:$0xf] %vm691, %v660
    %694 = vst.msk [vmem:[%s3 + $0x8] sm:$0xf] %vm691, %v661
    %695 = vst.msk [vmem:[%s3 + $0xc] sm:$0xf] %vm691, %v662
    %696 = vst.msk [vmem:[%s3 + $0x10] sm:$0xf] %vm691, %v663
    %697 = vst.msk [vmem:[%s3 + $0x14] sm:$0xf] %vm691, %v664
    %698 = vst.msk [vmem:[%s3 + $0x18] sm:$0xf] %vm691, %v665
    %699 = vst.msk [vmem:[%s3 + $0x1c] sm:$0xf] %vm691, %v666
    %700 = vst.msk [vmem:[%s3 + $0x20] sm:$0xf] %vm691, %v667
    %701 = vst.msk [vmem:[%s3 + $0x24] sm:$0xf] %vm691, %v668
    %702 = vst.msk [vmem:[%s3 + $0x28] sm:$0xf] %vm691, %v669
    %703 = vst.msk [vmem:[%s3 + $0x2c] sm:$0xf] %vm691, %v670
    %704 = vst.msk [vmem:[%s3 + $0x30] sm:$0xf] %vm691, %v671
    %705 = vst.msk [vmem:[%s3 + $0x34] sm:$0xf] %vm691, %v672
    %706 = vst.msk [vmem:[%s3 + $0x38] sm:$0xf] %vm691, %v673
    %707 = vst.msk [vmem:[%s3 + $0x3c] sm:$0xf] %vm691, %v674
    %v708 = vsel %vm357, %v611, 0.0
    %v709 = vsel %vm357, %v612, 0.0
    %v710 = vadd.f32 %v708, %v709
    %v711 = vsel %vm357, %v613, 0.0
    %v712 = vadd.f32 %v710, %v711
    %v713 = vsel %vm357, %v614, 0.0
    %v714 = vadd.f32 %v712, %v713
    %v715 = vsel %vm357, %v615, 0.0
    %v716 = vadd.f32 %v714, %v715
    %v717 = vsel %vm357, %v616, 0.0
    %v718 = vadd.f32 %v716, %v717
    %v719 = vsel %vm357, %v617, 0.0
    %v720 = vadd.f32 %v718, %v719
    %v721 = vsel %vm357, %v618, 0.0
    %v722 = vadd.f32 %v720, %v721
    %v723 = vsel %vm357, %v619, 0.0
    %v724 = vadd.f32 %v722, %v723
    %v725 = vsel %vm357, %v620, 0.0
    %v726 = vadd.f32 %v724, %v725
    %v727 = vsel %vm357, %v621, 0.0
    %v728 = vadd.f32 %v726, %v727
    %v729 = vsel %vm357, %v622, 0.0
    %v730 = vadd.f32 %v728, %v729
    %v731 = vsel %vm357, %v623, 0.0
    %v732 = vadd.f32 %v730, %v731
    %v733 = vsel %vm357, %v624, 0.0
    %v734 = vadd.f32 %v732, %v733
    %v735 = vsel %vm357, %v625, 0.0
    %v736 = vadd.f32 %v734, %v735
    %v737 = vsel %vm357, %v626, 0.0
    %v738 = vadd.f32 %v736, %v737
    %v739 = vrot.slane %v738, 4
    %v740 = vadd.f32 %v738, %v739
    %v741 = vrot.slane %v740, 2
    %v742 = vadd.f32 %v740, %v741
    %v743 = vrot.slane %v742, 1
    %v744 = vadd.f32 %v742, %v743
    %vm745 = vcmask 253952
    %746 = vst.msk [vmem:[%s4] sm:$0x1] %vm745, %v744
    %v747 = vmul.f32 %v611, %v611
    %v748 = vmul.f32 %v612, %v612
    %v749 = vmul.f32 %v613, %v613
    %v750 = vmul.f32 %v614, %v614
    %v751 = vmul.f32 %v615, %v615
    %v752 = vmul.f32 %v616, %v616
    %v753 = vmul.f32 %v617, %v617
    %v754 = vmul.f32 %v618, %v618
    %v755 = vmul.f32 %v619, %v619
    %v756 = vmul.f32 %v620, %v620
    %v757 = vmul.f32 %v621, %v621
    %v758 = vmul.f32 %v622, %v622
    %v759 = vmul.f32 %v623, %v623
    %v760 = vmul.f32 %v624, %v624
    %v761 = vmul.f32 %v625, %v625
    %v762 = vmul.f32 %v626, %v626
    %v763 = vsel %vm357, %v747, 0.0
    %v764 = vsel %vm357, %v748, 0.0
    %v765 = vadd.f32 %v763, %v764
    %v766 = vsel %vm357, %v749, 0.0
    %v767 = vadd.f32 %v765, %v766
    %v768 = vsel %vm357, %v750, 0.0
    %v769 = vadd.f32 %v767, %v768
    %v770 = vsel %vm357, %v751, 0.0
    %v771 = vadd.f32 %v769, %v770
    %v772 = vsel %vm357, %v752, 0.0
    %v773 = vadd.f32 %v771, %v772
    %v774 = vsel %vm357, %v753, 0.0
    %v775 = vadd.f32 %v773, %v774
    %v776 = vsel %vm357, %v754, 0.0
    %v777 = vadd.f32 %v775, %v776
    %v778 = vsel %vm357, %v755, 0.0
    %v779 = vadd.f32 %v777, %v778
    %v780 = vsel %vm357, %v756, 0.0
    %v781 = vadd.f32 %v779, %v780
    %v782 = vsel %vm357, %v757, 0.0
    %v783 = vadd.f32 %v781, %v782
    %v784 = vsel %vm357, %v758, 0.0
    %v785 = vadd.f32 %v783, %v784
    %v786 = vsel %vm357, %v759, 0.0
    %v787 = vadd.f32 %v785, %v786
    %v788 = vsel %vm357, %v760, 0.0
    %v789 = vadd.f32 %v787, %v788
    %v790 = vsel %vm357, %v761, 0.0
    %v791 = vadd.f32 %v789, %v790
    %v792 = vsel %vm357, %v762, 0.0
    %v793 = vadd.f32 %v791, %v792
    %v794 = vrot.slane %v793, 4
    %v795 = vadd.f32 %v793, %v794
    %v796 = vrot.slane %v795, 2
    %v797 = vadd.f32 %v795, %v796
    %v798 = vrot.slane %v797, 1
    %v799 = vadd.f32 %v797, %v798
    %800 = vst.msk [vmem:[%s4 + $0x1] sm:$0x1] %vm745, %v799
  $region21: #{unet_generator.18} parent=0 // pred_fallthru
    _
  // Predicated region
  $region22: #{unet_generator.18} parent=0 // pred_check
    _
  $region23: #{unet_generator.18} parent=0 // pred_check_branch
    %802 = sbr.rel (0) target = $region25
  $region24: #{unet_generator.18} parent=0 // pred_region
    _
  $region25: #{unet_generator.18} parent=0 // pred_fallthru
    _
  // Predicated region
  $region26: #{unet_generator.18} parent=0 // pred_check
    _
  $region27: #{unet_generator.18} parent=0 // pred_check_branch
    %804 = sbr.rel (0) target = $region29
  $region28: #{unet_generator.18} parent=0 // pred_region
    _
  $region29: #{unet_generator.18} parent=0 // pred_fallthru
    _
  // Predicated region
  $region30: #{unet_generator.18} parent=0 // pred_check
    _
  $region31: #{unet_generator.18} parent=0 // pred_check_branch
    %806 = sbr.rel (0) target = $region33
  $region32: #{unet_generator.18} parent=0 // pred_region
    _
  $region33: #{unet_generator.18} parent=0 // pred_fallthru
    _
  // Predicated region
  $region34: #{unet_generator.18} parent=0 // pred_check
    _
  $region35: #{unet_generator.18} parent=0 // pred_check_branch
    %808 = sbr.rel (0) target = $region37
  $region36: #{unet_generator.18} parent=0 // pred_region
    _
  $region37: #{unet_generator.18} parent=0 // pred_fallthru
    _

// kernel: tile.48
$region0: #{tile.48}
  #allocation0 [shape = 's32[1]{0}', space=sflag, size = 0x4, scoped, tag = 'scoped memory for tile.48']
  %s0 = inlined_call_operand.vmem [shape: f32[3], index: 0, kind: input, shape index: {}]
  %s1 = inlined_call_operand.vmem [shape: f32[4,3], index: 1, kind: output, shape index: {}]
  // Predicated region
  $region2: #{tile.48} parent=0 // pred_check
    _
  $region3: #{tile.48} parent=0 // pred_check_branch
    %3 = sbr.rel (0) target = $region5
  $region4: #{tile.48} parent=0 // pred_region
    _
  $region5: #{tile.48} parent=0 // pred_fallthru
    _
  %v4 = vld [vmem:[%s0] ss:$0 sm:$0xff]
  %5 = vst [vmem:[%s1] sm:$0xf] %v4

// kernel: tile.49
$region0: #{tile.49}
  %s0 = inlined_call_operand.vmem [shape: f32[4,3], index: 0, kind: input, shape index: {}]
  %s1 = inlined_call_operand.vmem [shape: f32[1,12], index: 1, kind: output, shape index: {}]
  $region1: #{tile.49} parent=0
    #allocation0 [shape = 'u8[4096]{0}', space=vmem, size = 0x1000, scoped, tag = 'scoped mem for output reshape']
    #allocation1 [shape = 'u8[4096]{0}', space=vmem, size = 0x1000, scoped, tag = 'scoped mem for input reshape']
    %s3 = sshll.u32 1, 4
    %s4 = ssub.s32 %s3, 1
    %v5 = vld [vmem:[%s0] sm:%s4]
    %6 = vst [vmem:[#allocation1] sm:%s4] %v5
    %v7 = vld [vmem:[#allocation1] sm:$0x1]
    %vm8 = vcmask 23552
    %9 = vst.msk [vmem:[#allocation0] sm:$0x1] %vm8, %v7
    %s10 = scalar_lea.vmem [#allocation1], 3
    %v11 = vld [vmem:[%s10] sm:$0x1]
    %12 = vrot.lane.b32.xlu0 %v11, 9
    %v13 = vpop.permute.xlu0 %12
    %vm14 = vcmask 97352
    %15 = vst.msk [vmem:[#allocation0] sm:$0x1] %vm14, %v13
    %s16 = scalar_lea.vmem [#allocation1], 2
    %v17 = vld [vmem:[%s16] sm:$0x1]
    %18 = vrot.lane.b32.xlu0 %v17, 6
    %v19 = vpop.permute.xlu0 %18
    %vm20 = vcmask 72752
    %21 = vst.msk [vmem:[#allocation0] sm:$0x1] %vm20, %v19
    %s22 = scalar_lea.vmem [#allocation1], 1
    %v23 = vld [vmem:[%s22] sm:$0x1]
    %24 = vrot.lane.b32.xlu0 %v23, 3
    %v25 = vpop.permute.xlu0 %24
    %vm26 = vcmask 48152
    %27 = vst.msk [vmem:[#allocation0] sm:$0x1] %vm26, %v25
    %s29 = sshll.u32 1, 1
    %s30 = ssub.s32 %s29, 1
    %v32 = vld [vmem:[#allocation0] sm:%s30]
    %s33 = sshll.u32 1, 1
    %s34 = ssub.s32 %s33, 1
    %35 = vst [vmem:[%s1] sm:%s34] %v32

// kernel: unet_generator.19
$region0: #{unet_generator.19}
  #allocation0 [shape = 'u32[]', space=smem, size = 0x4, offset = 0x4, fixed_abs, tag = 'smem constant byte address 0x4 - core index']
  #allocation1 [shape = 'u32[144,128]{1,0:T(1,128)}', space=vmem, size = 0x12000, scoped, tag = 'internal scratch']
  #allocation2 [shape = 'f32[512,12]{1,0:T(8,128)}', space=vmem, size = 0x40000, scoped, tag = 'scratch operand']
  %s0 = inlined_call_operand.vmem [shape: bf16[512,144], index: 0, kind: input, shape index: {}]
  %s1 = inlined_call_operand.vmem [shape: bf16[144,12], index: 1, kind: input, shape index: {}]
  %s2 = inlined_call_operand.vmem [shape: f32[1,12], index: 2, kind: input, shape index: {}]
  %s3 = inlined_call_operand.vmem [shape: bf16[512,12], index: 3, kind: output, shape index: {}]
  %s4 = sld [smem:[#allocation0]]
  $region30: #{unet_generator.19} parent=0
    _
  %s6 = ssub.s32 1, %s4
  %s7 = scalar_select 0, %s6, %s4
  // Predicated region
  $region2: #{unet_generator.19} parent=0 // pred_check
    _
  $region3: #{unet_generator.19} parent=0 // pred_check_branch
    %9 = sbr.rel (0) target = $region5
  $region4: #{unet_generator.19} parent=0 // pred_region
    _
  $region5: #{unet_generator.19} parent=0 // pred_fallthru
    _
  // Predicated region
  $region6: #{unet_generator.19} parent=0 // pred_check
    _
  $region7: #{unet_generator.19} parent=0 // pred_check_branch
    %11 = sbr.rel (0) target = $region9
  $region8: #{unet_generator.19} parent=0 // pred_region
    _
  $region9: #{unet_generator.19} parent=0 // pred_fallthru
    _
  // Predicated region
  $region10: #{unet_generator.19} parent=0 // pred_check
    _
  $region11: #{unet_generator.19} parent=0 // pred_check_branch
    %13 = sbr.rel (0) target = $region13
  $region12: #{unet_generator.19} parent=0 // pred_region
    _
  $region13: #{unet_generator.19} parent=0 // pred_fallthru
    _
  %p15 = scmp.eq.s32.totalorder 0, 0
  // Predicated region
  $region14: #{unet_generator.19} parent=0 // pred_check
    %p16 = pneg %p15
  $region15: #{unet_generator.19} parent=0 // pred_check_branch
    %18 = sbr.rel (%p16) target = $region17
  $region16: #{unet_generator.19} parent=0 // pred_region
    %v19 = vld [vmem:[%s2] sm:$0x1]
    %v21 = vlaneseq
    %v22 = vshrl.u32 %v21, 7
    %v23 = vsub.s32 0, %v22
    %v24 = vrot.slane %v19, %v23
    %vm26 = vcmask 97280
    %27 = vst.msk [vmem:[#allocation2] sm:$0xff] %vm26, %v24
    %28 = vst.msk [vmem:[#allocation2 + $0x8] sm:$0xff] %vm26, %v24
    %29 = vst.msk [vmem:[#allocation2 + $0x10] sm:$0xff] %vm26, %v24
    %30 = vst.msk [vmem:[#allocation2 + $0x18] sm:$0xff] %vm26, %v24
    %31 = vst.msk [vmem:[#allocation2 + $0x20] sm:$0xff] %vm26, %v24
    %32 = vst.msk [vmem:[#allocation2 + $0x28] sm:$0xff] %vm26, %v24
    %33 = vst.msk [vmem:[#allocation2 + $0x30] sm:$0xff] %vm26, %v24
    %34 = vst.msk [vmem:[#allocation2 + $0x38] sm:$0xff] %vm26, %v24
    %35 = vst.msk [vmem:[#allocation2 + $0x40] sm:$0xff] %vm26, %v24
    %36 = vst.msk [vmem:[#allocation2 + $0x48] sm:$0xff] %vm26, %v24
    %37 = vst.msk [vmem:[#allocation2 + $0x50] sm:$0xff] %vm26, %v24
    %38 = vst.msk [vmem:[#allocation2 + $0x58] sm:$0xff] %vm26, %v24
    %39 = vst.msk [vmem:[#allocation2 + $0x60] sm:$0xff] %vm26, %v24
    %40 = vst.msk [vmem:[#allocation2 + $0x68] sm:$0xff] %vm26, %v24
    %41 = vst.msk [vmem:[#allocation2 + $0x70] sm:$0xff] %vm26, %v24
    %42 = vst.msk [vmem:[#allocation2 + $0x78] sm:$0xff] %vm26, %v24
    %43 = vst.msk [vmem:[#allocation2 + $0x80] sm:$0xff] %vm26, %v24
    %44 = vst.msk [vmem:[#allocation2 + $0x88] sm:$0xff] %vm26, %v24
    %45 = vst.msk [vmem:[#allocation2 + $0x90] sm:$0xff] %vm26, %v24
    %46 = vst.msk [vmem:[#allocation2 + $0x98] sm:$0xff] %vm26, %v24
    %47 = vst.msk [vmem:[#allocation2 + $0xa0] sm:$0xff] %vm26, %v24
    %48 = vst.msk [vmem:[#allocation2 + $0xa8] sm:$0xff] %vm26, %v24
    %49 = vst.msk [vmem:[#allocation2 + $0xb0] sm:$0xff] %vm26, %v24
    %50 = vst.msk [vmem:[#allocation2 + $0xb8] sm:$0xff] %vm26, %v24
    %51 = vst.msk [vmem:[#allocation2 + $0xc0] sm:$0xff] %vm26, %v24
    %52 = vst.msk [vmem:[#allocation2 + $0xc8] sm:$0xff] %vm26, %v24
    %53 = vst.msk [vmem:[#allocation2 + $0xd0] sm:$0xff] %vm26, %v24
    %54 = vst.msk [vmem:[#allocation2 + $0xd8] sm:$0xff] %vm26, %v24
    %55 = vst.msk [vmem:[#allocation2 + $0xe0] sm:$0xff] %vm26, %v24
    %56 = vst.msk [vmem:[#allocation2 + $0xe8] sm:$0xff] %vm26, %v24
    %57 = vst.msk [vmem:[#allocation2 + $0xf0] sm:$0xff] %vm26, %v24
    %58 = vst.msk [vmem:[#allocation2 + $0xf8] sm:$0xff] %vm26, %v24
    %59 = vst.msk [vmem:[#allocation2 + $0x100] sm:$0xff] %vm26, %v24
    %60 = vst.msk [vmem:[#allocation2 + $0x108] sm:$0xff] %vm26, %v24
    %61 = vst.msk [vmem:[#allocation2 + $0x110] sm:$0xff] %vm26, %v24
    %62 = vst.msk [vmem:[#allocation2 + $0x118] sm:$0xff] %vm26, %v24
    %63 = vst.msk [vmem:[#allocation2 + $0x120] sm:$0xff] %vm26, %v24
    %64 = vst.msk [vmem:[#allocation2 + $0x128] sm:$0xff] %vm26, %v24
    %65 = vst.msk [vmem:[#allocation2 + $0x130] sm:$0xff] %vm26, %v24
    %66 = vst.msk [vmem:[#allocation2 + $0x138] sm:$0xff] %vm26, %v24
    %67 = vst.msk [vmem:[#allocation2 + $0x140] sm:$0xff] %vm26, %v24
    %68 = vst.msk [vmem:[#allocation2 + $0x148] sm:$0xff] %vm26, %v24
    %69 = vst.msk [vmem:[#allocation2 + $0x150] sm:$0xff] %vm26, %v24
    %70 = vst.msk [vmem:[#allocation2 + $0x158] sm:$0xff] %vm26, %v24
    %71 = vst.msk [vmem:[#allocation2 + $0x160] sm:$0xff] %vm26, %v24
    %72 = vst.msk [vmem:[#allocation2 + $0x168] sm:$0xff] %vm26, %v24
    %73 = vst.msk [vmem:[#allocation2 + $0x170] sm:$0xff] %vm26, %v24
    %74 = vst.msk [vmem:[#allocation2 + $0x178] sm:$0xff] %vm26, %v24
    %75 = vst.msk [vmem:[#allocation2 + $0x180] sm:$0xff] %vm26, %v24
    %76 = vst.msk [vmem:[#allocation2 + $0x188] sm:$0xff] %vm26, %v24
    %77 = vst.msk [vmem:[#allocation2 + $0x190] sm:$0xff] %vm26, %v24
    %78 = vst.msk [vmem:[#allocation2 + $0x198] sm:$0xff] %vm26, %v24
    %79 = vst.msk [vmem:[#allocation2 + $0x1a0] sm:$0xff] %vm26, %v24
    %80 = vst.msk [vmem:[#allocation2 + $0x1a8] sm:$0xff] %vm26, %v24
    %81 = vst.msk [vmem:[#allocation2 + $0x1b0] sm:$0xff] %vm26, %v24
    %82 = vst.msk [vmem:[#allocation2 + $0x1b8] sm:$0xff] %vm26, %v24
    %83 = vst.msk [vmem:[#allocation2 + $0x1c0] sm:$0xff] %vm26, %v24
    %84 = vst.msk [vmem:[#allocation2 + $0x1c8] sm:$0xff] %vm26, %v24
    %85 = vst.msk [vmem:[#allocation2 + $0x1d0] sm:$0xff] %vm26, %v24
    %86 = vst.msk [vmem:[#allocation2 + $0x1d8] sm:$0xff] %vm26, %v24
    %87 = vst.msk [vmem:[#allocation2 + $0x1e0] sm:$0xff] %vm26, %v24
    %88 = vst.msk [vmem:[#allocation2 + $0x1e8] sm:$0xff] %vm26, %v24
    %89 = vst.msk [vmem:[#allocation2 + $0x1f0] sm:$0xff] %vm26, %v24
    %90 = vst.msk [vmem:[#allocation2 + $0x1f8] sm:$0xff] %vm26, %v24
  $region17: #{unet_generator.19} parent=0 // pred_fallthru
    _
  %v91 = vld [vmem:[#allocation2] sm:$0xff]
  %v92 = vld [vmem:[#allocation2 + $0x8] sm:$0xff]
  %v93 = vld [vmem:[#allocation2 + $0x10] sm:$0xff]
  %v94 = vld [vmem:[#allocation2 + $0x18] sm:$0xff]
  %v95 = vld [vmem:[#allocation2 + $0x20] sm:$0xff]
  %v96 = vld [vmem:[#allocation2 + $0x28] sm:$0xff]
  %v97 = vld [vmem:[#allocation2 + $0x30] sm:$0xff]
  %v98 = vld [vmem:[#allocation2 + $0x38] sm:$0xff]
  %v99 = vld [vmem:[#allocation2 + $0x40] sm:$0xff]
  %v100 = vld [vmem:[#allocation2 + $0x48] sm:$0xff]
  %v101 = vld [vmem:[#allocation2 + $0x50] sm:$0xff]
  %v102 = vld [vmem:[#allocation2 + $0x58] sm:$0xff]
  %v103 = vld [vmem:[#allocation2 + $0x60] sm:$0xff]
  %v104 = vld [vmem:[#allocation2 + $0x68] sm:$0xff]
  %v105 = vld [vmem:[#allocation2 + $0x70] sm:$0xff]
  %v106 = vld [vmem:[#allocation2 + $0x78] sm:$0xff]
  %v107 = vld [vmem:[#allocation2 + $0x80] sm:$0xff]
  %v108 = vld [vmem:[#allocation2 + $0x88] sm:$0xff]
  %v109 = vld [vmem:[#allocation2 + $0x90] sm:$0xff]
  %v110 = vld [vmem:[#allocation2 + $0x98] sm:$0xff]
  %v111 = vld [vmem:[#allocation2 + $0xa0] sm:$0xff]
  %v112 = vld [vmem:[#allocation2 + $0xa8] sm:$0xff]
  %v113 = vld [vmem:[#allocation2 + $0xb0] sm:$0xff]
  %v114 = vld [vmem:[#allocation2 + $0xb8] sm:$0xff]
  %v115 = vld [vmem:[#allocation2 + $0xc0] sm:$0xff]
  %v116 = vld [vmem:[#allocation2 + $0xc8] sm:$0xff]
  %v117 = vld [vmem:[#allocation2 + $0xd0] sm:$0xff]
  %v118 = vld [vmem:[#allocation2 + $0xd8] sm:$0xff]
  %v119 = vld [vmem:[#allocation2 + $0xe0] sm:$0xff]
  %v120 = vld [vmem:[#allocation2 + $0xe8] sm:$0xff]
  %v121 = vld [vmem:[#allocation2 + $0xf0] sm:$0xff]
  %v122 = vld [vmem:[#allocation2 + $0xf8] sm:$0xff]
  %v123 = vld [vmem:[#allocation2 + $0x100] sm:$0xff]
  %v124 = vld [vmem:[#allocation2 + $0x108] sm:$0xff]
  %v125 = vld [vmem:[#allocation2 + $0x110] sm:$0xff]
  %v126 = vld [vmem:[#allocation2 + $0x118] sm:$0xff]
  %v127 = vld [vmem:[#allocation2 + $0x120] sm:$0xff]
  %v128 = vld [vmem:[#allocation2 + $0x128] sm:$0xff]
  %v129 = vld [vmem:[#allocation2 + $0x130] sm:$0xff]
  %v130 = vld [vmem:[#allocation2 + $0x138] sm:$0xff]
  %v131 = vld [vmem:[#allocation2 + $0x140] sm:$0xff]
  %v132 = vld [vmem:[#allocation2 + $0x148] sm:$0xff]
  %v133 = vld [vmem:[#allocation2 + $0x150] sm:$0xff]
  %v134 = vld [vmem:[#allocation2 + $0x158] sm:$0xff]
  %v135 = vld [vmem:[#allocation2 + $0x160] sm:$0xff]
  %v136 = vld [vmem:[#allocation2 + $0x168] sm:$0xff]
  %v137 = vld [vmem:[#allocation2 + $0x170] sm:$0xff]
  %v138 = vld [vmem:[#allocation2 + $0x178] sm:$0xff]
  %v139 = vld [vmem:[#allocation2 + $0x180] sm:$0xff]
  %v140 = vld [vmem:[#allocation2 + $0x188] sm:$0xff]
  %v141 = vld [vmem:[#allocation2 + $0x190] sm:$0xff]
  %v142 = vld [vmem:[#allocation2 + $0x198] sm:$0xff]
  %v143 = vld [vmem:[#allocation2 + $0x1a0] sm:$0xff]
  %v144 = vld [vmem:[#allocation2 + $0x1a8] sm:$0xff]
  %v145 = vld [vmem:[#allocation2 + $0x1b0] sm:$0xff]
  %v146 = vld [vmem:[#allocation2 + $0x1b8] sm:$0xff]
  %v147 = vld [vmem:[#allocation2 + $0x1c0] sm:$0xff]
  %v148 = vld [vmem:[#allocation2 + $0x1c8] sm:$0xff]
  %v149 = vld [vmem:[#allocation2 + $0x1d0] sm:$0xff]
  %v150 = vld [vmem:[#allocation2 + $0x1d8] sm:$0xff]
  %v151 = vld [vmem:[#allocation2 + $0x1e0] sm:$0xff]
  %v152 = vld [vmem:[#allocation2 + $0x1e8] sm:$0xff]
  %v153 = vld [vmem:[#allocation2 + $0x1f0] sm:$0xff]
  %v154 = vld [vmem:[#allocation2 + $0x1f8] sm:$0xff]
  %v155 = vld [vmem:[%s0] sm:$0xff]
  %v156 = vld [vmem:[%s0 + $0x8] sm:$0xff]
  %v157 = vld [vmem:[%s0 + $0x10] sm:$0xff]
  %v158 = vld [vmem:[%s0 + $0x18] sm:$0xff]
  %v159 = vld [vmem:[%s0 + $0x20] sm:$0xff]
  %v160 = vld [vmem:[%s0 + $0x28] sm:$0xff]
  %v161 = vld [vmem:[%s0 + $0x30] sm:$0xff]
  %v162 = vld [vmem:[%s0 + $0x38] sm:$0xff]
  %v163 = vld [vmem:[%s0 + $0x40] sm:$0xff]
  %v164 = vld [vmem:[%s0 + $0x48] sm:$0xff]
  %v165 = vld [vmem:[%s0 + $0x50] sm:$0xff]
  %v166 = vld [vmem:[%s0 + $0x58] sm:$0xff]
  %v167 = vld [vmem:[%s0 + $0x60] sm:$0xff]
  %v168 = vld [vmem:[%s0 + $0x68] sm:$0xff]
  %v169 = vld [vmem:[%s0 + $0x70] sm:$0xff]
  %v170 = vld [vmem:[%s0 + $0x78] sm:$0xff]
  %v171 = vld [vmem:[%s0 + $0x80] sm:$0xff]
  %v172 = vld [vmem:[%s0 + $0x88] sm:$0xff]
  %v173 = vld [vmem:[%s0 + $0x90] sm:$0xff]
  %v174 = vld [vmem:[%s0 + $0x98] sm:$0xff]
  %v175 = vld [vmem:[%s0 + $0xa0] sm:$0xff]
  %v176 = vld [vmem:[%s0 + $0xa8] sm:$0xff]
  %v177 = vld [vmem:[%s0 + $0xb0] sm:$0xff]
  %v178 = vld [vmem:[%s0 + $0xb8] sm:$0xff]
  %v179 = vld [vmem:[%s0 + $0xc0] sm:$0xff]
  %v180 = vld [vmem:[%s0 + $0xc8] sm:$0xff]
  %v181 = vld [vmem:[%s0 + $0xd0] sm:$0xff]
  %v182 = vld [vmem:[%s0 + $0xd8] sm:$0xff]
  %v183 = vld [vmem:[%s0 + $0xe0] sm:$0xff]
  %v184 = vld [vmem:[%s0 + $0xe8] sm:$0xff]
  %v185 = vld [vmem:[%s0 + $0xf0] sm:$0xff]
  %v186 = vld [vmem:[%s0 + $0xf8] sm:$0xff]
  %v187 = vld [vmem:[%s0 + $0x100] sm:$0xff]
  %v188 = vld [vmem:[%s0 + $0x108] sm:$0xff]
  %v189 = vld [vmem:[%s0 + $0x110] sm:$0xff]
  %v190 = vld [vmem:[%s0 + $0x118] sm:$0xff]
  %v191 = vld [vmem:[%s0 + $0x120] sm:$0xff]
  %v192 = vld [vmem:[%s0 + $0x128] sm:$0xff]
  %v193 = vld [vmem:[%s0 + $0x130] sm:$0xff]
  %v194 = vld [vmem:[%s0 + $0x138] sm:$0xff]
  %v195 = vld [vmem:[%s0 + $0x140] sm:$0xff]
  %v196 = vld [vmem:[%s0 + $0x148] sm:$0xff]
  %v197 = vld [vmem:[%s0 + $0x150] sm:$0xff]
  %v198 = vld [vmem:[%s0 + $0x158] sm:$0xff]
  %v199 = vld [vmem:[%s0 + $0x160] sm:$0xff]
  %v200 = vld [vmem:[%s0 + $0x168] sm:$0xff]
  %v201 = vld [vmem:[%s0 + $0x170] sm:$0xff]
  %v202 = vld [vmem:[%s0 + $0x178] sm:$0xff]
  %v203 = vld [vmem:[%s0 + $0x180] sm:$0xff]
  %v204 = vld [vmem:[%s0 + $0x188] sm:$0xff]
  %v205 = vld [vmem:[%s0 + $0x190] sm:$0xff]
  %v206 = vld [vmem:[%s0 + $0x198] sm:$0xff]
  %v207 = vld [vmem:[%s0 + $0x1a0] sm:$0xff]
  %v208 = vld [vmem:[%s0 + $0x1a8] sm:$0xff]
  %v209 = vld [vmem:[%s0 + $0x1b0] sm:$0xff]
  %v210 = vld [vmem:[%s0 + $0x1b8] sm:$0xff]
  %v211 = vld [vmem:[%s0 + $0x1c0] sm:$0xff]
  %v212 = vld [vmem:[%s0 + $0x1c8] sm:$0xff]
  %v213 = vld [vmem:[%s0 + $0x1d0] sm:$0xff]
  %v214 = vld [vmem:[%s0 + $0x1d8] sm:$0xff]
  %v215 = vld [vmem:[%s0 + $0x1e0] sm:$0xff]
  %v216 = vld [vmem:[%s0 + $0x1e8] sm:$0xff]
  %v217 = vld [vmem:[%s0 + $0x1f0] sm:$0xff]
  %v218 = vld [vmem:[%s0 + $0x1f8] sm:$0xff]
  %v219 = vld [vmem:[%s1] sm:$0xf]
  %v220 = vld [vmem:[%s1 + $0x4] sm:$0xf]
  %v221 = vld [vmem:[%s1 + $0x8] sm:$0xf]
  %v222 = vld [vmem:[%s1 + $0xc] sm:$0xf]
  %v223 = vld [vmem:[%s1 + $0x10] sm:$0xf]
  %v224 = vld [vmem:[%s1 + $0x14] sm:$0xf]
  %v225 = vld [vmem:[%s1 + $0x18] sm:$0xf]
  %v226 = vld [vmem:[%s1 + $0x1c] sm:$0xf]
  %v227 = vld [vmem:[%s1 + $0x20] sm:$0xf]
  %v228 = vld [vmem:[%s1 + $0x24] sm:$0xf]
  %v229 = vld [vmem:[%s1 + $0x28] sm:$0xf]
  %v230 = vld [vmem:[%s1 + $0x2c] sm:$0xf]
  %v231 = vld [vmem:[%s1 + $0x30] sm:$0xf]
  %v232 = vld [vmem:[%s1 + $0x34] sm:$0xf]
  %v233 = vld [vmem:[%s1 + $0x38] sm:$0xf]
  %v234 = vld [vmem:[%s1 + $0x3c] sm:$0xf]
  %v235 = vld [vmem:[%s1 + $0x40] sm:$0xf]
  %v236 = vld [vmem:[%s1 + $0x44] sm:$0xf]
  %v301 = vunpack.c.l.b16 %v155
  %v302 = vunpack.c.h.b16 %v155
  %v303 = vunpack.c.l.b16 %v156
  %v304 = vunpack.c.h.b16 %v156
  %v305 = vunpack.c.l.b16 %v157
  %v306 = vunpack.c.h.b16 %v157
  %v307 = vunpack.c.l.b16 %v158
  %v308 = vunpack.c.h.b16 %v158
  %v309 = vunpack.c.l.b16 %v159
  %v310 = vunpack.c.h.b16 %v159
  %v311 = vunpack.c.l.b16 %v160
  %v312 = vunpack.c.h.b16 %v160
  %v313 = vunpack.c.l.b16 %v161
  %v314 = vunpack.c.h.b16 %v161
  %v315 = vunpack.c.l.b16 %v162
  %v316 = vunpack.c.h.b16 %v162
  %v317 = vunpack.c.l.b16 %v163
  %v318 = vunpack.c.h.b16 %v163
  %v319 = vunpack.c.l.b16 %v164
  %v320 = vunpack.c.h.b16 %v164
  %v321 = vunpack.c.l.b16 %v165
  %v322 = vunpack.c.h.b16 %v165
  %v323 = vunpack.c.l.b16 %v166
  %v324 = vunpack.c.h.b16 %v166
  %v325 = vunpack.c.l.b16 %v167
  %v326 = vunpack.c.h.b16 %v167
  %v327 = vunpack.c.l.b16 %v168
  %v328 = vunpack.c.h.b16 %v168
  %v329 = vunpack.c.l.b16 %v169
  %v330 = vunpack.c.h.b16 %v169
  %v331 = vunpack.c.l.b16 %v170
  %v332 = vunpack.c.h.b16 %v170
  %v333 = vunpack.c.l.b16 %v171
  %v334 = vunpack.c.h.b16 %v171
  %v335 = vunpack.c.l.b16 %v172
  %v336 = vunpack.c.h.b16 %v172
  %v337 = vunpack.c.l.b16 %v173
  %v338 = vunpack.c.h.b16 %v173
  %v339 = vunpack.c.l.b16 %v174
  %v340 = vunpack.c.h.b16 %v174
  %v341 = vunpack.c.l.b16 %v175
  %v342 = vunpack.c.h.b16 %v175
  %v343 = vunpack.c.l.b16 %v176
  %v344 = vunpack.c.h.b16 %v176
  %v345 = vunpack.c.l.b16 %v177
  %v346 = vunpack.c.h.b16 %v177
  %v347 = vunpack.c.l.b16 %v178
  %v348 = vunpack.c.h.b16 %v178
  %v349 = vunpack.c.l.b16 %v179
  %v350 = vunpack.c.h.b16 %v179
  %v351 = vunpack.c.l.b16 %v180
  %v352 = vunpack.c.h.b16 %v180
  %v353 = vunpack.c.l.b16 %v181
  %v354 = vunpack.c.h.b16 %v181
  %v355 = vunpack.c.l.b16 %v182
  %v356 = vunpack.c.h.b16 %v182
  %v357 = vunpack.c.l.b16 %v183
  %v358 = vunpack.c.h.b16 %v183
  %v359 = vunpack.c.l.b16 %v184
  %v360 = vunpack.c.h.b16 %v184
  %v361 = vunpack.c.l.b16 %v185
  %v362 = vunpack.c.h.b16 %v185
  %v363 = vunpack.c.l.b16 %v186
  %v364 = vunpack.c.h.b16 %v186
  %v365 = vunpack.c.l.b16 %v187
  %v366 = vunpack.c.h.b16 %v187
  %v367 = vunpack.c.l.b16 %v188
  %v368 = vunpack.c.h.b16 %v188
  %v369 = vunpack.c.l.b16 %v189
  %v370 = vunpack.c.h.b16 %v189
  %v371 = vunpack.c.l.b16 %v190
  %v372 = vunpack.c.h.b16 %v190
  %v373 = vunpack.c.l.b16 %v191
  %v374 = vunpack.c.h.b16 %v191
  %v375 = vunpack.c.l.b16 %v192
  %v376 = vunpack.c.h.b16 %v192
  %v377 = vunpack.c.l.b16 %v193
  %v378 = vunpack.c.h.b16 %v193
  %v379 = vunpack.c.l.b16 %v194
  %v380 = vunpack.c.h.b16 %v194
  %v381 = vunpack.c.l.b16 %v195
  %v382 = vunpack.c.h.b16 %v195
  %v383 = vunpack.c.l.b16 %v196
  %v384 = vunpack.c.h.b16 %v196
  %v385 = vunpack.c.l.b16 %v197
  %v386 = vunpack.c.h.b16 %v197
  %v387 = vunpack.c.l.b16 %v198
  %v388 = vunpack.c.h.b16 %v198
  %v389 = vunpack.c.l.b16 %v199
  %v390 = vunpack.c.h.b16 %v199
  %v391 = vunpack.c.l.b16 %v200
  %v392 = vunpack.c.h.b16 %v200
  %v393 = vunpack.c.l.b16 %v201
  %v394 = vunpack.c.h.b16 %v201
  %v395 = vunpack.c.l.b16 %v202
  %v396 = vunpack.c.h.b16 %v202
  %v397 = vunpack.c.l.b16 %v203
  %v398 = vunpack.c.h.b16 %v203
  %v399 = vunpack.c.l.b16 %v204
  %v400 = vunpack.c.h.b16 %v204
  %v401 = vunpack.c.l.b16 %v205
  %v402 = vunpack.c.h.b16 %v205
  %v403 = vunpack.c.l.b16 %v206
  %v404 = vunpack.c.h.b16 %v206
  %v405 = vunpack.c.l.b16 %v207
  %v406 = vunpack.c.h.b16 %v207
  %v407 = vunpack.c.l.b16 %v208
  %v408 = vunpack.c.h.b16 %v208
  %v409 = vunpack.c.l.b16 %v209
  %v410 = vunpack.c.h.b16 %v209
  %v411 = vunpack.c.l.b16 %v210
  %v412 = vunpack.c.h.b16 %v210
  %v413 = vunpack.c.l.b16 %v211
  %v414 = vunpack.c.h.b16 %v211
  %v415 = vunpack.c.l.b16 %v212
  %v416 = vunpack.c.h.b16 %v212
  %v417 = vunpack.c.l.b16 %v213
  %v418 = vunpack.c.h.b16 %v213
  %v419 = vunpack.c.l.b16 %v214
  %v420 = vunpack.c.h.b16 %v214
  %v421 = vunpack.c.l.b16 %v215
  %v422 = vunpack.c.h.b16 %v215
  %v423 = vunpack.c.l.b16 %v216
  %v424 = vunpack.c.h.b16 %v216
  %v425 = vunpack.c.l.b16 %v217
  %v426 = vunpack.c.h.b16 %v217
  %v427 = vunpack.c.l.b16 %v218
  %v428 = vunpack.c.h.b16 %v218
  %v429 = vpack.c.b16 %v303, %v301
  %v430 = vpack.c.b16 %v304, %v302
  %v431 = vpack.c.b16 %v307, %v305
  %v432 = vpack.c.b16 %v308, %v306
  %v433 = vpack.c.b16 %v311, %v309
  %v434 = vpack.c.b16 %v312, %v310
  %v435 = vpack.c.b16 %v315, %v313
  %v436 = vpack.c.b16 %v316, %v314
  %v437 = vpack.c.b16 %v319, %v317
  %v438 = vpack.c.b16 %v320, %v318
  %v439 = vpack.c.b16 %v323, %v321
  %v440 = vpack.c.b16 %v324, %v322
  %v441 = vpack.c.b16 %v327, %v325
  %v442 = vpack.c.b16 %v328, %v326
  %v443 = vpack.c.b16 %v331, %v329
  %v444 = vpack.c.b16 %v332, %v330
  %v445 = vpack.c.b16 %v335, %v333
  %v446 = vpack.c.b16 %v336, %v334
  %v447 = vpack.c.b16 %v339, %v337
  %v448 = vpack.c.b16 %v340, %v338
  %v449 = vpack.c.b16 %v343, %v341
  %v450 = vpack.c.b16 %v344, %v342
  %v451 = vpack.c.b16 %v347, %v345
  %v452 = vpack.c.b16 %v348, %v346
  %v453 = vpack.c.b16 %v351, %v349
  %v454 = vpack.c.b16 %v352, %v350
  %v455 = vpack.c.b16 %v355, %v353
  %v456 = vpack.c.b16 %v356, %v354
  %v457 = vpack.c.b16 %v359, %v357
  %v458 = vpack.c.b16 %v360, %v358
  %v459 = vpack.c.b16 %v363, %v361
  %v460 = vpack.c.b16 %v364, %v362
  %v461 = vpack.c.b16 %v367, %v365
  %v462 = vpack.c.b16 %v368, %v366
  %v463 = vpack.c.b16 %v371, %v369
  %v464 = vpack.c.b16 %v372, %v370
  %v465 = vpack.c.b16 %v375, %v373
  %v466 = vpack.c.b16 %v376, %v374
  %v467 = vpack.c.b16 %v379, %v377
  %v468 = vpack.c.b16 %v380, %v378
  %v469 = vpack.c.b16 %v383, %v381
  %v470 = vpack.c.b16 %v384, %v382
  %v471 = vpack.c.b16 %v387, %v385
  %v472 = vpack.c.b16 %v388, %v386
  %v473 = vpack.c.b16 %v391, %v389
  %v474 = vpack.c.b16 %v392, %v390
  %v475 = vpack.c.b16 %v395, %v393
  %v476 = vpack.c.b16 %v396, %v394
  %v477 = vpack.c.b16 %v399, %v397
  %v478 = vpack.c.b16 %v400, %v398
  %v479 = vpack.c.b16 %v403, %v401
  %v480 = vpack.c.b16 %v404, %v402
  %v481 = vpack.c.b16 %v407, %v405
  %v482 = vpack.c.b16 %v408, %v406
  %v483 = vpack.c.b16 %v411, %v409
  %v484 = vpack.c.b16 %v412, %v410
  %v485 = vpack.c.b16 %v415, %v413
  %v486 = vpack.c.b16 %v416, %v414
  %v487 = vpack.c.b16 %v419, %v417
  %v488 = vpack.c.b16 %v420, %v418
  %v489 = vpack.c.b16 %v423, %v421
  %v490 = vpack.c.b16 %v424, %v422
  %v491 = vpack.c.b16 %v427, %v425
  %v492 = vpack.c.b16 %v428, %v426
  %v543 = vunpack.c.l.b16 %v219
  %v544 = vunpack.c.l.b16 %v220
  %v545 = vunpack.c.l.b16 %v221
  %v546 = vunpack.c.l.b16 %v222
  %v547 = vunpack.c.l.b16 %v223
  %v548 = vunpack.c.l.b16 %v224
  %v549 = vunpack.c.l.b16 %v225
  %v550 = vunpack.c.l.b16 %v226
  %v551 = vunpack.c.l.b16 %v227
  %v552 = vunpack.c.l.b16 %v228
  %v553 = vunpack.c.l.b16 %v229
  %v554 = vunpack.c.l.b16 %v230
  %v555 = vunpack.c.l.b16 %v231
  %v556 = vunpack.c.l.b16 %v232
  %v557 = vunpack.c.l.b16 %v233
  %v558 = vunpack.c.l.b16 %v234
  %v559 = vunpack.c.l.b16 %v235
  %v560 = vunpack.c.l.b16 %v236
  %v561 = vpack.c.b16 %v544, %v543
  %v562 = vpack.c.b16 %v546, %v545
  %v563 = vpack.c.b16 %v548, %v547
  %v564 = vpack.c.b16 %v550, %v549
  %v565 = vpack.c.b16 %v552, %v551
  %v566 = vpack.c.b16 %v554, %v553
  %v567 = vpack.c.b16 %v556, %v555
  %v568 = vpack.c.b16 %v558, %v557
  %v569 = vpack.c.b16 %v560, %v559
  %vm579 = vcmask 130048
  %v581 = vsel %vm579, %v430, 0
  %v584 = vsel %vm579, %v432, 0
  %v587 = vsel %vm579, %v434, 0
  %v590 = vsel %vm579, %v436, 0
  %v593 = vsel %vm579, %v438, 0
  %v596 = vsel %vm579, %v440, 0
  %v599 = vsel %vm579, %v442, 0
  %v602 = vsel %vm579, %v444, 0
  %v605 = vsel %vm579, %v446, 0
  %v608 = vsel %vm579, %v448, 0
  %v611 = vsel %vm579, %v450, 0
  %v614 = vsel %vm579, %v452, 0
  %v617 = vsel %vm579, %v454, 0
  %v620 = vsel %vm579, %v456, 0
  %v623 = vsel %vm579, %v458, 0
  %v626 = vsel %vm579, %v460, 0
  %v629 = vsel %vm579, %v462, 0
  %v632 = vsel %vm579, %v464, 0
  %v635 = vsel %vm579, %v466, 0
  %v638 = vsel %vm579, %v468, 0
  %v641 = vsel %vm579, %v470, 0
  %v644 = vsel %vm579, %v472, 0
  %v647 = vsel %vm579, %v474, 0
  %v650 = vsel %vm579, %v476, 0
  %v653 = vsel %vm579, %v478, 0
  %v656 = vsel %vm579, %v480, 0
  %v659 = vsel %vm579, %v482, 0
  %v662 = vsel %vm579, %v484, 0
  %v665 = vsel %vm579, %v486, 0
  %v668 = vsel %vm579, %v488, 0
  %v671 = vsel %vm579, %v490, 0
  %v674 = vsel %vm579, %v492, 0
  %676 = vmatprep.subr.bf16.mxu0 0
  %677 = vmatpush1.bf16.msra.mxu0 %v568
  %678 = vmatprep.subr.bf16.mxu0 0
  %679 = vmatpush1.bf16.msra.mxu0 %v567
  %680 = vmatprep.subr.bf16.mxu0 0
  %681 = vmatpush1.bf16.msra.mxu0 %v566
  %682 = vmatprep.subr.bf16.mxu0 0
  %683 = vmatpush1.bf16.msra.mxu0 %v565
  %684 = vmatprep.subr.bf16.mxu0 0
  %685 = vmatpush1.bf16.msra.mxu0 %v564
  %686 = vmatprep.subr.bf16.mxu0 0
  %687 = vmatpush1.bf16.msra.mxu0 %v563
  %688 = vmatprep.subr.bf16.mxu0 0
  %689 = vmatpush1.bf16.msra.mxu0 %v562
  %690 = vmatprep.subr.bf16.mxu0 0
  %691 = vmatpush1.bf16.msra.mxu0 %v561
  %692 = vmatprep.subr.bf16.mxu0 0
  %693 = vmatpush2.bf16.msra.mxu0 0
  %694 = vmatprep.subr.bf16.mxu0 0
  %695 = vmatpush2.bf16.msra.mxu0 0
  %696 = vmatprep.subr.bf16.mxu0 0
  %697 = vmatpush2.bf16.msra.mxu0 0
  %698 = vmatprep.subr.bf16.mxu0 0
  %699 = vmatpush2.bf16.msra.mxu0 0
  %700 = vmatprep.subr.bf16.mxu0 0
  %701 = vmatpush2.bf16.msra.mxu0 0
  %702 = vmatprep.subr.bf16.mxu0 0
  %703 = vmatpush2.bf16.msra.mxu0 0
  %704 = vmatprep.subr.bf16.mxu0 0
  %705 = vmatpush2.bf16.msra.mxu0 0
  %706 = vmatprep.subr.bf16.mxu0 0
  %707 = vmatpush2.bf16.msra.mxu0 %v569
  %708 = vmatprep.mubr.bf16.mxu0 %v581
  %709 = vmatmul.mubr.bf16.gmra.mxu0 %v429
  %v710 = vpop.f32.mrf.mxu0
  %v711 = vadd.f32 0.0, %v710
  %v712 = vpop.f32.mrf.mxu0
  %v713 = vpop.f32.mrf.mxu0
  %v714 = vadd.f32 0.0, %v713
  %v715 = vpop.f32.mrf.mxu0
  %716 = vmatprep.mubr.bf16.mxu0 %v584
  %717 = vmatmul.mubr.bf16.gmra.mxu0 %v431
  %v718 = vpop.f32.mrf.mxu0
  %v719 = vadd.f32 0.0, %v718
  %v720 = vpop.f32.mrf.mxu0
  %v721 = vpop.f32.mrf.mxu0
  %v722 = vadd.f32 0.0, %v721
  %v723 = vpop.f32.mrf.mxu0
  %724 = vmatprep.mubr.bf16.mxu0 %v587
  %725 = vmatmul.mubr.bf16.gmra.mxu0 %v433
  %v726 = vpop.f32.mrf.mxu0
  %v727 = vadd.f32 0.0, %v726
  %v728 = vpop.f32.mrf.mxu0
  %v729 = vpop.f32.mrf.mxu0
  %v730 = vadd.f32 0.0, %v729
  %v731 = vpop.f32.mrf.mxu0
  %732 = vmatprep.mubr.bf16.mxu0 %v590
  %733 = vmatmul.mubr.bf16.gmra.mxu0 %v435
  %v734 = vpop.f32.mrf.mxu0
  %v735 = vadd.f32 0.0, %v734
  %v736 = vpop.f32.mrf.mxu0
  %v737 = vpop.f32.mrf.mxu0
  %v738 = vadd.f32 0.0, %v737
  %v739 = vpop.f32.mrf.mxu0
  %740 = vmatprep.mubr.bf16.mxu0 %v593
  %741 = vmatmul.mubr.bf16.gmra.mxu0 %v437
  %v742 = vpop.f32.mrf.mxu0
  %v743 = vadd.f32 0.0, %v742
  %v744 = vpop.f32.mrf.mxu0
  %v745 = vpop.f32.mrf.mxu0
  %v746 = vadd.f32 0.0, %v745
  %v747 = vpop.f32.mrf.mxu0
  %748 = vmatprep.mubr.bf16.mxu0 %v596
  %749 = vmatmul.mubr.bf16.gmra.mxu0 %v439
  %v750 = vpop.f32.mrf.mxu0
  %v751 = vadd.f32 0.0, %v750
  %v752 = vpop.f32.mrf.mxu0
  %v753 = vpop.f32.mrf.mxu0
  %v754 = vadd.f32 0.0, %v753
  %v755 = vpop.f32.mrf.mxu0
  %756 = vmatprep.mubr.bf16.mxu0 %v599
  %757 = vmatmul.mubr.bf16.gmra.mxu0 %v441
  %v758 = vpop.f32.mrf.mxu0
  %v759 = vadd.f32 0.0, %v758
  %v760 = vpop.f32.mrf.mxu0
  %v761 = vpop.f32.mrf.mxu0
  %v762 = vadd.f32 0.0, %v761
  %v763 = vpop.f32.mrf.mxu0
  %764 = vmatprep.mubr.bf16.mxu0 %v602
  %765 = vmatmul.mubr.bf16.gmra.mxu0 %v443
  %v766 = vpop.f32.mrf.mxu0
  %v767 = vadd.f32 0.0, %v766
  %v768 = vpop.f32.mrf.mxu0
  %v769 = vpop.f32.mrf.mxu0
  %v770 = vadd.f32 0.0, %v769
  %v771 = vpop.f32.mrf.mxu0
  %772 = vmatprep.mubr.bf16.mxu0 %v605
  %773 = vmatmul.mubr.bf16.gmra.mxu0 %v445
  %v774 = vpop.f32.mrf.mxu0
  %v775 = vadd.f32 0.0, %v774
  %v776 = vpop.f32.mrf.mxu0
  %v777 = vpop.f32.mrf.mxu0
  %v778 = vadd.f32 0.0, %v777
  %v779 = vpop.f32.mrf.mxu0
  %780 = vmatprep.mubr.bf16.mxu0 %v608
  %781 = vmatmul.mubr.bf16.gmra.mxu0 %v447
  %v782 = vpop.f32.mrf.mxu0
  %v783 = vadd.f32 0.0, %v782
  %v784 = vpop.f32.mrf.mxu0
  %v785 = vpop.f32.mrf.mxu0
  %v786 = vadd.f32 0.0, %v785
  %v787 = vpop.f32.mrf.mxu0
  %788 = vmatprep.mubr.bf16.mxu0 %v611
  %789 = vmatmul.mubr.bf16.gmra.mxu0 %v449
  %v790 = vpop.f32.mrf.mxu0
  %v791 = vadd.f32 0.0, %v790
  %v792 = vpop.f32.mrf.mxu0
  %v793 = vpop.f32.mrf.mxu0
  %v794 = vadd.f32 0.0, %v793
  %v795 = vpop.f32.mrf.mxu0
  %796 = vmatprep.mubr.bf16.mxu0 %v614
  %797 = vmatmul.mubr.bf16.gmra.mxu0 %v451
  %v798 = vpop.f32.mrf.mxu0
  %v799 = vadd.f32 0.0, %v798
  %v800 = vpop.f32.mrf.mxu0
  %v801 = vpop.f32.mrf.mxu0
  %v802 = vadd.f32 0.0, %v801
  %v803 = vpop.f32.mrf.mxu0
  %804 = vmatprep.mubr.bf16.mxu0 %v617
  %805 = vmatmul.mubr.bf16.gmra.mxu0 %v453
  %v806 = vpop.f32.mrf.mxu0
  %v807 = vadd.f32 0.0, %v806
  %v808 = vpop.f32.mrf.mxu0
  %v809 = vpop.f32.mrf.mxu0
  %v810 = vadd.f32 0.0, %v809
  %v811 = vpop.f32.mrf.mxu0
  %812 = vmatprep.mubr.bf16.mxu0 %v620
  %813 = vmatmul.mubr.bf16.gmra.mxu0 %v455
  %v814 = vpop.f32.mrf.mxu0
  %v815 = vadd.f32 0.0, %v814
  %v816 = vpop.f32.mrf.mxu0
  %v817 = vpop.f32.mrf.mxu0
  %v818 = vadd.f32 0.0, %v817
  %v819 = vpop.f32.mrf.mxu0
  %820 = vmatprep.mubr.bf16.mxu0 %v623
  %821 = vmatmul.mubr.bf16.gmra.mxu0 %v457
  %v822 = vpop.f32.mrf.mxu0
  %v823 = vadd.f32 0.0, %v822
  %v824 = vpop.f32.mrf.mxu0
  %v825 = vpop.f32.mrf.mxu0
  %v826 = vadd.f32 0.0, %v825
  %v827 = vpop.f32.mrf.mxu0
  %828 = vmatprep.mubr.bf16.mxu0 %v626
  %829 = vmatmul.mubr.bf16.gmra.mxu0 %v459
  %v830 = vpop.f32.mrf.mxu0
  %v831 = vadd.f32 0.0, %v830
  %v832 = vpop.f32.mrf.mxu0
  %v833 = vpop.f32.mrf.mxu0
  %v834 = vadd.f32 0.0, %v833
  %v835 = vpop.f32.mrf.mxu0
  %836 = vmatprep.mubr.bf16.mxu0 %v629
  %837 = vmatmul.mubr.bf16.gmra.mxu0 %v461
  %v838 = vpop.f32.mrf.mxu0
  %v839 = vadd.f32 0.0, %v838
  %v840 = vpop.f32.mrf.mxu0
  %v841 = vpop.f32.mrf.mxu0
  %v842 = vadd.f32 0.0, %v841
  %v843 = vpop.f32.mrf.mxu0
  %844 = vmatprep.mubr.bf16.mxu0 %v632
  %845 = vmatmul.mubr.bf16.gmra.mxu0 %v463
  %v846 = vpop.f32.mrf.mxu0
  %v847 = vadd.f32 0.0, %v846
  %v848 = vpop.f32.mrf.mxu0
  %v849 = vpop.f32.mrf.mxu0
  %v850 = vadd.f32 0.0, %v849
  %v851 = vpop.f32.mrf.mxu0
  %852 = vmatprep.mubr.bf16.mxu0 %v635
  %853 = vmatmul.mubr.bf16.gmra.mxu0 %v465
  %v854 = vpop.f32.mrf.mxu0
  %v855 = vadd.f32 0.0, %v854
  %v856 = vpop.f32.mrf.mxu0
  %v857 = vpop.f32.mrf.mxu0
  %v858 = vadd.f32 0.0, %v857
  %v859 = vpop.f32.mrf.mxu0
  %860 = vmatprep.mubr.bf16.mxu0 %v638
  %861 = vmatmul.mubr.bf16.gmra.mxu0 %v467
  %v862 = vpop.f32.mrf.mxu0
  %v863 = vadd.f32 0.0, %v862
  %v864 = vpop.f32.mrf.mxu0
  %v865 = vpop.f32.mrf.mxu0
  %v866 = vadd.f32 0.0, %v865
  %v867 = vpop.f32.mrf.mxu0
  %868 = vmatprep.mubr.bf16.mxu0 %v641
  %869 = vmatmul.mubr.bf16.gmra.mxu0 %v469
  %v870 = vpop.f32.mrf.mxu0
  %v871 = vadd.f32 0.0, %v870
  %v872 = vpop.f32.mrf.mxu0
  %v873 = vpop.f32.mrf.mxu0
  %v874 = vadd.f32 0.0, %v873
  %v875 = vpop.f32.mrf.mxu0
  %876 = vmatprep.mubr.bf16.mxu0 %v644
  %877 = vmatmul.mubr.bf16.gmra.mxu0 %v471
  %v878 = vpop.f32.mrf.mxu0
  %v879 = vadd.f32 0.0, %v878
  %v880 = vpop.f32.mrf.mxu0
  %v881 = vpop.f32.mrf.mxu0
  %v882 = vadd.f32 0.0, %v881
  %v883 = vpop.f32.mrf.mxu0
  %884 = vmatprep.mubr.bf16.mxu0 %v647
  %885 = vmatmul.mubr.bf16.gmra.mxu0 %v473
  %v886 = vpop.f32.mrf.mxu0
  %v887 = vadd.f32 0.0, %v886
  %v888 = vpop.f32.mrf.mxu0
  %v889 = vpop.f32.mrf.mxu0
  %v890 = vadd.f32 0.0, %v889
  %v891 = vpop.f32.mrf.mxu0
  %892 = vmatprep.mubr.bf16.mxu0 %v650
  %893 = vmatmul.mubr.bf16.gmra.mxu0 %v475
  %v894 = vpop.f32.mrf.mxu0
  %v895 = vadd.f32 0.0, %v894
  %v896 = vpop.f32.mrf.mxu0
  %v897 = vpop.f32.mrf.mxu0
  %v898 = vadd.f32 0.0, %v897
  %v899 = vpop.f32.mrf.mxu0
  %900 = vmatprep.mubr.bf16.mxu0 %v653
  %901 = vmatmul.mubr.bf16.gmra.mxu0 %v477
  %v902 = vpop.f32.mrf.mxu0
  %v903 = vadd.f32 0.0, %v902
  %v904 = vpop.f32.mrf.mxu0
  %v905 = vpop.f32.mrf.mxu0
  %v906 = vadd.f32 0.0, %v905
  %v907 = vpop.f32.mrf.mxu0
  %908 = vmatprep.mubr.bf16.mxu0 %v656
  %909 = vmatmul.mubr.bf16.gmra.mxu0 %v479
  %v910 = vpop.f32.mrf.mxu0
  %v911 = vadd.f32 0.0, %v910
  %v912 = vpop.f32.mrf.mxu0
  %v913 = vpop.f32.mrf.mxu0
  %v914 = vadd.f32 0.0, %v913
  %v915 = vpop.f32.mrf.mxu0
  %916 = vmatprep.mubr.bf16.mxu0 %v659
  %917 = vmatmul.mubr.bf16.gmra.mxu0 %v481
  %v918 = vpop.f32.mrf.mxu0
  %v919 = vadd.f32 0.0, %v918
  %v920 = vpop.f32.mrf.mxu0
  %v921 = vpop.f32.mrf.mxu0
  %v922 = vadd.f32 0.0, %v921
  %v923 = vpop.f32.mrf.mxu0
  %924 = vmatprep.mubr.bf16.mxu0 %v662
  %925 = vmatmul.mubr.bf16.gmra.mxu0 %v483
  %v926 = vpop.f32.mrf.mxu0
  %v927 = vadd.f32 0.0, %v926
  %v928 = vpop.f32.mrf.mxu0
  %v929 = vpop.f32.mrf.mxu0
  %v930 = vadd.f32 0.0, %v929
  %v931 = vpop.f32.mrf.mxu0
  %932 = vmatprep.mubr.bf16.mxu0 %v665
  %933 = vmatmul.mubr.bf16.gmra.mxu0 %v485
  %v934 = vpop.f32.mrf.mxu0
  %v935 = vadd.f32 0.0, %v934
  %v936 = vpop.f32.mrf.mxu0
  %v937 = vpop.f32.mrf.mxu0
  %v938 = vadd.f32 0.0, %v937
  %v939 = vpop.f32.mrf.mxu0
  %940 = vmatprep.mubr.bf16.mxu0 %v668
  %941 = vmatmul.mubr.bf16.gmra.mxu0 %v487
  %v942 = vpop.f32.mrf.mxu0
  %v943 = vadd.f32 0.0, %v942
  %v944 = vpop.f32.mrf.mxu0
  %v945 = vpop.f32.mrf.mxu0
  %v946 = vadd.f32 0.0, %v945
  %v947 = vpop.f32.mrf.mxu0
  %948 = vmatprep.mubr.bf16.mxu0 %v671
  %949 = vmatmul.mubr.bf16.gmra.mxu0 %v489
  %v950 = vpop.f32.mrf.mxu0
  %v951 = vadd.f32 0.0, %v950
  %v952 = vpop.f32.mrf.mxu0
  %v953 = vpop.f32.mrf.mxu0
  %v954 = vadd.f32 0.0, %v953
  %v955 = vpop.f32.mrf.mxu0
  %956 = vmatprep.mubr.bf16.mxu0 %v674
  %957 = vmatmul.mubr.bf16.gmra.mxu0 %v491
  %v958 = vpop.f32.mrf.mxu0
  %v959 = vadd.f32 0.0, %v958
  %v960 = vpop.f32.mrf.mxu0
  %v961 = vpop.f32.mrf.mxu0
  %v962 = vadd.f32 0.0, %v961
  %v963 = vpop.f32.mrf.mxu0
  %964 = vdwg.mxu0
  %v965 = vadd.f32 %v91, %v711
  %v966 = vadd.f32 %v92, %v714
  %v967 = vadd.f32 %v93, %v719
  %v968 = vadd.f32 %v94, %v722
  %v969 = vadd.f32 %v95, %v727
  %v970 = vadd.f32 %v96, %v730
  %v971 = vadd.f32 %v97, %v735
  %v972 = vadd.f32 %v98, %v738
  %v973 = vadd.f32 %v99, %v743
  %v974 = vadd.f32 %v100, %v746
  %v975 = vadd.f32 %v101, %v751
  %v976 = vadd.f32 %v102, %v754
  %v977 = vadd.f32 %v103, %v759
  %v978 = vadd.f32 %v104, %v762
  %v979 = vadd.f32 %v105, %v767
  %v980 = vadd.f32 %v106, %v770
  %v981 = vadd.f32 %v107, %v775
  %v982 = vadd.f32 %v108, %v778
  %v983 = vadd.f32 %v109, %v783
  %v984 = vadd.f32 %v110, %v786
  %v985 = vadd.f32 %v111, %v791
  %v986 = vadd.f32 %v112, %v794
  %v987 = vadd.f32 %v113, %v799
  %v988 = vadd.f32 %v114, %v802
  %v989 = vadd.f32 %v115, %v807
  %v990 = vadd.f32 %v116, %v810
  %v991 = vadd.f32 %v117, %v815
  %v992 = vadd.f32 %v118, %v818
  %v993 = vadd.f32 %v119, %v823
  %v994 = vadd.f32 %v120, %v826
  %v995 = vadd.f32 %v121, %v831
  %v996 = vadd.f32 %v122, %v834
  %v997 = vadd.f32 %v123, %v839
  %v998 = vadd.f32 %v124, %v842
  %v999 = vadd.f32 %v125, %v847
  %v1000 = vadd.f32 %v126, %v850
  %v1001 = vadd.f32 %v127, %v855
  %v1002 = vadd.f32 %v128, %v858
  %v1003 = vadd.f32 %v129, %v863
  %v1004 = vadd.f32 %v130, %v866
  %v1005 = vadd.f32 %v131, %v871
  %v1006 = vadd.f32 %v132, %v874
  %v1007 = vadd.f32 %v133, %v879
  %v1008 = vadd.f32 %v134, %v882
  %v1009 = vadd.f32 %v135, %v887
  %v1010 = vadd.f32 %v136, %v890
  %v1011 = vadd.f32 %v137, %v895
  %v1012 = vadd.f32 %v138, %v898
  %v1013 = vadd.f32 %v139, %v903
  %v1014 = vadd.f32 %v140, %v906
  %v1015 = vadd.f32 %v141, %v911
  %v1016 = vadd.f32 %v142, %v914
  %v1017 = vadd.f32 %v143, %v919
  %v1018 = vadd.f32 %v144, %v922
  %v1019 = vadd.f32 %v145, %v927
  %v1020 = vadd.f32 %v146, %v930
  %v1021 = vadd.f32 %v147, %v935
  %v1022 = vadd.f32 %v148, %v938
  %v1023 = vadd.f32 %v149, %v943
  %v1024 = vadd.f32 %v150, %v946
  %v1025 = vadd.f32 %v151, %v951
  %v1026 = vadd.f32 %v152, %v954
  %v1027 = vadd.f32 %v153, %v959
  %v1028 = vadd.f32 %v154, %v962
  %vm1029 = vcmask 97280
  %1030 = vst.msk [vmem:[#allocation2] sm:$0xff] %vm1029, %v965
  %1031 = vst.msk [vmem:[#allocation2 + $0x8] sm:$0xff] %vm1029, %v966
  %1032 = vst.msk [vmem:[#allocation2 + $0x10] sm:$0xff] %vm1029, %v967
  %1033 = vst.msk [vmem:[#allocation2 + $0x18] sm:$0xff] %vm1029, %v968
  %1034 = vst.msk [vmem:[#allocation2 + $0x20] sm:$0xff] %vm1029, %v969
  %1035 = vst.msk [vmem:[#allocation2 + $0x28] sm:$0xff] %vm1029, %v970
  %1036 = vst.msk [vmem:[#allocation2 + $0x30] sm:$0xff] %vm1029, %v971
  %1037 = vst.msk [vmem:[#allocation2 + $0x38] sm:$0xff] %vm1029, %v972
  %1038 = vst.msk [vmem:[#allocation2 + $0x40] sm:$0xff] %vm1029, %v973
  %1039 = vst.msk [vmem:[#allocation2 + $0x48] sm:$0xff] %vm1029, %v974
  %1040 = vst.msk [vmem:[#allocation2 + $0x50] sm:$0xff] %vm1029, %v975
  %1041 = vst.msk [vmem:[#allocation2 + $0x58] sm:$0xff] %vm1029, %v976
  %1042 = vst.msk [vmem:[#allocation2 + $0x60] sm:$0xff] %vm1029, %v977
  %1043 = vst.msk [vmem:[#allocation2 + $0x68] sm:$0xff] %vm1029, %v978
  %1044 = vst.msk [vmem:[#allocation2 + $0x70] sm:$0xff] %vm1029, %v979
  %1045 = vst.msk [vmem:[#allocation2 + $0x78] sm:$0xff] %vm1029, %v980
  %1046 = vst.msk [vmem:[#allocation2 + $0x80] sm:$0xff] %vm1029, %v981
  %1047 = vst.msk [vmem:[#allocation2 + $0x88] sm:$0xff] %vm1029, %v982
  %1048 = vst.msk [vmem:[#allocation2 + $0x90] sm:$0xff] %vm1029, %v983
  %1049 = vst.msk [vmem:[#allocation2 + $0x98] sm:$0xff] %vm1029, %v984
  %1050 = vst.msk [vmem:[#allocation2 + $0xa0] sm:$0xff] %vm1029, %v985
  %1051 = vst.msk [vmem:[#allocation2 + $0xa8] sm:$0xff] %vm1029, %v986
  %1052 = vst.msk [vmem:[#allocation2 + $0xb0] sm:$0xff] %vm1029, %v987
  %1053 = vst.msk [vmem:[#allocation2 + $0xb8] sm:$0xff] %vm1029, %v988
  %1054 = vst.msk [vmem:[#allocation2 + $0xc0] sm:$0xff] %vm1029, %v989
  %1055 = vst.msk [vmem:[#allocation2 + $0xc8] sm:$0xff] %vm1029, %v990
  %1056 = vst.msk [vmem:[#allocation2 + $0xd0] sm:$0xff] %vm1029, %v991
  %1057 = vst.msk [vmem:[#allocation2 + $0xd8] sm:$0xff] %vm1029, %v992
  %1058 = vst.msk [vmem:[#allocation2 + $0xe0] sm:$0xff] %vm1029, %v993
  %1059 = vst.msk [vmem:[#allocation2 + $0xe8] sm:$0xff] %vm1029, %v994
  %1060 = vst.msk [vmem:[#allocation2 + $0xf0] sm:$0xff] %vm1029, %v995
  %1061 = vst.msk [vmem:[#allocation2 + $0xf8] sm:$0xff] %vm1029, %v996
  %1062 = vst.msk [vmem:[#allocation2 + $0x100] sm:$0xff] %vm1029, %v997
  %1063 = vst.msk [vmem:[#allocation2 + $0x108] sm:$0xff] %vm1029, %v998
  %1064 = vst.msk [vmem:[#allocation2 + $0x110] sm:$0xff] %vm1029, %v999
  %1065 = vst.msk [vmem:[#allocation2 + $0x118] sm:$0xff] %vm1029, %v1000
  %1066 = vst.msk [vmem:[#allocation2 + $0x120] sm:$0xff] %vm1029, %v1001
  %1067 = vst.msk [vmem:[#allocation2 + $0x128] sm:$0xff] %vm1029, %v1002
  %1068 = vst.msk [vmem:[#allocation2 + $0x130] sm:$0xff] %vm1029, %v1003
  %1069 = vst.msk [vmem:[#allocation2 + $0x138] sm:$0xff] %vm1029, %v1004
  %1070 = vst.msk [vmem:[#allocation2 + $0x140] sm:$0xff] %vm1029, %v1005
  %1071 = vst.msk [vmem:[#allocation2 + $0x148] sm:$0xff] %vm1029, %v1006
  %1072 = vst.msk [vmem:[#allocation2 + $0x150] sm:$0xff] %vm1029, %v1007
  %1073 = vst.msk [vmem:[#allocation2 + $0x158] sm:$0xff] %vm1029, %v1008
  %1074 = vst.msk [vmem:[#allocation2 + $0x160] sm:$0xff] %vm1029, %v1009
  %1075 = vst.msk [vmem:[#allocation2 + $0x168] sm:$0xff] %vm1029, %v1010
  %1076 = vst.msk [vmem:[#allocation2 + $0x170] sm:$0xff] %vm1029, %v1011
  %1077 = vst.msk [vmem:[#allocation2 + $0x178] sm:$0xff] %vm1029, %v1012
  %1078 = vst.msk [vmem:[#allocation2 + $0x180] sm:$0xff] %vm1029, %v1013
  %1079 = vst.msk [vmem:[#allocation2 + $0x188] sm:$0xff] %vm1029, %v1014
  %1080 = vst.msk [vmem:[#allocation2 + $0x190] sm:$0xff] %vm1029, %v1015
  %1081 = vst.msk [vmem:[#allocation2 + $0x198] sm:$0xff] %vm1029, %v1016
  %1082 = vst.msk [vmem:[#allocation2 + $0x1a0] sm:$0xff] %vm1029, %v1017
  %1083 = vst.msk [vmem:[#allocation2 + $0x1a8] sm:$0xff] %vm1029, %v1018
  %1084 = vst.msk [vmem:[#allocation2 + $0x1b0] sm:$0xff] %vm1029, %v1019
  %1085 = vst.msk [vmem:[#allocation2 + $0x1b8] sm:$0xff] %vm1029, %v1020
  %1086 = vst.msk [vmem:[#allocation2 + $0x1c0] sm:$0xff] %vm1029, %v1021
  %1087 = vst.msk [vmem:[#allocation2 + $0x1c8] sm:$0xff] %vm1029, %v1022
  %1088 = vst.msk [vmem:[#allocation2 + $0x1d0] sm:$0xff] %vm1029, %v1023
  %1089 = vst.msk [vmem:[#allocation2 + $0x1d8] sm:$0xff] %vm1029, %v1024
  %1090 = vst.msk [vmem:[#allocation2 + $0x1e0] sm:$0xff] %vm1029, %v1025
  %1091 = vst.msk [vmem:[#allocation2 + $0x1e8] sm:$0xff] %vm1029, %v1026
  %1092 = vst.msk [vmem:[#allocation2 + $0x1f0] sm:$0xff] %vm1029, %v1027
  %1093 = vst.msk [vmem:[#allocation2 + $0x1f8] sm:$0xff] %vm1029, %v1028
  // Predicated region
  $region18: #{unet_generator.19} parent=0 // pred_check
    %p1094 = pneg %p15
  $region19: #{unet_generator.19} parent=0 // pred_check_branch
    %1096 = sbr.rel (%p1094) target = $region21
  $region20: #{unet_generator.19} parent=0 // pred_region
    %v1097 = vld [vmem:[#allocation2] sm:$0xff]
    %v1098 = vld [vmem:[#allocation2 + $0x8] sm:$0xff]
    %v1099 = vld [vmem:[#allocation2 + $0x10] sm:$0xff]
    %v1100 = vld [vmem:[#allocation2 + $0x18] sm:$0xff]
    %v1101 = vld [vmem:[#allocation2 + $0x20] sm:$0xff]
    %v1102 = vld [vmem:[#allocation2 + $0x28] sm:$0xff]
    %v1103 = vld [vmem:[#allocation2 + $0x30] sm:$0xff]
    %v1104 = vld [vmem:[#allocation2 + $0x38] sm:$0xff]
    %v1105 = vld [vmem:[#allocation2 + $0x40] sm:$0xff]
    %v1106 = vld [vmem:[#allocation2 + $0x48] sm:$0xff]
    %v1107 = vld [vmem:[#allocation2 + $0x50] sm:$0xff]
    %v1108 = vld [vmem:[#allocation2 + $0x58] sm:$0xff]
    %v1109 = vld [vmem:[#allocation2 + $0x60] sm:$0xff]
    %v1110 = vld [vmem:[#allocation2 + $0x68] sm:$0xff]
    %v1111 = vld [vmem:[#allocation2 + $0x70] sm:$0xff]
    %v1112 = vld [vmem:[#allocation2 + $0x78] sm:$0xff]
    %v1113 = vld [vmem:[#allocation2 + $0x80] sm:$0xff]
    %v1114 = vld [vmem:[#allocation2 + $0x88] sm:$0xff]
    %v1115 = vld [vmem:[#allocation2 + $0x90] sm:$0xff]
    %v1116 = vld [vmem:[#allocation2 + $0x98] sm:$0xff]
    %v1117 = vld [vmem:[#allocation2 + $0xa0] sm:$0xff]
    %v1118 = vld [vmem:[#allocation2 + $0xa8] sm:$0xff]
    %v1119 = vld [vmem:[#allocation2 + $0xb0] sm:$0xff]
    %v1120 = vld [vmem:[#allocation2 + $0xb8] sm:$0xff]
    %v1121 = vld [vmem:[#allocation2 + $0xc0] sm:$0xff]
    %v1122 = vld [vmem:[#allocation2 + $0xc8] sm:$0xff]
    %v1123 = vld [vmem:[#allocation2 + $0xd0] sm:$0xff]
    %v1124 = vld [vmem:[#allocation2 + $0xd8] sm:$0xff]
    %v1125 = vld [vmem:[#allocation2 + $0xe0] sm:$0xff]
    %v1126 = vld [vmem:[#allocation2 + $0xe8] sm:$0xff]
    %v1127 = vld [vmem:[#allocation2 + $0xf0] sm:$0xff]
    %v1128 = vld [vmem:[#allocation2 + $0xf8] sm:$0xff]
    %v1129 = vld [vmem:[#allocation2 + $0x100] sm:$0xff]
    %v1130 = vld [vmem:[#allocation2 + $0x108] sm:$0xff]
    %v1131 = vld [vmem:[#allocation2 + $0x110] sm:$0xff]
    %v1132 = vld [vmem:[#allocation2 + $0x118] sm:$0xff]
    %v1133 = vld [vmem:[#allocation2 + $0x120] sm:$0xff]
    %v1134 = vld [vmem:[#allocation2 + $0x128] sm:$0xff]
    %v1135 = vld [vmem:[#allocation2 + $0x130] sm:$0xff]
    %v1136 = vld [vmem:[#allocation2 + $0x138] sm:$0xff]
    %v1137 = vld [vmem:[#allocation2 + $0x140] sm:$0xff]
    %v1138 = vld [vmem:[#allocation2 + $0x148] sm:$0xff]
    %v1139 = vld [vmem:[#allocation2 + $0x150] sm:$0xff]
    %v1140 = vld [vmem:[#allocation2 + $0x158] sm:$0xff]
    %v1141 = vld [vmem:[#allocation2 + $0x160] sm:$0xff]
    %v1142 = vld [vmem:[#allocation2 + $0x168] sm:$0xff]
    %v1143 = vld [vmem:[#allocation2 + $0x170] sm:$0xff]
    %v1144 = vld [vmem:[#allocation2 + $0x178] sm:$0xff]
    %v1145 = vld [vmem:[#allocation2 + $0x180] sm:$0xff]
    %v1146 = vld [vmem:[#allocation2 + $0x188] sm:$0xff]
    %v1147 = vld [vmem:[#allocation2 + $0x190] sm:$0xff]
    %v1148 = vld [vmem:[#allocation2 + $0x198] sm:$0xff]
    %v1149 = vld [vmem:[#allocation2 + $0x1a0] sm:$0xff]
    %v1150 = vld [vmem:[#allocation2 + $0x1a8] sm:$0xff]
    %v1151 = vld [vmem:[#allocation2 + $0x1b0] sm:$0xff]
    %v1152 = vld [vmem:[#allocation2 + $0x1b8] sm:$0xff]
    %v1153 = vld [vmem:[#allocation2 + $0x1c0] sm:$0xff]
    %v1154 = vld [vmem:[#allocation2 + $0x1c8] sm:$0xff]
    %v1155 = vld [vmem:[#allocation2 + $0x1d0] sm:$0xff]
    %v1156 = vld [vmem:[#allocation2 + $0x1d8] sm:$0xff]
    %v1157 = vld [vmem:[#allocation2 + $0x1e0] sm:$0xff]
    %v1158 = vld [vmem:[#allocation2 + $0x1e8] sm:$0xff]
    %v1159 = vld [vmem:[#allocation2 + $0x1f0] sm:$0xff]
    %v1160 = vld [vmem:[#allocation2 + $0x1f8] sm:$0xff]
    %v1161 = vpack.c.bf16 %v1098, %v1097
    %v1162 = vpack.c.bf16 %v1100, %v1099
    %v1163 = vpack.c.bf16 %v1102, %v1101
    %v1164 = vpack.c.bf16 %v1104, %v1103
    %v1165 = vpack.c.bf16 %v1106, %v1105
    %v1166 = vpack.c.bf16 %v1108, %v1107
    %v1167 = vpack.c.bf16 %v1110, %v1109
    %v1168 = vpack.c.bf16 %v1112, %v1111
    %v1169 = vpack.c.bf16 %v1114, %v1113
    %v1170 = vpack.c.bf16 %v1116, %v1115
    %v1171 = vpack.c.bf16 %v1118, %v1117
    %v1172 = vpack.c.bf16 %v1120, %v1119
    %v1173 = vpack.c.bf16 %v1122, %v1121
    %v1174 = vpack.c.bf16 %v1124, %v1123
    %v1175 = vpack.c.bf16 %v1126, %v1125
    %v1176 = vpack.c.bf16 %v1128, %v1127
    %v1177 = vpack.c.bf16 %v1130, %v1129
    %v1178 = vpack.c.bf16 %v1132, %v1131
    %v1179 = vpack.c.bf16 %v1134, %v1133
    %v1180 = vpack.c.bf16 %v1136, %v1135
    %v1181 = vpack.c.bf16 %v1138, %v1137
    %v1182 = vpack.c.bf16 %v1140, %v1139
    %v1183 = vpack.c.bf16 %v1142, %v1141
    %v1184 = vpack.c.bf16 %v1144, %v1143
    %v1185 = vpack.c.bf16 %v1146, %v1145
    %v1186 = vpack.c.bf16 %v1148, %v1147
    %v1187 = vpack.c.bf16 %v1150, %v1149
    %v1188 = vpack.c.bf16 %v1152, %v1151
    %v1189 = vpack.c.bf16 %v1154, %v1153
    %v1190 = vpack.c.bf16 %v1156, %v1155
    %v1191 = vpack.c.bf16 %v1158, %v1157
    %v1192 = vpack.c.bf16 %v1160, %v1159
    %v1225 = vunpack.c.l.b16 %v1161
    %v1226 = vunpack.c.h.b16 %v1161
    %v1227 = vunpack.c.l.b16 %v1162
    %v1228 = vunpack.c.h.b16 %v1162
    %v1229 = vunpack.c.l.b16 %v1163
    %v1230 = vunpack.c.h.b16 %v1163
    %v1231 = vunpack.c.l.b16 %v1164
    %v1232 = vunpack.c.h.b16 %v1164
    %v1233 = vunpack.c.l.b16 %v1165
    %v1234 = vunpack.c.h.b16 %v1165
    %v1235 = vunpack.c.l.b16 %v1166
    %v1236 = vunpack.c.h.b16 %v1166
    %v1237 = vunpack.c.l.b16 %v1167
    %v1238 = vunpack.c.h.b16 %v1167
    %v1239 = vunpack.c.l.b16 %v1168
    %v1240 = vunpack.c.h.b16 %v1168
    %v1241 = vunpack.c.l.b16 %v1169
    %v1242 = vunpack.c.h.b16 %v1169
    %v1243 = vunpack.c.l.b16 %v1170
    %v1244 = vunpack.c.h.b16 %v1170
    %v1245 = vunpack.c.l.b16 %v1171
    %v1246 = vunpack.c.h.b16 %v1171
    %v1247 = vunpack.c.l.b16 %v1172
    %v1248 = vunpack.c.h.b16 %v1172
    %v1249 = vunpack.c.l.b16 %v1173
    %v1250 = vunpack.c.h.b16 %v1173
    %v1251 = vunpack.c.l.b16 %v1174
    %v1252 = vunpack.c.h.b16 %v1174
    %v1253 = vunpack.c.l.b16 %v1175
    %v1254 = vunpack.c.h.b16 %v1175
    %v1255 = vunpack.c.l.b16 %v1176
    %v1256 = vunpack.c.h.b16 %v1176
    %v1257 = vunpack.c.l.b16 %v1177
    %v1258 = vunpack.c.h.b16 %v1177
    %v1259 = vunpack.c.l.b16 %v1178
    %v1260 = vunpack.c.h.b16 %v1178
    %v1261 = vunpack.c.l.b16 %v1179
    %v1262 = vunpack.c.h.b16 %v1179
    %v1263 = vunpack.c.l.b16 %v1180
    %v1264 = vunpack.c.h.b16 %v1180
    %v1265 = vunpack.c.l.b16 %v1181
    %v1266 = vunpack.c.h.b16 %v1181
    %v1267 = vunpack.c.l.b16 %v1182
    %v1268 = vunpack.c.h.b16 %v1182
    %v1269 = vunpack.c.l.b16 %v1183
    %v1270 = vunpack.c.h.b16 %v1183
    %v1271 = vunpack.c.l.b16 %v1184
    %v1272 = vunpack.c.h.b16 %v1184
    %v1273 = vunpack.c.l.b16 %v1185
    %v1274 = vunpack.c.h.b16 %v1185
    %v1275 = vunpack.c.l.b16 %v1186
    %v1276 = vunpack.c.h.b16 %v1186
    %v1277 = vunpack.c.l.b16 %v1187
    %v1278 = vunpack.c.h.b16 %v1187
    %v1279 = vunpack.c.l.b16 %v1188
    %v1280 = vunpack.c.h.b16 %v1188
    %v1281 = vunpack.c.l.b16 %v1189
    %v1282 = vunpack.c.h.b16 %v1189
    %v1283 = vunpack.c.l.b16 %v1190
    %v1284 = vunpack.c.h.b16 %v1190
    %v1285 = vunpack.c.l.b16 %v1191
    %v1286 = vunpack.c.h.b16 %v1191
    %v1287 = vunpack.c.l.b16 %v1192
    %v1288 = vunpack.c.h.b16 %v1192
    %v1289 = vpack.c.b16 %v1225, %v1225
    %v1290 = vpack.c.b16 %v1226, %v1226
    %v1291 = vpack.c.b16 %v1227, %v1227
    %v1292 = vpack.c.b16 %v1228, %v1228
    %v1293 = vpack.c.b16 %v1229, %v1229
    %v1294 = vpack.c.b16 %v1230, %v1230
    %v1295 = vpack.c.b16 %v1231, %v1231
    %v1296 = vpack.c.b16 %v1232, %v1232
    %v1297 = vpack.c.b16 %v1233, %v1233
    %v1298 = vpack.c.b16 %v1234, %v1234
    %v1299 = vpack.c.b16 %v1235, %v1235
    %v1300 = vpack.c.b16 %v1236, %v1236
    %v1301 = vpack.c.b16 %v1237, %v1237
    %v1302 = vpack.c.b16 %v1238, %v1238
    %v1303 = vpack.c.b16 %v1239, %v1239
    %v1304 = vpack.c.b16 %v1240, %v1240
    %v1305 = vpack.c.b16 %v1241, %v1241
    %v1306 = vpack.c.b16 %v1242, %v1242
    %v1307 = vpack.c.b16 %v1243, %v1243
    %v1308 = vpack.c.b16 %v1244, %v1244
    %v1309 = vpack.c.b16 %v1245, %v1245
    %v1310 = vpack.c.b16 %v1246, %v1246
    %v1311 = vpack.c.b16 %v1247, %v1247
    %v1312 = vpack.c.b16 %v1248, %v1248
    %v1313 = vpack.c.b16 %v1249, %v1249
    %v1314 = vpack.c.b16 %v1250, %v1250
    %v1315 = vpack.c.b16 %v1251, %v1251
    %v1316 = vpack.c.b16 %v1252, %v1252
    %v1317 = vpack.c.b16 %v1253, %v1253
    %v1318 = vpack.c.b16 %v1254, %v1254
    %v1319 = vpack.c.b16 %v1255, %v1255
    %v1320 = vpack.c.b16 %v1256, %v1256
    %v1321 = vpack.c.b16 %v1257, %v1257
    %v1322 = vpack.c.b16 %v1258, %v1258
    %v1323 = vpack.c.b16 %v1259, %v1259
    %v1324 = vpack.c.b16 %v1260, %v1260
    %v1325 = vpack.c.b16 %v1261, %v1261
    %v1326 = vpack.c.b16 %v1262, %v1262
    %v1327 = vpack.c.b16 %v1263, %v1263
    %v1328 = vpack.c.b16 %v1264, %v1264
    %v1329 = vpack.c.b16 %v1265, %v1265
    %v1330 = vpack.c.b16 %v1266, %v1266
    %v1331 = vpack.c.b16 %v1267, %v1267
    %v1332 = vpack.c.b16 %v1268, %v1268
    %v1333 = vpack.c.b16 %v1269, %v1269
    %v1334 = vpack.c.b16 %v1270, %v1270
    %v1335 = vpack.c.b16 %v1271, %v1271
    %v1336 = vpack.c.b16 %v1272, %v1272
    %v1337 = vpack.c.b16 %v1273, %v1273
    %v1338 = vpack.c.b16 %v1274, %v1274
    %v1339 = vpack.c.b16 %v1275, %v1275
    %v1340 = vpack.c.b16 %v1276, %v1276
    %v1341 = vpack.c.b16 %v1277, %v1277
    %v1342 = vpack.c.b16 %v1278, %v1278
    %v1343 = vpack.c.b16 %v1279, %v1279
    %v1344 = vpack.c.b16 %v1280, %v1280
    %v1345 = vpack.c.b16 %v1281, %v1281
    %v1346 = vpack.c.b16 %v1282, %v1282
    %v1347 = vpack.c.b16 %v1283, %v1283
    %v1348 = vpack.c.b16 %v1284, %v1284
    %v1349 = vpack.c.b16 %v1285, %v1285
    %v1350 = vpack.c.b16 %v1286, %v1286
    %v1351 = vpack.c.b16 %v1287, %v1287
    %v1352 = vpack.c.b16 %v1288, %v1288
    %vm1417 = vcmask 93184
    %1418 = vst.msk [vmem:[%s3] sm:$0xf] %vm1417, %v1289
    %1419 = vst.msk [vmem:[%s3 + $0x4] sm:$0xf] %vm1417, %v1290
    %1420 = vst.msk [vmem:[%s3 + $0x8] sm:$0xf] %vm1417, %v1291
    %1421 = vst.msk [vmem:[%s3 + $0xc] sm:$0xf] %vm1417, %v1292
    %1422 = vst.msk [vmem:[%s3 + $0x10] sm:$0xf] %vm1417, %v1293
    %1423 = vst.msk [vmem:[%s3 + $0x14] sm:$0xf] %vm1417, %v1294
    %1424 = vst.msk [vmem:[%s3 + $0x18] sm:$0xf] %vm1417, %v1295
    %1425 = vst.msk [vmem:[%s3 + $0x1c] sm:$0xf] %vm1417, %v1296
    %1426 = vst.msk [vmem:[%s3 + $0x20] sm:$0xf] %vm1417, %v1297
    %1427 = vst.msk [vmem:[%s3 + $0x24] sm:$0xf] %vm1417, %v1298
    %1428 = vst.msk [vmem:[%s3 + $0x28] sm:$0xf] %vm1417, %v1299
    %1429 = vst.msk [vmem:[%s3 + $0x2c] sm:$0xf] %vm1417, %v1300
    %1430 = vst.msk [vmem:[%s3 + $0x30] sm:$0xf] %vm1417, %v1301
    %1431 = vst.msk [vmem:[%s3 + $0x34] sm:$0xf] %vm1417, %v1302
    %1432 = vst.msk [vmem:[%s3 + $0x38] sm:$0xf] %vm1417, %v1303
    %1433 = vst.msk [vmem:[%s3 + $0x3c] sm:$0xf] %vm1417, %v1304
    %1434 = vst.msk [vmem:[%s3 + $0x40] sm:$0xf] %vm1417, %v1305
    %1435 = vst.msk [vmem:[%s3 + $0x44] sm:$0xf] %vm1417, %v1306
    %1436 = vst.msk [vmem:[%s3 + $0x48] sm:$0xf] %vm1417, %v1307
    %1437 = vst.msk [vmem:[%s3 + $0x4c] sm:$0xf] %vm1417, %v1308
    %1438 = vst.msk [vmem:[%s3 + $0x50] sm:$0xf] %vm1417, %v1309
    %1439 = vst.msk [vmem:[%s3 + $0x54] sm:$0xf] %vm1417, %v1310
    %1440 = vst.msk [vmem:[%s3 + $0x58] sm:$0xf] %vm1417, %v1311
    %1441 = vst.msk [vmem:[%s3 + $0x5c] sm:$0xf] %vm1417, %v1312
    %1442 = vst.msk [vmem:[%s3 + $0x60] sm:$0xf] %vm1417, %v1313
    %1443 = vst.msk [vmem:[%s3 + $0x64] sm:$0xf] %vm1417, %v1314
    %1444 = vst.msk [vmem:[%s3 + $0x68] sm:$0xf] %vm1417, %v1315
    %1445 = vst.msk [vmem:[%s3 + $0x6c] sm:$0xf] %vm1417, %v1316
    %1446 = vst.msk [vmem:[%s3 + $0x70] sm:$0xf] %vm1417, %v1317
    %1447 = vst.msk [vmem:[%s3 + $0x74] sm:$0xf] %vm1417, %v1318
    %1448 = vst.msk [vmem:[%s3 + $0x78] sm:$0xf] %vm1417, %v1319
    %1449 = vst.msk [vmem:[%s3 + $0x7c] sm:$0xf] %vm1417, %v1320
    %1450 = vst.msk [vmem:[%s3 + $0x80] sm:$0xf] %vm1417, %v1321
    %1451 = vst.msk [vmem:[%s3 + $0x84] sm:$0xf] %vm1417, %v1322
    %1452 = vst.msk [vmem:[%s3 + $0x88] sm:$0xf] %vm1417, %v1323
    %1453 = vst.msk [vmem:[%s3 + $0x8c] sm:$0xf] %vm1417, %v1324
    %1454 = vst.msk [vmem:[%s3 + $0x90] sm:$0xf] %vm1417, %v1325
    %1455 = vst.msk [vmem:[%s3 + $0x94] sm:$0xf] %vm1417, %v1326
    %1456 = vst.msk [vmem:[%s3 + $0x98] sm:$0xf] %vm1417, %v1327
    %1457 = vst.msk [vmem:[%s3 + $0x9c] sm:$0xf] %vm1417, %v1328
    %1458 = vst.msk [vmem:[%s3 + $0xa0] sm:$0xf] %vm1417, %v1329
    %1459 = vst.msk [vmem:[%s3 + $0xa4] sm:$0xf] %vm1417, %v1330
    %1460 = vst.msk [vmem:[%s3 + $0xa8] sm:$0xf] %vm1417, %v1331
    %1461 = vst.msk [vmem:[%s3 + $0xac] sm:$0xf] %vm1417, %v1332
    %1462 = vst.msk [vmem:[%s3 + $0xb0] sm:$0xf] %vm1417, %v1333
    %1463 = vst.msk [vmem:[%s3 + $0xb4] sm:$0xf] %vm1417, %v1334
    %1464 = vst.msk [vmem:[%s3 + $0xb8] sm:$0xf] %vm1417, %v1335
    %1465 = vst.msk [vmem:[%s3 + $0xbc] sm:$0xf] %vm1417, %v1336
    %1466 = vst.msk [vmem:[%s3 + $0xc0] sm:$0xf] %vm1417, %v1337
    %1467 = vst.msk [vmem:[%s3 + $0xc4] sm:$0xf] %vm1417, %v1338
    %1468 = vst.msk [vmem:[%s3 + $0xc8] sm:$0xf] %vm1417, %v1339
    %1469 = vst.msk [vmem:[%s3 + $0xcc] sm:$0xf] %vm1417, %v1340
    %1470 = vst.msk [vmem:[%s3 + $0xd0] sm:$0xf] %vm1417, %v1341
    %1471 = vst.msk [vmem:[%s3 + $0xd4] sm:$0xf] %vm1417, %v1342
    %1472 = vst.msk [vmem:[%s3 + $0xd8] sm:$0xf] %vm1417, %v1343
    %1473 = vst.msk [vmem:[%s3 + $0xdc] sm:$0xf] %vm1417, %v1344
    %1474 = vst.msk [vmem:[%s3 + $0xe0] sm:$0xf] %vm1417, %v1345
    %1475 = vst.msk [vmem:[%s3 + $0xe4] sm:$0xf] %vm1417, %v1346
    %1476 = vst.msk [vmem:[%s3 + $0xe8] sm:$0xf] %vm1417, %v1347
    %1477 = vst.msk [vmem:[%s3 + $0xec] sm:$0xf] %vm1417, %v1348
    %1478 = vst.msk [vmem:[%s3 + $0xf0] sm:$0xf] %vm1417, %v1349
    %1479 = vst.msk [vmem:[%s3 + $0xf4] sm:$0xf] %vm1417, %v1350
    %1480 = vst.msk [vmem:[%s3 + $0xf8] sm:$0xf] %vm1417, %v1351
    %1481 = vst.msk [vmem:[%s3 + $0xfc] sm:$0xf] %vm1417, %v1352
  $region21: #{unet_generator.19} parent=0 // pred_fallthru
    _
  // Predicated region
  $region22: #{unet_generator.19} parent=0 // pred_check
    _
  $region23: #{unet_generator.19} parent=0 // pred_check_branch
    %1483 = sbr.rel (0) target = $region25
  $region24: #{unet_generator.19} parent=0 // pred_region
    _
  $region25: #{unet_generator.19} parent=0 // pred_fallthru
    _
  // Predicated region
  $region26: #{unet_generator.19} parent=0 // pred_check
    _
  $region27: #{unet_generator.19} parent=0 // pred_check_branch
    %1485 = sbr.rel (0) target = $region29
  $region28: #{unet_generator.19} parent=0 // pred_region
    _
  $region29: #{unet_generator.19} parent=0 // pred_fallthru
    _

</llo_original>
